<compile_context>
chip_gen: v6e
topology: v6e:2x2x1
jax: 0.10.0
libtpu: 0.0.40
codegen_flags: <defaults>
</compile_context>

<pallas_src>
import functools

import jax
import jax.numpy as jnp
from jax.experimental import pallas as pl
from jax.experimental.pallas import tpu as pltpu


# ----------------------------------------------------------------------------
# Helpers
# ----------------------------------------------------------------------------
def _round_up(x, m):
    return (x + m - 1) // m * m


def _pick_tile(hw_pad):
    for t in (512, 256, 128):
        if hw_pad % t == 0:
            return t
    return hw_pad


_CPARAMS = pltpu.CompilerParams(
    dimension_semantics=("parallel", "parallel"),
    vmem_limit_bytes=32 * 1024 * 1024,
)


# ----------------------------------------------------------------------------
# Pallas kernels
# ----------------------------------------------------------------------------
def _chain_kernel(x_ref, win_ref, w1e_ref, w2e_ref, w1d_ref, w2d_ref,
                  wra_ref, wrb_ref, o_ref, *, deep, u_res_layers):
    """Fused input 1x1 conv + encoder + decoder (with skip fusion).

    Layout: activations are (channels, spatial_tile) so the big spatial dim is
    on the 128-lane axis.  Weights arrive in bf16; dots accumulate in f32.
    """
    cdt = jnp.bfloat16

    def mm(w, x):
        # w: bf16 (out_c, in_c); x: f32 (in_c, THW) -> f32 (out_c, THW)
        return jnp.dot(w, x.astype(cdt), preferred_element_type=jnp.float32)

    def vim_block(x, w1, w2):
        # TODO(synk): ViMBlock source (Vision-Mamba SSM token mixer, head=4,
        # Bi flag) was not provided; modeled as a residual channel MLP
        # x + W2 @ gelu(W1 @ x), fused in-kernel.
        h = jax.nn.gelu(mm(w1, x))
        return x + mm(w2, h)

    x = mm(win_ref[...], x_ref[0])                       # input 1x1 conv

    skips = {}
    for i in range(deep):                                # encoder
        x = vim_block(x, w1e_ref[i], w2e_ref[i])
        if i in u_res_layers:                            # keep only used skips
            skips[i] = x

    for i in range(deep - 1, -1, -1):                    # decoder
        if i in u_res_layers:
            r = u_res_layers.index(i)
            # torch: conv1x1(cat((en[i], x), dim=1)) == Wa @ en + Wb @ x
            x = mm(wra_ref[r], skips[i]) + mm(wrb_ref[r], x)
        x = vim_block(x, w1d_ref[i], w2d_ref[i])

    o_ref[0] = x


def _conv_out_kernel(p_ref, w_ref, o_ref):
    # Output 3x3 conv as a single (Cout, 9C) @ (9C, THW) matmul, lane-dense.
    o_ref[0] = jnp.dot(w_ref[...], p_ref[0].astype(jnp.bfloat16),
                       preferred_element_type=jnp.float32)


# ----------------------------------------------------------------------------
# pallas_call wrappers
# ----------------------------------------------------------------------------
def _run_chain(x_flat, params, deep, u_res_layers, thw):
    """x_flat: (N, Cin, HWp) f32  ->  (N, C, HWp) f32."""
    N, Cin, HWp = x_flat.shape
    C = params["win"].shape[0]
    assert HWp % thw == 0

    kernel = functools.partial(_chain_kernel, deep=deep,
                               u_res_layers=tuple(u_res_layers))

    return pl.pallas_call(
        kernel,
        out_shape=jax.ShapeDtypeStruct((N, C, HWp), jnp.float32),
        grid=(N, HWp // thw),
        in_specs=[
            pl.BlockSpec((1, Cin, thw), lambda n, t: (n, 0, t)),
            pl.BlockSpec(params["win"].shape, lambda n, t: (0, 0)),
            pl.BlockSpec(params["w1e"].shape, lambda n, t: (0, 0, 0)),
            pl.BlockSpec(params["w2e"].shape, lambda n, t: (0, 0, 0)),
            pl.BlockSpec(params["w1d"].shape, lambda n, t: (0, 0, 0)),
            pl.BlockSpec(params["w2d"].shape, lambda n, t: (0, 0, 0)),
            pl.BlockSpec(params["wra"].shape, lambda n, t: (0, 0, 0)),
            pl.BlockSpec(params["wrb"].shape, lambda n, t: (0, 0, 0)),
        ],
        out_specs=pl.BlockSpec((1, C, thw), lambda n, t: (n, 0, t)),
        compiler_params=_CPARAMS,
    )(x_flat, params["win"], params["w1e"], params["w2e"],
      params["w1d"], params["w2d"], params["wra"], params["wrb"])


def _conv3x3_out(x_nchw, wmat):
    """3x3 conv, padding=1, no bias.  x: (N, C, H, W); wmat: (Cout, 9C) bf16."""
    N, C, H, W = x_nchw.shape
    Cout = wmat.shape[0]
    HW = H * W

    xp = jnp.pad(x_nchw, ((0, 0), (0, 0), (1, 1), (1, 1)))
    taps = [xp[:, :, dy:dy + H, dx:dx + W]
            for dy in range(3) for dx in range(3)]                  # 9 x (N,C,H,W)
    patches = jnp.concatenate(taps, axis=1).reshape(N, 9 * C, HW)   # (N, 9C, HW)

    HWp = _round_up(HW, 128)
    if HWp != HW:
        patches = jnp.pad(patches, ((0, 0), (0, 0), (0, HWp - HW)))
    thw = _pick_tile(HWp)

    out = pl.pallas_call(
        _conv_out_kernel,
        out_shape=jax.ShapeDtypeStruct((N, Cout, HWp), jnp.float32),
        grid=(N, HWp // thw),
        in_specs=[pl.BlockSpec((1, 9 * C, thw), lambda n, t: (n, 0, t)),
                  pl.BlockSpec((Cout, 9 * C), lambda n, t: (0, 0))],
        out_specs=pl.BlockSpec((1, Cout, thw), lambda n, t: (n, 0, t)),
        compiler_params=_CPARAMS,
    )(patches, wmat)

    return out[:, :, :HW].reshape(N, Cout, H, W)


# ----------------------------------------------------------------------------
# Parameter construction (deterministic, synthetic; bf16 storage)
# ----------------------------------------------------------------------------
def init_params(key, cin, cout, dim=96, patch_size=16,
                u_res_layers=(2, 4, 6, 8)):
    u_res_layers = tuple(u_res_layers)
    deep = max(u_res_layers) + 2
    cmid = max(dim // patch_size, int(cout ** 0.5) + 1)
    n_res = len(u_res_layers)
    wdt = jnp.bfloat16

    def dense(k, fan_in, shape):
        w = jax.random.normal(k, shape, jnp.float32) / jnp.sqrt(float(fan_in))
        return w.astype(wdt)

    ks = jax.random.split(key, 8)
    params = {
        # input_layer: torch Conv2d(cin, cmid, 1) weight (cmid, cin, 1, 1)
        "win":  dense(ks[0], cin, (cmid, cin)),
        # ViMBlock placeholder weights, stacked over layers (encoder/decoder)
        "w1e":  dense(ks[1], cmid, (deep, dim, cmid)),
        "w2e":  dense(ks[2], dim,  (deep, cmid, dim)),
        "w1d":  dense(ks[3], cmid, (deep, dim, cmid)),
        "w2d":  dense(ks[4], dim,  (deep, cmid, dim)),
        # residual Conv2d(2*cmid, cmid, 1): split into [skip-half, x-half]
        "wra":  dense(ks[5], 2 * cmid, (n_res, cmid, cmid)),
        "wrb":  dense(ks[6], 2 * cmid, (n_res, cmid, cmid)),
        # output Conv2d(cmid, cout, 3): (Cout, 9*cmid), tap-major columns
        "wout": dense(ks[7], 9 * cmid, (cout, 9 * cmid)),
    }
    cfg = {"deep": deep, "u_res_layers": u_res_layers, "cmid": cmid}
    return params, cfg


# ----------------------------------------------------------------------------
# Full forward pass (mirrors ViMUnet.forward); config is static for jit
# ----------------------------------------------------------------------------
@functools.partial(jax.jit, static_argnames=("deep", "u_res_layers"))
def vimunet_forward(x_nchw, params, *, deep, u_res_layers):
    N, Cin, H, W = x_nchw.shape
    C = params["win"].shape[0]
    HW = H * W
    HWp = _round_up(HW, 128)

    xf = x_nchw.reshape(N, Cin, HW)
    if HWp != HW:
        xf = jnp.pad(xf, ((0, 0), (0, 0), (0, HWp - HW)))
    thw = _pick_tile(HWp)

    mid = _run_chain(xf, params, deep, tuple(u_res_layers), thw)   # (N, C, HWp)
    mid = mid[:, :, :HW].reshape(N, C, H, W)

    return _conv3x3_out(mid, params["wout"])                       # (N, Cout, H, W)


# ----------------------------------------------------------------------------
if __name__ == "__main__":
    key = jax.random.PRNGKey(0)
    kx, kp = jax.random.split(key)

    # Module config: cin=4, cout=4, dim=96, head=4, patch_size=16,
    # u_res_layers=[2,4,6,8], Bi=False  ->  cmid=6, deep=10
    x = jax.random.normal(kx, (2, 4, 16, 16), jnp.float32)   # NCHW like torch
    params, cfg = init_params(kp, cin=4, cout=4, dim=96, patch_size=16,
                              u_res_layers=(2, 4, 6, 8))

    y = vimunet_forward(x, params, deep=cfg["deep"],
                        u_res_layers=cfg["u_res_layers"])
    jax.block_until_ready(y)

    assert y.shape == (2, 4, 16, 16), y.shape
    assert y.dtype == jnp.float32
    assert bool(jnp.all(jnp.isfinite(y)))
    print("KERNEL_OK")
</pallas_src>

<mosaic_0001>
module attributes {stable_mosaic.version = 11 : i64} {
  func.func @_chain_kernel(%arg0: i32, %arg1: i32, %arg2: memref<1x4x256xf32, #tpu.memory_space<vmem>>, %arg3: memref<6x4xbf16, #tpu.memory_space<vmem>>, %arg4: memref<10x96x6xbf16, #tpu.memory_space<vmem>>, %arg5: memref<10x6x96xbf16, #tpu.memory_space<vmem>>, %arg6: memref<10x96x6xbf16, #tpu.memory_space<vmem>>, %arg7: memref<10x6x96xbf16, #tpu.memory_space<vmem>>, %arg8: memref<4x6x6xbf16, #tpu.memory_space<vmem>>, %arg9: memref<4x6x6xbf16, #tpu.memory_space<vmem>>, %arg10: memref<1x6x256xf32, #tpu.memory_space<vmem>>) attributes {dimension_semantics = [#tpu.dimension_semantics<parallel>, #tpu.dimension_semantics<parallel>], iteration_bounds = array<i64: 2, 1>, scalar_prefetch = 0 : i64, scratch_operands = 0 : i64, tpu.core_type = #tpu.core_type<tc>, window_params = [{transform_indices = @transform_0, window_bounds = array<i64: 1, 4, 256>}, {pipeline_mode = #tpu.pipeline_mode<synchronous>, transform_indices = @transform_1, window_bounds = array<i64: 6, 4>}, {pipeline_mode = #tpu.pipeline_mode<synchronous>, transform_indices = @transform_2, window_bounds = array<i64: 10, 96, 6>}, {pipeline_mode = #tpu.pipeline_mode<synchronous>, transform_indices = @transform_3, window_bounds = array<i64: 10, 6, 96>}, {pipeline_mode = #tpu.pipeline_mode<synchronous>, transform_indices = @transform_4, window_bounds = array<i64: 10, 96, 6>}, {pipeline_mode = #tpu.pipeline_mode<synchronous>, transform_indices = @transform_5, window_bounds = array<i64: 10, 6, 96>}, {pipeline_mode = #tpu.pipeline_mode<synchronous>, transform_indices = @transform_6, window_bounds = array<i64: 4, 6, 6>}, {pipeline_mode = #tpu.pipeline_mode<synchronous>, transform_indices = @transform_7, window_bounds = array<i64: 4, 6, 6>}, {transform_indices = @transform_8, window_bounds = array<i64: 1, 6, 256>}]} {
    %c0 = arith.constant 0 : index
    %c0_0 = arith.constant 0 : index
    %0 = vector.load %arg3[%c0, %c0_0] : memref<6x4xbf16, #tpu.memory_space<vmem>>, vector<6x4xbf16>
    %c0_1 = arith.constant 0 : index
    %c0_2 = arith.constant 0 : index
    %c0_3 = arith.constant 0 : index
    %1 = vector.load %arg2[%c0_1, %c0_2, %c0_3] : memref<1x4x256xf32, #tpu.memory_space<vmem>>, vector<1x4x256xf32>
    %2 = vector.shape_cast %1 : vector<1x4x256xf32> to vector<4x256xf32>
    %3 = arith.truncf %2 : vector<4x256xf32> to vector<4x256xbf16>
    %cst = arith.constant dense<0.000000e+00> : vector<6x256xf32>
    %4 = tpu.matmul %0, %3, %cst {dimension_numbers = #tpu.dot_dimension_numbers<[1], [0], [0], [1], [0, 0, 1, 1], [], []>} : vector<6x4xbf16>, vector<4x256xbf16>, vector<6x256xf32> -> vector<6x256xf32>
    %c0_4 = arith.constant 0 : index
    %c0_5 = arith.constant 0 : index
    %c0_6 = arith.constant 0 : index
    %5 = vector.load %arg4[%c0_4, %c0_5, %c0_6] : memref<10x96x6xbf16, #tpu.memory_space<vmem>>, vector<1x96x6xbf16>
    %6 = vector.shape_cast %5 : vector<1x96x6xbf16> to vector<96x6xbf16>
    %c0_7 = arith.constant 0 : index
    %c0_8 = arith.constant 0 : index
    %c0_9 = arith.constant 0 : index
    %7 = vector.load %arg5[%c0_7, %c0_8, %c0_9] : memref<10x6x96xbf16, #tpu.memory_space<vmem>>, vector<1x6x96xbf16>
    %8 = vector.shape_cast %7 : vector<1x6x96xbf16> to vector<6x96xbf16>
    %9 = arith.truncf %4 : vector<6x256xf32> to vector<6x256xbf16>
    %cst_10 = arith.constant dense<0.000000e+00> : vector<96x256xf32>
    %10 = tpu.matmul %6, %9, %cst_10 {dimension_numbers = #tpu.dot_dimension_numbers<[1], [0], [0], [1], [0, 0, 1, 1], [], []>} : vector<96x6xbf16>, vector<6x256xbf16>, vector<96x256xf32> -> vector<96x256xf32>
    %11 = arith.mulf %10, %10 : vector<96x256xf32>
    %12 = arith.mulf %10, %11 : vector<96x256xf32>
    %cst_11 = arith.constant 4.471500e-02 : f32
    %13 = vector.broadcast %cst_11 : f32 to vector<96x256xf32>
    %14 = arith.mulf %13, %12 : vector<96x256xf32>
    %15 = arith.addf %10, %14 : vector<96x256xf32>
    %cst_12 = arith.constant 0.797884583 : f32
    %16 = vector.broadcast %cst_12 : f32 to vector<96x256xf32>
    %17 = arith.mulf %16, %15 : vector<96x256xf32>
    %18 = math.tanh %17 : vector<96x256xf32>
    %cst_13 = arith.constant 1.000000e+00 : f32
    %19 = vector.broadcast %cst_13 : f32 to vector<96x256xf32>
    %20 = arith.addf %19, %18 : vector<96x256xf32>
    %cst_14 = arith.constant 5.000000e-01 : f32
    %21 = vector.broadcast %cst_14 : f32 to vector<96x256xf32>
    %22 = arith.mulf %21, %20 : vector<96x256xf32>
    %23 = arith.mulf %10, %22 : vector<96x256xf32>
    %24 = arith.truncf %23 : vector<96x256xf32> to vector<96x256xbf16>
    %cst_15 = arith.constant dense<0.000000e+00> : vector<6x256xf32>
    %25 = tpu.matmul %8, %24, %cst_15 {dimension_numbers = #tpu.dot_dimension_numbers<[1], [0], [0], [1], [0, 0, 1, 1], [], []>} : vector<6x96xbf16>, vector<96x256xbf16>, vector<6x256xf32> -> vector<6x256xf32>
    %26 = arith.addf %4, %25 : vector<6x256xf32>
    %c1 = arith.constant 1 : index
    %c0_16 = arith.constant 0 : index
    %c0_17 = arith.constant 0 : index
    %27 = vector.load %arg4[%c1, %c0_16, %c0_17] : memref<10x96x6xbf16, #tpu.memory_space<vmem>>, vector<1x96x6xbf16>
    %28 = vector.shape_cast %27 : vector<1x96x6xbf16> to vector<96x6xbf16>
    %c1_18 = arith.constant 1 : index
    %c0_19 = arith.constant 0 : index
    %c0_20 = arith.constant 0 : index
    %29 = vector.load %arg5[%c1_18, %c0_19, %c0_20] : memref<10x6x96xbf16, #tpu.memory_space<vmem>>, vector<1x6x96xbf16>
    %30 = vector.shape_cast %29 : vector<1x6x96xbf16> to vector<6x96xbf16>
    %31 = arith.truncf %26 : vector<6x256xf32> to vector<6x256xbf16>
    %cst_21 = arith.constant dense<0.000000e+00> : vector<96x256xf32>
    %32 = tpu.matmul %28, %31, %cst_21 {dimension_numbers = #tpu.dot_dimension_numbers<[1], [0], [0], [1], [0, 0, 1, 1], [], []>} : vector<96x6xbf16>, vector<6x256xbf16>, vector<96x256xf32> -> vector<96x256xf32>
    %33 = arith.mulf %32, %32 : vector<96x256xf32>
    %34 = arith.mulf %32, %33 : vector<96x256xf32>
    %cst_22 = arith.constant 4.471500e-02 : f32
    %35 = vector.broadcast %cst_22 : f32 to vector<96x256xf32>
    %36 = arith.mulf %35, %34 : vector<96x256xf32>
    %37 = arith.addf %32, %36 : vector<96x256xf32>
    %cst_23 = arith.constant 0.797884583 : f32
    %38 = vector.broadcast %cst_23 : f32 to vector<96x256xf32>
    %39 = arith.mulf %38, %37 : vector<96x256xf32>
    %40 = math.tanh %39 : vector<96x256xf32>
    %cst_24 = arith.constant 1.000000e+00 : f32
    %41 = vector.broadcast %cst_24 : f32 to vector<96x256xf32>
    %42 = arith.addf %41, %40 : vector<96x256xf32>
    %cst_25 = arith.constant 5.000000e-01 : f32
    %43 = vector.broadcast %cst_25 : f32 to vector<96x256xf32>
    %44 = arith.mulf %43, %42 : vector<96x256xf32>
    %45 = arith.mulf %32, %44 : vector<96x256xf32>
    %46 = arith.truncf %45 : vector<96x256xf32> to vector<96x256xbf16>
    %cst_26 = arith.constant dense<0.000000e+00> : vector<6x256xf32>
    %47 = tpu.matmul %30, %46, %cst_26 {dimension_numbers = #tpu.dot_dimension_numbers<[1], [0], [0], [1], [0, 0, 1, 1], [], []>} : vector<6x96xbf16>, vector<96x256xbf16>, vector<6x256xf32> -> vector<6x256xf32>
    %48 = arith.addf %26, %47 : vector<6x256xf32>
    %c2 = arith.constant 2 : index
    %c0_27 = arith.constant 0 : index
    %c0_28 = arith.constant 0 : index
    %49 = vector.load %arg4[%c2, %c0_27, %c0_28] : memref<10x96x6xbf16, #tpu.memory_space<vmem>>, vector<1x96x6xbf16>
    %50 = vector.shape_cast %49 : vector<1x96x6xbf16> to vector<96x6xbf16>
    %c2_29 = arith.constant 2 : index
    %c0_30 = arith.constant 0 : index
    %c0_31 = arith.constant 0 : index
    %51 = vector.load %arg5[%c2_29, %c0_30, %c0_31] : memref<10x6x96xbf16, #tpu.memory_space<vmem>>, vector<1x6x96xbf16>
    %52 = vector.shape_cast %51 : vector<1x6x96xbf16> to vector<6x96xbf16>
    %53 = arith.truncf %48 : vector<6x256xf32> to vector<6x256xbf16>
    %cst_32 = arith.constant dense<0.000000e+00> : vector<96x256xf32>
    %54 = tpu.matmul %50, %53, %cst_32 {dimension_numbers = #tpu.dot_dimension_numbers<[1], [0], [0], [1], [0, 0, 1, 1], [], []>} : vector<96x6xbf16>, vector<6x256xbf16>, vector<96x256xf32> -> vector<96x256xf32>
    %55 = arith.mulf %54, %54 : vector<96x256xf32>
    %56 = arith.mulf %54, %55 : vector<96x256xf32>
    %cst_33 = arith.constant 4.471500e-02 : f32
    %57 = vector.broadcast %cst_33 : f32 to vector<96x256xf32>
    %58 = arith.mulf %57, %56 : vector<96x256xf32>
    %59 = arith.addf %54, %58 : vector<96x256xf32>
    %cst_34 = arith.constant 0.797884583 : f32
    %60 = vector.broadcast %cst_34 : f32 to vector<96x256xf32>
    %61 = arith.mulf %60, %59 : vector<96x256xf32>
    %62 = math.tanh %61 : vector<96x256xf32>
    %cst_35 = arith.constant 1.000000e+00 : f32
    %63 = vector.broadcast %cst_35 : f32 to vector<96x256xf32>
    %64 = arith.addf %63, %62 : vector<96x256xf32>
    %cst_36 = arith.constant 5.000000e-01 : f32
    %65 = vector.broadcast %cst_36 : f32 to vector<96x256xf32>
    %66 = arith.mulf %65, %64 : vector<96x256xf32>
    %67 = arith.mulf %54, %66 : vector<96x256xf32>
    %68 = arith.truncf %67 : vector<96x256xf32> to vector<96x256xbf16>
    %cst_37 = arith.constant dense<0.000000e+00> : vector<6x256xf32>
    %69 = tpu.matmul %52, %68, %cst_37 {dimension_numbers = #tpu.dot_dimension_numbers<[1], [0], [0], [1], [0, 0, 1, 1], [], []>} : vector<6x96xbf16>, vector<96x256xbf16>, vector<6x256xf32> -> vector<6x256xf32>
    %70 = arith.addf %48, %69 : vector<6x256xf32>
    %c3 = arith.constant 3 : index
    %c0_38 = arith.constant 0 : index
    %c0_39 = arith.constant 0 : index
    %71 = vector.load %arg4[%c3, %c0_38, %c0_39] : memref<10x96x6xbf16, #tpu.memory_space<vmem>>, vector<1x96x6xbf16>
    %72 = vector.shape_cast %71 : vector<1x96x6xbf16> to vector<96x6xbf16>
    %c3_40 = arith.constant 3 : index
    %c0_41 = arith.constant 0 : index
    %c0_42 = arith.constant 0 : index
    %73 = vector.load %arg5[%c3_40, %c0_41, %c0_42] : memref<10x6x96xbf16, #tpu.memory_space<vmem>>, vector<1x6x96xbf16>
    %74 = vector.shape_cast %73 : vector<1x6x96xbf16> to vector<6x96xbf16>
    %75 = arith.truncf %70 : vector<6x256xf32> to vector<6x256xbf16>
    %cst_43 = arith.constant dense<0.000000e+00> : vector<96x256xf32>
    %76 = tpu.matmul %72, %75, %cst_43 {dimension_numbers = #tpu.dot_dimension_numbers<[1], [0], [0], [1], [0, 0, 1, 1], [], []>} : vector<96x6xbf16>, vector<6x256xbf16>, vector<96x256xf32> -> vector<96x256xf32>
    %77 = arith.mulf %76, %76 : vector<96x256xf32>
    %78 = arith.mulf %76, %77 : vector<96x256xf32>
    %cst_44 = arith.constant 4.471500e-02 : f32
    %79 = vector.broadcast %cst_44 : f32 to vector<96x256xf32>
    %80 = arith.mulf %79, %78 : vector<96x256xf32>
    %81 = arith.addf %76, %80 : vector<96x256xf32>
    %cst_45 = arith.constant 0.797884583 : f32
    %82 = vector.broadcast %cst_45 : f32 to vector<96x256xf32>
    %83 = arith.mulf %82, %81 : vector<96x256xf32>
    %84 = math.tanh %83 : vector<96x256xf32>
    %cst_46 = arith.constant 1.000000e+00 : f32
    %85 = vector.broadcast %cst_46 : f32 to vector<96x256xf32>
    %86 = arith.addf %85, %84 : vector<96x256xf32>
    %cst_47 = arith.constant 5.000000e-01 : f32
    %87 = vector.broadcast %cst_47 : f32 to vector<96x256xf32>
    %88 = arith.mulf %87, %86 : vector<96x256xf32>
    %89 = arith.mulf %76, %88 : vector<96x256xf32>
    %90 = arith.truncf %89 : vector<96x256xf32> to vector<96x256xbf16>
    %cst_48 = arith.constant dense<0.000000e+00> : vector<6x256xf32>
    %91 = tpu.matmul %74, %90, %cst_48 {dimension_numbers = #tpu.dot_dimension_numbers<[1], [0], [0], [1], [0, 0, 1, 1], [], []>} : vector<6x96xbf16>, vector<96x256xbf16>, vector<6x256xf32> -> vector<6x256xf32>
    %92 = arith.addf %70, %91 : vector<6x256xf32>
    %c4 = arith.constant 4 : index
    %c0_49 = arith.constant 0 : index
    %c0_50 = arith.constant 0 : index
    %93 = vector.load %arg4[%c4, %c0_49, %c0_50] : memref<10x96x6xbf16, #tpu.memory_space<vmem>>, vector<1x96x6xbf16>
    %94 = vector.shape_cast %93 : vector<1x96x6xbf16> to vector<96x6xbf16>
    %c4_51 = arith.constant 4 : index
    %c0_52 = arith.constant 0 : index
    %c0_53 = arith.constant 0 : index
    %95 = vector.load %arg5[%c4_51, %c0_52, %c0_53] : memref<10x6x96xbf16, #tpu.memory_space<vmem>>, vector<1x6x96xbf16>
    %96 = vector.shape_cast %95 : vector<1x6x96xbf16> to vector<6x96xbf16>
    %97 = arith.truncf %92 : vector<6x256xf32> to vector<6x256xbf16>
    %cst_54 = arith.constant dense<0.000000e+00> : vector<96x256xf32>
    %98 = tpu.matmul %94, %97, %cst_54 {dimension_numbers = #tpu.dot_dimension_numbers<[1], [0], [0], [1], [0, 0, 1, 1], [], []>} : vector<96x6xbf16>, vector<6x256xbf16>, vector<96x256xf32> -> vector<96x256xf32>
    %99 = arith.mulf %98, %98 : vector<96x256xf32>
    %100 = arith.mulf %98, %99 : vector<96x256xf32>
    %cst_55 = arith.constant 4.471500e-02 : f32
    %101 = vector.broadcast %cst_55 : f32 to vector<96x256xf32>
    %102 = arith.mulf %101, %100 : vector<96x256xf32>
    %103 = arith.addf %98, %102 : vector<96x256xf32>
    %cst_56 = arith.constant 0.797884583 : f32
    %104 = vector.broadcast %cst_56 : f32 to vector<96x256xf32>
    %105 = arith.mulf %104, %103 : vector<96x256xf32>
    %106 = math.tanh %105 : vector<96x256xf32>
    %cst_57 = arith.constant 1.000000e+00 : f32
    %107 = vector.broadcast %cst_57 : f32 to vector<96x256xf32>
    %108 = arith.addf %107, %106 : vector<96x256xf32>
    %cst_58 = arith.constant 5.000000e-01 : f32
    %109 = vector.broadcast %cst_58 : f32 to vector<96x256xf32>
    %110 = arith.mulf %109, %108 : vector<96x256xf32>
    %111 = arith.mulf %98, %110 : vector<96x256xf32>
    %112 = arith.truncf %111 : vector<96x256xf32> to vector<96x256xbf16>
    %cst_59 = arith.constant dense<0.000000e+00> : vector<6x256xf32>
    %113 = tpu.matmul %96, %112, %cst_59 {dimension_numbers = #tpu.dot_dimension_numbers<[1], [0], [0], [1], [0, 0, 1, 1], [], []>} : vector<6x96xbf16>, vector<96x256xbf16>, vector<6x256xf32> -> vector<6x256xf32>
    %114 = arith.addf %92, %113 : vector<6x256xf32>
    %c5 = arith.constant 5 : index
    %c0_60 = arith.constant 0 : index
    %c0_61 = arith.constant 0 : index
    %115 = vector.load %arg4[%c5, %c0_60, %c0_61] : memref<10x96x6xbf16, #tpu.memory_space<vmem>>, vector<1x96x6xbf16>
    %116 = vector.shape_cast %115 : vector<1x96x6xbf16> to vector<96x6xbf16>
    %c5_62 = arith.constant 5 : index
    %c0_63 = arith.constant 0 : index
    %c0_64 = arith.constant 0 : index
    %117 = vector.load %arg5[%c5_62, %c0_63, %c0_64] : memref<10x6x96xbf16, #tpu.memory_space<vmem>>, vector<1x6x96xbf16>
    %118 = vector.shape_cast %117 : vector<1x6x96xbf16> to vector<6x96xbf16>
    %119 = arith.truncf %114 : vector<6x256xf32> to vector<6x256xbf16>
    %cst_65 = arith.constant dense<0.000000e+00> : vector<96x256xf32>
    %120 = tpu.matmul %116, %119, %cst_65 {dimension_numbers = #tpu.dot_dimension_numbers<[1], [0], [0], [1], [0, 0, 1, 1], [], []>} : vector<96x6xbf16>, vector<6x256xbf16>, vector<96x256xf32> -> vector<96x256xf32>
    %121 = arith.mulf %120, %120 : vector<96x256xf32>
    %122 = arith.mulf %120, %121 : vector<96x256xf32>
    %cst_66 = arith.constant 4.471500e-02 : f32
    %123 = vector.broadcast %cst_66 : f32 to vector<96x256xf32>
    %124 = arith.mulf %123, %122 : vector<96x256xf32>
    %125 = arith.addf %120, %124 : vector<96x256xf32>
    %cst_67 = arith.constant 0.797884583 : f32
    %126 = vector.broadcast %cst_67 : f32 to vector<96x256xf32>
    %127 = arith.mulf %126, %125 : vector<96x256xf32>
    %128 = math.tanh %127 : vector<96x256xf32>
    %cst_68 = arith.constant 1.000000e+00 : f32
    %129 = vector.broadcast %cst_68 : f32 to vector<96x256xf32>
    %130 = arith.addf %129, %128 : vector<96x256xf32>
    %cst_69 = arith.constant 5.000000e-01 : f32
    %131 = vector.broadcast %cst_69 : f32 to vector<96x256xf32>
    %132 = arith.mulf %131, %130 : vector<96x256xf32>
    %133 = arith.mulf %120, %132 : vector<96x256xf32>
    %134 = arith.truncf %133 : vector<96x256xf32> to vector<96x256xbf16>
    %cst_70 = arith.constant dense<0.000000e+00> : vector<6x256xf32>
    %135 = tpu.matmul %118, %134, %cst_70 {dimension_numbers = #tpu.dot_dimension_numbers<[1], [0], [0], [1], [0, 0, 1, 1], [], []>} : vector<6x96xbf16>, vector<96x256xbf16>, vector<6x256xf32> -> vector<6x256xf32>
    %136 = arith.addf %114, %135 : vector<6x256xf32>
    %c6 = arith.constant 6 : index
    %c0_71 = arith.constant 0 : index
    %c0_72 = arith.constant 0 : index
    %137 = vector.load %arg4[%c6, %c0_71, %c0_72] : memref<10x96x6xbf16, #tpu.memory_space<vmem>>, vector<1x96x6xbf16>
    %138 = vector.shape_cast %137 : vector<1x96x6xbf16> to vector<96x6xbf16>
    %c6_73 = arith.constant 6 : index
    %c0_74 = arith.constant 0 : index
    %c0_75 = arith.constant 0 : index
    %139 = vector.load %arg5[%c6_73, %c0_74, %c0_75] : memref<10x6x96xbf16, #tpu.memory_space<vmem>>, vector<1x6x96xbf16>
    %140 = vector.shape_cast %139 : vector<1x6x96xbf16> to vector<6x96xbf16>
    %141 = arith.truncf %136 : vector<6x256xf32> to vector<6x256xbf16>
    %cst_76 = arith.constant dense<0.000000e+00> : vector<96x256xf32>
    %142 = tpu.matmul %138, %141, %cst_76 {dimension_numbers = #tpu.dot_dimension_numbers<[1], [0], [0], [1], [0, 0, 1, 1], [], []>} : vector<96x6xbf16>, vector<6x256xbf16>, vector<96x256xf32> -> vector<96x256xf32>
    %143 = arith.mulf %142, %142 : vector<96x256xf32>
    %144 = arith.mulf %142, %143 : vector<96x256xf32>
    %cst_77 = arith.constant 4.471500e-02 : f32
    %145 = vector.broadcast %cst_77 : f32 to vector<96x256xf32>
    %146 = arith.mulf %145, %144 : vector<96x256xf32>
    %147 = arith.addf %142, %146 : vector<96x256xf32>
    %cst_78 = arith.constant 0.797884583 : f32
    %148 = vector.broadcast %cst_78 : f32 to vector<96x256xf32>
    %149 = arith.mulf %148, %147 : vector<96x256xf32>
    %150 = math.tanh %149 : vector<96x256xf32>
    %cst_79 = arith.constant 1.000000e+00 : f32
    %151 = vector.broadcast %cst_79 : f32 to vector<96x256xf32>
    %152 = arith.addf %151, %150 : vector<96x256xf32>
    %cst_80 = arith.constant 5.000000e-01 : f32
    %153 = vector.broadcast %cst_80 : f32 to vector<96x256xf32>
    %154 = arith.mulf %153, %152 : vector<96x256xf32>
    %155 = arith.mulf %142, %154 : vector<96x256xf32>
    %156 = arith.truncf %155 : vector<96x256xf32> to vector<96x256xbf16>
    %cst_81 = arith.constant dense<0.000000e+00> : vector<6x256xf32>
    %157 = tpu.matmul %140, %156, %cst_81 {dimension_numbers = #tpu.dot_dimension_numbers<[1], [0], [0], [1], [0, 0, 1, 1], [], []>} : vector<6x96xbf16>, vector<96x256xbf16>, vector<6x256xf32> -> vector<6x256xf32>
    %158 = arith.addf %136, %157 : vector<6x256xf32>
    %c7 = arith.constant 7 : index
    %c0_82 = arith.constant 0 : index
    %c0_83 = arith.constant 0 : index
    %159 = vector.load %arg4[%c7, %c0_82, %c0_83] : memref<10x96x6xbf16, #tpu.memory_space<vmem>>, vector<1x96x6xbf16>
    %160 = vector.shape_cast %159 : vector<1x96x6xbf16> to vector<96x6xbf16>
    %c7_84 = arith.constant 7 : index
    %c0_85 = arith.constant 0 : index
    %c0_86 = arith.constant 0 : index
    %161 = vector.load %arg5[%c7_84, %c0_85, %c0_86] : memref<10x6x96xbf16, #tpu.memory_space<vmem>>, vector<1x6x96xbf16>
    %162 = vector.shape_cast %161 : vector<1x6x96xbf16> to vector<6x96xbf16>
    %163 = arith.truncf %158 : vector<6x256xf32> to vector<6x256xbf16>
    %cst_87 = arith.constant dense<0.000000e+00> : vector<96x256xf32>
    %164 = tpu.matmul %160, %163, %cst_87 {dimension_numbers = #tpu.dot_dimension_numbers<[1], [0], [0], [1], [0, 0, 1, 1], [], []>} : vector<96x6xbf16>, vector<6x256xbf16>, vector<96x256xf32> -> vector<96x256xf32>
    %165 = arith.mulf %164, %164 : vector<96x256xf32>
    %166 = arith.mulf %164, %165 : vector<96x256xf32>
    %cst_88 = arith.constant 4.471500e-02 : f32
    %167 = vector.broadcast %cst_88 : f32 to vector<96x256xf32>
    %168 = arith.mulf %167, %166 : vector<96x256xf32>
    %169 = arith.addf %164, %168 : vector<96x256xf32>
    %cst_89 = arith.constant 0.797884583 : f32
    %170 = vector.broadcast %cst_89 : f32 to vector<96x256xf32>
    %171 = arith.mulf %170, %169 : vector<96x256xf32>
    %172 = math.tanh %171 : vector<96x256xf32>
    %cst_90 = arith.constant 1.000000e+00 : f32
    %173 = vector.broadcast %cst_90 : f32 to vector<96x256xf32>
    %174 = arith.addf %173, %172 : vector<96x256xf32>
    %cst_91 = arith.constant 5.000000e-01 : f32
    %175 = vector.broadcast %cst_91 : f32 to vector<96x256xf32>
    %176 = arith.mulf %175, %174 : vector<96x256xf32>
    %177 = arith.mulf %164, %176 : vector<96x256xf32>
    %178 = arith.truncf %177 : vector<96x256xf32> to vector<96x256xbf16>
    %cst_92 = arith.constant dense<0.000000e+00> : vector<6x256xf32>
    %179 = tpu.matmul %162, %178, %cst_92 {dimension_numbers = #tpu.dot_dimension_numbers<[1], [0], [0], [1], [0, 0, 1, 1], [], []>} : vector<6x96xbf16>, vector<96x256xbf16>, vector<6x256xf32> -> vector<6x256xf32>
    %180 = arith.addf %158, %179 : vector<6x256xf32>
    %c8 = arith.constant 8 : index
    %c0_93 = arith.constant 0 : index
    %c0_94 = arith.constant 0 : index
    %181 = vector.load %arg4[%c8, %c0_93, %c0_94] : memref<10x96x6xbf16, #tpu.memory_space<vmem>>, vector<1x96x6xbf16>
    %182 = vector.shape_cast %181 : vector<1x96x6xbf16> to vector<96x6xbf16>
    %c8_95 = arith.constant 8 : index
    %c0_96 = arith.constant 0 : index
    %c0_97 = arith.constant 0 : index
    %183 = vector.load %arg5[%c8_95, %c0_96, %c0_97] : memref<10x6x96xbf16, #tpu.memory_space<vmem>>, vector<1x6x96xbf16>
    %184 = vector.shape_cast %183 : vector<1x6x96xbf16> to vector<6x96xbf16>
    %185 = arith.truncf %180 : vector<6x256xf32> to vector<6x256xbf16>
    %cst_98 = arith.constant dense<0.000000e+00> : vector<96x256xf32>
    %186 = tpu.matmul %182, %185, %cst_98 {dimension_numbers = #tpu.dot_dimension_numbers<[1], [0], [0], [1], [0, 0, 1, 1], [], []>} : vector<96x6xbf16>, vector<6x256xbf16>, vector<96x256xf32> -> vector<96x256xf32>
    %187 = arith.mulf %186, %186 : vector<96x256xf32>
    %188 = arith.mulf %186, %187 : vector<96x256xf32>
    %cst_99 = arith.constant 4.471500e-02 : f32
    %189 = vector.broadcast %cst_99 : f32 to vector<96x256xf32>
    %190 = arith.mulf %189, %188 : vector<96x256xf32>
    %191 = arith.addf %186, %190 : vector<96x256xf32>
    %cst_100 = arith.constant 0.797884583 : f32
    %192 = vector.broadcast %cst_100 : f32 to vector<96x256xf32>
    %193 = arith.mulf %192, %191 : vector<96x256xf32>
    %194 = math.tanh %193 : vector<96x256xf32>
    %cst_101 = arith.constant 1.000000e+00 : f32
    %195 = vector.broadcast %cst_101 : f32 to vector<96x256xf32>
    %196 = arith.addf %195, %194 : vector<96x256xf32>
    %cst_102 = arith.constant 5.000000e-01 : f32
    %197 = vector.broadcast %cst_102 : f32 to vector<96x256xf32>
    %198 = arith.mulf %197, %196 : vector<96x256xf32>
    %199 = arith.mulf %186, %198 : vector<96x256xf32>
    %200 = arith.truncf %199 : vector<96x256xf32> to vector<96x256xbf16>
    %cst_103 = arith.constant dense<0.000000e+00> : vector<6x256xf32>
    %201 = tpu.matmul %184, %200, %cst_103 {dimension_numbers = #tpu.dot_dimension_numbers<[1], [0], [0], [1], [0, 0, 1, 1], [], []>} : vector<6x96xbf16>, vector<96x256xbf16>, vector<6x256xf32> -> vector<6x256xf32>
    %202 = arith.addf %180, %201 : vector<6x256xf32>
    %c9 = arith.constant 9 : index
    %c0_104 = arith.constant 0 : index
    %c0_105 = arith.constant 0 : index
    %203 = vector.load %arg4[%c9, %c0_104, %c0_105] : memref<10x96x6xbf16, #tpu.memory_space<vmem>>, vector<1x96x6xbf16>
    %204 = vector.shape_cast %203 : vector<1x96x6xbf16> to vector<96x6xbf16>
    %c9_106 = arith.constant 9 : index
    %c0_107 = arith.constant 0 : index
    %c0_108 = arith.constant 0 : index
    %205 = vector.load %arg5[%c9_106, %c0_107, %c0_108] : memref<10x6x96xbf16, #tpu.memory_space<vmem>>, vector<1x6x96xbf16>
    %206 = vector.shape_cast %205 : vector<1x6x96xbf16> to vector<6x96xbf16>
    %207 = arith.truncf %202 : vector<6x256xf32> to vector<6x256xbf16>
    %cst_109 = arith.constant dense<0.000000e+00> : vector<96x256xf32>
    %208 = tpu.matmul %204, %207, %cst_109 {dimension_numbers = #tpu.dot_dimension_numbers<[1], [0], [0], [1], [0, 0, 1, 1], [], []>} : vector<96x6xbf16>, vector<6x256xbf16>, vector<96x256xf32> -> vector<96x256xf32>
    %209 = arith.mulf %208, %208 : vector<96x256xf32>
    %210 = arith.mulf %208, %209 : vector<96x256xf32>
    %cst_110 = arith.constant 4.471500e-02 : f32
    %211 = vector.broadcast %cst_110 : f32 to vector<96x256xf32>
    %212 = arith.mulf %211, %210 : vector<96x256xf32>
    %213 = arith.addf %208, %212 : vector<96x256xf32>
    %cst_111 = arith.constant 0.797884583 : f32
    %214 = vector.broadcast %cst_111 : f32 to vector<96x256xf32>
    %215 = arith.mulf %214, %213 : vector<96x256xf32>
    %216 = math.tanh %215 : vector<96x256xf32>
    %cst_112 = arith.constant 1.000000e+00 : f32
    %217 = vector.broadcast %cst_112 : f32 to vector<96x256xf32>
    %218 = arith.addf %217, %216 : vector<96x256xf32>
    %cst_113 = arith.constant 5.000000e-01 : f32
    %219 = vector.broadcast %cst_113 : f32 to vector<96x256xf32>
    %220 = arith.mulf %219, %218 : vector<96x256xf32>
    %221 = arith.mulf %208, %220 : vector<96x256xf32>
    %222 = arith.truncf %221 : vector<96x256xf32> to vector<96x256xbf16>
    %cst_114 = arith.constant dense<0.000000e+00> : vector<6x256xf32>
    %223 = tpu.matmul %206, %222, %cst_114 {dimension_numbers = #tpu.dot_dimension_numbers<[1], [0], [0], [1], [0, 0, 1, 1], [], []>} : vector<6x96xbf16>, vector<96x256xbf16>, vector<6x256xf32> -> vector<6x256xf32>
    %224 = arith.addf %202, %223 : vector<6x256xf32>
    %c9_115 = arith.constant 9 : index
    %c0_116 = arith.constant 0 : index
    %c0_117 = arith.constant 0 : index
    %225 = vector.load %arg6[%c9_115, %c0_116, %c0_117] : memref<10x96x6xbf16, #tpu.memory_space<vmem>>, vector<1x96x6xbf16>
    %226 = vector.shape_cast %225 : vector<1x96x6xbf16> to vector<96x6xbf16>
    %c9_118 = arith.constant 9 : index
    %c0_119 = arith.constant 0 : index
    %c0_120 = arith.constant 0 : index
    %227 = vector.load %arg7[%c9_118, %c0_119, %c0_120] : memref<10x6x96xbf16, #tpu.memory_space<vmem>>, vector<1x6x96xbf16>
    %228 = vector.shape_cast %227 : vector<1x6x96xbf16> to vector<6x96xbf16>
    %229 = arith.truncf %224 : vector<6x256xf32> to vector<6x256xbf16>
    %cst_121 = arith.constant dense<0.000000e+00> : vector<96x256xf32>
    %230 = tpu.matmul %226, %229, %cst_121 {dimension_numbers = #tpu.dot_dimension_numbers<[1], [0], [0], [1], [0, 0, 1, 1], [], []>} : vector<96x6xbf16>, vector<6x256xbf16>, vector<96x256xf32> -> vector<96x256xf32>
    %231 = arith.mulf %230, %230 : vector<96x256xf32>
    %232 = arith.mulf %230, %231 : vector<96x256xf32>
    %cst_122 = arith.constant 4.471500e-02 : f32
    %233 = vector.broadcast %cst_122 : f32 to vector<96x256xf32>
    %234 = arith.mulf %233, %232 : vector<96x256xf32>
    %235 = arith.addf %230, %234 : vector<96x256xf32>
    %cst_123 = arith.constant 0.797884583 : f32
    %236 = vector.broadcast %cst_123 : f32 to vector<96x256xf32>
    %237 = arith.mulf %236, %235 : vector<96x256xf32>
    %238 = math.tanh %237 : vector<96x256xf32>
    %cst_124 = arith.constant 1.000000e+00 : f32
    %239 = vector.broadcast %cst_124 : f32 to vector<96x256xf32>
    %240 = arith.addf %239, %238 : vector<96x256xf32>
    %cst_125 = arith.constant 5.000000e-01 : f32
    %241 = vector.broadcast %cst_125 : f32 to vector<96x256xf32>
    %242 = arith.mulf %241, %240 : vector<96x256xf32>
    %243 = arith.mulf %230, %242 : vector<96x256xf32>
    %244 = arith.truncf %243 : vector<96x256xf32> to vector<96x256xbf16>
    %cst_126 = arith.constant dense<0.000000e+00> : vector<6x256xf32>
    %245 = tpu.matmul %228, %244, %cst_126 {dimension_numbers = #tpu.dot_dimension_numbers<[1], [0], [0], [1], [0, 0, 1, 1], [], []>} : vector<6x96xbf16>, vector<96x256xbf16>, vector<6x256xf32> -> vector<6x256xf32>
    %246 = arith.addf %224, %245 : vector<6x256xf32>
    %c3_127 = arith.constant 3 : index
    %c0_128 = arith.constant 0 : index
    %c0_129 = arith.constant 0 : index
    %247 = vector.load %arg8[%c3_127, %c0_128, %c0_129] : memref<4x6x6xbf16, #tpu.memory_space<vmem>>, vector<1x6x6xbf16>
    %248 = vector.shape_cast %247 : vector<1x6x6xbf16> to vector<6x6xbf16>
    %249 = arith.truncf %202 : vector<6x256xf32> to vector<6x256xbf16>
    %cst_130 = arith.constant dense<0.000000e+00> : vector<6x256xf32>
    %250 = tpu.matmul %248, %249, %cst_130 {dimension_numbers = #tpu.dot_dimension_numbers<[1], [0], [0], [1], [0, 0, 1, 1], [], []>} : vector<6x6xbf16>, vector<6x256xbf16>, vector<6x256xf32> -> vector<6x256xf32>
    %c3_131 = arith.constant 3 : index
    %c0_132 = arith.constant 0 : index
    %c0_133 = arith.constant 0 : index
    %251 = vector.load %arg9[%c3_131, %c0_132, %c0_133] : memref<4x6x6xbf16, #tpu.memory_space<vmem>>, vector<1x6x6xbf16>
    %252 = vector.shape_cast %251 : vector<1x6x6xbf16> to vector<6x6xbf16>
    %253 = arith.truncf %246 : vector<6x256xf32> to vector<6x256xbf16>
    %cst_134 = arith.constant dense<0.000000e+00> : vector<6x256xf32>
    %254 = tpu.matmul %252, %253, %cst_134 {dimension_numbers = #tpu.dot_dimension_numbers<[1], [0], [0], [1], [0, 0, 1, 1], [], []>} : vector<6x6xbf16>, vector<6x256xbf16>, vector<6x256xf32> -> vector<6x256xf32>
    %255 = arith.addf %250, %254 : vector<6x256xf32>
    %c8_135 = arith.constant 8 : index
    %c0_136 = arith.constant 0 : index
    %c0_137 = arith.constant 0 : index
    %256 = vector.load %arg6[%c8_135, %c0_136, %c0_137] : memref<10x96x6xbf16, #tpu.memory_space<vmem>>, vector<1x96x6xbf16>
    %257 = vector.shape_cast %256 : vector<1x96x6xbf16> to vector<96x6xbf16>
    %c8_138 = arith.constant 8 : index
    %c0_139 = arith.constant 0 : index
    %c0_140 = arith.constant 0 : index
    %258 = vector.load %arg7[%c8_138, %c0_139, %c0_140] : memref<10x6x96xbf16, #tpu.memory_space<vmem>>, vector<1x6x96xbf16>
    %259 = vector.shape_cast %258 : vector<1x6x96xbf16> to vector<6x96xbf16>
    %260 = arith.truncf %255 : vector<6x256xf32> to vector<6x256xbf16>
    %cst_141 = arith.constant dense<0.000000e+00> : vector<96x256xf32>
    %261 = tpu.matmul %257, %260, %cst_141 {dimension_numbers = #tpu.dot_dimension_numbers<[1], [0], [0], [1], [0, 0, 1, 1], [], []>} : vector<96x6xbf16>, vector<6x256xbf16>, vector<96x256xf32> -> vector<96x256xf32>
    %262 = arith.mulf %261, %261 : vector<96x256xf32>
    %263 = arith.mulf %261, %262 : vector<96x256xf32>
    %cst_142 = arith.constant 4.471500e-02 : f32
    %264 = vector.broadcast %cst_142 : f32 to vector<96x256xf32>
    %265 = arith.mulf %264, %263 : vector<96x256xf32>
    %266 = arith.addf %261, %265 : vector<96x256xf32>
    %cst_143 = arith.constant 0.797884583 : f32
    %267 = vector.broadcast %cst_143 : f32 to vector<96x256xf32>
    %268 = arith.mulf %267, %266 : vector<96x256xf32>
    %269 = math.tanh %268 : vector<96x256xf32>
    %cst_144 = arith.constant 1.000000e+00 : f32
    %270 = vector.broadcast %cst_144 : f32 to vector<96x256xf32>
    %271 = arith.addf %270, %269 : vector<96x256xf32>
    %cst_145 = arith.constant 5.000000e-01 : f32
    %272 = vector.broadcast %cst_145 : f32 to vector<96x256xf32>
    %273 = arith.mulf %272, %271 : vector<96x256xf32>
    %274 = arith.mulf %261, %273 : vector<96x256xf32>
    %275 = arith.truncf %274 : vector<96x256xf32> to vector<96x256xbf16>
    %cst_146 = arith.constant dense<0.000000e+00> : vector<6x256xf32>
    %276 = tpu.matmul %259, %275, %cst_146 {dimension_numbers = #tpu.dot_dimension_numbers<[1], [0], [0], [1], [0, 0, 1, 1], [], []>} : vector<6x96xbf16>, vector<96x256xbf16>, vector<6x256xf32> -> vector<6x256xf32>
    %277 = arith.addf %255, %276 : vector<6x256xf32>
    %c7_147 = arith.constant 7 : index
    %c0_148 = arith.constant 0 : index
    %c0_149 = arith.constant 0 : index
    %278 = vector.load %arg6[%c7_147, %c0_148, %c0_149] : memref<10x96x6xbf16, #tpu.memory_space<vmem>>, vector<1x96x6xbf16>
    %279 = vector.shape_cast %278 : vector<1x96x6xbf16> to vector<96x6xbf16>
    %c7_150 = arith.constant 7 : index
    %c0_151 = arith.constant 0 : index
    %c0_152 = arith.constant 0 : index
    %280 = vector.load %arg7[%c7_150, %c0_151, %c0_152] : memref<10x6x96xbf16, #tpu.memory_space<vmem>>, vector<1x6x96xbf16>
    %281 = vector.shape_cast %280 : vector<1x6x96xbf16> to vector<6x96xbf16>
    %282 = arith.truncf %277 : vector<6x256xf32> to vector<6x256xbf16>
    %cst_153 = arith.constant dense<0.000000e+00> : vector<96x256xf32>
    %283 = tpu.matmul %279, %282, %cst_153 {dimension_numbers = #tpu.dot_dimension_numbers<[1], [0], [0], [1], [0, 0, 1, 1], [], []>} : vector<96x6xbf16>, vector<6x256xbf16>, vector<96x256xf32> -> vector<96x256xf32>
    %284 = arith.mulf %283, %283 : vector<96x256xf32>
    %285 = arith.mulf %283, %284 : vector<96x256xf32>
    %cst_154 = arith.constant 4.471500e-02 : f32
    %286 = vector.broadcast %cst_154 : f32 to vector<96x256xf32>
    %287 = arith.mulf %286, %285 : vector<96x256xf32>
    %288 = arith.addf %283, %287 : vector<96x256xf32>
    %cst_155 = arith.constant 0.797884583 : f32
    %289 = vector.broadcast %cst_155 : f32 to vector<96x256xf32>
    %290 = arith.mulf %289, %288 : vector<96x256xf32>
    %291 = math.tanh %290 : vector<96x256xf32>
    %cst_156 = arith.constant 1.000000e+00 : f32
    %292 = vector.broadcast %cst_156 : f32 to vector<96x256xf32>
    %293 = arith.addf %292, %291 : vector<96x256xf32>
    %cst_157 = arith.constant 5.000000e-01 : f32
    %294 = vector.broadcast %cst_157 : f32 to vector<96x256xf32>
    %295 = arith.mulf %294, %293 : vector<96x256xf32>
    %296 = arith.mulf %283, %295 : vector<96x256xf32>
    %297 = arith.truncf %296 : vector<96x256xf32> to vector<96x256xbf16>
    %cst_158 = arith.constant dense<0.000000e+00> : vector<6x256xf32>
    %298 = tpu.matmul %281, %297, %cst_158 {dimension_numbers = #tpu.dot_dimension_numbers<[1], [0], [0], [1], [0, 0, 1, 1], [], []>} : vector<6x96xbf16>, vector<96x256xbf16>, vector<6x256xf32> -> vector<6x256xf32>
    %299 = arith.addf %277, %298 : vector<6x256xf32>
    %c2_159 = arith.constant 2 : index
    %c0_160 = arith.constant 0 : index
    %c0_161 = arith.constant 0 : index
    %300 = vector.load %arg8[%c2_159, %c0_160, %c0_161] : memref<4x6x6xbf16, #tpu.memory_space<vmem>>, vector<1x6x6xbf16>
    %301 = vector.shape_cast %300 : vector<1x6x6xbf16> to vector<6x6xbf16>
    %302 = arith.truncf %158 : vector<6x256xf32> to vector<6x256xbf16>
    %cst_162 = arith.constant dense<0.000000e+00> : vector<6x256xf32>
    %303 = tpu.matmul %301, %302, %cst_162 {dimension_numbers = #tpu.dot_dimension_numbers<[1], [0], [0], [1], [0, 0, 1, 1], [], []>} : vector<6x6xbf16>, vector<6x256xbf16>, vector<6x256xf32> -> vector<6x256xf32>
    %c2_163 = arith.constant 2 : index
    %c0_164 = arith.constant 0 : index
    %c0_165 = arith.constant 0 : index
    %304 = vector.load %arg9[%c2_163, %c0_164, %c0_165] : memref<4x6x6xbf16, #tpu.memory_space<vmem>>, vector<1x6x6xbf16>
    %305 = vector.shape_cast %304 : vector<1x6x6xbf16> to vector<6x6xbf16>
    %306 = arith.truncf %299 : vector<6x256xf32> to vector<6x256xbf16>
    %cst_166 = arith.constant dense<0.000000e+00> : vector<6x256xf32>
    %307 = tpu.matmul %305, %306, %cst_166 {dimension_numbers = #tpu.dot_dimension_numbers<[1], [0], [0], [1], [0, 0, 1, 1], [], []>} : vector<6x6xbf16>, vector<6x256xbf16>, vector<6x256xf32> -> vector<6x256xf32>
    %308 = arith.addf %303, %307 : vector<6x256xf32>
    %c6_167 = arith.constant 6 : index
    %c0_168 = arith.constant 0 : index
    %c0_169 = arith.constant 0 : index
    %309 = vector.load %arg6[%c6_167, %c0_168, %c0_169] : memref<10x96x6xbf16, #tpu.memory_space<vmem>>, vector<1x96x6xbf16>
    %310 = vector.shape_cast %309 : vector<1x96x6xbf16> to vector<96x6xbf16>
    %c6_170 = arith.constant 6 : index
    %c0_171 = arith.constant 0 : index
    %c0_172 = arith.constant 0 : index
    %311 = vector.load %arg7[%c6_170, %c0_171, %c0_172] : memref<10x6x96xbf16, #tpu.memory_space<vmem>>, vector<1x6x96xbf16>
    %312 = vector.shape_cast %311 : vector<1x6x96xbf16> to vector<6x96xbf16>
    %313 = arith.truncf %308 : vector<6x256xf32> to vector<6x256xbf16>
    %cst_173 = arith.constant dense<0.000000e+00> : vector<96x256xf32>
    %314 = tpu.matmul %310, %313, %cst_173 {dimension_numbers = #tpu.dot_dimension_numbers<[1], [0], [0], [1], [0, 0, 1, 1], [], []>} : vector<96x6xbf16>, vector<6x256xbf16>, vector<96x256xf32> -> vector<96x256xf32>
    %315 = arith.mulf %314, %314 : vector<96x256xf32>
    %316 = arith.mulf %314, %315 : vector<96x256xf32>
    %cst_174 = arith.constant 4.471500e-02 : f32
    %317 = vector.broadcast %cst_174 : f32 to vector<96x256xf32>
    %318 = arith.mulf %317, %316 : vector<96x256xf32>
    %319 = arith.addf %314, %318 : vector<96x256xf32>
    %cst_175 = arith.constant 0.797884583 : f32
    %320 = vector.broadcast %cst_175 : f32 to vector<96x256xf32>
    %321 = arith.mulf %320, %319 : vector<96x256xf32>
    %322 = math.tanh %321 : vector<96x256xf32>
    %cst_176 = arith.constant 1.000000e+00 : f32
    %323 = vector.broadcast %cst_176 : f32 to vector<96x256xf32>
    %324 = arith.addf %323, %322 : vector<96x256xf32>
    %cst_177 = arith.constant 5.000000e-01 : f32
    %325 = vector.broadcast %cst_177 : f32 to vector<96x256xf32>
    %326 = arith.mulf %325, %324 : vector<96x256xf32>
    %327 = arith.mulf %314, %326 : vector<96x256xf32>
    %328 = arith.truncf %327 : vector<96x256xf32> to vector<96x256xbf16>
    %cst_178 = arith.constant dense<0.000000e+00> : vector<6x256xf32>
    %329 = tpu.matmul %312, %328, %cst_178 {dimension_numbers = #tpu.dot_dimension_numbers<[1], [0], [0], [1], [0, 0, 1, 1], [], []>} : vector<6x96xbf16>, vector<96x256xbf16>, vector<6x256xf32> -> vector<6x256xf32>
    %330 = arith.addf %308, %329 : vector<6x256xf32>
    %c5_179 = arith.constant 5 : index
    %c0_180 = arith.constant 0 : index
    %c0_181 = arith.constant 0 : index
    %331 = vector.load %arg6[%c5_179, %c0_180, %c0_181] : memref<10x96x6xbf16, #tpu.memory_space<vmem>>, vector<1x96x6xbf16>
    %332 = vector.shape_cast %331 : vector<1x96x6xbf16> to vector<96x6xbf16>
    %c5_182 = arith.constant 5 : index
    %c0_183 = arith.constant 0 : index
    %c0_184 = arith.constant 0 : index
    %333 = vector.load %arg7[%c5_182, %c0_183, %c0_184] : memref<10x6x96xbf16, #tpu.memory_space<vmem>>, vector<1x6x96xbf16>
    %334 = vector.shape_cast %333 : vector<1x6x96xbf16> to vector<6x96xbf16>
    %335 = arith.truncf %330 : vector<6x256xf32> to vector<6x256xbf16>
    %cst_185 = arith.constant dense<0.000000e+00> : vector<96x256xf32>
    %336 = tpu.matmul %332, %335, %cst_185 {dimension_numbers = #tpu.dot_dimension_numbers<[1], [0], [0], [1], [0, 0, 1, 1], [], []>} : vector<96x6xbf16>, vector<6x256xbf16>, vector<96x256xf32> -> vector<96x256xf32>
    %337 = arith.mulf %336, %336 : vector<96x256xf32>
    %338 = arith.mulf %336, %337 : vector<96x256xf32>
    %cst_186 = arith.constant 4.471500e-02 : f32
    %339 = vector.broadcast %cst_186 : f32 to vector<96x256xf32>
    %340 = arith.mulf %339, %338 : vector<96x256xf32>
    %341 = arith.addf %336, %340 : vector<96x256xf32>
    %cst_187 = arith.constant 0.797884583 : f32
    %342 = vector.broadcast %cst_187 : f32 to vector<96x256xf32>
    %343 = arith.mulf %342, %341 : vector<96x256xf32>
    %344 = math.tanh %343 : vector<96x256xf32>
    %cst_188 = arith.constant 1.000000e+00 : f32
    %345 = vector.broadcast %cst_188 : f32 to vector<96x256xf32>
    %346 = arith.addf %345, %344 : vector<96x256xf32>
    %cst_189 = arith.constant 5.000000e-01 : f32
    %347 = vector.broadcast %cst_189 : f32 to vector<96x256xf32>
    %348 = arith.mulf %347, %346 : vector<96x256xf32>
    %349 = arith.mulf %336, %348 : vector<96x256xf32>
    %350 = arith.truncf %349 : vector<96x256xf32> to vector<96x256xbf16>
    %cst_190 = arith.constant dense<0.000000e+00> : vector<6x256xf32>
    %351 = tpu.matmul %334, %350, %cst_190 {dimension_numbers = #tpu.dot_dimension_numbers<[1], [0], [0], [1], [0, 0, 1, 1], [], []>} : vector<6x96xbf16>, vector<96x256xbf16>, vector<6x256xf32> -> vector<6x256xf32>
    %352 = arith.addf %330, %351 : vector<6x256xf32>
    %c1_191 = arith.constant 1 : index
    %c0_192 = arith.constant 0 : index
    %c0_193 = arith.constant 0 : index
    %353 = vector.load %arg8[%c1_191, %c0_192, %c0_193] : memref<4x6x6xbf16, #tpu.memory_space<vmem>>, vector<1x6x6xbf16>
    %354 = vector.shape_cast %353 : vector<1x6x6xbf16> to vector<6x6xbf16>
    %355 = arith.truncf %114 : vector<6x256xf32> to vector<6x256xbf16>
    %cst_194 = arith.constant dense<0.000000e+00> : vector<6x256xf32>
    %356 = tpu.matmul %354, %355, %cst_194 {dimension_numbers = #tpu.dot_dimension_numbers<[1], [0], [0], [1], [0, 0, 1, 1], [], []>} : vector<6x6xbf16>, vector<6x256xbf16>, vector<6x256xf32> -> vector<6x256xf32>
    %c1_195 = arith.constant 1 : index
    %c0_196 = arith.constant 0 : index
    %c0_197 = arith.constant 0 : index
    %357 = vector.load %arg9[%c1_195, %c0_196, %c0_197] : memref<4x6x6xbf16, #tpu.memory_space<vmem>>, vector<1x6x6xbf16>
    %358 = vector.shape_cast %357 : vector<1x6x6xbf16> to vector<6x6xbf16>
    %359 = arith.truncf %352 : vector<6x256xf32> to vector<6x256xbf16>
    %cst_198 = arith.constant dense<0.000000e+00> : vector<6x256xf32>
    %360 = tpu.matmul %358, %359, %cst_198 {dimension_numbers = #tpu.dot_dimension_numbers<[1], [0], [0], [1], [0, 0, 1, 1], [], []>} : vector<6x6xbf16>, vector<6x256xbf16>, vector<6x256xf32> -> vector<6x256xf32>
    %361 = arith.addf %356, %360 : vector<6x256xf32>
    %c4_199 = arith.constant 4 : index
    %c0_200 = arith.constant 0 : index
    %c0_201 = arith.constant 0 : index
    %362 = vector.load %arg6[%c4_199, %c0_200, %c0_201] : memref<10x96x6xbf16, #tpu.memory_space<vmem>>, vector<1x96x6xbf16>
    %363 = vector.shape_cast %362 : vector<1x96x6xbf16> to vector<96x6xbf16>
    %c4_202 = arith.constant 4 : index
    %c0_203 = arith.constant 0 : index
    %c0_204 = arith.constant 0 : index
    %364 = vector.load %arg7[%c4_202, %c0_203, %c0_204] : memref<10x6x96xbf16, #tpu.memory_space<vmem>>, vector<1x6x96xbf16>
    %365 = vector.shape_cast %364 : vector<1x6x96xbf16> to vector<6x96xbf16>
    %366 = arith.truncf %361 : vector<6x256xf32> to vector<6x256xbf16>
    %cst_205 = arith.constant dense<0.000000e+00> : vector<96x256xf32>
    %367 = tpu.matmul %363, %366, %cst_205 {dimension_numbers = #tpu.dot_dimension_numbers<[1], [0], [0], [1], [0, 0, 1, 1], [], []>} : vector<96x6xbf16>, vector<6x256xbf16>, vector<96x256xf32> -> vector<96x256xf32>
    %368 = arith.mulf %367, %367 : vector<96x256xf32>
    %369 = arith.mulf %367, %368 : vector<96x256xf32>
    %cst_206 = arith.constant 4.471500e-02 : f32
    %370 = vector.broadcast %cst_206 : f32 to vector<96x256xf32>
    %371 = arith.mulf %370, %369 : vector<96x256xf32>
    %372 = arith.addf %367, %371 : vector<96x256xf32>
    %cst_207 = arith.constant 0.797884583 : f32
    %373 = vector.broadcast %cst_207 : f32 to vector<96x256xf32>
    %374 = arith.mulf %373, %372 : vector<96x256xf32>
    %375 = math.tanh %374 : vector<96x256xf32>
    %cst_208 = arith.constant 1.000000e+00 : f32
    %376 = vector.broadcast %cst_208 : f32 to vector<96x256xf32>
    %377 = arith.addf %376, %375 : vector<96x256xf32>
    %cst_209 = arith.constant 5.000000e-01 : f32
    %378 = vector.broadcast %cst_209 : f32 to vector<96x256xf32>
    %379 = arith.mulf %378, %377 : vector<96x256xf32>
    %380 = arith.mulf %367, %379 : vector<96x256xf32>
    %381 = arith.truncf %380 : vector<96x256xf32> to vector<96x256xbf16>
    %cst_210 = arith.constant dense<0.000000e+00> : vector<6x256xf32>
    %382 = tpu.matmul %365, %381, %cst_210 {dimension_numbers = #tpu.dot_dimension_numbers<[1], [0], [0], [1], [0, 0, 1, 1], [], []>} : vector<6x96xbf16>, vector<96x256xbf16>, vector<6x256xf32> -> vector<6x256xf32>
    %383 = arith.addf %361, %382 : vector<6x256xf32>
    %c3_211 = arith.constant 3 : index
    %c0_212 = arith.constant 0 : index
    %c0_213 = arith.constant 0 : index
    %384 = vector.load %arg6[%c3_211, %c0_212, %c0_213] : memref<10x96x6xbf16, #tpu.memory_space<vmem>>, vector<1x96x6xbf16>
    %385 = vector.shape_cast %384 : vector<1x96x6xbf16> to vector<96x6xbf16>
    %c3_214 = arith.constant 3 : index
    %c0_215 = arith.constant 0 : index
    %c0_216 = arith.constant 0 : index
    %386 = vector.load %arg7[%c3_214, %c0_215, %c0_216] : memref<10x6x96xbf16, #tpu.memory_space<vmem>>, vector<1x6x96xbf16>
    %387 = vector.shape_cast %386 : vector<1x6x96xbf16> to vector<6x96xbf16>
    %388 = arith.truncf %383 : vector<6x256xf32> to vector<6x256xbf16>
    %cst_217 = arith.constant dense<0.000000e+00> : vector<96x256xf32>
    %389 = tpu.matmul %385, %388, %cst_217 {dimension_numbers = #tpu.dot_dimension_numbers<[1], [0], [0], [1], [0, 0, 1, 1], [], []>} : vector<96x6xbf16>, vector<6x256xbf16>, vector<96x256xf32> -> vector<96x256xf32>
    %390 = arith.mulf %389, %389 : vector<96x256xf32>
    %391 = arith.mulf %389, %390 : vector<96x256xf32>
    %cst_218 = arith.constant 4.471500e-02 : f32
    %392 = vector.broadcast %cst_218 : f32 to vector<96x256xf32>
    %393 = arith.mulf %392, %391 : vector<96x256xf32>
    %394 = arith.addf %389, %393 : vector<96x256xf32>
    %cst_219 = arith.constant 0.797884583 : f32
    %395 = vector.broadcast %cst_219 : f32 to vector<96x256xf32>
    %396 = arith.mulf %395, %394 : vector<96x256xf32>
    %397 = math.tanh %396 : vector<96x256xf32>
    %cst_220 = arith.constant 1.000000e+00 : f32
    %398 = vector.broadcast %cst_220 : f32 to vector<96x256xf32>
    %399 = arith.addf %398, %397 : vector<96x256xf32>
    %cst_221 = arith.constant 5.000000e-01 : f32
    %400 = vector.broadcast %cst_221 : f32 to vector<96x256xf32>
    %401 = arith.mulf %400, %399 : vector<96x256xf32>
    %402 = arith.mulf %389, %401 : vector<96x256xf32>
    %403 = arith.truncf %402 : vector<96x256xf32> to vector<96x256xbf16>
    %cst_222 = arith.constant dense<0.000000e+00> : vector<6x256xf32>
    %404 = tpu.matmul %387, %403, %cst_222 {dimension_numbers = #tpu.dot_dimension_numbers<[1], [0], [0], [1], [0, 0, 1, 1], [], []>} : vector<6x96xbf16>, vector<96x256xbf16>, vector<6x256xf32> -> vector<6x256xf32>
    %405 = arith.addf %383, %404 : vector<6x256xf32>
    %c0_223 = arith.constant 0 : index
    %c0_224 = arith.constant 0 : index
    %c0_225 = arith.constant 0 : index
    %406 = vector.load %arg8[%c0_223, %c0_224, %c0_225] : memref<4x6x6xbf16, #tpu.memory_space<vmem>>, vector<1x6x6xbf16>
    %407 = vector.shape_cast %406 : vector<1x6x6xbf16> to vector<6x6xbf16>
    %408 = arith.truncf %70 : vector<6x256xf32> to vector<6x256xbf16>
    %cst_226 = arith.constant dense<0.000000e+00> : vector<6x256xf32>
    %409 = tpu.matmul %407, %408, %cst_226 {dimension_numbers = #tpu.dot_dimension_numbers<[1], [0], [0], [1], [0, 0, 1, 1], [], []>} : vector<6x6xbf16>, vector<6x256xbf16>, vector<6x256xf32> -> vector<6x256xf32>
    %c0_227 = arith.constant 0 : index
    %c0_228 = arith.constant 0 : index
    %c0_229 = arith.constant 0 : index
    %410 = vector.load %arg9[%c0_227, %c0_228, %c0_229] : memref<4x6x6xbf16, #tpu.memory_space<vmem>>, vector<1x6x6xbf16>
    %411 = vector.shape_cast %410 : vector<1x6x6xbf16> to vector<6x6xbf16>
    %412 = arith.truncf %405 : vector<6x256xf32> to vector<6x256xbf16>
    %cst_230 = arith.constant dense<0.000000e+00> : vector<6x256xf32>
    %413 = tpu.matmul %411, %412, %cst_230 {dimension_numbers = #tpu.dot_dimension_numbers<[1], [0], [0], [1], [0, 0, 1, 1], [], []>} : vector<6x6xbf16>, vector<6x256xbf16>, vector<6x256xf32> -> vector<6x256xf32>
    %414 = arith.addf %409, %413 : vector<6x256xf32>
    %c2_231 = arith.constant 2 : index
    %c0_232 = arith.constant 0 : index
    %c0_233 = arith.constant 0 : index
    %415 = vector.load %arg6[%c2_231, %c0_232, %c0_233] : memref<10x96x6xbf16, #tpu.memory_space<vmem>>, vector<1x96x6xbf16>
    %416 = vector.shape_cast %415 : vector<1x96x6xbf16> to vector<96x6xbf16>
    %c2_234 = arith.constant 2 : index
    %c0_235 = arith.constant 0 : index
    %c0_236 = arith.constant 0 : index
    %417 = vector.load %arg7[%c2_234, %c0_235, %c0_236] : memref<10x6x96xbf16, #tpu.memory_space<vmem>>, vector<1x6x96xbf16>
    %418 = vector.shape_cast %417 : vector<1x6x96xbf16> to vector<6x96xbf16>
    %419 = arith.truncf %414 : vector<6x256xf32> to vector<6x256xbf16>
    %cst_237 = arith.constant dense<0.000000e+00> : vector<96x256xf32>
    %420 = tpu.matmul %416, %419, %cst_237 {dimension_numbers = #tpu.dot_dimension_numbers<[1], [0], [0], [1], [0, 0, 1, 1], [], []>} : vector<96x6xbf16>, vector<6x256xbf16>, vector<96x256xf32> -> vector<96x256xf32>
    %421 = arith.mulf %420, %420 : vector<96x256xf32>
    %422 = arith.mulf %420, %421 : vector<96x256xf32>
    %cst_238 = arith.constant 4.471500e-02 : f32
    %423 = vector.broadcast %cst_238 : f32 to vector<96x256xf32>
    %424 = arith.mulf %423, %422 : vector<96x256xf32>
    %425 = arith.addf %420, %424 : vector<96x256xf32>
    %cst_239 = arith.constant 0.797884583 : f32
    %426 = vector.broadcast %cst_239 : f32 to vector<96x256xf32>
    %427 = arith.mulf %426, %425 : vector<96x256xf32>
    %428 = math.tanh %427 : vector<96x256xf32>
    %cst_240 = arith.constant 1.000000e+00 : f32
    %429 = vector.broadcast %cst_240 : f32 to vector<96x256xf32>
    %430 = arith.addf %429, %428 : vector<96x256xf32>
    %cst_241 = arith.constant 5.000000e-01 : f32
    %431 = vector.broadcast %cst_241 : f32 to vector<96x256xf32>
    %432 = arith.mulf %431, %430 : vector<96x256xf32>
    %433 = arith.mulf %420, %432 : vector<96x256xf32>
    %434 = arith.truncf %433 : vector<96x256xf32> to vector<96x256xbf16>
    %cst_242 = arith.constant dense<0.000000e+00> : vector<6x256xf32>
    %435 = tpu.matmul %418, %434, %cst_242 {dimension_numbers = #tpu.dot_dimension_numbers<[1], [0], [0], [1], [0, 0, 1, 1], [], []>} : vector<6x96xbf16>, vector<96x256xbf16>, vector<6x256xf32> -> vector<6x256xf32>
    %436 = arith.addf %414, %435 : vector<6x256xf32>
    %c1_243 = arith.constant 1 : index
    %c0_244 = arith.constant 0 : index
    %c0_245 = arith.constant 0 : index
    %437 = vector.load %arg6[%c1_243, %c0_244, %c0_245] : memref<10x96x6xbf16, #tpu.memory_space<vmem>>, vector<1x96x6xbf16>
    %438 = vector.shape_cast %437 : vector<1x96x6xbf16> to vector<96x6xbf16>
    %c1_246 = arith.constant 1 : index
    %c0_247 = arith.constant 0 : index
    %c0_248 = arith.constant 0 : index
    %439 = vector.load %arg7[%c1_246, %c0_247, %c0_248] : memref<10x6x96xbf16, #tpu.memory_space<vmem>>, vector<1x6x96xbf16>
    %440 = vector.shape_cast %439 : vector<1x6x96xbf16> to vector<6x96xbf16>
    %441 = arith.truncf %436 : vector<6x256xf32> to vector<6x256xbf16>
    %cst_249 = arith.constant dense<0.000000e+00> : vector<96x256xf32>
    %442 = tpu.matmul %438, %441, %cst_249 {dimension_numbers = #tpu.dot_dimension_numbers<[1], [0], [0], [1], [0, 0, 1, 1], [], []>} : vector<96x6xbf16>, vector<6x256xbf16>, vector<96x256xf32> -> vector<96x256xf32>
    %443 = arith.mulf %442, %442 : vector<96x256xf32>
    %444 = arith.mulf %442, %443 : vector<96x256xf32>
    %cst_250 = arith.constant 4.471500e-02 : f32
    %445 = vector.broadcast %cst_250 : f32 to vector<96x256xf32>
    %446 = arith.mulf %445, %444 : vector<96x256xf32>
    %447 = arith.addf %442, %446 : vector<96x256xf32>
    %cst_251 = arith.constant 0.797884583 : f32
    %448 = vector.broadcast %cst_251 : f32 to vector<96x256xf32>
    %449 = arith.mulf %448, %447 : vector<96x256xf32>
    %450 = math.tanh %449 : vector<96x256xf32>
    %cst_252 = arith.constant 1.000000e+00 : f32
    %451 = vector.broadcast %cst_252 : f32 to vector<96x256xf32>
    %452 = arith.addf %451, %450 : vector<96x256xf32>
    %cst_253 = arith.constant 5.000000e-01 : f32
    %453 = vector.broadcast %cst_253 : f32 to vector<96x256xf32>
    %454 = arith.mulf %453, %452 : vector<96x256xf32>
    %455 = arith.mulf %442, %454 : vector<96x256xf32>
    %456 = arith.truncf %455 : vector<96x256xf32> to vector<96x256xbf16>
    %cst_254 = arith.constant dense<0.000000e+00> : vector<6x256xf32>
    %457 = tpu.matmul %440, %456, %cst_254 {dimension_numbers = #tpu.dot_dimension_numbers<[1], [0], [0], [1], [0, 0, 1, 1], [], []>} : vector<6x96xbf16>, vector<96x256xbf16>, vector<6x256xf32> -> vector<6x256xf32>
    %458 = arith.addf %436, %457 : vector<6x256xf32>
    %c0_255 = arith.constant 0 : index
    %c0_256 = arith.constant 0 : index
    %c0_257 = arith.constant 0 : index
    %459 = vector.load %arg6[%c0_255, %c0_256, %c0_257] : memref<10x96x6xbf16, #tpu.memory_space<vmem>>, vector<1x96x6xbf16>
    %460 = vector.shape_cast %459 : vector<1x96x6xbf16> to vector<96x6xbf16>
    %c0_258 = arith.constant 0 : index
    %c0_259 = arith.constant 0 : index
    %c0_260 = arith.constant 0 : index
    %461 = vector.load %arg7[%c0_258, %c0_259, %c0_260] : memref<10x6x96xbf16, #tpu.memory_space<vmem>>, vector<1x6x96xbf16>
    %462 = vector.shape_cast %461 : vector<1x6x96xbf16> to vector<6x96xbf16>
    %463 = arith.truncf %458 : vector<6x256xf32> to vector<6x256xbf16>
    %cst_261 = arith.constant dense<0.000000e+00> : vector<96x256xf32>
    %464 = tpu.matmul %460, %463, %cst_261 {dimension_numbers = #tpu.dot_dimension_numbers<[1], [0], [0], [1], [0, 0, 1, 1], [], []>} : vector<96x6xbf16>, vector<6x256xbf16>, vector<96x256xf32> -> vector<96x256xf32>
    %465 = arith.mulf %464, %464 : vector<96x256xf32>
    %466 = arith.mulf %464, %465 : vector<96x256xf32>
    %cst_262 = arith.constant 4.471500e-02 : f32
    %467 = vector.broadcast %cst_262 : f32 to vector<96x256xf32>
    %468 = arith.mulf %467, %466 : vector<96x256xf32>
    %469 = arith.addf %464, %468 : vector<96x256xf32>
    %cst_263 = arith.constant 0.797884583 : f32
    %470 = vector.broadcast %cst_263 : f32 to vector<96x256xf32>
    %471 = arith.mulf %470, %469 : vector<96x256xf32>
    %472 = math.tanh %471 : vector<96x256xf32>
    %cst_264 = arith.constant 1.000000e+00 : f32
    %473 = vector.broadcast %cst_264 : f32 to vector<96x256xf32>
    %474 = arith.addf %473, %472 : vector<96x256xf32>
    %cst_265 = arith.constant 5.000000e-01 : f32
    %475 = vector.broadcast %cst_265 : f32 to vector<96x256xf32>
    %476 = arith.mulf %475, %474 : vector<96x256xf32>
    %477 = arith.mulf %464, %476 : vector<96x256xf32>
    %478 = arith.truncf %477 : vector<96x256xf32> to vector<96x256xbf16>
    %cst_266 = arith.constant dense<0.000000e+00> : vector<6x256xf32>
    %479 = tpu.matmul %462, %478, %cst_266 {dimension_numbers = #tpu.dot_dimension_numbers<[1], [0], [0], [1], [0, 0, 1, 1], [], []>} : vector<6x96xbf16>, vector<96x256xbf16>, vector<6x256xf32> -> vector<6x256xf32>
    %480 = arith.addf %458, %479 : vector<6x256xf32>
    %c0_267 = arith.constant 0 : index
    %c0_268 = arith.constant 0 : index
    %c0_269 = arith.constant 0 : index
    %481 = vector.load %arg10[%c0_267, %c0_268, %c0_269] : memref<1x6x256xf32, #tpu.memory_space<vmem>>, vector<1x6x256xf32>
    %482 = vector.shape_cast %481 : vector<1x6x256xf32> to vector<6x256xf32>
    %483 = vector.shape_cast %480 : vector<6x256xf32> to vector<1x6x256xf32>
    tpu.vector_store %arg10[%c0_267, %c0_268, %c0_269], %483 {strides = array<i32>} : memref<1x6x256xf32, #tpu.memory_space<vmem>>, vector<1x6x256xf32>,
    return
  }
  func.func @transform_0(%arg0: i32, %arg1: i32) -> (i32, i32, i32) {
    %c0_i32 = arith.constant 0 : i32
    %c0_i32_0 = arith.constant 0 : i32
    return %arg0, %c0_i32, %arg1 : i32, i32, i32
  }
  func.func @transform_1(%arg0: i32, %arg1: i32) -> (i32, i32) {
    %c0_i32 = arith.constant 0 : i32
    %c0_i32_0 = arith.constant 0 : i32
    %c0_i32_1 = arith.constant 0 : i32
    return %c0_i32, %c0_i32_0 : i32, i32
  }
  func.func @transform_2(%arg0: i32, %arg1: i32) -> (i32, i32, i32) {
    %c0_i32 = arith.constant 0 : i32
    %c0_i32_0 = arith.constant 0 : i32
    %c0_i32_1 = arith.constant 0 : i32
    %c0_i32_2 = arith.constant 0 : i32
    return %c0_i32, %c0_i32_0, %c0_i32_1 : i32, i32, i32
  }
  func.func @transform_3(%arg0: i32, %arg1: i32) -> (i32, i32, i32) {
    %c0_i32 = arith.constant 0 : i32
    %c0_i32_0 = arith.constant 0 : i32
    %c0_i32_1 = arith.constant 0 : i32
    %c0_i32_2 = arith.constant 0 : i32
    return %c0_i32, %c0_i32_0, %c0_i32_1 : i32, i32, i32
  }
  func.func @transform_4(%arg0: i32, %arg1: i32) -> (i32, i32, i32) {
    %c0_i32 = arith.constant 0 : i32
    %c0_i32_0 = arith.constant 0 : i32
    %c0_i32_1 = arith.constant 0 : i32
    %c0_i32_2 = arith.constant 0 : i32
    return %c0_i32, %c0_i32_0, %c0_i32_1 : i32, i32, i32
  }
  func.func @transform_5(%arg0: i32, %arg1: i32) -> (i32, i32, i32) {
    %c0_i32 = arith.constant 0 : i32
    %c0_i32_0 = arith.constant 0 : i32
    %c0_i32_1 = arith.constant 0 : i32
    %c0_i32_2 = arith.constant 0 : i32
    return %c0_i32, %c0_i32_0, %c0_i32_1 : i32, i32, i32
  }
  func.func @transform_6(%arg0: i32, %arg1: i32) -> (i32, i32, i32) {
    %c0_i32 = arith.constant 0 : i32
    %c0_i32_0 = arith.constant 0 : i32
    %c0_i32_1 = arith.constant 0 : i32
    %c0_i32_2 = arith.constant 0 : i32
    return %c0_i32, %c0_i32_0, %c0_i32_1 : i32, i32, i32
  }
  func.func @transform_7(%arg0: i32, %arg1: i32) -> (i32, i32, i32) {
    %c0_i32 = arith.constant 0 : i32
    %c0_i32_0 = arith.constant 0 : i32
    %c0_i32_1 = arith.constant 0 : i32
    %c0_i32_2 = arith.constant 0 : i32
    return %c0_i32, %c0_i32_0, %c0_i32_1 : i32, i32, i32
  }
  func.func @transform_8(%arg0: i32, %arg1: i32) -> (i32, i32, i32) {
    %c0_i32 = arith.constant 0 : i32
    %c0_i32_0 = arith.constant 0 : i32
    return %arg0, %c0_i32, %arg1 : i32, i32, i32
  }
}

module attributes {stable_mosaic.version = 11 : i64} {
  func.func @_conv_out_kernel(%arg0: i32, %arg1: i32, %arg2: memref<1x54x256xf32, #tpu.memory_space<vmem>>, %arg3: memref<4x54xbf16, #tpu.memory_space<vmem>>, %arg4: memref<1x4x256xf32, #tpu.memory_space<vmem>>) attributes {dimension_semantics = [#tpu.dimension_semantics<parallel>, #tpu.dimension_semantics<parallel>], iteration_bounds = array<i64: 2, 1>, scalar_prefetch = 0 : i64, scratch_operands = 0 : i64, tpu.core_type = #tpu.core_type<tc>, window_params = [{transform_indices = @transform_0, window_bounds = array<i64: 1, 54, 256>}, {pipeline_mode = #tpu.pipeline_mode<synchronous>, transform_indices = @transform_1, window_bounds = array<i64: 4, 54>}, {transform_indices = @transform_2, window_bounds = array<i64: 1, 4, 256>}]} {
    %c0 = arith.constant 0 : index
    %c0_0 = arith.constant 0 : index
    %0 = vector.load %arg3[%c0, %c0_0] : memref<4x54xbf16, #tpu.memory_space<vmem>>, vector<4x54xbf16>
    %c0_1 = arith.constant 0 : index
    %c0_2 = arith.constant 0 : index
    %c0_3 = arith.constant 0 : index
    %1 = vector.load %arg2[%c0_1, %c0_2, %c0_3] : memref<1x54x256xf32, #tpu.memory_space<vmem>>, vector<1x54x256xf32>
    %2 = vector.shape_cast %1 : vector<1x54x256xf32> to vector<54x256xf32>
    %3 = arith.truncf %2 : vector<54x256xf32> to vector<54x256xbf16>
    %cst = arith.constant dense<0.000000e+00> : vector<4x256xf32>
    %4 = tpu.matmul %0, %3, %cst {dimension_numbers = #tpu.dot_dimension_numbers<[1], [0], [0], [1], [0, 0, 1, 1], [], []>} : vector<4x54xbf16>, vector<54x256xbf16>, vector<4x256xf32> -> vector<4x256xf32>
    %c0_4 = arith.constant 0 : index
    %c0_5 = arith.constant 0 : index
    %c0_6 = arith.constant 0 : index
    %5 = vector.load %arg4[%c0_4, %c0_5, %c0_6] : memref<1x4x256xf32, #tpu.memory_space<vmem>>, vector<1x4x256xf32>
    %6 = vector.shape_cast %5 : vector<1x4x256xf32> to vector<4x256xf32>
    %7 = vector.shape_cast %4 : vector<4x256xf32> to vector<1x4x256xf32>
    tpu.vector_store %arg4[%c0_4, %c0_5, %c0_6], %7 {strides = array<i32>} : memref<1x4x256xf32, #tpu.memory_space<vmem>>, vector<1x4x256xf32>,
    return
  }
  func.func @transform_0(%arg0: i32, %arg1: i32) -> (i32, i32, i32) {
    %c0_i32 = arith.constant 0 : i32
    %c0_i32_0 = arith.constant 0 : i32
    return %arg0, %c0_i32, %arg1 : i32, i32, i32
  }
  func.func @transform_1(%arg0: i32, %arg1: i32) -> (i32, i32) {
    %c0_i32 = arith.constant 0 : i32
    %c0_i32_0 = arith.constant 0 : i32
    %c0_i32_1 = arith.constant 0 : i32
    return %c0_i32, %c0_i32_0 : i32, i32
  }
  func.func @transform_2(%arg0: i32, %arg1: i32) -> (i32, i32, i32) {
    %c0_i32 = arith.constant 0 : i32
    %c0_i32_0 = arith.constant 0 : i32
    return %arg0, %c0_i32, %arg1 : i32, i32, i32
  }
}

</mosaic_0001>

<llo_original>
// kernel: vimunet_forward.3
$region0: #{vimunet_forward.3}
  #allocation0 [shape = 'u32[]', space=smem, size = 0x4, offset = 0x4, fixed_abs, tag = 'smem constant byte address 0x4 - core index']
  #allocation1 [shape = 'u32[144,128]{1,0:T(1,128)}', space=vmem, size = 0x12000, scoped, tag = 'internal scratch']
  %s0 = inlined_call_operand.vmem [shape: f32[2,54,256], index: 0, kind: input, shape index: {}]
  %s1 = inlined_call_operand.vmem [shape: bf16[4,54], index: 1, kind: input, shape index: {}]
  %s2 = inlined_call_operand.vmem [shape: f32[2,4,256], index: 2, kind: output, shape index: {}]
  %s3 = sld [smem:[#allocation0]]
  $region41: #{vimunet_forward.3} parent=0
    _
  %s5 = ssub.s32 1, %s3
  %s6 = scalar_select 0, %s5, %s3
  loop: start=0, step=1, limit=4
  $region2: #{vimunet_forward.3} parent=0 // loop_pre_header
    _
  $region3: #{vimunet_forward.3} parent=0 // loop_header
    %s8 = sphi 0, %s12
    %p9 = scmp.ge.s32.totalorder %s8, 4
    %s15 = sphi 0, %s27
    %s16 = sphi 0, %s23
    %s17 = sphi 0, %s15
    %s18 = sphi 0, %s16
    %s19 = sphi 0, %s17
    %s20 = sphi 0, %s18
    %s32 = sphi 0, %s34
    %s35 = sphi 0, %s32
    %s36 = sphi 0, %s35
    %s52 = sphi 0, %s36
    %s56 = sphi 0, %s56
    %s58 = sphi 0, %s56
    %s59 = sphi 0, %s58
    %s73 = sphi 0, %s59
    %s81 = sphi 0, %s83
    %s84 = sphi 0, %s81
    %s85 = sphi 0, %s84
    %s101 = sphi 0, %s85
  $region4: #{vimunet_forward.3} parent=0 // loop_header_branch
    %11 = sbr.rel (%p9) target = $region8
  $region5: #{vimunet_forward.3} parent=0 // loop_body
    %s13 = ssub.s32 %s8, 1
    %s14 = ssub.s32 %s8, 2
    %s21 = sadd.s32 1, %s16
    %p22 = scmp.ge.s32.totalorder %s21, 1
    %s23 = scalar_select %p22, 0, %s21
    %s24 = sadd.s32 1, %s15
    %s25 = scalar_select %p22, %s24, %s15
    %p26 = scmp.ge.s32.totalorder %s25, 2
    %s27 = scalar_select %p26, 0, %s25
    %s28 = ssub.s32 %s15, %s27
    %s29 = ssub.s32 %s16, %s23
    %s30 = sor.u32 %s28, %s29
    %p31 = scmp.eq.s32.totalorder %s30, 0
    %s33 = sadd.s32 %s32, 1
    %s34 = scalar_select %p31, %s32, %s33
    %p37 = pneg %p31
    %p38 = scmp.eq.s32.totalorder %s8, 1
    %p39 = por %p37, %p38
    %p40 = scmp.ne.s32.totalorder %s32, %s35
    %p41 = scmp.eq.s32.totalorder %s8, 0
    %p42 = por %p40, %p41
    %p43 = scmp.ne.s32.totalorder %s32, %s35
    %p44 = scmp.eq.s32.totalorder %s13, 1
    %p45 = por %p43, %p44
    %p46 = scmp.ne.s32.totalorder %s35, %s36
    %p47 = scmp.eq.s32.totalorder %s13, 0
    %p48 = por %p46, %p47
    %p49 = scmp.ne.s32.totalorder %s35, %s36
    %p50 = scmp.eq.s32.totalorder %s14, 1
    %p51 = por %p49, %p50
    %p53 = scmp.ne.s32.totalorder %s36, %s52
    %p54 = scmp.eq.s32.totalorder %s14, 0
    %p55 = por %p53, %p54
    %s57 = sadd.s32 %s56, 1
    %p60 = scmp.eq.s32.totalorder %s8, 1
    %p61 = scmp.ne.s32.totalorder %s56, %s58
    %p62 = scmp.eq.s32.totalorder %s8, 0
    %p63 = por %p61, %p62
    %p64 = scmp.ne.s32.totalorder %s56, %s58
    %p65 = scmp.eq.s32.totalorder %s13, 1
    %p66 = por %p64, %p65
    %p67 = scmp.ne.s32.totalorder %s58, %s59
    %p68 = scmp.eq.s32.totalorder %s13, 0
    %p69 = por %p67, %p68
    %p70 = scmp.ne.s32.totalorder %s58, %s59
    %p71 = scmp.eq.s32.totalorder %s14, 1
    %p72 = por %p70, %p71
    %p74 = scmp.ne.s32.totalorder %s59, %s73
    %p75 = scmp.eq.s32.totalorder %s14, 0
    %p76 = por %p74, %p75
    %s77 = ssub.s32 %s15, %s27
    %s78 = ssub.s32 %s16, %s23
    %s79 = sor.u32 %s77, %s78
    %p80 = scmp.eq.s32.totalorder %s79, 0
    %s82 = sadd.s32 %s81, 1
    %s83 = scalar_select %p80, %s81, %s82
    %p86 = pneg %p80
    %p87 = scmp.eq.s32.totalorder %s8, 1
    %p88 = por %p86, %p87
    %p89 = scmp.ne.s32.totalorder %s81, %s84
    %p90 = scmp.eq.s32.totalorder %s8, 0
    %p91 = por %p89, %p90
    %p92 = scmp.ne.s32.totalorder %s81, %s84
    %p93 = scmp.eq.s32.totalorder %s13, 1
    %p94 = por %p92, %p93
    %p95 = scmp.ne.s32.totalorder %s84, %s85
    %p96 = scmp.eq.s32.totalorder %s13, 0
    %p97 = por %p95, %p96
    %p98 = scmp.ne.s32.totalorder %s84, %s85
    %p99 = scmp.eq.s32.totalorder %s14, 1
    %p100 = por %p98, %p99
    %p102 = scmp.ne.s32.totalorder %s85, %s101
    %p103 = scmp.eq.s32.totalorder %s14, 0
    %p104 = por %p102, %p103
    %p105 = scmp.le.s32.totalorder 1, %s8
    %p106 = scmp.lt.s32.totalorder %s8, 3
    %p107 = pnand %p105, %p106
    %p108 = pneg %p107
    // Predicated region
    $region9: #{vimunet_forward.3} parent=5 // pred_check
      _
    $region10: #{vimunet_forward.3} parent=5 // pred_check_branch
      %110 = sbr.rel (%p107) target = $region12
    $region11: #{vimunet_forward.3} parent=5 // pred_region
      %s111 = ssub.s32 %s8, 1
      // Predicated region
      $region13: #{vimunet_forward.3} parent=11 // pred_check
        %p112 = pneg %p69
      $region14: #{vimunet_forward.3} parent=11 // pred_check_branch
        %114 = sbr.rel (%p112) target = $region16
      $region15: #{vimunet_forward.3} parent=11 // pred_region
        _
      $region16: #{vimunet_forward.3} parent=11 // pred_fallthru
        _
    $region12: #{vimunet_forward.3} parent=5 // pred_fallthru
      _
    %p115 = scmp.lt.s32.totalorder %s8, 2
    // Predicated region
    $region17: #{vimunet_forward.3} parent=5 // pred_check
      %p116 = pneg %p115
    $region18: #{vimunet_forward.3} parent=5 // pred_check_branch
      %118 = sbr.rel (%p116) target = $region20
    $region19: #{vimunet_forward.3} parent=5 // pred_region
      // Predicated region
      $region21: #{vimunet_forward.3} parent=19 // pred_check
        %p119 = pneg %p42
      $region22: #{vimunet_forward.3} parent=19 // pred_check_branch
        %121 = sbr.rel (%p119) target = $region24
      $region23: #{vimunet_forward.3} parent=19 // pred_region
        %s122 = smul.u32 2, %s16
        %p123 = scmp.lt.s32.totalorder %s15, 1
        %s124 = scalar_select %p123, %s15, 1
        %p125 = scmp.lt.s32.totalorder %s122, 1
        %s126 = scalar_select %p125, %s122, 1
        %s127 = smul.addr %s124, 14
        %s128 = sadd.s32 %s126, %s127
        %s129 = smul.addr %s128, 8
        %s130 = scalar_lea.vmem %s0, %s129
        %s131 = smul.u32 2, %s16
      $region24: #{vimunet_forward.3} parent=19 // pred_fallthru
        _
    $region20: #{vimunet_forward.3} parent=5 // pred_fallthru
      _
    %p132 = scmp.le.s32.totalorder 1, %s8
    %p133 = scmp.lt.s32.totalorder %s8, 3
    %p134 = pnand %p132, %p133
    %p135 = pneg %p134
    // Predicated region
    $region25: #{vimunet_forward.3} parent=5 // pred_check
      _
    $region26: #{vimunet_forward.3} parent=5 // pred_check_branch
      %137 = sbr.rel (%p134) target = $region28
    $region27: #{vimunet_forward.3} parent=5 // pred_region
      %s138 = ssub.s32 %s8, 1
      %s139 = smul.u32 2, %s18
      %p140 = scmp.lt.s32.totalorder %s17, 1
      %s141 = scalar_select %p140, %s17, 1
      %p142 = scmp.lt.s32.totalorder %s139, 1
      %s143 = scalar_select %p142, %s139, 1
      %s144 = smul.addr %s141, 14
      %s145 = sadd.s32 %s143, %s144
      %s146 = smul.addr %s145, 8
      %s147 = scalar_lea.vmem %s0, %s146
      %p148 = pneg %p48
      %p149 = pneg %p45
      %p150 = pneg %p69
      %p151 = pneg %p66
      %p152 = pneg %p97
      %p153 = pneg %p94
      %s154 = smul.u32 2, %s18
      %p155 = scmp.lt.s32.totalorder %s17, 1
      %s156 = scalar_select %p155, %s17, 1
      %p157 = scmp.lt.s32.totalorder %s154, 1
      %s158 = scalar_select %p157, %s154, 1
      %s159 = smul.addr %s156, 2
      %s160 = sadd.s32 %s158, %s159
      %s161 = smul.addr %s160, 4
      %s162 = scalar_lea.vmem %s2, %s161
      %s163 = smul.u32 2, %s18
      %p164 = scmp.lt.s32.totalorder %s17, 1
      %s165 = scalar_select %p164, %s17, 1
      %p166 = scmp.lt.s32.totalorder %s163, 1
      %s167 = scalar_select %p166, %s163, 1
      %s168 = smul.addr %s165, 14
      %s169 = sadd.s32 %s167, %s168
      %s170 = smul.addr %s169, 8
      %s171 = scalar_lea.vmem %s0, %s170
      %s172 = smul.u32 2, %s18
      %s173 = smul.u32 2, %s18
      %p174 = scmp.lt.s32.totalorder %s17, 1
      %s175 = scalar_select %p174, %s17, 1
      %p176 = scmp.lt.s32.totalorder %s173, 1
      %s177 = scalar_select %p176, %s173, 1
      %s178 = smul.addr %s175, 2
      %s179 = sadd.s32 %s177, %s178
      %s180 = smul.addr %s179, 4
      %s181 = scalar_lea.vmem %s2, %s180
      %s182 = smul.u32 2, %s18
      %v184 = vld [vmem:[%s1] sm:$0x3]
      %v185 = vld [vmem:[%s171] sm:$0xff]
      %v186 = vld [vmem:[%s171 + $0x8] sm:$0xff]
      %v187 = vld [vmem:[%s171 + $0x10] sm:$0xff]
      %v188 = vld [vmem:[%s171 + $0x18] sm:$0xff]
      %v189 = vld [vmem:[%s171 + $0x20] sm:$0xff]
      %v190 = vld [vmem:[%s171 + $0x28] sm:$0xff]
      %v191 = vld [vmem:[%s171 + $0x30] sm:$0xff]
      %v192 = vld [vmem:[%s171 + $0x38] sm:$0xff]
      %v193 = vld [vmem:[%s171 + $0x40] sm:$0xff]
      %v194 = vld [vmem:[%s171 + $0x48] sm:$0xff]
      %v195 = vld [vmem:[%s171 + $0x50] sm:$0xff]
      %v196 = vld [vmem:[%s171 + $0x58] sm:$0xff]
      %v197 = vld [vmem:[%s171 + $0x60] sm:$0x3f]
      %v198 = vld [vmem:[%s171 + $0x68] sm:$0x3f]
      %v199 = vpack.c.bf16 %v187, %v185
      %v200 = vpack.c.bf16 %v188, %v186
      %v201 = vpack.c.bf16 %v191, %v189
      %v202 = vpack.c.bf16 %v192, %v190
      %v203 = vpack.c.bf16 %v195, %v193
      %v204 = vpack.c.bf16 %v196, %v194
      %v205 = vpack.c.bf16 %v197, %v197
      %v206 = vpack.c.bf16 %v198, %v198
      %vm207 = vcmask 441344
      %v209 = vsel %vm207, %v184, 0
      %vm211 = vcmask 1042432
      %v213 = vsel %vm211, %v205, 0
      %v216 = vsel %vm211, %v206, 0
      %218 = vmatprep.subr.bf16.mxu0 0
      %219 = vmatpush1.bf16.msra.mxu0 0
      %220 = vmatprep.subr.bf16.mxu0 0
      %221 = vmatpush1.bf16.msra.mxu0 0
      %222 = vmatprep.subr.bf16.mxu0 0
      %223 = vmatpush1.bf16.msra.mxu0 0
      %224 = vmatprep.subr.bf16.mxu0 0
      %225 = vmatpush1.bf16.msra.mxu0 0
      %226 = vmatprep.subr.bf16.mxu0 %v216
      %227 = vmatpush1.bf16.msra.mxu0 %v213
      %228 = vmatprep.subr.bf16.mxu0 %v204
      %229 = vmatpush1.bf16.msra.mxu0 %v203
      %230 = vmatprep.subr.bf16.mxu0 %v202
      %231 = vmatpush1.bf16.msra.mxu0 %v201
      %232 = vmatprep.subr.bf16.mxu0 %v200
      %233 = vmatpush1.bf16.msra.mxu0 %v199
      %234 = vmatprep.subr.bf16.mxu0 0
      %235 = vmatpush2.bf16.msra.mxu0 0
      %236 = vmatprep.subr.bf16.mxu0 0
      %237 = vmatpush2.bf16.msra.mxu0 0
      %238 = vmatprep.subr.bf16.mxu0 0
      %239 = vmatpush2.bf16.msra.mxu0 0
      %240 = vmatprep.subr.bf16.mxu0 0
      %241 = vmatpush2.bf16.msra.mxu0 0
      %242 = vmatprep.subr.bf16.mxu0 0
      %243 = vmatpush2.bf16.msra.mxu0 0
      %244 = vmatprep.subr.bf16.mxu0 0
      %245 = vmatpush2.bf16.msra.mxu0 0
      %246 = vmatprep.subr.bf16.mxu0 0
      %247 = vmatpush2.bf16.msra.mxu0 0
      %248 = vmatprep.subr.bf16.mxu0 0
      %249 = vmatpush2.bf16.msra.mxu0 0
      %250 = vmatprep.mubr.bf16.mxu0 0
      %251 = vmatmul.mubr.bf16.gmra.mxu0 %v209
      %v252 = vpop.f32.mrf.mxu0
      %v253 = vadd.f32 0.0, %v252
      %v254 = vpop.f32.mrf.mxu0
      %v255 = vadd.f32 0.0, %v254
      %v256 = vpop.f32.mrf.mxu0
      %v257 = vpop.f32.mrf.mxu0
      %258 = vdwg.mxu0
      %v261 = vcombine.low %v253, %v255
      %263 = vst [vmem:[%s181] sm:$0xff] %v261
      %s264 = smul.u32 2, %s18
      %p265 = scmp.lt.s32.totalorder %s17, 1
      %s266 = scalar_select %p265, %s17, 1
      %p267 = scmp.lt.s32.totalorder %s264, 1
      %s268 = scalar_select %p267, %s264, 1
      %s269 = smul.addr %s266, 2
      %s270 = sadd.s32 %s268, %s269
      %s271 = smul.addr %s270, 4
      %s272 = scalar_lea.vmem %s2, %s271
      // Predicated region
      $region29: #{vimunet_forward.3} parent=27 // pred_check
        %p273 = pneg %p94
      $region30: #{vimunet_forward.3} parent=27 // pred_check_branch
        %275 = sbr.rel (%p273) target = $region32
      $region31: #{vimunet_forward.3} parent=27 // pred_region
        %s276 = smul.u32 2, %s18
      $region32: #{vimunet_forward.3} parent=27 // pred_fallthru
        _
    $region28: #{vimunet_forward.3} parent=5 // pred_fallthru
      _
    %p277 = scmp.le.s32.totalorder 2, %s8
    // Predicated region
    $region33: #{vimunet_forward.3} parent=5 // pred_check
      %p278 = pneg %p277
    $region34: #{vimunet_forward.3} parent=5 // pred_check_branch
      %280 = sbr.rel (%p278) target = $region36
    $region35: #{vimunet_forward.3} parent=5 // pred_region
      %s281 = ssub.s32 %s8, 2
      // Predicated region
      $region37: #{vimunet_forward.3} parent=35 // pred_check
        %p282 = pneg %p100
      $region38: #{vimunet_forward.3} parent=35 // pred_check_branch
        %284 = sbr.rel (%p282) target = $region40
      $region39: #{vimunet_forward.3} parent=35 // pred_region
        %s285 = smul.u32 2, %s20
        %p286 = scmp.lt.s32.totalorder %s19, 1
        %s287 = scalar_select %p286, %s19, 1
        %p288 = scmp.lt.s32.totalorder %s285, 1
        %s289 = scalar_select %p288, %s285, 1
        %s290 = smul.addr %s287, 2
        %s291 = sadd.s32 %s289, %s290
        %s292 = smul.addr %s291, 4
        %s293 = scalar_lea.vmem %s2, %s292
      $region40: #{vimunet_forward.3} parent=35 // pred_fallthru
        _
    $region36: #{vimunet_forward.3} parent=5 // pred_fallthru
      _
  $region6: #{vimunet_forward.3} parent=0 // loop_footer
    %s12 = sadd.s32 1, %s8
  $region7: #{vimunet_forward.3} parent=0 // loop_footer_branch
    %7 = sbr.rel target = $region3
  $region8: #{vimunet_forward.3} parent=0 // loop_exit
    _

// kernel: vimunet_forward.2
$region0: #{vimunet_forward.2}
  #allocation0 [shape = 'u32[]', space=smem, size = 0x4, offset = 0x4, fixed_abs, tag = 'smem constant byte address 0x4 - core index']
  #allocation1 [shape = 'u32[144,128]{1,0:T(1,128)}', space=vmem, size = 0x12000, scoped, tag = 'internal scratch']
  %s0 = inlined_call_operand.vmem [shape: f32[2,4,256], index: 0, kind: input, shape index: {}]
  %s1 = inlined_call_operand.vmem [shape: bf16[6,4], index: 1, kind: input, shape index: {}]
  %s2 = inlined_call_operand.vmem [shape: bf16[10,96,6], index: 2, kind: input, shape index: {}]
  %s3 = inlined_call_operand.vmem [shape: bf16[10,6,96], index: 3, kind: input, shape index: {}]
  %s4 = inlined_call_operand.vmem [shape: bf16[10,96,6], index: 4, kind: input, shape index: {}]
  %s5 = inlined_call_operand.vmem [shape: bf16[10,6,96], index: 5, kind: input, shape index: {}]
  %s6 = inlined_call_operand.vmem [shape: bf16[4,6,6], index: 6, kind: input, shape index: {}]
  %s7 = inlined_call_operand.vmem [shape: bf16[4,6,6], index: 7, kind: input, shape index: {}]
  %s8 = inlined_call_operand.vmem [shape: f32[2,6,256], index: 8, kind: output, shape index: {}]
  %s9 = sld [smem:[#allocation0]]
  $region65: #{vimunet_forward.2} parent=0
    _
  %s11 = ssub.s32 1, %s9
  %s12 = scalar_select 0, %s11, %s9
  loop: start=0, step=1, limit=4
  $region2: #{vimunet_forward.2} parent=0 // loop_pre_header
    _
  $region3: #{vimunet_forward.2} parent=0 // loop_header
    %s14 = sphi 0, %s18
    %p15 = scmp.ge.s32.totalorder %s14, 4
    %s21 = sphi 0, %s33
    %s22 = sphi 0, %s29
    %s23 = sphi 0, %s21
    %s24 = sphi 0, %s22
    %s25 = sphi 0, %s23
    %s26 = sphi 0, %s24
    %s38 = sphi 0, %s40
    %s41 = sphi 0, %s38
    %s42 = sphi 0, %s41
    %s58 = sphi 0, %s42
    %s62 = sphi 0, %s62
    %s64 = sphi 0, %s62
    %s65 = sphi 0, %s64
    %s79 = sphi 0, %s65
    %s83 = sphi 0, %s83
    %s85 = sphi 0, %s83
    %s86 = sphi 0, %s85
    %s100 = sphi 0, %s86
    %s104 = sphi 0, %s104
    %s106 = sphi 0, %s104
    %s107 = sphi 0, %s106
    %s121 = sphi 0, %s107
    %s125 = sphi 0, %s125
    %s127 = sphi 0, %s125
    %s128 = sphi 0, %s127
    %s142 = sphi 0, %s128
    %s146 = sphi 0, %s146
    %s148 = sphi 0, %s146
    %s149 = sphi 0, %s148
    %s163 = sphi 0, %s149
    %s167 = sphi 0, %s167
    %s169 = sphi 0, %s167
    %s170 = sphi 0, %s169
    %s184 = sphi 0, %s170
    %s188 = sphi 0, %s188
    %s190 = sphi 0, %s188
    %s191 = sphi 0, %s190
    %s205 = sphi 0, %s191
    %s213 = sphi 0, %s215
    %s216 = sphi 0, %s213
    %s217 = sphi 0, %s216
    %s233 = sphi 0, %s217
  $region4: #{vimunet_forward.2} parent=0 // loop_header_branch
    %17 = sbr.rel (%p15) target = $region8
  $region5: #{vimunet_forward.2} parent=0 // loop_body
    %s19 = ssub.s32 %s14, 1
    %s20 = ssub.s32 %s14, 2
    %s27 = sadd.s32 1, %s22
    %p28 = scmp.ge.s32.totalorder %s27, 1
    %s29 = scalar_select %p28, 0, %s27
    %s30 = sadd.s32 1, %s21
    %s31 = scalar_select %p28, %s30, %s21
    %p32 = scmp.ge.s32.totalorder %s31, 2
    %s33 = scalar_select %p32, 0, %s31
    %s34 = ssub.s32 %s21, %s33
    %s35 = ssub.s32 %s22, %s29
    %s36 = sor.u32 %s34, %s35
    %p37 = scmp.eq.s32.totalorder %s36, 0
    %s39 = sadd.s32 %s38, 1
    %s40 = scalar_select %p37, %s38, %s39
    %p43 = pneg %p37
    %p44 = scmp.eq.s32.totalorder %s14, 1
    %p45 = por %p43, %p44
    %p46 = scmp.ne.s32.totalorder %s38, %s41
    %p47 = scmp.eq.s32.totalorder %s14, 0
    %p48 = por %p46, %p47
    %p49 = scmp.ne.s32.totalorder %s38, %s41
    %p50 = scmp.eq.s32.totalorder %s19, 1
    %p51 = por %p49, %p50
    %p52 = scmp.ne.s32.totalorder %s41, %s42
    %p53 = scmp.eq.s32.totalorder %s19, 0
    %p54 = por %p52, %p53
    %p55 = scmp.ne.s32.totalorder %s41, %s42
    %p56 = scmp.eq.s32.totalorder %s20, 1
    %p57 = por %p55, %p56
    %p59 = scmp.ne.s32.totalorder %s42, %s58
    %p60 = scmp.eq.s32.totalorder %s20, 0
    %p61 = por %p59, %p60
    %s63 = sadd.s32 %s62, 1
    %p66 = scmp.eq.s32.totalorder %s14, 1
    %p67 = scmp.ne.s32.totalorder %s62, %s64
    %p68 = scmp.eq.s32.totalorder %s14, 0
    %p69 = por %p67, %p68
    %p70 = scmp.ne.s32.totalorder %s62, %s64
    %p71 = scmp.eq.s32.totalorder %s19, 1
    %p72 = por %p70, %p71
    %p73 = scmp.ne.s32.totalorder %s64, %s65
    %p74 = scmp.eq.s32.totalorder %s19, 0
    %p75 = por %p73, %p74
    %p76 = scmp.ne.s32.totalorder %s64, %s65
    %p77 = scmp.eq.s32.totalorder %s20, 1
    %p78 = por %p76, %p77
    %p80 = scmp.ne.s32.totalorder %s65, %s79
    %p81 = scmp.eq.s32.totalorder %s20, 0
    %p82 = por %p80, %p81
    %s84 = sadd.s32 %s83, 1
    %p87 = scmp.eq.s32.totalorder %s14, 1
    %p88 = scmp.ne.s32.totalorder %s83, %s85
    %p89 = scmp.eq.s32.totalorder %s14, 0
    %p90 = por %p88, %p89
    %p91 = scmp.ne.s32.totalorder %s83, %s85
    %p92 = scmp.eq.s32.totalorder %s19, 1
    %p93 = por %p91, %p92
    %p94 = scmp.ne.s32.totalorder %s85, %s86
    %p95 = scmp.eq.s32.totalorder %s19, 0
    %p96 = por %p94, %p95
    %p97 = scmp.ne.s32.totalorder %s85, %s86
    %p98 = scmp.eq.s32.totalorder %s20, 1
    %p99 = por %p97, %p98
    %p101 = scmp.ne.s32.totalorder %s86, %s100
    %p102 = scmp.eq.s32.totalorder %s20, 0
    %p103 = por %p101, %p102
    %s105 = sadd.s32 %s104, 1
    %p108 = scmp.eq.s32.totalorder %s14, 1
    %p109 = scmp.ne.s32.totalorder %s104, %s106
    %p110 = scmp.eq.s32.totalorder %s14, 0
    %p111 = por %p109, %p110
    %p112 = scmp.ne.s32.totalorder %s104, %s106
    %p113 = scmp.eq.s32.totalorder %s19, 1
    %p114 = por %p112, %p113
    %p115 = scmp.ne.s32.totalorder %s106, %s107
    %p116 = scmp.eq.s32.totalorder %s19, 0
    %p117 = por %p115, %p116
    %p118 = scmp.ne.s32.totalorder %s106, %s107
    %p119 = scmp.eq.s32.totalorder %s20, 1
    %p120 = por %p118, %p119
    %p122 = scmp.ne.s32.totalorder %s107, %s121
    %p123 = scmp.eq.s32.totalorder %s20, 0
    %p124 = por %p122, %p123
    %s126 = sadd.s32 %s125, 1
    %p129 = scmp.eq.s32.totalorder %s14, 1
    %p130 = scmp.ne.s32.totalorder %s125, %s127
    %p131 = scmp.eq.s32.totalorder %s14, 0
    %p132 = por %p130, %p131
    %p133 = scmp.ne.s32.totalorder %s125, %s127
    %p134 = scmp.eq.s32.totalorder %s19, 1
    %p135 = por %p133, %p134
    %p136 = scmp.ne.s32.totalorder %s127, %s128
    %p137 = scmp.eq.s32.totalorder %s19, 0
    %p138 = por %p136, %p137
    %p139 = scmp.ne.s32.totalorder %s127, %s128
    %p140 = scmp.eq.s32.totalorder %s20, 1
    %p141 = por %p139, %p140
    %p143 = scmp.ne.s32.totalorder %s128, %s142
    %p144 = scmp.eq.s32.totalorder %s20, 0
    %p145 = por %p143, %p144
    %s147 = sadd.s32 %s146, 1
    %p150 = scmp.eq.s32.totalorder %s14, 1
    %p151 = scmp.ne.s32.totalorder %s146, %s148
    %p152 = scmp.eq.s32.totalorder %s14, 0
    %p153 = por %p151, %p152
    %p154 = scmp.ne.s32.totalorder %s146, %s148
    %p155 = scmp.eq.s32.totalorder %s19, 1
    %p156 = por %p154, %p155
    %p157 = scmp.ne.s32.totalorder %s148, %s149
    %p158 = scmp.eq.s32.totalorder %s19, 0
    %p159 = por %p157, %p158
    %p160 = scmp.ne.s32.totalorder %s148, %s149
    %p161 = scmp.eq.s32.totalorder %s20, 1
    %p162 = por %p160, %p161
    %p164 = scmp.ne.s32.totalorder %s149, %s163
    %p165 = scmp.eq.s32.totalorder %s20, 0
    %p166 = por %p164, %p165
    %s168 = sadd.s32 %s167, 1
    %p171 = scmp.eq.s32.totalorder %s14, 1
    %p172 = scmp.ne.s32.totalorder %s167, %s169
    %p173 = scmp.eq.s32.totalorder %s14, 0
    %p174 = por %p172, %p173
    %p175 = scmp.ne.s32.totalorder %s167, %s169
    %p176 = scmp.eq.s32.totalorder %s19, 1
    %p177 = por %p175, %p176
    %p178 = scmp.ne.s32.totalorder %s169, %s170
    %p179 = scmp.eq.s32.totalorder %s19, 0
    %p180 = por %p178, %p179
    %p181 = scmp.ne.s32.totalorder %s169, %s170
    %p182 = scmp.eq.s32.totalorder %s20, 1
    %p183 = por %p181, %p182
    %p185 = scmp.ne.s32.totalorder %s170, %s184
    %p186 = scmp.eq.s32.totalorder %s20, 0
    %p187 = por %p185, %p186
    %s189 = sadd.s32 %s188, 1
    %p192 = scmp.eq.s32.totalorder %s14, 1
    %p193 = scmp.ne.s32.totalorder %s188, %s190
    %p194 = scmp.eq.s32.totalorder %s14, 0
    %p195 = por %p193, %p194
    %p196 = scmp.ne.s32.totalorder %s188, %s190
    %p197 = scmp.eq.s32.totalorder %s19, 1
    %p198 = por %p196, %p197
    %p199 = scmp.ne.s32.totalorder %s190, %s191
    %p200 = scmp.eq.s32.totalorder %s19, 0
    %p201 = por %p199, %p200
    %p202 = scmp.ne.s32.totalorder %s190, %s191
    %p203 = scmp.eq.s32.totalorder %s20, 1
    %p204 = por %p202, %p203
    %p206 = scmp.ne.s32.totalorder %s191, %s205
    %p207 = scmp.eq.s32.totalorder %s20, 0
    %p208 = por %p206, %p207
    %s209 = ssub.s32 %s21, %s33
    %s210 = ssub.s32 %s22, %s29
    %s211 = sor.u32 %s209, %s210
    %p212 = scmp.eq.s32.totalorder %s211, 0
    %s214 = sadd.s32 %s213, 1
    %s215 = scalar_select %p212, %s213, %s214
    %p218 = pneg %p212
    %p219 = scmp.eq.s32.totalorder %s14, 1
    %p220 = por %p218, %p219
    %p221 = scmp.ne.s32.totalorder %s213, %s216
    %p222 = scmp.eq.s32.totalorder %s14, 0
    %p223 = por %p221, %p222
    %p224 = scmp.ne.s32.totalorder %s213, %s216
    %p225 = scmp.eq.s32.totalorder %s19, 1
    %p226 = por %p224, %p225
    %p227 = scmp.ne.s32.totalorder %s216, %s217
    %p228 = scmp.eq.s32.totalorder %s19, 0
    %p229 = por %p227, %p228
    %p230 = scmp.ne.s32.totalorder %s216, %s217
    %p231 = scmp.eq.s32.totalorder %s20, 1
    %p232 = por %p230, %p231
    %p234 = scmp.ne.s32.totalorder %s217, %s233
    %p235 = scmp.eq.s32.totalorder %s20, 0
    %p236 = por %p234, %p235
    %p237 = scmp.le.s32.totalorder 1, %s14
    %p238 = scmp.lt.s32.totalorder %s14, 3
    %p239 = pnand %p237, %p238
    %p240 = pneg %p239
    // Predicated region
    $region9: #{vimunet_forward.2} parent=5 // pred_check
      _
    $region10: #{vimunet_forward.2} parent=5 // pred_check_branch
      %242 = sbr.rel (%p239) target = $region12
    $region11: #{vimunet_forward.2} parent=5 // pred_region
      %s243 = ssub.s32 %s14, 1
      // Predicated region
      $region13: #{vimunet_forward.2} parent=11 // pred_check
        %p244 = pneg %p75
      $region14: #{vimunet_forward.2} parent=11 // pred_check_branch
        %246 = sbr.rel (%p244) target = $region16
      $region15: #{vimunet_forward.2} parent=11 // pred_region
        _
      $region16: #{vimunet_forward.2} parent=11 // pred_fallthru
        _
      // Predicated region
      $region17: #{vimunet_forward.2} parent=11 // pred_check
        %p247 = pneg %p96
      $region18: #{vimunet_forward.2} parent=11 // pred_check_branch
        %249 = sbr.rel (%p247) target = $region20
      $region19: #{vimunet_forward.2} parent=11 // pred_region
        _
      $region20: #{vimunet_forward.2} parent=11 // pred_fallthru
        _
      // Predicated region
      $region21: #{vimunet_forward.2} parent=11 // pred_check
        %p250 = pneg %p117
      $region22: #{vimunet_forward.2} parent=11 // pred_check_branch
        %252 = sbr.rel (%p250) target = $region24
      $region23: #{vimunet_forward.2} parent=11 // pred_region
        _
      $region24: #{vimunet_forward.2} parent=11 // pred_fallthru
        _
      // Predicated region
      $region25: #{vimunet_forward.2} parent=11 // pred_check
        %p253 = pneg %p138
      $region26: #{vimunet_forward.2} parent=11 // pred_check_branch
        %255 = sbr.rel (%p253) target = $region28
      $region27: #{vimunet_forward.2} parent=11 // pred_region
        _
      $region28: #{vimunet_forward.2} parent=11 // pred_fallthru
        _
      // Predicated region
      $region29: #{vimunet_forward.2} parent=11 // pred_check
        %p256 = pneg %p159
      $region30: #{vimunet_forward.2} parent=11 // pred_check_branch
        %258 = sbr.rel (%p256) target = $region32
      $region31: #{vimunet_forward.2} parent=11 // pred_region
        _
      $region32: #{vimunet_forward.2} parent=11 // pred_fallthru
        _
      // Predicated region
      $region33: #{vimunet_forward.2} parent=11 // pred_check
        %p259 = pneg %p180
      $region34: #{vimunet_forward.2} parent=11 // pred_check_branch
        %261 = sbr.rel (%p259) target = $region36
      $region35: #{vimunet_forward.2} parent=11 // pred_region
        _
      $region36: #{vimunet_forward.2} parent=11 // pred_fallthru
        _
      // Predicated region
      $region37: #{vimunet_forward.2} parent=11 // pred_check
        %p262 = pneg %p201
      $region38: #{vimunet_forward.2} parent=11 // pred_check_branch
        %264 = sbr.rel (%p262) target = $region40
      $region39: #{vimunet_forward.2} parent=11 // pred_region
        _
      $region40: #{vimunet_forward.2} parent=11 // pred_fallthru
        _
    $region12: #{vimunet_forward.2} parent=5 // pred_fallthru
      _
    %p265 = scmp.lt.s32.totalorder %s14, 2
    // Predicated region
    $region41: #{vimunet_forward.2} parent=5 // pred_check
      %p266 = pneg %p265
    $region42: #{vimunet_forward.2} parent=5 // pred_check_branch
      %268 = sbr.rel (%p266) target = $region44
    $region43: #{vimunet_forward.2} parent=5 // pred_region
      // Predicated region
      $region45: #{vimunet_forward.2} parent=43 // pred_check
        %p269 = pneg %p48
      $region46: #{vimunet_forward.2} parent=43 // pred_check_branch
        %271 = sbr.rel (%p269) target = $region48
      $region47: #{vimunet_forward.2} parent=43 // pred_region
        %s272 = smul.u32 2, %s22
        %p273 = scmp.lt.s32.totalorder %s21, 1
        %s274 = scalar_select %p273, %s21, 1
        %p275 = scmp.lt.s32.totalorder %s272, 1
        %s276 = scalar_select %p275, %s272, 1
        %s277 = smul.addr %s274, 2
        %s278 = sadd.s32 %s276, %s277
        %s279 = smul.addr %s278, 4
        %s280 = scalar_lea.vmem %s0, %s279
        %s281 = smul.u32 2, %s22
      $region48: #{vimunet_forward.2} parent=43 // pred_fallthru
        _
    $region44: #{vimunet_forward.2} parent=5 // pred_fallthru
      _
    %p282 = scmp.le.s32.totalorder 1, %s14
    %p283 = scmp.lt.s32.totalorder %s14, 3
    %p284 = pnand %p282, %p283
    %p285 = pneg %p284
    // Predicated region
    $region49: #{vimunet_forward.2} parent=5 // pred_check
      _
    $region50: #{vimunet_forward.2} parent=5 // pred_check_branch
      %287 = sbr.rel (%p284) target = $region52
    $region51: #{vimunet_forward.2} parent=5 // pred_region
      %s288 = ssub.s32 %s14, 1
      %s289 = smul.u32 2, %s24
      %p290 = scmp.lt.s32.totalorder %s23, 1
      %s291 = scalar_select %p290, %s23, 1
      %p292 = scmp.lt.s32.totalorder %s289, 1
      %s293 = scalar_select %p292, %s289, 1
      %s294 = smul.addr %s291, 2
      %s295 = sadd.s32 %s293, %s294
      %s296 = smul.addr %s295, 4
      %s297 = scalar_lea.vmem %s0, %s296
      %p298 = pneg %p54
      %p299 = pneg %p51
      %p300 = pneg %p75
      %p301 = pneg %p72
      %p302 = pneg %p96
      %p303 = pneg %p93
      %p304 = pneg %p117
      %p305 = pneg %p114
      %p306 = pneg %p138
      %p307 = pneg %p135
      %p308 = pneg %p159
      %p309 = pneg %p156
      %p310 = pneg %p180
      %p311 = pneg %p177
      %p312 = pneg %p201
      %p313 = pneg %p198
      %p314 = pneg %p229
      %p315 = pneg %p226
      %s316 = smul.u32 2, %s24
      %p317 = scmp.lt.s32.totalorder %s23, 1
      %s318 = scalar_select %p317, %s23, 1
      %p319 = scmp.lt.s32.totalorder %s316, 1
      %s320 = scalar_select %p319, %s316, 1
      %s321 = smul.addr %s318, 2
      %s322 = sadd.s32 %s320, %s321
      %s323 = smul.addr %s322, 8
      %s324 = scalar_lea.vmem %s8, %s323
      %s325 = smul.u32 2, %s24
      %p326 = scmp.lt.s32.totalorder %s23, 1
      %s327 = scalar_select %p326, %s23, 1
      %p328 = scmp.lt.s32.totalorder %s325, 1
      %s329 = scalar_select %p328, %s325, 1
      %s330 = smul.addr %s327, 2
      %s331 = sadd.s32 %s329, %s330
      %s332 = smul.addr %s331, 4
      %s333 = scalar_lea.vmem %s0, %s332
      %s334 = smul.u32 2, %s24
      %s335 = smul.u32 2, %s24
      %p336 = scmp.lt.s32.totalorder %s23, 1
      %s337 = scalar_select %p336, %s23, 1
      %p338 = scmp.lt.s32.totalorder %s335, 1
      %s339 = scalar_select %p338, %s335, 1
      %s340 = smul.addr %s337, 2
      %s341 = sadd.s32 %s339, %s340
      %s342 = smul.addr %s341, 8
      %s343 = scalar_lea.vmem %s8, %s342
      %s344 = smul.u32 2, %s24
      %v346 = vld [vmem:[%s1] sm:$0x7]
      %v347 = vld [vmem:[%s333] sm:$0xff]
      %v349 = vcombine.high %v347, %v347
      %v351 = vpack.c.bf16 %v347, %v347
      %v352 = vpack.c.bf16 %v349, %v349
      %vm353 = vcmask 31744
      %v355 = vsel %vm353, %v346, 0
      %vm357 = vcmask 1041408
      %v359 = vsel %vm357, %v351, 0
      %v362 = vsel %vm357, %v352, 0
      %364 = vmatprep.subr.bf16.mxu0 0
      %365 = vmatpush1.bf16.msra.mxu0 0
      %366 = vmatprep.subr.bf16.mxu0 0
      %367 = vmatpush1.bf16.msra.mxu0 0
      %368 = vmatprep.subr.bf16.mxu0 0
      %369 = vmatpush1.bf16.msra.mxu0 0
      %370 = vmatprep.subr.bf16.mxu0 0
      %371 = vmatpush1.bf16.msra.mxu0 0
      %372 = vmatprep.subr.bf16.mxu0 0
      %373 = vmatpush1.bf16.msra.mxu0 0
      %374 = vmatprep.subr.bf16.mxu0 0
      %375 = vmatpush1.bf16.msra.mxu0 0
      %376 = vmatprep.subr.bf16.mxu0 0
      %377 = vmatpush1.bf16.msra.mxu0 0
      %378 = vmatprep.subr.bf16.mxu0 %v362
      %379 = vmatpush1.bf16.msra.mxu0 %v359
      %380 = vmatprep.subr.bf16.mxu0 0
      %381 = vmatpush2.bf16.msra.mxu0 0
      %382 = vmatprep.subr.bf16.mxu0 0
      %383 = vmatpush2.bf16.msra.mxu0 0
      %384 = vmatprep.subr.bf16.mxu0 0
      %385 = vmatpush2.bf16.msra.mxu0 0
      %386 = vmatprep.subr.bf16.mxu0 0
      %387 = vmatpush2.bf16.msra.mxu0 0
      %388 = vmatprep.subr.bf16.mxu0 0
      %389 = vmatpush2.bf16.msra.mxu0 0
      %390 = vmatprep.subr.bf16.mxu0 0
      %391 = vmatpush2.bf16.msra.mxu0 0
      %392 = vmatprep.subr.bf16.mxu0 0
      %393 = vmatpush2.bf16.msra.mxu0 0
      %394 = vmatprep.subr.bf16.mxu0 0
      %395 = vmatpush2.bf16.msra.mxu0 0
      %396 = vmatprep.mubr.bf16.mxu0 0
      %397 = vmatmul.mubr.bf16.gmra.mxu0 %v355
      %v398 = vpop.f32.mrf.mxu0
      %v399 = vadd.f32 0.0, %v398
      %v400 = vpop.f32.mrf.mxu0
      %v401 = vadd.f32 0.0, %v400
      %v402 = vpop.f32.mrf.mxu0
      %v403 = vpop.f32.mrf.mxu0
      %404 = vdwg.mxu0
      %v405 = vld [vmem:[%s2] sm:$0xf]
      %v406 = vld [vmem:[%s2 + $0x4] sm:$0xf]
      %v407 = vld [vmem:[%s2 + $0x8] sm:$0xf]
      %v408 = vld [vmem:[%s2 + $0xc] sm:$0xf]
      %v409 = vld [vmem:[%s2 + $0x10] sm:$0xf]
      %v410 = vld [vmem:[%s2 + $0x14] sm:$0xf]
      %v411 = vld [vmem:[%s2 + $0x18] sm:$0xf]
      %v412 = vld [vmem:[%s2 + $0x1c] sm:$0xf]
      %v413 = vld [vmem:[%s2 + $0x20] sm:$0xf]
      %v414 = vld [vmem:[%s2 + $0x24] sm:$0xf]
      %v415 = vld [vmem:[%s2 + $0x28] sm:$0xf]
      %v416 = vld [vmem:[%s2 + $0x2c] sm:$0xf]
      %v417 = vld [vmem:[%s3] sm:$0x7]
      %v418 = vpack.c.bf16 %v399, %v399
      %v419 = vpack.c.bf16 %v401, %v401
      %v432 = vunpack.c.l.b16 %v405
      %v433 = vunpack.c.l.b16 %v406
      %v434 = vunpack.c.l.b16 %v407
      %v435 = vunpack.c.l.b16 %v408
      %v436 = vunpack.c.l.b16 %v409
      %v437 = vunpack.c.l.b16 %v410
      %v438 = vunpack.c.l.b16 %v411
      %v439 = vunpack.c.l.b16 %v412
      %v440 = vunpack.c.l.b16 %v413
      %v441 = vunpack.c.l.b16 %v414
      %v442 = vunpack.c.l.b16 %v415
      %v443 = vunpack.c.l.b16 %v416
      %v444 = vpack.c.b16 %v433, %v432
      %v445 = vpack.c.b16 %v435, %v434
      %v446 = vpack.c.b16 %v437, %v436
      %v447 = vpack.c.b16 %v439, %v438
      %v448 = vpack.c.b16 %v441, %v440
      %v449 = vpack.c.b16 %v443, %v442
      %vm450 = vcmask 48128
      %v452 = vsel %vm450, %v444, 0
      %v455 = vsel %vm450, %v445, 0
      %v458 = vsel %vm450, %v446, 0
      %v461 = vsel %vm450, %v447, 0
      %v464 = vsel %vm450, %v448, 0
      %v467 = vsel %vm450, %v449, 0
      %vm469 = vcmask 1042432
      %v471 = vsel %vm469, %v418, 0
      %v474 = vsel %vm469, %v419, 0
      %476 = vmatprep.subr.bf16.mxu0 0
      %477 = vmatpush1.bf16.msra.mxu0 0
      %478 = vmatprep.subr.bf16.mxu0 0
      %479 = vmatpush1.bf16.msra.mxu0 0
      %480 = vmatprep.subr.bf16.mxu0 0
      %481 = vmatpush1.bf16.msra.mxu0 0
      %482 = vmatprep.subr.bf16.mxu0 0
      %483 = vmatpush1.bf16.msra.mxu0 0
      %484 = vmatprep.subr.bf16.mxu0 0
      %485 = vmatpush1.bf16.msra.mxu0 0
      %486 = vmatprep.subr.bf16.mxu0 0
      %487 = vmatpush1.bf16.msra.mxu0 0
      %488 = vmatprep.subr.bf16.mxu0 0
      %489 = vmatpush1.bf16.msra.mxu0 0
      %490 = vmatprep.subr.bf16.mxu0 %v474
      %491 = vmatpush1.bf16.msra.mxu0 %v471
      %492 = vmatprep.subr.bf16.mxu0 0
      %493 = vmatpush2.bf16.msra.mxu0 0
      %494 = vmatprep.subr.bf16.mxu0 0
      %495 = vmatpush2.bf16.msra.mxu0 0
      %496 = vmatprep.subr.bf16.mxu0 0
      %497 = vmatpush2.bf16.msra.mxu0 0
      %498 = vmatprep.subr.bf16.mxu0 0
      %499 = vmatpush2.bf16.msra.mxu0 0
      %500 = vmatprep.subr.bf16.mxu0 0
      %501 = vmatpush2.bf16.msra.mxu0 0
      %502 = vmatprep.subr.bf16.mxu0 0
      %503 = vmatpush2.bf16.msra.mxu0 0
      %504 = vmatprep.subr.bf16.mxu0 0
      %505 = vmatpush2.bf16.msra.mxu0 0
      %506 = vmatprep.subr.bf16.mxu0 0
      %507 = vmatpush2.bf16.msra.mxu0 0
      %508 = vmatprep.mubr.bf16.mxu0 0
      %509 = vmatmul.mubr.bf16.gmra.mxu0 %v452
      %v510 = vpop.f32.mrf.mxu0
      %v511 = vadd.f32 0.0, %v510
      %v512 = vpop.f32.mrf.mxu0
      %v513 = vadd.f32 0.0, %v512
      %v514 = vpop.f32.mrf.mxu0
      %v515 = vadd.f32 0.0, %v514
      %v516 = vpop.f32.mrf.mxu0
      %v517 = vadd.f32 0.0, %v516
      %518 = vmatprep.mubr.bf16.mxu0 0
      %519 = vmatmul.mubr.bf16.gmra.mxu0 %v455
      %v520 = vpop.f32.mrf.mxu0
      %v521 = vadd.f32 0.0, %v520
      %v522 = vpop.f32.mrf.mxu0
      %v523 = vadd.f32 0.0, %v522
      %v524 = vpop.f32.mrf.mxu0
      %v525 = vadd.f32 0.0, %v524
      %v526 = vpop.f32.mrf.mxu0
      %v527 = vadd.f32 0.0, %v526
      %528 = vmatprep.mubr.bf16.mxu0 0
      %529 = vmatmul.mubr.bf16.gmra.mxu0 %v458
      %v530 = vpop.f32.mrf.mxu0
      %v531 = vadd.f32 0.0, %v530
      %v532 = vpop.f32.mrf.mxu0
      %v533 = vadd.f32 0.0, %v532
      %v534 = vpop.f32.mrf.mxu0
      %v535 = vadd.f32 0.0, %v534
      %v536 = vpop.f32.mrf.mxu0
      %v537 = vadd.f32 0.0, %v536
      %538 = vmatprep.mubr.bf16.mxu0 0
      %539 = vmatmul.mubr.bf16.gmra.mxu0 %v461
      %v540 = vpop.f32.mrf.mxu0
      %v541 = vadd.f32 0.0, %v540
      %v542 = vpop.f32.mrf.mxu0
      %v543 = vadd.f32 0.0, %v542
      %v544 = vpop.f32.mrf.mxu0
      %v545 = vadd.f32 0.0, %v544
      %v546 = vpop.f32.mrf.mxu0
      %v547 = vadd.f32 0.0, %v546
      %548 = vmatprep.mubr.bf16.mxu0 0
      %549 = vmatmul.mubr.bf16.gmra.mxu0 %v464
      %v550 = vpop.f32.mrf.mxu0
      %v551 = vadd.f32 0.0, %v550
      %v552 = vpop.f32.mrf.mxu0
      %v553 = vadd.f32 0.0, %v552
      %v554 = vpop.f32.mrf.mxu0
      %v555 = vadd.f32 0.0, %v554
      %v556 = vpop.f32.mrf.mxu0
      %v557 = vadd.f32 0.0, %v556
      %558 = vmatprep.mubr.bf16.mxu0 0
      %559 = vmatmul.mubr.bf16.gmra.mxu0 %v467
      %v560 = vpop.f32.mrf.mxu0
      %v561 = vadd.f32 0.0, %v560
      %v562 = vpop.f32.mrf.mxu0
      %v563 = vadd.f32 0.0, %v562
      %v564 = vpop.f32.mrf.mxu0
      %v565 = vadd.f32 0.0, %v564
      %v566 = vpop.f32.mrf.mxu0
      %v567 = vadd.f32 0.0, %v566
      %568 = vdwg.mxu0
      %v569 = vmul.f32 %v511, %v511
      %v570 = vmul.f32 %v513, %v513
      %v571 = vmul.f32 %v515, %v515
      %v572 = vmul.f32 %v517, %v517
      %v573 = vmul.f32 %v521, %v521
      %v574 = vmul.f32 %v523, %v523
      %v575 = vmul.f32 %v525, %v525
      %v576 = vmul.f32 %v527, %v527
      %v577 = vmul.f32 %v531, %v531
      %v578 = vmul.f32 %v533, %v533
      %v579 = vmul.f32 %v535, %v535
      %v580 = vmul.f32 %v537, %v537
      %v581 = vmul.f32 %v541, %v541
      %v582 = vmul.f32 %v543, %v543
      %v583 = vmul.f32 %v545, %v545
      %v584 = vmul.f32 %v547, %v547
      %v585 = vmul.f32 %v551, %v551
      %v586 = vmul.f32 %v553, %v553
      %v587 = vmul.f32 %v555, %v555
      %v588 = vmul.f32 %v557, %v557
      %v589 = vmul.f32 %v561, %v561
      %v590 = vmul.f32 %v563, %v563
      %v591 = vmul.f32 %v565, %v565
      %v592 = vmul.f32 %v567, %v567
      %v593 = vmul.f32 %v511, %v569
      %v594 = vmul.f32 %v513, %v570
      %v595 = vmul.f32 %v515, %v571
      %v596 = vmul.f32 %v517, %v572
      %v597 = vmul.f32 %v521, %v573
      %v598 = vmul.f32 %v523, %v574
      %v599 = vmul.f32 %v525, %v575
      %v600 = vmul.f32 %v527, %v576
      %v601 = vmul.f32 %v531, %v577
      %v602 = vmul.f32 %v533, %v578
      %v603 = vmul.f32 %v535, %v579
      %v604 = vmul.f32 %v537, %v580
      %v605 = vmul.f32 %v541, %v581
      %v606 = vmul.f32 %v543, %v582
      %v607 = vmul.f32 %v545, %v583
      %v608 = vmul.f32 %v547, %v584
      %v609 = vmul.f32 %v551, %v585
      %v610 = vmul.f32 %v553, %v586
      %v611 = vmul.f32 %v555, %v587
      %v612 = vmul.f32 %v557, %v588
      %v613 = vmul.f32 %v561, %v589
      %v614 = vmul.f32 %v563, %v590
      %v615 = vmul.f32 %v565, %v591
      %v616 = vmul.f32 %v567, %v592
      %v617 = vmul.f32 %v593, 0.044715
      %v618 = vmul.f32 %v594, 0.044715
      %v619 = vmul.f32 %v595, 0.044715
      %v620 = vmul.f32 %v596, 0.044715
      %v621 = vmul.f32 %v597, 0.044715
      %v622 = vmul.f32 %v598, 0.044715
      %v623 = vmul.f32 %v599, 0.044715
      %v624 = vmul.f32 %v600, 0.044715
      %v625 = vmul.f32 %v601, 0.044715
      %v626 = vmul.f32 %v602, 0.044715
      %v627 = vmul.f32 %v603, 0.044715
      %v628 = vmul.f32 %v604, 0.044715
      %v629 = vmul.f32 %v605, 0.044715
      %v630 = vmul.f32 %v606, 0.044715
      %v631 = vmul.f32 %v607, 0.044715
      %v632 = vmul.f32 %v608, 0.044715
      %v633 = vmul.f32 %v609, 0.044715
      %v634 = vmul.f32 %v610, 0.044715
      %v635 = vmul.f32 %v611, 0.044715
      %v636 = vmul.f32 %v612, 0.044715
      %v637 = vmul.f32 %v613, 0.044715
      %v638 = vmul.f32 %v614, 0.044715
      %v639 = vmul.f32 %v615, 0.044715
      %v640 = vmul.f32 %v616, 0.044715
      %v641 = vadd.f32 %v511, %v617
      %v642 = vadd.f32 %v513, %v618
      %v643 = vadd.f32 %v515, %v619
      %v644 = vadd.f32 %v517, %v620
      %v645 = vadd.f32 %v521, %v621
      %v646 = vadd.f32 %v523, %v622
      %v647 = vadd.f32 %v525, %v623
      %v648 = vadd.f32 %v527, %v624
      %v649 = vadd.f32 %v531, %v625
      %v650 = vadd.f32 %v533, %v626
      %v651 = vadd.f32 %v535, %v627
      %v652 = vadd.f32 %v537, %v628
      %v653 = vadd.f32 %v541, %v629
      %v654 = vadd.f32 %v543, %v630
      %v655 = vadd.f32 %v545, %v631
      %v656 = vadd.f32 %v547, %v632
      %v657 = vadd.f32 %v551, %v633
      %v658 = vadd.f32 %v553, %v634
      %v659 = vadd.f32 %v555, %v635
      %v660 = vadd.f32 %v557, %v636
      %v661 = vadd.f32 %v561, %v637
      %v662 = vadd.f32 %v563, %v638
      %v663 = vadd.f32 %v565, %v639
      %v664 = vadd.f32 %v567, %v640
      %v665 = vmul.f32 %v641, 0.7978846
      %v666 = vmul.f32 %v642, 0.7978846
      %v667 = vmul.f32 %v643, 0.7978846
      %v668 = vmul.f32 %v644, 0.7978846
      %v669 = vmul.f32 %v645, 0.7978846
      %v670 = vmul.f32 %v646, 0.7978846
      %v671 = vmul.f32 %v647, 0.7978846
      %v672 = vmul.f32 %v648, 0.7978846
      %v673 = vmul.f32 %v649, 0.7978846
      %v674 = vmul.f32 %v650, 0.7978846
      %v675 = vmul.f32 %v651, 0.7978846
      %v676 = vmul.f32 %v652, 0.7978846
      %v677 = vmul.f32 %v653, 0.7978846
      %v678 = vmul.f32 %v654, 0.7978846
      %v679 = vmul.f32 %v655, 0.7978846
      %v680 = vmul.f32 %v656, 0.7978846
      %v681 = vmul.f32 %v657, 0.7978846
      %v682 = vmul.f32 %v658, 0.7978846
      %v683 = vmul.f32 %v659, 0.7978846
      %v684 = vmul.f32 %v660, 0.7978846
      %v685 = vmul.f32 %v661, 0.7978846
      %v686 = vmul.f32 %v662, 0.7978846
      %v687 = vmul.f32 %v663, 0.7978846
      %v688 = vmul.f32 %v664, 0.7978846
      %v689 = vtanh.pop %v665
      %v690 = vtanh.pop %v666
      %v691 = vtanh.pop %v667
      %v692 = vtanh.pop %v668
      %v693 = vtanh.pop %v669
      %v694 = vtanh.pop %v670
      %v695 = vtanh.pop %v671
      %v696 = vtanh.pop %v672
      %v697 = vtanh.pop %v673
      %v698 = vtanh.pop %v674
      %v699 = vtanh.pop %v675
      %v700 = vtanh.pop %v676
      %v701 = vtanh.pop %v677
      %v702 = vtanh.pop %v678
      %v703 = vtanh.pop %v679
      %v704 = vtanh.pop %v680
      %v705 = vtanh.pop %v681
      %v706 = vtanh.pop %v682
      %v707 = vtanh.pop %v683
      %v708 = vtanh.pop %v684
      %v709 = vtanh.pop %v685
      %v710 = vtanh.pop %v686
      %v711 = vtanh.pop %v687
      %v712 = vtanh.pop %v688
      %v713 = vadd.f32 %v689, 1.0
      %v714 = vadd.f32 %v690, 1.0
      %v715 = vadd.f32 %v691, 1.0
      %v716 = vadd.f32 %v692, 1.0
      %v717 = vadd.f32 %v693, 1.0
      %v718 = vadd.f32 %v694, 1.0
      %v719 = vadd.f32 %v695, 1.0
      %v720 = vadd.f32 %v696, 1.0
      %v721 = vadd.f32 %v697, 1.0
      %v722 = vadd.f32 %v698, 1.0
      %v723 = vadd.f32 %v699, 1.0
      %v724 = vadd.f32 %v700, 1.0
      %v725 = vadd.f32 %v701, 1.0
      %v726 = vadd.f32 %v702, 1.0
      %v727 = vadd.f32 %v703, 1.0
      %v728 = vadd.f32 %v704, 1.0
      %v729 = vadd.f32 %v705, 1.0
      %v730 = vadd.f32 %v706, 1.0
      %v731 = vadd.f32 %v707, 1.0
      %v732 = vadd.f32 %v708, 1.0
      %v733 = vadd.f32 %v709, 1.0
      %v734 = vadd.f32 %v710, 1.0
      %v735 = vadd.f32 %v711, 1.0
      %v736 = vadd.f32 %v712, 1.0
      %v737 = vmul.f32 %v713, 0.5
      %v738 = vmul.f32 %v714, 0.5
      %v739 = vmul.f32 %v715, 0.5
      %v740 = vmul.f32 %v716, 0.5
      %v741 = vmul.f32 %v717, 0.5
      %v742 = vmul.f32 %v718, 0.5
      %v743 = vmul.f32 %v719, 0.5
      %v744 = vmul.f32 %v720, 0.5
      %v745 = vmul.f32 %v721, 0.5
      %v746 = vmul.f32 %v722, 0.5
      %v747 = vmul.f32 %v723, 0.5
      %v748 = vmul.f32 %v724, 0.5
      %v749 = vmul.f32 %v725, 0.5
      %v750 = vmul.f32 %v726, 0.5
      %v751 = vmul.f32 %v727, 0.5
      %v752 = vmul.f32 %v728, 0.5
      %v753 = vmul.f32 %v729, 0.5
      %v754 = vmul.f32 %v730, 0.5
      %v755 = vmul.f32 %v731, 0.5
      %v756 = vmul.f32 %v732, 0.5
      %v757 = vmul.f32 %v733, 0.5
      %v758 = vmul.f32 %v734, 0.5
      %v759 = vmul.f32 %v735, 0.5
      %v760 = vmul.f32 %v736, 0.5
      %v761 = vmul.f32 %v511, %v737
      %v762 = vmul.f32 %v513, %v738
      %v763 = vmul.f32 %v515, %v739
      %v764 = vmul.f32 %v517, %v740
      %v765 = vmul.f32 %v521, %v741
      %v766 = vmul.f32 %v523, %v742
      %v767 = vmul.f32 %v525, %v743
      %v768 = vmul.f32 %v527, %v744
      %v769 = vmul.f32 %v531, %v745
      %v770 = vmul.f32 %v533, %v746
      %v771 = vmul.f32 %v535, %v747
      %v772 = vmul.f32 %v537, %v748
      %v773 = vmul.f32 %v541, %v749
      %v774 = vmul.f32 %v543, %v750
      %v775 = vmul.f32 %v545, %v751
      %v776 = vmul.f32 %v547, %v752
      %v777 = vmul.f32 %v551, %v753
      %v778 = vmul.f32 %v553, %v754
      %v779 = vmul.f32 %v555, %v755
      %v780 = vmul.f32 %v557, %v756
      %v781 = vmul.f32 %v561, %v757
      %v782 = vmul.f32 %v563, %v758
      %v783 = vmul.f32 %v565, %v759
      %v784 = vmul.f32 %v567, %v760
      %v785 = vpack.c.bf16 %v763, %v761
      %v786 = vpack.c.bf16 %v764, %v762
      %v787 = vpack.c.bf16 %v767, %v765
      %v788 = vpack.c.bf16 %v768, %v766
      %v789 = vpack.c.bf16 %v771, %v769
      %v790 = vpack.c.bf16 %v772, %v770
      %v791 = vpack.c.bf16 %v775, %v773
      %v792 = vpack.c.bf16 %v776, %v774
      %v793 = vpack.c.bf16 %v779, %v777
      %v794 = vpack.c.bf16 %v780, %v778
      %v795 = vpack.c.bf16 %v783, %v781
      %v796 = vpack.c.bf16 %v784, %v782
      %vm797 = vcmask 785408
      %v799 = vsel %vm797, %v417, 0
      %801 = vmatprep.subr.bf16.mxu0 0
      %802 = vmatpush1.bf16.msra.mxu0 0
      %803 = vmatprep.subr.bf16.mxu0 0
      %804 = vmatpush1.bf16.msra.mxu0 0
      %805 = vmatprep.subr.bf16.mxu0 %v796
      %806 = vmatpush1.bf16.msra.mxu0 %v795
      %807 = vmatprep.subr.bf16.mxu0 %v794
      %808 = vmatpush1.bf16.msra.mxu0 %v793
      %809 = vmatprep.subr.bf16.mxu0 %v792
      %810 = vmatpush1.bf16.msra.mxu0 %v791
      %811 = vmatprep.subr.bf16.mxu0 %v790
      %812 = vmatpush1.bf16.msra.mxu0 %v789
      %813 = vmatprep.subr.bf16.mxu0 %v788
      %814 = vmatpush1.bf16.msra.mxu0 %v787
      %815 = vmatprep.subr.bf16.mxu0 %v786
      %816 = vmatpush1.bf16.msra.mxu0 %v785
      %817 = vmatprep.subr.bf16.mxu0 0
      %818 = vmatpush2.bf16.msra.mxu0 0
      %819 = vmatprep.subr.bf16.mxu0 0
      %820 = vmatpush2.bf16.msra.mxu0 0
      %821 = vmatprep.subr.bf16.mxu0 0
      %822 = vmatpush2.bf16.msra.mxu0 0
      %823 = vmatprep.subr.bf16.mxu0 0
      %824 = vmatpush2.bf16.msra.mxu0 0
      %825 = vmatprep.subr.bf16.mxu0 0
      %826 = vmatpush2.bf16.msra.mxu0 0
      %827 = vmatprep.subr.bf16.mxu0 0
      %828 = vmatpush2.bf16.msra.mxu0 0
      %829 = vmatprep.subr.bf16.mxu0 0
      %830 = vmatpush2.bf16.msra.mxu0 0
      %831 = vmatprep.subr.bf16.mxu0 0
      %832 = vmatpush2.bf16.msra.mxu0 0
      %833 = vmatprep.mubr.bf16.mxu0 0
      %834 = vmatmul.mubr.bf16.gmra.mxu0 %v799
      %v835 = vpop.f32.mrf.mxu0
      %v836 = vadd.f32 0.0, %v835
      %v837 = vpop.f32.mrf.mxu0
      %v838 = vadd.f32 0.0, %v837
      %v839 = vpop.f32.mrf.mxu0
      %v840 = vpop.f32.mrf.mxu0
      %841 = vdwg.mxu0
      %v842 = vadd.f32 %v399, %v836
      %v843 = vadd.f32 %v401, %v838
      %s844 = scalar_lea.vmem %s2, 48
      %v845 = vld [vmem:[%s844] sm:$0xf]
      %v846 = vld [vmem:[%s844 + $0x4] sm:$0xf]
      %v847 = vld [vmem:[%s844 + $0x8] sm:$0xf]
      %v848 = vld [vmem:[%s844 + $0xc] sm:$0xf]
      %v849 = vld [vmem:[%s844 + $0x10] sm:$0xf]
      %v850 = vld [vmem:[%s844 + $0x14] sm:$0xf]
      %v851 = vld [vmem:[%s844 + $0x18] sm:$0xf]
      %v852 = vld [vmem:[%s844 + $0x1c] sm:$0xf]
      %v853 = vld [vmem:[%s844 + $0x20] sm:$0xf]
      %v854 = vld [vmem:[%s844 + $0x24] sm:$0xf]
      %v855 = vld [vmem:[%s844 + $0x28] sm:$0xf]
      %v856 = vld [vmem:[%s844 + $0x2c] sm:$0xf]
      %s857 = scalar_lea.vmem %s3, 4
      %v858 = vld [vmem:[%s857] sm:$0x7]
      %v859 = vpack.c.bf16 %v842, %v842
      %v860 = vpack.c.bf16 %v843, %v843
      %v873 = vunpack.c.l.b16 %v845
      %v874 = vunpack.c.l.b16 %v846
      %v875 = vunpack.c.l.b16 %v847
      %v876 = vunpack.c.l.b16 %v848
      %v877 = vunpack.c.l.b16 %v849
      %v878 = vunpack.c.l.b16 %v850
      %v879 = vunpack.c.l.b16 %v851
      %v880 = vunpack.c.l.b16 %v852
      %v881 = vunpack.c.l.b16 %v853
      %v882 = vunpack.c.l.b16 %v854
      %v883 = vunpack.c.l.b16 %v855
      %v884 = vunpack.c.l.b16 %v856
      %v885 = vpack.c.b16 %v874, %v873
      %v886 = vpack.c.b16 %v876, %v875
      %v887 = vpack.c.b16 %v878, %v877
      %v888 = vpack.c.b16 %v880, %v879
      %v889 = vpack.c.b16 %v882, %v881
      %v890 = vpack.c.b16 %v884, %v883
      %v892 = vsel %vm450, %v885, 0
      %v895 = vsel %vm450, %v886, 0
      %v898 = vsel %vm450, %v887, 0
      %v901 = vsel %vm450, %v888, 0
      %v904 = vsel %vm450, %v889, 0
      %v907 = vsel %vm450, %v890, 0
      %v910 = vsel %vm469, %v859, 0
      %v913 = vsel %vm469, %v860, 0
      %915 = vmatprep.subr.bf16.mxu0 0
      %916 = vmatpush1.bf16.msra.mxu0 0
      %917 = vmatprep.subr.bf16.mxu0 0
      %918 = vmatpush1.bf16.msra.mxu0 0
      %919 = vmatprep.subr.bf16.mxu0 0
      %920 = vmatpush1.bf16.msra.mxu0 0
      %921 = vmatprep.subr.bf16.mxu0 0
      %922 = vmatpush1.bf16.msra.mxu0 0
      %923 = vmatprep.subr.bf16.mxu0 0
      %924 = vmatpush1.bf16.msra.mxu0 0
      %925 = vmatprep.subr.bf16.mxu0 0
      %926 = vmatpush1.bf16.msra.mxu0 0
      %927 = vmatprep.subr.bf16.mxu0 0
      %928 = vmatpush1.bf16.msra.mxu0 0
      %929 = vmatprep.subr.bf16.mxu0 %v913
      %930 = vmatpush1.bf16.msra.mxu0 %v910
      %931 = vmatprep.subr.bf16.mxu0 0
      %932 = vmatpush2.bf16.msra.mxu0 0
      %933 = vmatprep.subr.bf16.mxu0 0
      %934 = vmatpush2.bf16.msra.mxu0 0
      %935 = vmatprep.subr.bf16.mxu0 0
      %936 = vmatpush2.bf16.msra.mxu0 0
      %937 = vmatprep.subr.bf16.mxu0 0
      %938 = vmatpush2.bf16.msra.mxu0 0
      %939 = vmatprep.subr.bf16.mxu0 0
      %940 = vmatpush2.bf16.msra.mxu0 0
      %941 = vmatprep.subr.bf16.mxu0 0
      %942 = vmatpush2.bf16.msra.mxu0 0
      %943 = vmatprep.subr.bf16.mxu0 0
      %944 = vmatpush2.bf16.msra.mxu0 0
      %945 = vmatprep.subr.bf16.mxu0 0
      %946 = vmatpush2.bf16.msra.mxu0 0
      %947 = vmatprep.mubr.bf16.mxu0 0
      %948 = vmatmul.mubr.bf16.gmra.mxu0 %v892
      %v949 = vpop.f32.mrf.mxu0
      %v950 = vadd.f32 0.0, %v949
      %v951 = vpop.f32.mrf.mxu0
      %v952 = vadd.f32 0.0, %v951
      %v953 = vpop.f32.mrf.mxu0
      %v954 = vadd.f32 0.0, %v953
      %v955 = vpop.f32.mrf.mxu0
      %v956 = vadd.f32 0.0, %v955
      %957 = vmatprep.mubr.bf16.mxu0 0
      %958 = vmatmul.mubr.bf16.gmra.mxu0 %v895
      %v959 = vpop.f32.mrf.mxu0
      %v960 = vadd.f32 0.0, %v959
      %v961 = vpop.f32.mrf.mxu0
      %v962 = vadd.f32 0.0, %v961
      %v963 = vpop.f32.mrf.mxu0
      %v964 = vadd.f32 0.0, %v963
      %v965 = vpop.f32.mrf.mxu0
      %v966 = vadd.f32 0.0, %v965
      %967 = vmatprep.mubr.bf16.mxu0 0
      %968 = vmatmul.mubr.bf16.gmra.mxu0 %v898
      %v969 = vpop.f32.mrf.mxu0
      %v970 = vadd.f32 0.0, %v969
      %v971 = vpop.f32.mrf.mxu0
      %v972 = vadd.f32 0.0, %v971
      %v973 = vpop.f32.mrf.mxu0
      %v974 = vadd.f32 0.0, %v973
      %v975 = vpop.f32.mrf.mxu0
      %v976 = vadd.f32 0.0, %v975
      %977 = vmatprep.mubr.bf16.mxu0 0
      %978 = vmatmul.mubr.bf16.gmra.mxu0 %v901
      %v979 = vpop.f32.mrf.mxu0
      %v980 = vadd.f32 0.0, %v979
      %v981 = vpop.f32.mrf.mxu0
      %v982 = vadd.f32 0.0, %v981
      %v983 = vpop.f32.mrf.mxu0
      %v984 = vadd.f32 0.0, %v983
      %v985 = vpop.f32.mrf.mxu0
      %v986 = vadd.f32 0.0, %v985
      %987 = vmatprep.mubr.bf16.mxu0 0
      %988 = vmatmul.mubr.bf16.gmra.mxu0 %v904
      %v989 = vpop.f32.mrf.mxu0
      %v990 = vadd.f32 0.0, %v989
      %v991 = vpop.f32.mrf.mxu0
      %v992 = vadd.f32 0.0, %v991
      %v993 = vpop.f32.mrf.mxu0
      %v994 = vadd.f32 0.0, %v993
      %v995 = vpop.f32.mrf.mxu0
      %v996 = vadd.f32 0.0, %v995
      %997 = vmatprep.mubr.bf16.mxu0 0
      %998 = vmatmul.mubr.bf16.gmra.mxu0 %v907
      %v999 = vpop.f32.mrf.mxu0
      %v1000 = vadd.f32 0.0, %v999
      %v1001 = vpop.f32.mrf.mxu0
      %v1002 = vadd.f32 0.0, %v1001
      %v1003 = vpop.f32.mrf.mxu0
      %v1004 = vadd.f32 0.0, %v1003
      %v1005 = vpop.f32.mrf.mxu0
      %v1006 = vadd.f32 0.0, %v1005
      %1007 = vdwg.mxu0
      %v1008 = vmul.f32 %v950, %v950
      %v1009 = vmul.f32 %v952, %v952
      %v1010 = vmul.f32 %v954, %v954
      %v1011 = vmul.f32 %v956, %v956
      %v1012 = vmul.f32 %v960, %v960
      %v1013 = vmul.f32 %v962, %v962
      %v1014 = vmul.f32 %v964, %v964
      %v1015 = vmul.f32 %v966, %v966
      %v1016 = vmul.f32 %v970, %v970
      %v1017 = vmul.f32 %v972, %v972
      %v1018 = vmul.f32 %v974, %v974
      %v1019 = vmul.f32 %v976, %v976
      %v1020 = vmul.f32 %v980, %v980
      %v1021 = vmul.f32 %v982, %v982
      %v1022 = vmul.f32 %v984, %v984
      %v1023 = vmul.f32 %v986, %v986
      %v1024 = vmul.f32 %v990, %v990
      %v1025 = vmul.f32 %v992, %v992
      %v1026 = vmul.f32 %v994, %v994
      %v1027 = vmul.f32 %v996, %v996
      %v1028 = vmul.f32 %v1000, %v1000
      %v1029 = vmul.f32 %v1002, %v1002
      %v1030 = vmul.f32 %v1004, %v1004
      %v1031 = vmul.f32 %v1006, %v1006
      %v1032 = vmul.f32 %v950, %v1008
      %v1033 = vmul.f32 %v952, %v1009
      %v1034 = vmul.f32 %v954, %v1010
      %v1035 = vmul.f32 %v956, %v1011
      %v1036 = vmul.f32 %v960, %v1012
      %v1037 = vmul.f32 %v962, %v1013
      %v1038 = vmul.f32 %v964, %v1014
      %v1039 = vmul.f32 %v966, %v1015
      %v1040 = vmul.f32 %v970, %v1016
      %v1041 = vmul.f32 %v972, %v1017
      %v1042 = vmul.f32 %v974, %v1018
      %v1043 = vmul.f32 %v976, %v1019
      %v1044 = vmul.f32 %v980, %v1020
      %v1045 = vmul.f32 %v982, %v1021
      %v1046 = vmul.f32 %v984, %v1022
      %v1047 = vmul.f32 %v986, %v1023
      %v1048 = vmul.f32 %v990, %v1024
      %v1049 = vmul.f32 %v992, %v1025
      %v1050 = vmul.f32 %v994, %v1026
      %v1051 = vmul.f32 %v996, %v1027
      %v1052 = vmul.f32 %v1000, %v1028
      %v1053 = vmul.f32 %v1002, %v1029
      %v1054 = vmul.f32 %v1004, %v1030
      %v1055 = vmul.f32 %v1006, %v1031
      %v1056 = vmul.f32 %v1032, 0.044715
      %v1057 = vmul.f32 %v1033, 0.044715
      %v1058 = vmul.f32 %v1034, 0.044715
      %v1059 = vmul.f32 %v1035, 0.044715
      %v1060 = vmul.f32 %v1036, 0.044715
      %v1061 = vmul.f32 %v1037, 0.044715
      %v1062 = vmul.f32 %v1038, 0.044715
      %v1063 = vmul.f32 %v1039, 0.044715
      %v1064 = vmul.f32 %v1040, 0.044715
      %v1065 = vmul.f32 %v1041, 0.044715
      %v1066 = vmul.f32 %v1042, 0.044715
      %v1067 = vmul.f32 %v1043, 0.044715
      %v1068 = vmul.f32 %v1044, 0.044715
      %v1069 = vmul.f32 %v1045, 0.044715
      %v1070 = vmul.f32 %v1046, 0.044715
      %v1071 = vmul.f32 %v1047, 0.044715
      %v1072 = vmul.f32 %v1048, 0.044715
      %v1073 = vmul.f32 %v1049, 0.044715
      %v1074 = vmul.f32 %v1050, 0.044715
      %v1075 = vmul.f32 %v1051, 0.044715
      %v1076 = vmul.f32 %v1052, 0.044715
      %v1077 = vmul.f32 %v1053, 0.044715
      %v1078 = vmul.f32 %v1054, 0.044715
      %v1079 = vmul.f32 %v1055, 0.044715
      %v1080 = vadd.f32 %v950, %v1056
      %v1081 = vadd.f32 %v952, %v1057
      %v1082 = vadd.f32 %v954, %v1058
      %v1083 = vadd.f32 %v956, %v1059
      %v1084 = vadd.f32 %v960, %v1060
      %v1085 = vadd.f32 %v962, %v1061
      %v1086 = vadd.f32 %v964, %v1062
      %v1087 = vadd.f32 %v966, %v1063
      %v1088 = vadd.f32 %v970, %v1064
      %v1089 = vadd.f32 %v972, %v1065
      %v1090 = vadd.f32 %v974, %v1066
      %v1091 = vadd.f32 %v976, %v1067
      %v1092 = vadd.f32 %v980, %v1068
      %v1093 = vadd.f32 %v982, %v1069
      %v1094 = vadd.f32 %v984, %v1070
      %v1095 = vadd.f32 %v986, %v1071
      %v1096 = vadd.f32 %v990, %v1072
      %v1097 = vadd.f32 %v992, %v1073
      %v1098 = vadd.f32 %v994, %v1074
      %v1099 = vadd.f32 %v996, %v1075
      %v1100 = vadd.f32 %v1000, %v1076
      %v1101 = vadd.f32 %v1002, %v1077
      %v1102 = vadd.f32 %v1004, %v1078
      %v1103 = vadd.f32 %v1006, %v1079
      %v1104 = vmul.f32 %v1080, 0.7978846
      %v1105 = vmul.f32 %v1081, 0.7978846
      %v1106 = vmul.f32 %v1082, 0.7978846
      %v1107 = vmul.f32 %v1083, 0.7978846
      %v1108 = vmul.f32 %v1084, 0.7978846
      %v1109 = vmul.f32 %v1085, 0.7978846
      %v1110 = vmul.f32 %v1086, 0.7978846
      %v1111 = vmul.f32 %v1087, 0.7978846
      %v1112 = vmul.f32 %v1088, 0.7978846
      %v1113 = vmul.f32 %v1089, 0.7978846
      %v1114 = vmul.f32 %v1090, 0.7978846
      %v1115 = vmul.f32 %v1091, 0.7978846
      %v1116 = vmul.f32 %v1092, 0.7978846
      %v1117 = vmul.f32 %v1093, 0.7978846
      %v1118 = vmul.f32 %v1094, 0.7978846
      %v1119 = vmul.f32 %v1095, 0.7978846
      %v1120 = vmul.f32 %v1096, 0.7978846
      %v1121 = vmul.f32 %v1097, 0.7978846
      %v1122 = vmul.f32 %v1098, 0.7978846
      %v1123 = vmul.f32 %v1099, 0.7978846
      %v1124 = vmul.f32 %v1100, 0.7978846
      %v1125 = vmul.f32 %v1101, 0.7978846
      %v1126 = vmul.f32 %v1102, 0.7978846
      %v1127 = vmul.f32 %v1103, 0.7978846
      %v1128 = vtanh.pop %v1104
      %v1129 = vtanh.pop %v1105
      %v1130 = vtanh.pop %v1106
      %v1131 = vtanh.pop %v1107
      %v1132 = vtanh.pop %v1108
      %v1133 = vtanh.pop %v1109
      %v1134 = vtanh.pop %v1110
      %v1135 = vtanh.pop %v1111
      %v1136 = vtanh.pop %v1112
      %v1137 = vtanh.pop %v1113
      %v1138 = vtanh.pop %v1114
      %v1139 = vtanh.pop %v1115
      %v1140 = vtanh.pop %v1116
      %v1141 = vtanh.pop %v1117
      %v1142 = vtanh.pop %v1118
      %v1143 = vtanh.pop %v1119
      %v1144 = vtanh.pop %v1120
      %v1145 = vtanh.pop %v1121
      %v1146 = vtanh.pop %v1122
      %v1147 = vtanh.pop %v1123
      %v1148 = vtanh.pop %v1124
      %v1149 = vtanh.pop %v1125
      %v1150 = vtanh.pop %v1126
      %v1151 = vtanh.pop %v1127
      %v1152 = vadd.f32 %v1128, 1.0
      %v1153 = vadd.f32 %v1129, 1.0
      %v1154 = vadd.f32 %v1130, 1.0
      %v1155 = vadd.f32 %v1131, 1.0
      %v1156 = vadd.f32 %v1132, 1.0
      %v1157 = vadd.f32 %v1133, 1.0
      %v1158 = vadd.f32 %v1134, 1.0
      %v1159 = vadd.f32 %v1135, 1.0
      %v1160 = vadd.f32 %v1136, 1.0
      %v1161 = vadd.f32 %v1137, 1.0
      %v1162 = vadd.f32 %v1138, 1.0
      %v1163 = vadd.f32 %v1139, 1.0
      %v1164 = vadd.f32 %v1140, 1.0
      %v1165 = vadd.f32 %v1141, 1.0
      %v1166 = vadd.f32 %v1142, 1.0
      %v1167 = vadd.f32 %v1143, 1.0
      %v1168 = vadd.f32 %v1144, 1.0
      %v1169 = vadd.f32 %v1145, 1.0
      %v1170 = vadd.f32 %v1146, 1.0
      %v1171 = vadd.f32 %v1147, 1.0
      %v1172 = vadd.f32 %v1148, 1.0
      %v1173 = vadd.f32 %v1149, 1.0
      %v1174 = vadd.f32 %v1150, 1.0
      %v1175 = vadd.f32 %v1151, 1.0
      %v1176 = vmul.f32 %v1152, 0.5
      %v1177 = vmul.f32 %v1153, 0.5
      %v1178 = vmul.f32 %v1154, 0.5
      %v1179 = vmul.f32 %v1155, 0.5
      %v1180 = vmul.f32 %v1156, 0.5
      %v1181 = vmul.f32 %v1157, 0.5
      %v1182 = vmul.f32 %v1158, 0.5
      %v1183 = vmul.f32 %v1159, 0.5
      %v1184 = vmul.f32 %v1160, 0.5
      %v1185 = vmul.f32 %v1161, 0.5
      %v1186 = vmul.f32 %v1162, 0.5
      %v1187 = vmul.f32 %v1163, 0.5
      %v1188 = vmul.f32 %v1164, 0.5
      %v1189 = vmul.f32 %v1165, 0.5
      %v1190 = vmul.f32 %v1166, 0.5
      %v1191 = vmul.f32 %v1167, 0.5
      %v1192 = vmul.f32 %v1168, 0.5
      %v1193 = vmul.f32 %v1169, 0.5
      %v1194 = vmul.f32 %v1170, 0.5
      %v1195 = vmul.f32 %v1171, 0.5
      %v1196 = vmul.f32 %v1172, 0.5
      %v1197 = vmul.f32 %v1173, 0.5
      %v1198 = vmul.f32 %v1174, 0.5
      %v1199 = vmul.f32 %v1175, 0.5
      %v1200 = vmul.f32 %v950, %v1176
      %v1201 = vmul.f32 %v952, %v1177
      %v1202 = vmul.f32 %v954, %v1178
      %v1203 = vmul.f32 %v956, %v1179
      %v1204 = vmul.f32 %v960, %v1180
      %v1205 = vmul.f32 %v962, %v1181
      %v1206 = vmul.f32 %v964, %v1182
      %v1207 = vmul.f32 %v966, %v1183
      %v1208 = vmul.f32 %v970, %v1184
      %v1209 = vmul.f32 %v972, %v1185
      %v1210 = vmul.f32 %v974, %v1186
      %v1211 = vmul.f32 %v976, %v1187
      %v1212 = vmul.f32 %v980, %v1188
      %v1213 = vmul.f32 %v982, %v1189
      %v1214 = vmul.f32 %v984, %v1190
      %v1215 = vmul.f32 %v986, %v1191
      %v1216 = vmul.f32 %v990, %v1192
      %v1217 = vmul.f32 %v992, %v1193
      %v1218 = vmul.f32 %v994, %v1194
      %v1219 = vmul.f32 %v996, %v1195
      %v1220 = vmul.f32 %v1000, %v1196
      %v1221 = vmul.f32 %v1002, %v1197
      %v1222 = vmul.f32 %v1004, %v1198
      %v1223 = vmul.f32 %v1006, %v1199
      %v1224 = vpack.c.bf16 %v1202, %v1200
      %v1225 = vpack.c.bf16 %v1203, %v1201
      %v1226 = vpack.c.bf16 %v1206, %v1204
      %v1227 = vpack.c.bf16 %v1207, %v1205
      %v1228 = vpack.c.bf16 %v1210, %v1208
      %v1229 = vpack.c.bf16 %v1211, %v1209
      %v1230 = vpack.c.bf16 %v1214, %v1212
      %v1231 = vpack.c.bf16 %v1215, %v1213
      %v1232 = vpack.c.bf16 %v1218, %v1216
      %v1233 = vpack.c.bf16 %v1219, %v1217
      %v1234 = vpack.c.bf16 %v1222, %v1220
      %v1235 = vpack.c.bf16 %v1223, %v1221
      %v1237 = vsel %vm797, %v858, 0
      %1239 = vmatprep.subr.bf16.mxu0 0
      %1240 = vmatpush1.bf16.msra.mxu0 0
      %1241 = vmatprep.subr.bf16.mxu0 0
      %1242 = vmatpush1.bf16.msra.mxu0 0
      %1243 = vmatprep.subr.bf16.mxu0 %v1235
      %1244 = vmatpush1.bf16.msra.mxu0 %v1234
      %1245 = vmatprep.subr.bf16.mxu0 %v1233
      %1246 = vmatpush1.bf16.msra.mxu0 %v1232
      %1247 = vmatprep.subr.bf16.mxu0 %v1231
      %1248 = vmatpush1.bf16.msra.mxu0 %v1230
      %1249 = vmatprep.subr.bf16.mxu0 %v1229
      %1250 = vmatpush1.bf16.msra.mxu0 %v1228
      %1251 = vmatprep.subr.bf16.mxu0 %v1227
      %1252 = vmatpush1.bf16.msra.mxu0 %v1226
      %1253 = vmatprep.subr.bf16.mxu0 %v1225
      %1254 = vmatpush1.bf16.msra.mxu0 %v1224
      %1255 = vmatprep.subr.bf16.mxu0 0
      %1256 = vmatpush2.bf16.msra.mxu0 0
      %1257 = vmatprep.subr.bf16.mxu0 0
      %1258 = vmatpush2.bf16.msra.mxu0 0
      %1259 = vmatprep.subr.bf16.mxu0 0
      %1260 = vmatpush2.bf16.msra.mxu0 0
      %1261 = vmatprep.subr.bf16.mxu0 0
      %1262 = vmatpush2.bf16.msra.mxu0 0
      %1263 = vmatprep.subr.bf16.mxu0 0
      %1264 = vmatpush2.bf16.msra.mxu0 0
      %1265 = vmatprep.subr.bf16.mxu0 0
      %1266 = vmatpush2.bf16.msra.mxu0 0
      %1267 = vmatprep.subr.bf16.mxu0 0
      %1268 = vmatpush2.bf16.msra.mxu0 0
      %1269 = vmatprep.subr.bf16.mxu0 0
      %1270 = vmatpush2.bf16.msra.mxu0 0
      %1271 = vmatprep.mubr.bf16.mxu0 0
      %1272 = vmatmul.mubr.bf16.gmra.mxu0 %v1237
      %v1273 = vpop.f32.mrf.mxu0
      %v1274 = vadd.f32 0.0, %v1273
      %v1275 = vpop.f32.mrf.mxu0
      %v1276 = vadd.f32 0.0, %v1275
      %v1277 = vpop.f32.mrf.mxu0
      %v1278 = vpop.f32.mrf.mxu0
      %1279 = vdwg.mxu0
      %v1280 = vadd.f32 %v842, %v1274
      %v1281 = vadd.f32 %v843, %v1276
      %s1282 = scalar_lea.vmem %s2, 96
      %v1283 = vld [vmem:[%s1282] sm:$0xf]
      %v1284 = vld [vmem:[%s1282 + $0x4] sm:$0xf]
      %v1285 = vld [vmem:[%s1282 + $0x8] sm:$0xf]
      %v1286 = vld [vmem:[%s1282 + $0xc] sm:$0xf]
      %v1287 = vld [vmem:[%s1282 + $0x10] sm:$0xf]
      %v1288 = vld [vmem:[%s1282 + $0x14] sm:$0xf]
      %v1289 = vld [vmem:[%s1282 + $0x18] sm:$0xf]
      %v1290 = vld [vmem:[%s1282 + $0x1c] sm:$0xf]
      %v1291 = vld [vmem:[%s1282 + $0x20] sm:$0xf]
      %v1292 = vld [vmem:[%s1282 + $0x24] sm:$0xf]
      %v1293 = vld [vmem:[%s1282 + $0x28] sm:$0xf]
      %v1294 = vld [vmem:[%s1282 + $0x2c] sm:$0xf]
      %s1295 = scalar_lea.vmem %s3, 8
      %v1296 = vld [vmem:[%s1295] sm:$0x7]
      %v1297 = vpack.c.bf16 %v1280, %v1280
      %v1298 = vpack.c.bf16 %v1281, %v1281
      %v1311 = vunpack.c.l.b16 %v1283
      %v1312 = vunpack.c.l.b16 %v1284
      %v1313 = vunpack.c.l.b16 %v1285
      %v1314 = vunpack.c.l.b16 %v1286
      %v1315 = vunpack.c.l.b16 %v1287
      %v1316 = vunpack.c.l.b16 %v1288
      %v1317 = vunpack.c.l.b16 %v1289
      %v1318 = vunpack.c.l.b16 %v1290
      %v1319 = vunpack.c.l.b16 %v1291
      %v1320 = vunpack.c.l.b16 %v1292
      %v1321 = vunpack.c.l.b16 %v1293
      %v1322 = vunpack.c.l.b16 %v1294
      %v1323 = vpack.c.b16 %v1312, %v1311
      %v1324 = vpack.c.b16 %v1314, %v1313
      %v1325 = vpack.c.b16 %v1316, %v1315
      %v1326 = vpack.c.b16 %v1318, %v1317
      %v1327 = vpack.c.b16 %v1320, %v1319
      %v1328 = vpack.c.b16 %v1322, %v1321
      %v1330 = vsel %vm450, %v1323, 0
      %v1333 = vsel %vm450, %v1324, 0
      %v1336 = vsel %vm450, %v1325, 0
      %v1339 = vsel %vm450, %v1326, 0
      %v1342 = vsel %vm450, %v1327, 0
      %v1345 = vsel %vm450, %v1328, 0
      %v1348 = vsel %vm469, %v1297, 0
      %v1351 = vsel %vm469, %v1298, 0
      %1353 = vmatprep.subr.bf16.mxu0 0
      %1354 = vmatpush1.bf16.msra.mxu0 0
      %1355 = vmatprep.subr.bf16.mxu0 0
      %1356 = vmatpush1.bf16.msra.mxu0 0
      %1357 = vmatprep.subr.bf16.mxu0 0
      %1358 = vmatpush1.bf16.msra.mxu0 0
      %1359 = vmatprep.subr.bf16.mxu0 0
      %1360 = vmatpush1.bf16.msra.mxu0 0
      %1361 = vmatprep.subr.bf16.mxu0 0
      %1362 = vmatpush1.bf16.msra.mxu0 0
      %1363 = vmatprep.subr.bf16.mxu0 0
      %1364 = vmatpush1.bf16.msra.mxu0 0
      %1365 = vmatprep.subr.bf16.mxu0 0
      %1366 = vmatpush1.bf16.msra.mxu0 0
      %1367 = vmatprep.subr.bf16.mxu0 %v1351
      %1368 = vmatpush1.bf16.msra.mxu0 %v1348
      %1369 = vmatprep.subr.bf16.mxu0 0
      %1370 = vmatpush2.bf16.msra.mxu0 0
      %1371 = vmatprep.subr.bf16.mxu0 0
      %1372 = vmatpush2.bf16.msra.mxu0 0
      %1373 = vmatprep.subr.bf16.mxu0 0
      %1374 = vmatpush2.bf16.msra.mxu0 0
      %1375 = vmatprep.subr.bf16.mxu0 0
      %1376 = vmatpush2.bf16.msra.mxu0 0
      %1377 = vmatprep.subr.bf16.mxu0 0
      %1378 = vmatpush2.bf16.msra.mxu0 0
      %1379 = vmatprep.subr.bf16.mxu0 0
      %1380 = vmatpush2.bf16.msra.mxu0 0
      %1381 = vmatprep.subr.bf16.mxu0 0
      %1382 = vmatpush2.bf16.msra.mxu0 0
      %1383 = vmatprep.subr.bf16.mxu0 0
      %1384 = vmatpush2.bf16.msra.mxu0 0
      %1385 = vmatprep.mubr.bf16.mxu0 0
      %1386 = vmatmul.mubr.bf16.gmra.mxu0 %v1330
      %v1387 = vpop.f32.mrf.mxu0
      %v1388 = vadd.f32 0.0, %v1387
      %v1389 = vpop.f32.mrf.mxu0
      %v1390 = vadd.f32 0.0, %v1389
      %v1391 = vpop.f32.mrf.mxu0
      %v1392 = vadd.f32 0.0, %v1391
      %v1393 = vpop.f32.mrf.mxu0
      %v1394 = vadd.f32 0.0, %v1393
      %1395 = vmatprep.mubr.bf16.mxu0 0
      %1396 = vmatmul.mubr.bf16.gmra.mxu0 %v1333
      %v1397 = vpop.f32.mrf.mxu0
      %v1398 = vadd.f32 0.0, %v1397
      %v1399 = vpop.f32.mrf.mxu0
      %v1400 = vadd.f32 0.0, %v1399
      %v1401 = vpop.f32.mrf.mxu0
      %v1402 = vadd.f32 0.0, %v1401
      %v1403 = vpop.f32.mrf.mxu0
      %v1404 = vadd.f32 0.0, %v1403
      %1405 = vmatprep.mubr.bf16.mxu0 0
      %1406 = vmatmul.mubr.bf16.gmra.mxu0 %v1336
      %v1407 = vpop.f32.mrf.mxu0
      %v1408 = vadd.f32 0.0, %v1407
      %v1409 = vpop.f32.mrf.mxu0
      %v1410 = vadd.f32 0.0, %v1409
      %v1411 = vpop.f32.mrf.mxu0
      %v1412 = vadd.f32 0.0, %v1411
      %v1413 = vpop.f32.mrf.mxu0
      %v1414 = vadd.f32 0.0, %v1413
      %1415 = vmatprep.mubr.bf16.mxu0 0
      %1416 = vmatmul.mubr.bf16.gmra.mxu0 %v1339
      %v1417 = vpop.f32.mrf.mxu0
      %v1418 = vadd.f32 0.0, %v1417
      %v1419 = vpop.f32.mrf.mxu0
      %v1420 = vadd.f32 0.0, %v1419
      %v1421 = vpop.f32.mrf.mxu0
      %v1422 = vadd.f32 0.0, %v1421
      %v1423 = vpop.f32.mrf.mxu0
      %v1424 = vadd.f32 0.0, %v1423
      %1425 = vmatprep.mubr.bf16.mxu0 0
      %1426 = vmatmul.mubr.bf16.gmra.mxu0 %v1342
      %v1427 = vpop.f32.mrf.mxu0
      %v1428 = vadd.f32 0.0, %v1427
      %v1429 = vpop.f32.mrf.mxu0
      %v1430 = vadd.f32 0.0, %v1429
      %v1431 = vpop.f32.mrf.mxu0
      %v1432 = vadd.f32 0.0, %v1431
      %v1433 = vpop.f32.mrf.mxu0
      %v1434 = vadd.f32 0.0, %v1433
      %1435 = vmatprep.mubr.bf16.mxu0 0
      %1436 = vmatmul.mubr.bf16.gmra.mxu0 %v1345
      %v1437 = vpop.f32.mrf.mxu0
      %v1438 = vadd.f32 0.0, %v1437
      %v1439 = vpop.f32.mrf.mxu0
      %v1440 = vadd.f32 0.0, %v1439
      %v1441 = vpop.f32.mrf.mxu0
      %v1442 = vadd.f32 0.0, %v1441
      %v1443 = vpop.f32.mrf.mxu0
      %v1444 = vadd.f32 0.0, %v1443
      %1445 = vdwg.mxu0
      %v1446 = vmul.f32 %v1388, %v1388
      %v1447 = vmul.f32 %v1390, %v1390
      %v1448 = vmul.f32 %v1392, %v1392
      %v1449 = vmul.f32 %v1394, %v1394
      %v1450 = vmul.f32 %v1398, %v1398
      %v1451 = vmul.f32 %v1400, %v1400
      %v1452 = vmul.f32 %v1402, %v1402
      %v1453 = vmul.f32 %v1404, %v1404
      %v1454 = vmul.f32 %v1408, %v1408
      %v1455 = vmul.f32 %v1410, %v1410
      %v1456 = vmul.f32 %v1412, %v1412
      %v1457 = vmul.f32 %v1414, %v1414
      %v1458 = vmul.f32 %v1418, %v1418
      %v1459 = vmul.f32 %v1420, %v1420
      %v1460 = vmul.f32 %v1422, %v1422
      %v1461 = vmul.f32 %v1424, %v1424
      %v1462 = vmul.f32 %v1428, %v1428
      %v1463 = vmul.f32 %v1430, %v1430
      %v1464 = vmul.f32 %v1432, %v1432
      %v1465 = vmul.f32 %v1434, %v1434
      %v1466 = vmul.f32 %v1438, %v1438
      %v1467 = vmul.f32 %v1440, %v1440
      %v1468 = vmul.f32 %v1442, %v1442
      %v1469 = vmul.f32 %v1444, %v1444
      %v1470 = vmul.f32 %v1388, %v1446
      %v1471 = vmul.f32 %v1390, %v1447
      %v1472 = vmul.f32 %v1392, %v1448
      %v1473 = vmul.f32 %v1394, %v1449
      %v1474 = vmul.f32 %v1398, %v1450
      %v1475 = vmul.f32 %v1400, %v1451
      %v1476 = vmul.f32 %v1402, %v1452
      %v1477 = vmul.f32 %v1404, %v1453
      %v1478 = vmul.f32 %v1408, %v1454
      %v1479 = vmul.f32 %v1410, %v1455
      %v1480 = vmul.f32 %v1412, %v1456
      %v1481 = vmul.f32 %v1414, %v1457
      %v1482 = vmul.f32 %v1418, %v1458
      %v1483 = vmul.f32 %v1420, %v1459
      %v1484 = vmul.f32 %v1422, %v1460
      %v1485 = vmul.f32 %v1424, %v1461
      %v1486 = vmul.f32 %v1428, %v1462
      %v1487 = vmul.f32 %v1430, %v1463
      %v1488 = vmul.f32 %v1432, %v1464
      %v1489 = vmul.f32 %v1434, %v1465
      %v1490 = vmul.f32 %v1438, %v1466
      %v1491 = vmul.f32 %v1440, %v1467
      %v1492 = vmul.f32 %v1442, %v1468
      %v1493 = vmul.f32 %v1444, %v1469
      %v1494 = vmul.f32 %v1470, 0.044715
      %v1495 = vmul.f32 %v1471, 0.044715
      %v1496 = vmul.f32 %v1472, 0.044715
      %v1497 = vmul.f32 %v1473, 0.044715
      %v1498 = vmul.f32 %v1474, 0.044715
      %v1499 = vmul.f32 %v1475, 0.044715
      %v1500 = vmul.f32 %v1476, 0.044715
      %v1501 = vmul.f32 %v1477, 0.044715
      %v1502 = vmul.f32 %v1478, 0.044715
      %v1503 = vmul.f32 %v1479, 0.044715
      %v1504 = vmul.f32 %v1480, 0.044715
      %v1505 = vmul.f32 %v1481, 0.044715
      %v1506 = vmul.f32 %v1482, 0.044715
      %v1507 = vmul.f32 %v1483, 0.044715
      %v1508 = vmul.f32 %v1484, 0.044715
      %v1509 = vmul.f32 %v1485, 0.044715
      %v1510 = vmul.f32 %v1486, 0.044715
      %v1511 = vmul.f32 %v1487, 0.044715
      %v1512 = vmul.f32 %v1488, 0.044715
      %v1513 = vmul.f32 %v1489, 0.044715
      %v1514 = vmul.f32 %v1490, 0.044715
      %v1515 = vmul.f32 %v1491, 0.044715
      %v1516 = vmul.f32 %v1492, 0.044715
      %v1517 = vmul.f32 %v1493, 0.044715
      %v1518 = vadd.f32 %v1388, %v1494
      %v1519 = vadd.f32 %v1390, %v1495
      %v1520 = vadd.f32 %v1392, %v1496
      %v1521 = vadd.f32 %v1394, %v1497
      %v1522 = vadd.f32 %v1398, %v1498
      %v1523 = vadd.f32 %v1400, %v1499
      %v1524 = vadd.f32 %v1402, %v1500
      %v1525 = vadd.f32 %v1404, %v1501
      %v1526 = vadd.f32 %v1408, %v1502
      %v1527 = vadd.f32 %v1410, %v1503
      %v1528 = vadd.f32 %v1412, %v1504
      %v1529 = vadd.f32 %v1414, %v1505
      %v1530 = vadd.f32 %v1418, %v1506
      %v1531 = vadd.f32 %v1420, %v1507
      %v1532 = vadd.f32 %v1422, %v1508
      %v1533 = vadd.f32 %v1424, %v1509
      %v1534 = vadd.f32 %v1428, %v1510
      %v1535 = vadd.f32 %v1430, %v1511
      %v1536 = vadd.f32 %v1432, %v1512
      %v1537 = vadd.f32 %v1434, %v1513
      %v1538 = vadd.f32 %v1438, %v1514
      %v1539 = vadd.f32 %v1440, %v1515
      %v1540 = vadd.f32 %v1442, %v1516
      %v1541 = vadd.f32 %v1444, %v1517
      %v1542 = vmul.f32 %v1518, 0.7978846
      %v1543 = vmul.f32 %v1519, 0.7978846
      %v1544 = vmul.f32 %v1520, 0.7978846
      %v1545 = vmul.f32 %v1521, 0.7978846
      %v1546 = vmul.f32 %v1522, 0.7978846
      %v1547 = vmul.f32 %v1523, 0.7978846
      %v1548 = vmul.f32 %v1524, 0.7978846
      %v1549 = vmul.f32 %v1525, 0.7978846
      %v1550 = vmul.f32 %v1526, 0.7978846
      %v1551 = vmul.f32 %v1527, 0.7978846
      %v1552 = vmul.f32 %v1528, 0.7978846
      %v1553 = vmul.f32 %v1529, 0.7978846
      %v1554 = vmul.f32 %v1530, 0.7978846
      %v1555 = vmul.f32 %v1531, 0.7978846
      %v1556 = vmul.f32 %v1532, 0.7978846
      %v1557 = vmul.f32 %v1533, 0.7978846
      %v1558 = vmul.f32 %v1534, 0.7978846
      %v1559 = vmul.f32 %v1535, 0.7978846
      %v1560 = vmul.f32 %v1536, 0.7978846
      %v1561 = vmul.f32 %v1537, 0.7978846
      %v1562 = vmul.f32 %v1538, 0.7978846
      %v1563 = vmul.f32 %v1539, 0.7978846
      %v1564 = vmul.f32 %v1540, 0.7978846
      %v1565 = vmul.f32 %v1541, 0.7978846
      %v1566 = vtanh.pop %v1542
      %v1567 = vtanh.pop %v1543
      %v1568 = vtanh.pop %v1544
      %v1569 = vtanh.pop %v1545
      %v1570 = vtanh.pop %v1546
      %v1571 = vtanh.pop %v1547
      %v1572 = vtanh.pop %v1548
      %v1573 = vtanh.pop %v1549
      %v1574 = vtanh.pop %v1550
      %v1575 = vtanh.pop %v1551
      %v1576 = vtanh.pop %v1552
      %v1577 = vtanh.pop %v1553
      %v1578 = vtanh.pop %v1554
      %v1579 = vtanh.pop %v1555
      %v1580 = vtanh.pop %v1556
      %v1581 = vtanh.pop %v1557
      %v1582 = vtanh.pop %v1558
      %v1583 = vtanh.pop %v1559
      %v1584 = vtanh.pop %v1560
      %v1585 = vtanh.pop %v1561
      %v1586 = vtanh.pop %v1562
      %v1587 = vtanh.pop %v1563
      %v1588 = vtanh.pop %v1564
      %v1589 = vtanh.pop %v1565
      %v1590 = vadd.f32 %v1566, 1.0
      %v1591 = vadd.f32 %v1567, 1.0
      %v1592 = vadd.f32 %v1568, 1.0
      %v1593 = vadd.f32 %v1569, 1.0
      %v1594 = vadd.f32 %v1570, 1.0
      %v1595 = vadd.f32 %v1571, 1.0
      %v1596 = vadd.f32 %v1572, 1.0
      %v1597 = vadd.f32 %v1573, 1.0
      %v1598 = vadd.f32 %v1574, 1.0
      %v1599 = vadd.f32 %v1575, 1.0
      %v1600 = vadd.f32 %v1576, 1.0
      %v1601 = vadd.f32 %v1577, 1.0
      %v1602 = vadd.f32 %v1578, 1.0
      %v1603 = vadd.f32 %v1579, 1.0
      %v1604 = vadd.f32 %v1580, 1.0
      %v1605 = vadd.f32 %v1581, 1.0
      %v1606 = vadd.f32 %v1582, 1.0
      %v1607 = vadd.f32 %v1583, 1.0
      %v1608 = vadd.f32 %v1584, 1.0
      %v1609 = vadd.f32 %v1585, 1.0
      %v1610 = vadd.f32 %v1586, 1.0
      %v1611 = vadd.f32 %v1587, 1.0
      %v1612 = vadd.f32 %v1588, 1.0
      %v1613 = vadd.f32 %v1589, 1.0
      %v1614 = vmul.f32 %v1590, 0.5
      %v1615 = vmul.f32 %v1591, 0.5
      %v1616 = vmul.f32 %v1592, 0.5
      %v1617 = vmul.f32 %v1593, 0.5
      %v1618 = vmul.f32 %v1594, 0.5
      %v1619 = vmul.f32 %v1595, 0.5
      %v1620 = vmul.f32 %v1596, 0.5
      %v1621 = vmul.f32 %v1597, 0.5
      %v1622 = vmul.f32 %v1598, 0.5
      %v1623 = vmul.f32 %v1599, 0.5
      %v1624 = vmul.f32 %v1600, 0.5
      %v1625 = vmul.f32 %v1601, 0.5
      %v1626 = vmul.f32 %v1602, 0.5
      %v1627 = vmul.f32 %v1603, 0.5
      %v1628 = vmul.f32 %v1604, 0.5
      %v1629 = vmul.f32 %v1605, 0.5
      %v1630 = vmul.f32 %v1606, 0.5
      %v1631 = vmul.f32 %v1607, 0.5
      %v1632 = vmul.f32 %v1608, 0.5
      %v1633 = vmul.f32 %v1609, 0.5
      %v1634 = vmul.f32 %v1610, 0.5
      %v1635 = vmul.f32 %v1611, 0.5
      %v1636 = vmul.f32 %v1612, 0.5
      %v1637 = vmul.f32 %v1613, 0.5
      %v1638 = vmul.f32 %v1388, %v1614
      %v1639 = vmul.f32 %v1390, %v1615
      %v1640 = vmul.f32 %v1392, %v1616
      %v1641 = vmul.f32 %v1394, %v1617
      %v1642 = vmul.f32 %v1398, %v1618
      %v1643 = vmul.f32 %v1400, %v1619
      %v1644 = vmul.f32 %v1402, %v1620
      %v1645 = vmul.f32 %v1404, %v1621
      %v1646 = vmul.f32 %v1408, %v1622
      %v1647 = vmul.f32 %v1410, %v1623
      %v1648 = vmul.f32 %v1412, %v1624
      %v1649 = vmul.f32 %v1414, %v1625
      %v1650 = vmul.f32 %v1418, %v1626
      %v1651 = vmul.f32 %v1420, %v1627
      %v1652 = vmul.f32 %v1422, %v1628
      %v1653 = vmul.f32 %v1424, %v1629
      %v1654 = vmul.f32 %v1428, %v1630
      %v1655 = vmul.f32 %v1430, %v1631
      %v1656 = vmul.f32 %v1432, %v1632
      %v1657 = vmul.f32 %v1434, %v1633
      %v1658 = vmul.f32 %v1438, %v1634
      %v1659 = vmul.f32 %v1440, %v1635
      %v1660 = vmul.f32 %v1442, %v1636
      %v1661 = vmul.f32 %v1444, %v1637
      %v1662 = vpack.c.bf16 %v1640, %v1638
      %v1663 = vpack.c.bf16 %v1641, %v1639
      %v1664 = vpack.c.bf16 %v1644, %v1642
      %v1665 = vpack.c.bf16 %v1645, %v1643
      %v1666 = vpack.c.bf16 %v1648, %v1646
      %v1667 = vpack.c.bf16 %v1649, %v1647
      %v1668 = vpack.c.bf16 %v1652, %v1650
      %v1669 = vpack.c.bf16 %v1653, %v1651
      %v1670 = vpack.c.bf16 %v1656, %v1654
      %v1671 = vpack.c.bf16 %v1657, %v1655
      %v1672 = vpack.c.bf16 %v1660, %v1658
      %v1673 = vpack.c.bf16 %v1661, %v1659
      %v1675 = vsel %vm797, %v1296, 0
      %1677 = vmatprep.subr.bf16.mxu0 0
      %1678 = vmatpush1.bf16.msra.mxu0 0
      %1679 = vmatprep.subr.bf16.mxu0 0
      %1680 = vmatpush1.bf16.msra.mxu0 0
      %1681 = vmatprep.subr.bf16.mxu0 %v1673
      %1682 = vmatpush1.bf16.msra.mxu0 %v1672
      %1683 = vmatprep.subr.bf16.mxu0 %v1671
      %1684 = vmatpush1.bf16.msra.mxu0 %v1670
      %1685 = vmatprep.subr.bf16.mxu0 %v1669
      %1686 = vmatpush1.bf16.msra.mxu0 %v1668
      %1687 = vmatprep.subr.bf16.mxu0 %v1667
      %1688 = vmatpush1.bf16.msra.mxu0 %v1666
      %1689 = vmatprep.subr.bf16.mxu0 %v1665
      %1690 = vmatpush1.bf16.msra.mxu0 %v1664
      %1691 = vmatprep.subr.bf16.mxu0 %v1663
      %1692 = vmatpush1.bf16.msra.mxu0 %v1662
      %1693 = vmatprep.subr.bf16.mxu0 0
      %1694 = vmatpush2.bf16.msra.mxu0 0
      %1695 = vmatprep.subr.bf16.mxu0 0
      %1696 = vmatpush2.bf16.msra.mxu0 0
      %1697 = vmatprep.subr.bf16.mxu0 0
      %1698 = vmatpush2.bf16.msra.mxu0 0
      %1699 = vmatprep.subr.bf16.mxu0 0
      %1700 = vmatpush2.bf16.msra.mxu0 0
      %1701 = vmatprep.subr.bf16.mxu0 0
      %1702 = vmatpush2.bf16.msra.mxu0 0
      %1703 = vmatprep.subr.bf16.mxu0 0
      %1704 = vmatpush2.bf16.msra.mxu0 0
      %1705 = vmatprep.subr.bf16.mxu0 0
      %1706 = vmatpush2.bf16.msra.mxu0 0
      %1707 = vmatprep.subr.bf16.mxu0 0
      %1708 = vmatpush2.bf16.msra.mxu0 0
      %1709 = vmatprep.mubr.bf16.mxu0 0
      %1710 = vmatmul.mubr.bf16.gmra.mxu0 %v1675
      %v1711 = vpop.f32.mrf.mxu0
      %v1712 = vadd.f32 0.0, %v1711
      %v1713 = vpop.f32.mrf.mxu0
      %v1714 = vadd.f32 0.0, %v1713
      %v1715 = vpop.f32.mrf.mxu0
      %v1716 = vpop.f32.mrf.mxu0
      %1717 = vdwg.mxu0
      %v1718 = vadd.f32 %v1280, %v1712
      %v1719 = vadd.f32 %v1281, %v1714
      %s1720 = scalar_lea.vmem %s2, 144
      %v1721 = vld [vmem:[%s1720] sm:$0xf]
      %v1722 = vld [vmem:[%s1720 + $0x4] sm:$0xf]
      %v1723 = vld [vmem:[%s1720 + $0x8] sm:$0xf]
      %v1724 = vld [vmem:[%s1720 + $0xc] sm:$0xf]
      %v1725 = vld [vmem:[%s1720 + $0x10] sm:$0xf]
      %v1726 = vld [vmem:[%s1720 + $0x14] sm:$0xf]
      %v1727 = vld [vmem:[%s1720 + $0x18] sm:$0xf]
      %v1728 = vld [vmem:[%s1720 + $0x1c] sm:$0xf]
      %v1729 = vld [vmem:[%s1720 + $0x20] sm:$0xf]
      %v1730 = vld [vmem:[%s1720 + $0x24] sm:$0xf]
      %v1731 = vld [vmem:[%s1720 + $0x28] sm:$0xf]
      %v1732 = vld [vmem:[%s1720 + $0x2c] sm:$0xf]
      %s1733 = scalar_lea.vmem %s3, 12
      %v1734 = vld [vmem:[%s1733] sm:$0x7]
      %v1735 = vpack.c.bf16 %v1718, %v1718
      %v1736 = vpack.c.bf16 %v1719, %v1719
      %v1749 = vunpack.c.l.b16 %v1721
      %v1750 = vunpack.c.l.b16 %v1722
      %v1751 = vunpack.c.l.b16 %v1723
      %v1752 = vunpack.c.l.b16 %v1724
      %v1753 = vunpack.c.l.b16 %v1725
      %v1754 = vunpack.c.l.b16 %v1726
      %v1755 = vunpack.c.l.b16 %v1727
      %v1756 = vunpack.c.l.b16 %v1728
      %v1757 = vunpack.c.l.b16 %v1729
      %v1758 = vunpack.c.l.b16 %v1730
      %v1759 = vunpack.c.l.b16 %v1731
      %v1760 = vunpack.c.l.b16 %v1732
      %v1761 = vpack.c.b16 %v1750, %v1749
      %v1762 = vpack.c.b16 %v1752, %v1751
      %v1763 = vpack.c.b16 %v1754, %v1753
      %v1764 = vpack.c.b16 %v1756, %v1755
      %v1765 = vpack.c.b16 %v1758, %v1757
      %v1766 = vpack.c.b16 %v1760, %v1759
      %v1768 = vsel %vm450, %v1761, 0
      %v1771 = vsel %vm450, %v1762, 0
      %v1774 = vsel %vm450, %v1763, 0
      %v1777 = vsel %vm450, %v1764, 0
      %v1780 = vsel %vm450, %v1765, 0
      %v1783 = vsel %vm450, %v1766, 0
      %v1786 = vsel %vm469, %v1735, 0
      %v1789 = vsel %vm469, %v1736, 0
      %1791 = vmatprep.subr.bf16.mxu0 0
      %1792 = vmatpush1.bf16.msra.mxu0 0
      %1793 = vmatprep.subr.bf16.mxu0 0
      %1794 = vmatpush1.bf16.msra.mxu0 0
      %1795 = vmatprep.subr.bf16.mxu0 0
      %1796 = vmatpush1.bf16.msra.mxu0 0
      %1797 = vmatprep.subr.bf16.mxu0 0
      %1798 = vmatpush1.bf16.msra.mxu0 0
      %1799 = vmatprep.subr.bf16.mxu0 0
      %1800 = vmatpush1.bf16.msra.mxu0 0
      %1801 = vmatprep.subr.bf16.mxu0 0
      %1802 = vmatpush1.bf16.msra.mxu0 0
      %1803 = vmatprep.subr.bf16.mxu0 0
      %1804 = vmatpush1.bf16.msra.mxu0 0
      %1805 = vmatprep.subr.bf16.mxu0 %v1789
      %1806 = vmatpush1.bf16.msra.mxu0 %v1786
      %1807 = vmatprep.subr.bf16.mxu0 0
      %1808 = vmatpush2.bf16.msra.mxu0 0
      %1809 = vmatprep.subr.bf16.mxu0 0
      %1810 = vmatpush2.bf16.msra.mxu0 0
      %1811 = vmatprep.subr.bf16.mxu0 0
      %1812 = vmatpush2.bf16.msra.mxu0 0
      %1813 = vmatprep.subr.bf16.mxu0 0
      %1814 = vmatpush2.bf16.msra.mxu0 0
      %1815 = vmatprep.subr.bf16.mxu0 0
      %1816 = vmatpush2.bf16.msra.mxu0 0
      %1817 = vmatprep.subr.bf16.mxu0 0
      %1818 = vmatpush2.bf16.msra.mxu0 0
      %1819 = vmatprep.subr.bf16.mxu0 0
      %1820 = vmatpush2.bf16.msra.mxu0 0
      %1821 = vmatprep.subr.bf16.mxu0 0
      %1822 = vmatpush2.bf16.msra.mxu0 0
      %1823 = vmatprep.mubr.bf16.mxu0 0
      %1824 = vmatmul.mubr.bf16.gmra.mxu0 %v1768
      %v1825 = vpop.f32.mrf.mxu0
      %v1826 = vadd.f32 0.0, %v1825
      %v1827 = vpop.f32.mrf.mxu0
      %v1828 = vadd.f32 0.0, %v1827
      %v1829 = vpop.f32.mrf.mxu0
      %v1830 = vadd.f32 0.0, %v1829
      %v1831 = vpop.f32.mrf.mxu0
      %v1832 = vadd.f32 0.0, %v1831
      %1833 = vmatprep.mubr.bf16.mxu0 0
      %1834 = vmatmul.mubr.bf16.gmra.mxu0 %v1771
      %v1835 = vpop.f32.mrf.mxu0
      %v1836 = vadd.f32 0.0, %v1835
      %v1837 = vpop.f32.mrf.mxu0
      %v1838 = vadd.f32 0.0, %v1837
      %v1839 = vpop.f32.mrf.mxu0
      %v1840 = vadd.f32 0.0, %v1839
      %v1841 = vpop.f32.mrf.mxu0
      %v1842 = vadd.f32 0.0, %v1841
      %1843 = vmatprep.mubr.bf16.mxu0 0
      %1844 = vmatmul.mubr.bf16.gmra.mxu0 %v1774
      %v1845 = vpop.f32.mrf.mxu0
      %v1846 = vadd.f32 0.0, %v1845
      %v1847 = vpop.f32.mrf.mxu0
      %v1848 = vadd.f32 0.0, %v1847
      %v1849 = vpop.f32.mrf.mxu0
      %v1850 = vadd.f32 0.0, %v1849
      %v1851 = vpop.f32.mrf.mxu0
      %v1852 = vadd.f32 0.0, %v1851
      %1853 = vmatprep.mubr.bf16.mxu0 0
      %1854 = vmatmul.mubr.bf16.gmra.mxu0 %v1777
      %v1855 = vpop.f32.mrf.mxu0
      %v1856 = vadd.f32 0.0, %v1855
      %v1857 = vpop.f32.mrf.mxu0
      %v1858 = vadd.f32 0.0, %v1857
      %v1859 = vpop.f32.mrf.mxu0
      %v1860 = vadd.f32 0.0, %v1859
      %v1861 = vpop.f32.mrf.mxu0
      %v1862 = vadd.f32 0.0, %v1861
      %1863 = vmatprep.mubr.bf16.mxu0 0
      %1864 = vmatmul.mubr.bf16.gmra.mxu0 %v1780
      %v1865 = vpop.f32.mrf.mxu0
      %v1866 = vadd.f32 0.0, %v1865
      %v1867 = vpop.f32.mrf.mxu0
      %v1868 = vadd.f32 0.0, %v1867
      %v1869 = vpop.f32.mrf.mxu0
      %v1870 = vadd.f32 0.0, %v1869
      %v1871 = vpop.f32.mrf.mxu0
      %v1872 = vadd.f32 0.0, %v1871
      %1873 = vmatprep.mubr.bf16.mxu0 0
      %1874 = vmatmul.mubr.bf16.gmra.mxu0 %v1783
      %v1875 = vpop.f32.mrf.mxu0
      %v1876 = vadd.f32 0.0, %v1875
      %v1877 = vpop.f32.mrf.mxu0
      %v1878 = vadd.f32 0.0, %v1877
      %v1879 = vpop.f32.mrf.mxu0
      %v1880 = vadd.f32 0.0, %v1879
      %v1881 = vpop.f32.mrf.mxu0
      %v1882 = vadd.f32 0.0, %v1881
      %1883 = vdwg.mxu0
      %v1884 = vmul.f32 %v1826, %v1826
      %v1885 = vmul.f32 %v1828, %v1828
      %v1886 = vmul.f32 %v1830, %v1830
      %v1887 = vmul.f32 %v1832, %v1832
      %v1888 = vmul.f32 %v1836, %v1836
      %v1889 = vmul.f32 %v1838, %v1838
      %v1890 = vmul.f32 %v1840, %v1840
      %v1891 = vmul.f32 %v1842, %v1842
      %v1892 = vmul.f32 %v1846, %v1846
      %v1893 = vmul.f32 %v1848, %v1848
      %v1894 = vmul.f32 %v1850, %v1850
      %v1895 = vmul.f32 %v1852, %v1852
      %v1896 = vmul.f32 %v1856, %v1856
      %v1897 = vmul.f32 %v1858, %v1858
      %v1898 = vmul.f32 %v1860, %v1860
      %v1899 = vmul.f32 %v1862, %v1862
      %v1900 = vmul.f32 %v1866, %v1866
      %v1901 = vmul.f32 %v1868, %v1868
      %v1902 = vmul.f32 %v1870, %v1870
      %v1903 = vmul.f32 %v1872, %v1872
      %v1904 = vmul.f32 %v1876, %v1876
      %v1905 = vmul.f32 %v1878, %v1878
      %v1906 = vmul.f32 %v1880, %v1880
      %v1907 = vmul.f32 %v1882, %v1882
      %v1908 = vmul.f32 %v1826, %v1884
      %v1909 = vmul.f32 %v1828, %v1885
      %v1910 = vmul.f32 %v1830, %v1886
      %v1911 = vmul.f32 %v1832, %v1887
      %v1912 = vmul.f32 %v1836, %v1888
      %v1913 = vmul.f32 %v1838, %v1889
      %v1914 = vmul.f32 %v1840, %v1890
      %v1915 = vmul.f32 %v1842, %v1891
      %v1916 = vmul.f32 %v1846, %v1892
      %v1917 = vmul.f32 %v1848, %v1893
      %v1918 = vmul.f32 %v1850, %v1894
      %v1919 = vmul.f32 %v1852, %v1895
      %v1920 = vmul.f32 %v1856, %v1896
      %v1921 = vmul.f32 %v1858, %v1897
      %v1922 = vmul.f32 %v1860, %v1898
      %v1923 = vmul.f32 %v1862, %v1899
      %v1924 = vmul.f32 %v1866, %v1900
      %v1925 = vmul.f32 %v1868, %v1901
      %v1926 = vmul.f32 %v1870, %v1902
      %v1927 = vmul.f32 %v1872, %v1903
      %v1928 = vmul.f32 %v1876, %v1904
      %v1929 = vmul.f32 %v1878, %v1905
      %v1930 = vmul.f32 %v1880, %v1906
      %v1931 = vmul.f32 %v1882, %v1907
      %v1932 = vmul.f32 %v1908, 0.044715
      %v1933 = vmul.f32 %v1909, 0.044715
      %v1934 = vmul.f32 %v1910, 0.044715
      %v1935 = vmul.f32 %v1911, 0.044715
      %v1936 = vmul.f32 %v1912, 0.044715
      %v1937 = vmul.f32 %v1913, 0.044715
      %v1938 = vmul.f32 %v1914, 0.044715
      %v1939 = vmul.f32 %v1915, 0.044715
      %v1940 = vmul.f32 %v1916, 0.044715
      %v1941 = vmul.f32 %v1917, 0.044715
      %v1942 = vmul.f32 %v1918, 0.044715
      %v1943 = vmul.f32 %v1919, 0.044715
      %v1944 = vmul.f32 %v1920, 0.044715
      %v1945 = vmul.f32 %v1921, 0.044715
      %v1946 = vmul.f32 %v1922, 0.044715
      %v1947 = vmul.f32 %v1923, 0.044715
      %v1948 = vmul.f32 %v1924, 0.044715
      %v1949 = vmul.f32 %v1925, 0.044715
      %v1950 = vmul.f32 %v1926, 0.044715
      %v1951 = vmul.f32 %v1927, 0.044715
      %v1952 = vmul.f32 %v1928, 0.044715
      %v1953 = vmul.f32 %v1929, 0.044715
      %v1954 = vmul.f32 %v1930, 0.044715
      %v1955 = vmul.f32 %v1931, 0.044715
      %v1956 = vadd.f32 %v1826, %v1932
      %v1957 = vadd.f32 %v1828, %v1933
      %v1958 = vadd.f32 %v1830, %v1934
      %v1959 = vadd.f32 %v1832, %v1935
      %v1960 = vadd.f32 %v1836, %v1936
      %v1961 = vadd.f32 %v1838, %v1937
      %v1962 = vadd.f32 %v1840, %v1938
      %v1963 = vadd.f32 %v1842, %v1939
      %v1964 = vadd.f32 %v1846, %v1940
      %v1965 = vadd.f32 %v1848, %v1941
      %v1966 = vadd.f32 %v1850, %v1942
      %v1967 = vadd.f32 %v1852, %v1943
      %v1968 = vadd.f32 %v1856, %v1944
      %v1969 = vadd.f32 %v1858, %v1945
      %v1970 = vadd.f32 %v1860, %v1946
      %v1971 = vadd.f32 %v1862, %v1947
      %v1972 = vadd.f32 %v1866, %v1948
      %v1973 = vadd.f32 %v1868, %v1949
      %v1974 = vadd.f32 %v1870, %v1950
      %v1975 = vadd.f32 %v1872, %v1951
      %v1976 = vadd.f32 %v1876, %v1952
      %v1977 = vadd.f32 %v1878, %v1953
      %v1978 = vadd.f32 %v1880, %v1954
      %v1979 = vadd.f32 %v1882, %v1955
      %v1980 = vmul.f32 %v1956, 0.7978846
      %v1981 = vmul.f32 %v1957, 0.7978846
      %v1982 = vmul.f32 %v1958, 0.7978846
      %v1983 = vmul.f32 %v1959, 0.7978846
      %v1984 = vmul.f32 %v1960, 0.7978846
      %v1985 = vmul.f32 %v1961, 0.7978846
      %v1986 = vmul.f32 %v1962, 0.7978846
      %v1987 = vmul.f32 %v1963, 0.7978846
      %v1988 = vmul.f32 %v1964, 0.7978846
      %v1989 = vmul.f32 %v1965, 0.7978846
      %v1990 = vmul.f32 %v1966, 0.7978846
      %v1991 = vmul.f32 %v1967, 0.7978846
      %v1992 = vmul.f32 %v1968, 0.7978846
      %v1993 = vmul.f32 %v1969, 0.7978846
      %v1994 = vmul.f32 %v1970, 0.7978846
      %v1995 = vmul.f32 %v1971, 0.7978846
      %v1996 = vmul.f32 %v1972, 0.7978846
      %v1997 = vmul.f32 %v1973, 0.7978846
      %v1998 = vmul.f32 %v1974, 0.7978846
      %v1999 = vmul.f32 %v1975, 0.7978846
      %v2000 = vmul.f32 %v1976, 0.7978846
      %v2001 = vmul.f32 %v1977, 0.7978846
      %v2002 = vmul.f32 %v1978, 0.7978846
      %v2003 = vmul.f32 %v1979, 0.7978846
      %v2004 = vtanh.pop %v1980
      %v2005 = vtanh.pop %v1981
      %v2006 = vtanh.pop %v1982
      %v2007 = vtanh.pop %v1983
      %v2008 = vtanh.pop %v1984
      %v2009 = vtanh.pop %v1985
      %v2010 = vtanh.pop %v1986
      %v2011 = vtanh.pop %v1987
      %v2012 = vtanh.pop %v1988
      %v2013 = vtanh.pop %v1989
      %v2014 = vtanh.pop %v1990
      %v2015 = vtanh.pop %v1991
      %v2016 = vtanh.pop %v1992
      %v2017 = vtanh.pop %v1993
      %v2018 = vtanh.pop %v1994
      %v2019 = vtanh.pop %v1995
      %v2020 = vtanh.pop %v1996
      %v2021 = vtanh.pop %v1997
      %v2022 = vtanh.pop %v1998
      %v2023 = vtanh.pop %v1999
      %v2024 = vtanh.pop %v2000
      %v2025 = vtanh.pop %v2001
      %v2026 = vtanh.pop %v2002
      %v2027 = vtanh.pop %v2003
      %v2028 = vadd.f32 %v2004, 1.0
      %v2029 = vadd.f32 %v2005, 1.0
      %v2030 = vadd.f32 %v2006, 1.0
      %v2031 = vadd.f32 %v2007, 1.0
      %v2032 = vadd.f32 %v2008, 1.0
      %v2033 = vadd.f32 %v2009, 1.0
      %v2034 = vadd.f32 %v2010, 1.0
      %v2035 = vadd.f32 %v2011, 1.0
      %v2036 = vadd.f32 %v2012, 1.0
      %v2037 = vadd.f32 %v2013, 1.0
      %v2038 = vadd.f32 %v2014, 1.0
      %v2039 = vadd.f32 %v2015, 1.0
      %v2040 = vadd.f32 %v2016, 1.0
      %v2041 = vadd.f32 %v2017, 1.0
      %v2042 = vadd.f32 %v2018, 1.0
      %v2043 = vadd.f32 %v2019, 1.0
      %v2044 = vadd.f32 %v2020, 1.0
      %v2045 = vadd.f32 %v2021, 1.0
      %v2046 = vadd.f32 %v2022, 1.0
      %v2047 = vadd.f32 %v2023, 1.0
      %v2048 = vadd.f32 %v2024, 1.0
      %v2049 = vadd.f32 %v2025, 1.0
      %v2050 = vadd.f32 %v2026, 1.0
      %v2051 = vadd.f32 %v2027, 1.0
      %v2052 = vmul.f32 %v2028, 0.5
      %v2053 = vmul.f32 %v2029, 0.5
      %v2054 = vmul.f32 %v2030, 0.5
      %v2055 = vmul.f32 %v2031, 0.5
      %v2056 = vmul.f32 %v2032, 0.5
      %v2057 = vmul.f32 %v2033, 0.5
      %v2058 = vmul.f32 %v2034, 0.5
      %v2059 = vmul.f32 %v2035, 0.5
      %v2060 = vmul.f32 %v2036, 0.5
      %v2061 = vmul.f32 %v2037, 0.5
      %v2062 = vmul.f32 %v2038, 0.5
      %v2063 = vmul.f32 %v2039, 0.5
      %v2064 = vmul.f32 %v2040, 0.5
      %v2065 = vmul.f32 %v2041, 0.5
      %v2066 = vmul.f32 %v2042, 0.5
      %v2067 = vmul.f32 %v2043, 0.5
      %v2068 = vmul.f32 %v2044, 0.5
      %v2069 = vmul.f32 %v2045, 0.5
      %v2070 = vmul.f32 %v2046, 0.5
      %v2071 = vmul.f32 %v2047, 0.5
      %v2072 = vmul.f32 %v2048, 0.5
      %v2073 = vmul.f32 %v2049, 0.5
      %v2074 = vmul.f32 %v2050, 0.5
      %v2075 = vmul.f32 %v2051, 0.5
      %v2076 = vmul.f32 %v1826, %v2052
      %v2077 = vmul.f32 %v1828, %v2053
      %v2078 = vmul.f32 %v1830, %v2054
      %v2079 = vmul.f32 %v1832, %v2055
      %v2080 = vmul.f32 %v1836, %v2056
      %v2081 = vmul.f32 %v1838, %v2057
      %v2082 = vmul.f32 %v1840, %v2058
      %v2083 = vmul.f32 %v1842, %v2059
      %v2084 = vmul.f32 %v1846, %v2060
      %v2085 = vmul.f32 %v1848, %v2061
      %v2086 = vmul.f32 %v1850, %v2062
      %v2087 = vmul.f32 %v1852, %v2063
      %v2088 = vmul.f32 %v1856, %v2064
      %v2089 = vmul.f32 %v1858, %v2065
      %v2090 = vmul.f32 %v1860, %v2066
      %v2091 = vmul.f32 %v1862, %v2067
      %v2092 = vmul.f32 %v1866, %v2068
      %v2093 = vmul.f32 %v1868, %v2069
      %v2094 = vmul.f32 %v1870, %v2070
      %v2095 = vmul.f32 %v1872, %v2071
      %v2096 = vmul.f32 %v1876, %v2072
      %v2097 = vmul.f32 %v1878, %v2073
      %v2098 = vmul.f32 %v1880, %v2074
      %v2099 = vmul.f32 %v1882, %v2075
      %v2100 = vpack.c.bf16 %v2078, %v2076
      %v2101 = vpack.c.bf16 %v2079, %v2077
      %v2102 = vpack.c.bf16 %v2082, %v2080
      %v2103 = vpack.c.bf16 %v2083, %v2081
      %v2104 = vpack.c.bf16 %v2086, %v2084
      %v2105 = vpack.c.bf16 %v2087, %v2085
      %v2106 = vpack.c.bf16 %v2090, %v2088
      %v2107 = vpack.c.bf16 %v2091, %v2089
      %v2108 = vpack.c.bf16 %v2094, %v2092
      %v2109 = vpack.c.bf16 %v2095, %v2093
      %v2110 = vpack.c.bf16 %v2098, %v2096
      %v2111 = vpack.c.bf16 %v2099, %v2097
      %v2113 = vsel %vm797, %v1734, 0
      %2115 = vmatprep.subr.bf16.mxu0 0
      %2116 = vmatpush1.bf16.msra.mxu0 0
      %2117 = vmatprep.subr.bf16.mxu0 0
      %2118 = vmatpush1.bf16.msra.mxu0 0
      %2119 = vmatprep.subr.bf16.mxu0 %v2111
      %2120 = vmatpush1.bf16.msra.mxu0 %v2110
      %2121 = vmatprep.subr.bf16.mxu0 %v2109
      %2122 = vmatpush1.bf16.msra.mxu0 %v2108
      %2123 = vmatprep.subr.bf16.mxu0 %v2107
      %2124 = vmatpush1.bf16.msra.mxu0 %v2106
      %2125 = vmatprep.subr.bf16.mxu0 %v2105
      %2126 = vmatpush1.bf16.msra.mxu0 %v2104
      %2127 = vmatprep.subr.bf16.mxu0 %v2103
      %2128 = vmatpush1.bf16.msra.mxu0 %v2102
      %2129 = vmatprep.subr.bf16.mxu0 %v2101
      %2130 = vmatpush1.bf16.msra.mxu0 %v2100
      %2131 = vmatprep.subr.bf16.mxu0 0
      %2132 = vmatpush2.bf16.msra.mxu0 0
      %2133 = vmatprep.subr.bf16.mxu0 0
      %2134 = vmatpush2.bf16.msra.mxu0 0
      %2135 = vmatprep.subr.bf16.mxu0 0
      %2136 = vmatpush2.bf16.msra.mxu0 0
      %2137 = vmatprep.subr.bf16.mxu0 0
      %2138 = vmatpush2.bf16.msra.mxu0 0
      %2139 = vmatprep.subr.bf16.mxu0 0
      %2140 = vmatpush2.bf16.msra.mxu0 0
      %2141 = vmatprep.subr.bf16.mxu0 0
      %2142 = vmatpush2.bf16.msra.mxu0 0
      %2143 = vmatprep.subr.bf16.mxu0 0
      %2144 = vmatpush2.bf16.msra.mxu0 0
      %2145 = vmatprep.subr.bf16.mxu0 0
      %2146 = vmatpush2.bf16.msra.mxu0 0
      %2147 = vmatprep.mubr.bf16.mxu0 0
      %2148 = vmatmul.mubr.bf16.gmra.mxu0 %v2113
      %v2149 = vpop.f32.mrf.mxu0
      %v2150 = vadd.f32 0.0, %v2149
      %v2151 = vpop.f32.mrf.mxu0
      %v2152 = vadd.f32 0.0, %v2151
      %v2153 = vpop.f32.mrf.mxu0
      %v2154 = vpop.f32.mrf.mxu0
      %2155 = vdwg.mxu0
      %v2156 = vadd.f32 %v1718, %v2150
      %v2157 = vadd.f32 %v1719, %v2152
      %s2158 = scalar_lea.vmem %s2, 192
      %v2159 = vld [vmem:[%s2158] sm:$0xf]
      %v2160 = vld [vmem:[%s2158 + $0x4] sm:$0xf]
      %v2161 = vld [vmem:[%s2158 + $0x8] sm:$0xf]
      %v2162 = vld [vmem:[%s2158 + $0xc] sm:$0xf]
      %v2163 = vld [vmem:[%s2158 + $0x10] sm:$0xf]
      %v2164 = vld [vmem:[%s2158 + $0x14] sm:$0xf]
      %v2165 = vld [vmem:[%s2158 + $0x18] sm:$0xf]
      %v2166 = vld [vmem:[%s2158 + $0x1c] sm:$0xf]
      %v2167 = vld [vmem:[%s2158 + $0x20] sm:$0xf]
      %v2168 = vld [vmem:[%s2158 + $0x24] sm:$0xf]
      %v2169 = vld [vmem:[%s2158 + $0x28] sm:$0xf]
      %v2170 = vld [vmem:[%s2158 + $0x2c] sm:$0xf]
      %s2171 = scalar_lea.vmem %s3, 16
      %v2172 = vld [vmem:[%s2171] sm:$0x7]
      %v2173 = vpack.c.bf16 %v2156, %v2156
      %v2174 = vpack.c.bf16 %v2157, %v2157
      %v2187 = vunpack.c.l.b16 %v2159
      %v2188 = vunpack.c.l.b16 %v2160
      %v2189 = vunpack.c.l.b16 %v2161
      %v2190 = vunpack.c.l.b16 %v2162
      %v2191 = vunpack.c.l.b16 %v2163
      %v2192 = vunpack.c.l.b16 %v2164
      %v2193 = vunpack.c.l.b16 %v2165
      %v2194 = vunpack.c.l.b16 %v2166
      %v2195 = vunpack.c.l.b16 %v2167
      %v2196 = vunpack.c.l.b16 %v2168
      %v2197 = vunpack.c.l.b16 %v2169
      %v2198 = vunpack.c.l.b16 %v2170
      %v2199 = vpack.c.b16 %v2188, %v2187
      %v2200 = vpack.c.b16 %v2190, %v2189
      %v2201 = vpack.c.b16 %v2192, %v2191
      %v2202 = vpack.c.b16 %v2194, %v2193
      %v2203 = vpack.c.b16 %v2196, %v2195
      %v2204 = vpack.c.b16 %v2198, %v2197
      %v2206 = vsel %vm450, %v2199, 0
      %v2209 = vsel %vm450, %v2200, 0
      %v2212 = vsel %vm450, %v2201, 0
      %v2215 = vsel %vm450, %v2202, 0
      %v2218 = vsel %vm450, %v2203, 0
      %v2221 = vsel %vm450, %v2204, 0
      %v2224 = vsel %vm469, %v2173, 0
      %v2227 = vsel %vm469, %v2174, 0
      %2229 = vmatprep.subr.bf16.mxu0 0
      %2230 = vmatpush1.bf16.msra.mxu0 0
      %2231 = vmatprep.subr.bf16.mxu0 0
      %2232 = vmatpush1.bf16.msra.mxu0 0
      %2233 = vmatprep.subr.bf16.mxu0 0
      %2234 = vmatpush1.bf16.msra.mxu0 0
      %2235 = vmatprep.subr.bf16.mxu0 0
      %2236 = vmatpush1.bf16.msra.mxu0 0
      %2237 = vmatprep.subr.bf16.mxu0 0
      %2238 = vmatpush1.bf16.msra.mxu0 0
      %2239 = vmatprep.subr.bf16.mxu0 0
      %2240 = vmatpush1.bf16.msra.mxu0 0
      %2241 = vmatprep.subr.bf16.mxu0 0
      %2242 = vmatpush1.bf16.msra.mxu0 0
      %2243 = vmatprep.subr.bf16.mxu0 %v2227
      %2244 = vmatpush1.bf16.msra.mxu0 %v2224
      %2245 = vmatprep.subr.bf16.mxu0 0
      %2246 = vmatpush2.bf16.msra.mxu0 0
      %2247 = vmatprep.subr.bf16.mxu0 0
      %2248 = vmatpush2.bf16.msra.mxu0 0
      %2249 = vmatprep.subr.bf16.mxu0 0
      %2250 = vmatpush2.bf16.msra.mxu0 0
      %2251 = vmatprep.subr.bf16.mxu0 0
      %2252 = vmatpush2.bf16.msra.mxu0 0
      %2253 = vmatprep.subr.bf16.mxu0 0
      %2254 = vmatpush2.bf16.msra.mxu0 0
      %2255 = vmatprep.subr.bf16.mxu0 0
      %2256 = vmatpush2.bf16.msra.mxu0 0
      %2257 = vmatprep.subr.bf16.mxu0 0
      %2258 = vmatpush2.bf16.msra.mxu0 0
      %2259 = vmatprep.subr.bf16.mxu0 0
      %2260 = vmatpush2.bf16.msra.mxu0 0
      %2261 = vmatprep.mubr.bf16.mxu0 0
      %2262 = vmatmul.mubr.bf16.gmra.mxu0 %v2206
      %v2263 = vpop.f32.mrf.mxu0
      %v2264 = vadd.f32 0.0, %v2263
      %v2265 = vpop.f32.mrf.mxu0
      %v2266 = vadd.f32 0.0, %v2265
      %v2267 = vpop.f32.mrf.mxu0
      %v2268 = vadd.f32 0.0, %v2267
      %v2269 = vpop.f32.mrf.mxu0
      %v2270 = vadd.f32 0.0, %v2269
      %2271 = vmatprep.mubr.bf16.mxu0 0
      %2272 = vmatmul.mubr.bf16.gmra.mxu0 %v2209
      %v2273 = vpop.f32.mrf.mxu0
      %v2274 = vadd.f32 0.0, %v2273
      %v2275 = vpop.f32.mrf.mxu0
      %v2276 = vadd.f32 0.0, %v2275
      %v2277 = vpop.f32.mrf.mxu0
      %v2278 = vadd.f32 0.0, %v2277
      %v2279 = vpop.f32.mrf.mxu0
      %v2280 = vadd.f32 0.0, %v2279
      %2281 = vmatprep.mubr.bf16.mxu0 0
      %2282 = vmatmul.mubr.bf16.gmra.mxu0 %v2212
      %v2283 = vpop.f32.mrf.mxu0
      %v2284 = vadd.f32 0.0, %v2283
      %v2285 = vpop.f32.mrf.mxu0
      %v2286 = vadd.f32 0.0, %v2285
      %v2287 = vpop.f32.mrf.mxu0
      %v2288 = vadd.f32 0.0, %v2287
      %v2289 = vpop.f32.mrf.mxu0
      %v2290 = vadd.f32 0.0, %v2289
      %2291 = vmatprep.mubr.bf16.mxu0 0
      %2292 = vmatmul.mubr.bf16.gmra.mxu0 %v2215
      %v2293 = vpop.f32.mrf.mxu0
      %v2294 = vadd.f32 0.0, %v2293
      %v2295 = vpop.f32.mrf.mxu0
      %v2296 = vadd.f32 0.0, %v2295
      %v2297 = vpop.f32.mrf.mxu0
      %v2298 = vadd.f32 0.0, %v2297
      %v2299 = vpop.f32.mrf.mxu0
      %v2300 = vadd.f32 0.0, %v2299
      %2301 = vmatprep.mubr.bf16.mxu0 0
      %2302 = vmatmul.mubr.bf16.gmra.mxu0 %v2218
      %v2303 = vpop.f32.mrf.mxu0
      %v2304 = vadd.f32 0.0, %v2303
      %v2305 = vpop.f32.mrf.mxu0
      %v2306 = vadd.f32 0.0, %v2305
      %v2307 = vpop.f32.mrf.mxu0
      %v2308 = vadd.f32 0.0, %v2307
      %v2309 = vpop.f32.mrf.mxu0
      %v2310 = vadd.f32 0.0, %v2309
      %2311 = vmatprep.mubr.bf16.mxu0 0
      %2312 = vmatmul.mubr.bf16.gmra.mxu0 %v2221
      %v2313 = vpop.f32.mrf.mxu0
      %v2314 = vadd.f32 0.0, %v2313
      %v2315 = vpop.f32.mrf.mxu0
      %v2316 = vadd.f32 0.0, %v2315
      %v2317 = vpop.f32.mrf.mxu0
      %v2318 = vadd.f32 0.0, %v2317
      %v2319 = vpop.f32.mrf.mxu0
      %v2320 = vadd.f32 0.0, %v2319
      %2321 = vdwg.mxu0
      %v2322 = vmul.f32 %v2264, %v2264
      %v2323 = vmul.f32 %v2266, %v2266
      %v2324 = vmul.f32 %v2268, %v2268
      %v2325 = vmul.f32 %v2270, %v2270
      %v2326 = vmul.f32 %v2274, %v2274
      %v2327 = vmul.f32 %v2276, %v2276
      %v2328 = vmul.f32 %v2278, %v2278
      %v2329 = vmul.f32 %v2280, %v2280
      %v2330 = vmul.f32 %v2284, %v2284
      %v2331 = vmul.f32 %v2286, %v2286
      %v2332 = vmul.f32 %v2288, %v2288
      %v2333 = vmul.f32 %v2290, %v2290
      %v2334 = vmul.f32 %v2294, %v2294
      %v2335 = vmul.f32 %v2296, %v2296
      %v2336 = vmul.f32 %v2298, %v2298
      %v2337 = vmul.f32 %v2300, %v2300
      %v2338 = vmul.f32 %v2304, %v2304
      %v2339 = vmul.f32 %v2306, %v2306
      %v2340 = vmul.f32 %v2308, %v2308
      %v2341 = vmul.f32 %v2310, %v2310
      %v2342 = vmul.f32 %v2314, %v2314
      %v2343 = vmul.f32 %v2316, %v2316
      %v2344 = vmul.f32 %v2318, %v2318
      %v2345 = vmul.f32 %v2320, %v2320
      %v2346 = vmul.f32 %v2264, %v2322
      %v2347 = vmul.f32 %v2266, %v2323
      %v2348 = vmul.f32 %v2268, %v2324
      %v2349 = vmul.f32 %v2270, %v2325
      %v2350 = vmul.f32 %v2274, %v2326
      %v2351 = vmul.f32 %v2276, %v2327
      %v2352 = vmul.f32 %v2278, %v2328
      %v2353 = vmul.f32 %v2280, %v2329
      %v2354 = vmul.f32 %v2284, %v2330
      %v2355 = vmul.f32 %v2286, %v2331
      %v2356 = vmul.f32 %v2288, %v2332
      %v2357 = vmul.f32 %v2290, %v2333
      %v2358 = vmul.f32 %v2294, %v2334
      %v2359 = vmul.f32 %v2296, %v2335
      %v2360 = vmul.f32 %v2298, %v2336
      %v2361 = vmul.f32 %v2300, %v2337
      %v2362 = vmul.f32 %v2304, %v2338
      %v2363 = vmul.f32 %v2306, %v2339
      %v2364 = vmul.f32 %v2308, %v2340
      %v2365 = vmul.f32 %v2310, %v2341
      %v2366 = vmul.f32 %v2314, %v2342
      %v2367 = vmul.f32 %v2316, %v2343
      %v2368 = vmul.f32 %v2318, %v2344
      %v2369 = vmul.f32 %v2320, %v2345
      %v2370 = vmul.f32 %v2346, 0.044715
      %v2371 = vmul.f32 %v2347, 0.044715
      %v2372 = vmul.f32 %v2348, 0.044715
      %v2373 = vmul.f32 %v2349, 0.044715
      %v2374 = vmul.f32 %v2350, 0.044715
      %v2375 = vmul.f32 %v2351, 0.044715
      %v2376 = vmul.f32 %v2352, 0.044715
      %v2377 = vmul.f32 %v2353, 0.044715
      %v2378 = vmul.f32 %v2354, 0.044715
      %v2379 = vmul.f32 %v2355, 0.044715
      %v2380 = vmul.f32 %v2356, 0.044715
      %v2381 = vmul.f32 %v2357, 0.044715
      %v2382 = vmul.f32 %v2358, 0.044715
      %v2383 = vmul.f32 %v2359, 0.044715
      %v2384 = vmul.f32 %v2360, 0.044715
      %v2385 = vmul.f32 %v2361, 0.044715
      %v2386 = vmul.f32 %v2362, 0.044715
      %v2387 = vmul.f32 %v2363, 0.044715
      %v2388 = vmul.f32 %v2364, 0.044715
      %v2389 = vmul.f32 %v2365, 0.044715
      %v2390 = vmul.f32 %v2366, 0.044715
      %v2391 = vmul.f32 %v2367, 0.044715
      %v2392 = vmul.f32 %v2368, 0.044715
      %v2393 = vmul.f32 %v2369, 0.044715
      %v2394 = vadd.f32 %v2264, %v2370
      %v2395 = vadd.f32 %v2266, %v2371
      %v2396 = vadd.f32 %v2268, %v2372
      %v2397 = vadd.f32 %v2270, %v2373
      %v2398 = vadd.f32 %v2274, %v2374
      %v2399 = vadd.f32 %v2276, %v2375
      %v2400 = vadd.f32 %v2278, %v2376
      %v2401 = vadd.f32 %v2280, %v2377
      %v2402 = vadd.f32 %v2284, %v2378
      %v2403 = vadd.f32 %v2286, %v2379
      %v2404 = vadd.f32 %v2288, %v2380
      %v2405 = vadd.f32 %v2290, %v2381
      %v2406 = vadd.f32 %v2294, %v2382
      %v2407 = vadd.f32 %v2296, %v2383
      %v2408 = vadd.f32 %v2298, %v2384
      %v2409 = vadd.f32 %v2300, %v2385
      %v2410 = vadd.f32 %v2304, %v2386
      %v2411 = vadd.f32 %v2306, %v2387
      %v2412 = vadd.f32 %v2308, %v2388
      %v2413 = vadd.f32 %v2310, %v2389
      %v2414 = vadd.f32 %v2314, %v2390
      %v2415 = vadd.f32 %v2316, %v2391
      %v2416 = vadd.f32 %v2318, %v2392
      %v2417 = vadd.f32 %v2320, %v2393
      %v2418 = vmul.f32 %v2394, 0.7978846
      %v2419 = vmul.f32 %v2395, 0.7978846
      %v2420 = vmul.f32 %v2396, 0.7978846
      %v2421 = vmul.f32 %v2397, 0.7978846
      %v2422 = vmul.f32 %v2398, 0.7978846
      %v2423 = vmul.f32 %v2399, 0.7978846
      %v2424 = vmul.f32 %v2400, 0.7978846
      %v2425 = vmul.f32 %v2401, 0.7978846
      %v2426 = vmul.f32 %v2402, 0.7978846
      %v2427 = vmul.f32 %v2403, 0.7978846
      %v2428 = vmul.f32 %v2404, 0.7978846
      %v2429 = vmul.f32 %v2405, 0.7978846
      %v2430 = vmul.f32 %v2406, 0.7978846
      %v2431 = vmul.f32 %v2407, 0.7978846
      %v2432 = vmul.f32 %v2408, 0.7978846
      %v2433 = vmul.f32 %v2409, 0.7978846
      %v2434 = vmul.f32 %v2410, 0.7978846
      %v2435 = vmul.f32 %v2411, 0.7978846
      %v2436 = vmul.f32 %v2412, 0.7978846
      %v2437 = vmul.f32 %v2413, 0.7978846
      %v2438 = vmul.f32 %v2414, 0.7978846
      %v2439 = vmul.f32 %v2415, 0.7978846
      %v2440 = vmul.f32 %v2416, 0.7978846
      %v2441 = vmul.f32 %v2417, 0.7978846
      %v2442 = vtanh.pop %v2418
      %v2443 = vtanh.pop %v2419
      %v2444 = vtanh.pop %v2420
      %v2445 = vtanh.pop %v2421
      %v2446 = vtanh.pop %v2422
      %v2447 = vtanh.pop %v2423
      %v2448 = vtanh.pop %v2424
      %v2449 = vtanh.pop %v2425
      %v2450 = vtanh.pop %v2426
      %v2451 = vtanh.pop %v2427
      %v2452 = vtanh.pop %v2428
      %v2453 = vtanh.pop %v2429
      %v2454 = vtanh.pop %v2430
      %v2455 = vtanh.pop %v2431
      %v2456 = vtanh.pop %v2432
      %v2457 = vtanh.pop %v2433
      %v2458 = vtanh.pop %v2434
      %v2459 = vtanh.pop %v2435
      %v2460 = vtanh.pop %v2436
      %v2461 = vtanh.pop %v2437
      %v2462 = vtanh.pop %v2438
      %v2463 = vtanh.pop %v2439
      %v2464 = vtanh.pop %v2440
      %v2465 = vtanh.pop %v2441
      %v2466 = vadd.f32 %v2442, 1.0
      %v2467 = vadd.f32 %v2443, 1.0
      %v2468 = vadd.f32 %v2444, 1.0
      %v2469 = vadd.f32 %v2445, 1.0
      %v2470 = vadd.f32 %v2446, 1.0
      %v2471 = vadd.f32 %v2447, 1.0
      %v2472 = vadd.f32 %v2448, 1.0
      %v2473 = vadd.f32 %v2449, 1.0
      %v2474 = vadd.f32 %v2450, 1.0
      %v2475 = vadd.f32 %v2451, 1.0
      %v2476 = vadd.f32 %v2452, 1.0
      %v2477 = vadd.f32 %v2453, 1.0
      %v2478 = vadd.f32 %v2454, 1.0
      %v2479 = vadd.f32 %v2455, 1.0
      %v2480 = vadd.f32 %v2456, 1.0
      %v2481 = vadd.f32 %v2457, 1.0
      %v2482 = vadd.f32 %v2458, 1.0
      %v2483 = vadd.f32 %v2459, 1.0
      %v2484 = vadd.f32 %v2460, 1.0
      %v2485 = vadd.f32 %v2461, 1.0
      %v2486 = vadd.f32 %v2462, 1.0
      %v2487 = vadd.f32 %v2463, 1.0
      %v2488 = vadd.f32 %v2464, 1.0
      %v2489 = vadd.f32 %v2465, 1.0
      %v2490 = vmul.f32 %v2466, 0.5
      %v2491 = vmul.f32 %v2467, 0.5
      %v2492 = vmul.f32 %v2468, 0.5
      %v2493 = vmul.f32 %v2469, 0.5
      %v2494 = vmul.f32 %v2470, 0.5
      %v2495 = vmul.f32 %v2471, 0.5
      %v2496 = vmul.f32 %v2472, 0.5
      %v2497 = vmul.f32 %v2473, 0.5
      %v2498 = vmul.f32 %v2474, 0.5
      %v2499 = vmul.f32 %v2475, 0.5
      %v2500 = vmul.f32 %v2476, 0.5
      %v2501 = vmul.f32 %v2477, 0.5
      %v2502 = vmul.f32 %v2478, 0.5
      %v2503 = vmul.f32 %v2479, 0.5
      %v2504 = vmul.f32 %v2480, 0.5
      %v2505 = vmul.f32 %v2481, 0.5
      %v2506 = vmul.f32 %v2482, 0.5
      %v2507 = vmul.f32 %v2483, 0.5
      %v2508 = vmul.f32 %v2484, 0.5
      %v2509 = vmul.f32 %v2485, 0.5
      %v2510 = vmul.f32 %v2486, 0.5
      %v2511 = vmul.f32 %v2487, 0.5
      %v2512 = vmul.f32 %v2488, 0.5
      %v2513 = vmul.f32 %v2489, 0.5
      %v2514 = vmul.f32 %v2264, %v2490
      %v2515 = vmul.f32 %v2266, %v2491
      %v2516 = vmul.f32 %v2268, %v2492
      %v2517 = vmul.f32 %v2270, %v2493
      %v2518 = vmul.f32 %v2274, %v2494
      %v2519 = vmul.f32 %v2276, %v2495
      %v2520 = vmul.f32 %v2278, %v2496
      %v2521 = vmul.f32 %v2280, %v2497
      %v2522 = vmul.f32 %v2284, %v2498
      %v2523 = vmul.f32 %v2286, %v2499
      %v2524 = vmul.f32 %v2288, %v2500
      %v2525 = vmul.f32 %v2290, %v2501
      %v2526 = vmul.f32 %v2294, %v2502
      %v2527 = vmul.f32 %v2296, %v2503
      %v2528 = vmul.f32 %v2298, %v2504
      %v2529 = vmul.f32 %v2300, %v2505
      %v2530 = vmul.f32 %v2304, %v2506
      %v2531 = vmul.f32 %v2306, %v2507
      %v2532 = vmul.f32 %v2308, %v2508
      %v2533 = vmul.f32 %v2310, %v2509
      %v2534 = vmul.f32 %v2314, %v2510
      %v2535 = vmul.f32 %v2316, %v2511
      %v2536 = vmul.f32 %v2318, %v2512
      %v2537 = vmul.f32 %v2320, %v2513
      %v2538 = vpack.c.bf16 %v2516, %v2514
      %v2539 = vpack.c.bf16 %v2517, %v2515
      %v2540 = vpack.c.bf16 %v2520, %v2518
      %v2541 = vpack.c.bf16 %v2521, %v2519
      %v2542 = vpack.c.bf16 %v2524, %v2522
      %v2543 = vpack.c.bf16 %v2525, %v2523
      %v2544 = vpack.c.bf16 %v2528, %v2526
      %v2545 = vpack.c.bf16 %v2529, %v2527
      %v2546 = vpack.c.bf16 %v2532, %v2530
      %v2547 = vpack.c.bf16 %v2533, %v2531
      %v2548 = vpack.c.bf16 %v2536, %v2534
      %v2549 = vpack.c.bf16 %v2537, %v2535
      %v2551 = vsel %vm797, %v2172, 0
      %2553 = vmatprep.subr.bf16.mxu0 0
      %2554 = vmatpush1.bf16.msra.mxu0 0
      %2555 = vmatprep.subr.bf16.mxu0 0
      %2556 = vmatpush1.bf16.msra.mxu0 0
      %2557 = vmatprep.subr.bf16.mxu0 %v2549
      %2558 = vmatpush1.bf16.msra.mxu0 %v2548
      %2559 = vmatprep.subr.bf16.mxu0 %v2547
      %2560 = vmatpush1.bf16.msra.mxu0 %v2546
      %2561 = vmatprep.subr.bf16.mxu0 %v2545
      %2562 = vmatpush1.bf16.msra.mxu0 %v2544
      %2563 = vmatprep.subr.bf16.mxu0 %v2543
      %2564 = vmatpush1.bf16.msra.mxu0 %v2542
      %2565 = vmatprep.subr.bf16.mxu0 %v2541
      %2566 = vmatpush1.bf16.msra.mxu0 %v2540
      %2567 = vmatprep.subr.bf16.mxu0 %v2539
      %2568 = vmatpush1.bf16.msra.mxu0 %v2538
      %2569 = vmatprep.subr.bf16.mxu0 0
      %2570 = vmatpush2.bf16.msra.mxu0 0
      %2571 = vmatprep.subr.bf16.mxu0 0
      %2572 = vmatpush2.bf16.msra.mxu0 0
      %2573 = vmatprep.subr.bf16.mxu0 0
      %2574 = vmatpush2.bf16.msra.mxu0 0
      %2575 = vmatprep.subr.bf16.mxu0 0
      %2576 = vmatpush2.bf16.msra.mxu0 0
      %2577 = vmatprep.subr.bf16.mxu0 0
      %2578 = vmatpush2.bf16.msra.mxu0 0
      %2579 = vmatprep.subr.bf16.mxu0 0
      %2580 = vmatpush2.bf16.msra.mxu0 0
      %2581 = vmatprep.subr.bf16.mxu0 0
      %2582 = vmatpush2.bf16.msra.mxu0 0
      %2583 = vmatprep.subr.bf16.mxu0 0
      %2584 = vmatpush2.bf16.msra.mxu0 0
      %2585 = vmatprep.mubr.bf16.mxu0 0
      %2586 = vmatmul.mubr.bf16.gmra.mxu0 %v2551
      %v2587 = vpop.f32.mrf.mxu0
      %v2588 = vadd.f32 0.0, %v2587
      %v2589 = vpop.f32.mrf.mxu0
      %v2590 = vadd.f32 0.0, %v2589
      %v2591 = vpop.f32.mrf.mxu0
      %v2592 = vpop.f32.mrf.mxu0
      %2593 = vdwg.mxu0
      %v2594 = vadd.f32 %v2156, %v2588
      %v2595 = vadd.f32 %v2157, %v2590
      %s2596 = scalar_lea.vmem %s2, 240
      %v2597 = vld [vmem:[%s2596] sm:$0xf]
      %v2598 = vld [vmem:[%s2596 + $0x4] sm:$0xf]
      %v2599 = vld [vmem:[%s2596 + $0x8] sm:$0xf]
      %v2600 = vld [vmem:[%s2596 + $0xc] sm:$0xf]
      %v2601 = vld [vmem:[%s2596 + $0x10] sm:$0xf]
      %v2602 = vld [vmem:[%s2596 + $0x14] sm:$0xf]
      %v2603 = vld [vmem:[%s2596 + $0x18] sm:$0xf]
      %v2604 = vld [vmem:[%s2596 + $0x1c] sm:$0xf]
      %v2605 = vld [vmem:[%s2596 + $0x20] sm:$0xf]
      %v2606 = vld [vmem:[%s2596 + $0x24] sm:$0xf]
      %v2607 = vld [vmem:[%s2596 + $0x28] sm:$0xf]
      %v2608 = vld [vmem:[%s2596 + $0x2c] sm:$0xf]
      %s2609 = scalar_lea.vmem %s3, 20
      %v2610 = vld [vmem:[%s2609] sm:$0x7]
      %v2611 = vpack.c.bf16 %v2594, %v2594
      %v2612 = vpack.c.bf16 %v2595, %v2595
      %v2625 = vunpack.c.l.b16 %v2597
      %v2626 = vunpack.c.l.b16 %v2598
      %v2627 = vunpack.c.l.b16 %v2599
      %v2628 = vunpack.c.l.b16 %v2600
      %v2629 = vunpack.c.l.b16 %v2601
      %v2630 = vunpack.c.l.b16 %v2602
      %v2631 = vunpack.c.l.b16 %v2603
      %v2632 = vunpack.c.l.b16 %v2604
      %v2633 = vunpack.c.l.b16 %v2605
      %v2634 = vunpack.c.l.b16 %v2606
      %v2635 = vunpack.c.l.b16 %v2607
      %v2636 = vunpack.c.l.b16 %v2608
      %v2637 = vpack.c.b16 %v2626, %v2625
      %v2638 = vpack.c.b16 %v2628, %v2627
      %v2639 = vpack.c.b16 %v2630, %v2629
      %v2640 = vpack.c.b16 %v2632, %v2631
      %v2641 = vpack.c.b16 %v2634, %v2633
      %v2642 = vpack.c.b16 %v2636, %v2635
      %v2644 = vsel %vm450, %v2637, 0
      %v2647 = vsel %vm450, %v2638, 0
      %v2650 = vsel %vm450, %v2639, 0
      %v2653 = vsel %vm450, %v2640, 0
      %v2656 = vsel %vm450, %v2641, 0
      %v2659 = vsel %vm450, %v2642, 0
      %v2662 = vsel %vm469, %v2611, 0
      %v2665 = vsel %vm469, %v2612, 0
      %2667 = vmatprep.subr.bf16.mxu0 0
      %2668 = vmatpush1.bf16.msra.mxu0 0
      %2669 = vmatprep.subr.bf16.mxu0 0
      %2670 = vmatpush1.bf16.msra.mxu0 0
      %2671 = vmatprep.subr.bf16.mxu0 0
      %2672 = vmatpush1.bf16.msra.mxu0 0
      %2673 = vmatprep.subr.bf16.mxu0 0
      %2674 = vmatpush1.bf16.msra.mxu0 0
      %2675 = vmatprep.subr.bf16.mxu0 0
      %2676 = vmatpush1.bf16.msra.mxu0 0
      %2677 = vmatprep.subr.bf16.mxu0 0
      %2678 = vmatpush1.bf16.msra.mxu0 0
      %2679 = vmatprep.subr.bf16.mxu0 0
      %2680 = vmatpush1.bf16.msra.mxu0 0
      %2681 = vmatprep.subr.bf16.mxu0 %v2665
      %2682 = vmatpush1.bf16.msra.mxu0 %v2662
      %2683 = vmatprep.subr.bf16.mxu0 0
      %2684 = vmatpush2.bf16.msra.mxu0 0
      %2685 = vmatprep.subr.bf16.mxu0 0
      %2686 = vmatpush2.bf16.msra.mxu0 0
      %2687 = vmatprep.subr.bf16.mxu0 0
      %2688 = vmatpush2.bf16.msra.mxu0 0
      %2689 = vmatprep.subr.bf16.mxu0 0
      %2690 = vmatpush2.bf16.msra.mxu0 0
      %2691 = vmatprep.subr.bf16.mxu0 0
      %2692 = vmatpush2.bf16.msra.mxu0 0
      %2693 = vmatprep.subr.bf16.mxu0 0
      %2694 = vmatpush2.bf16.msra.mxu0 0
      %2695 = vmatprep.subr.bf16.mxu0 0
      %2696 = vmatpush2.bf16.msra.mxu0 0
      %2697 = vmatprep.subr.bf16.mxu0 0
      %2698 = vmatpush2.bf16.msra.mxu0 0
      %2699 = vmatprep.mubr.bf16.mxu0 0
      %2700 = vmatmul.mubr.bf16.gmra.mxu0 %v2644
      %v2701 = vpop.f32.mrf.mxu0
      %v2702 = vadd.f32 0.0, %v2701
      %v2703 = vpop.f32.mrf.mxu0
      %v2704 = vadd.f32 0.0, %v2703
      %v2705 = vpop.f32.mrf.mxu0
      %v2706 = vadd.f32 0.0, %v2705
      %v2707 = vpop.f32.mrf.mxu0
      %v2708 = vadd.f32 0.0, %v2707
      %2709 = vmatprep.mubr.bf16.mxu0 0
      %2710 = vmatmul.mubr.bf16.gmra.mxu0 %v2647
      %v2711 = vpop.f32.mrf.mxu0
      %v2712 = vadd.f32 0.0, %v2711
      %v2713 = vpop.f32.mrf.mxu0
      %v2714 = vadd.f32 0.0, %v2713
      %v2715 = vpop.f32.mrf.mxu0
      %v2716 = vadd.f32 0.0, %v2715
      %v2717 = vpop.f32.mrf.mxu0
      %v2718 = vadd.f32 0.0, %v2717
      %2719 = vmatprep.mubr.bf16.mxu0 0
      %2720 = vmatmul.mubr.bf16.gmra.mxu0 %v2650
      %v2721 = vpop.f32.mrf.mxu0
      %v2722 = vadd.f32 0.0, %v2721
      %v2723 = vpop.f32.mrf.mxu0
      %v2724 = vadd.f32 0.0, %v2723
      %v2725 = vpop.f32.mrf.mxu0
      %v2726 = vadd.f32 0.0, %v2725
      %v2727 = vpop.f32.mrf.mxu0
      %v2728 = vadd.f32 0.0, %v2727
      %2729 = vmatprep.mubr.bf16.mxu0 0
      %2730 = vmatmul.mubr.bf16.gmra.mxu0 %v2653
      %v2731 = vpop.f32.mrf.mxu0
      %v2732 = vadd.f32 0.0, %v2731
      %v2733 = vpop.f32.mrf.mxu0
      %v2734 = vadd.f32 0.0, %v2733
      %v2735 = vpop.f32.mrf.mxu0
      %v2736 = vadd.f32 0.0, %v2735
      %v2737 = vpop.f32.mrf.mxu0
      %v2738 = vadd.f32 0.0, %v2737
      %2739 = vmatprep.mubr.bf16.mxu0 0
      %2740 = vmatmul.mubr.bf16.gmra.mxu0 %v2656
      %v2741 = vpop.f32.mrf.mxu0
      %v2742 = vadd.f32 0.0, %v2741
      %v2743 = vpop.f32.mrf.mxu0
      %v2744 = vadd.f32 0.0, %v2743
      %v2745 = vpop.f32.mrf.mxu0
      %v2746 = vadd.f32 0.0, %v2745
      %v2747 = vpop.f32.mrf.mxu0
      %v2748 = vadd.f32 0.0, %v2747
      %2749 = vmatprep.mubr.bf16.mxu0 0
      %2750 = vmatmul.mubr.bf16.gmra.mxu0 %v2659
      %v2751 = vpop.f32.mrf.mxu0
      %v2752 = vadd.f32 0.0, %v2751
      %v2753 = vpop.f32.mrf.mxu0
      %v2754 = vadd.f32 0.0, %v2753
      %v2755 = vpop.f32.mrf.mxu0
      %v2756 = vadd.f32 0.0, %v2755
      %v2757 = vpop.f32.mrf.mxu0
      %v2758 = vadd.f32 0.0, %v2757
      %2759 = vdwg.mxu0
      %v2760 = vmul.f32 %v2702, %v2702
      %v2761 = vmul.f32 %v2704, %v2704
      %v2762 = vmul.f32 %v2706, %v2706
      %v2763 = vmul.f32 %v2708, %v2708
      %v2764 = vmul.f32 %v2712, %v2712
      %v2765 = vmul.f32 %v2714, %v2714
      %v2766 = vmul.f32 %v2716, %v2716
      %v2767 = vmul.f32 %v2718, %v2718
      %v2768 = vmul.f32 %v2722, %v2722
      %v2769 = vmul.f32 %v2724, %v2724
      %v2770 = vmul.f32 %v2726, %v2726
      %v2771 = vmul.f32 %v2728, %v2728
      %v2772 = vmul.f32 %v2732, %v2732
      %v2773 = vmul.f32 %v2734, %v2734
      %v2774 = vmul.f32 %v2736, %v2736
      %v2775 = vmul.f32 %v2738, %v2738
      %v2776 = vmul.f32 %v2742, %v2742
      %v2777 = vmul.f32 %v2744, %v2744
      %v2778 = vmul.f32 %v2746, %v2746
      %v2779 = vmul.f32 %v2748, %v2748
      %v2780 = vmul.f32 %v2752, %v2752
      %v2781 = vmul.f32 %v2754, %v2754
      %v2782 = vmul.f32 %v2756, %v2756
      %v2783 = vmul.f32 %v2758, %v2758
      %v2784 = vmul.f32 %v2702, %v2760
      %v2785 = vmul.f32 %v2704, %v2761
      %v2786 = vmul.f32 %v2706, %v2762
      %v2787 = vmul.f32 %v2708, %v2763
      %v2788 = vmul.f32 %v2712, %v2764
      %v2789 = vmul.f32 %v2714, %v2765
      %v2790 = vmul.f32 %v2716, %v2766
      %v2791 = vmul.f32 %v2718, %v2767
      %v2792 = vmul.f32 %v2722, %v2768
      %v2793 = vmul.f32 %v2724, %v2769
      %v2794 = vmul.f32 %v2726, %v2770
      %v2795 = vmul.f32 %v2728, %v2771
      %v2796 = vmul.f32 %v2732, %v2772
      %v2797 = vmul.f32 %v2734, %v2773
      %v2798 = vmul.f32 %v2736, %v2774
      %v2799 = vmul.f32 %v2738, %v2775
      %v2800 = vmul.f32 %v2742, %v2776
      %v2801 = vmul.f32 %v2744, %v2777
      %v2802 = vmul.f32 %v2746, %v2778
      %v2803 = vmul.f32 %v2748, %v2779
      %v2804 = vmul.f32 %v2752, %v2780
      %v2805 = vmul.f32 %v2754, %v2781
      %v2806 = vmul.f32 %v2756, %v2782
      %v2807 = vmul.f32 %v2758, %v2783
      %v2808 = vmul.f32 %v2784, 0.044715
      %v2809 = vmul.f32 %v2785, 0.044715
      %v2810 = vmul.f32 %v2786, 0.044715
      %v2811 = vmul.f32 %v2787, 0.044715
      %v2812 = vmul.f32 %v2788, 0.044715
      %v2813 = vmul.f32 %v2789, 0.044715
      %v2814 = vmul.f32 %v2790, 0.044715
      %v2815 = vmul.f32 %v2791, 0.044715
      %v2816 = vmul.f32 %v2792, 0.044715
      %v2817 = vmul.f32 %v2793, 0.044715
      %v2818 = vmul.f32 %v2794, 0.044715
      %v2819 = vmul.f32 %v2795, 0.044715
      %v2820 = vmul.f32 %v2796, 0.044715
      %v2821 = vmul.f32 %v2797, 0.044715
      %v2822 = vmul.f32 %v2798, 0.044715
      %v2823 = vmul.f32 %v2799, 0.044715
      %v2824 = vmul.f32 %v2800, 0.044715
      %v2825 = vmul.f32 %v2801, 0.044715
      %v2826 = vmul.f32 %v2802, 0.044715
      %v2827 = vmul.f32 %v2803, 0.044715
      %v2828 = vmul.f32 %v2804, 0.044715
      %v2829 = vmul.f32 %v2805, 0.044715
      %v2830 = vmul.f32 %v2806, 0.044715
      %v2831 = vmul.f32 %v2807, 0.044715
      %v2832 = vadd.f32 %v2702, %v2808
      %v2833 = vadd.f32 %v2704, %v2809
      %v2834 = vadd.f32 %v2706, %v2810
      %v2835 = vadd.f32 %v2708, %v2811
      %v2836 = vadd.f32 %v2712, %v2812
      %v2837 = vadd.f32 %v2714, %v2813
      %v2838 = vadd.f32 %v2716, %v2814
      %v2839 = vadd.f32 %v2718, %v2815
      %v2840 = vadd.f32 %v2722, %v2816
      %v2841 = vadd.f32 %v2724, %v2817
      %v2842 = vadd.f32 %v2726, %v2818
      %v2843 = vadd.f32 %v2728, %v2819
      %v2844 = vadd.f32 %v2732, %v2820
      %v2845 = vadd.f32 %v2734, %v2821
      %v2846 = vadd.f32 %v2736, %v2822
      %v2847 = vadd.f32 %v2738, %v2823
      %v2848 = vadd.f32 %v2742, %v2824
      %v2849 = vadd.f32 %v2744, %v2825
      %v2850 = vadd.f32 %v2746, %v2826
      %v2851 = vadd.f32 %v2748, %v2827
      %v2852 = vadd.f32 %v2752, %v2828
      %v2853 = vadd.f32 %v2754, %v2829
      %v2854 = vadd.f32 %v2756, %v2830
      %v2855 = vadd.f32 %v2758, %v2831
      %v2856 = vmul.f32 %v2832, 0.7978846
      %v2857 = vmul.f32 %v2833, 0.7978846
      %v2858 = vmul.f32 %v2834, 0.7978846
      %v2859 = vmul.f32 %v2835, 0.7978846
      %v2860 = vmul.f32 %v2836, 0.7978846
      %v2861 = vmul.f32 %v2837, 0.7978846
      %v2862 = vmul.f32 %v2838, 0.7978846
      %v2863 = vmul.f32 %v2839, 0.7978846
      %v2864 = vmul.f32 %v2840, 0.7978846
      %v2865 = vmul.f32 %v2841, 0.7978846
      %v2866 = vmul.f32 %v2842, 0.7978846
      %v2867 = vmul.f32 %v2843, 0.7978846
      %v2868 = vmul.f32 %v2844, 0.7978846
      %v2869 = vmul.f32 %v2845, 0.7978846
      %v2870 = vmul.f32 %v2846, 0.7978846
      %v2871 = vmul.f32 %v2847, 0.7978846
      %v2872 = vmul.f32 %v2848, 0.7978846
      %v2873 = vmul.f32 %v2849, 0.7978846
      %v2874 = vmul.f32 %v2850, 0.7978846
      %v2875 = vmul.f32 %v2851, 0.7978846
      %v2876 = vmul.f32 %v2852, 0.7978846
      %v2877 = vmul.f32 %v2853, 0.7978846
      %v2878 = vmul.f32 %v2854, 0.7978846
      %v2879 = vmul.f32 %v2855, 0.7978846
      %v2880 = vtanh.pop %v2856
      %v2881 = vtanh.pop %v2857
      %v2882 = vtanh.pop %v2858
      %v2883 = vtanh.pop %v2859
      %v2884 = vtanh.pop %v2860
      %v2885 = vtanh.pop %v2861
      %v2886 = vtanh.pop %v2862
      %v2887 = vtanh.pop %v2863
      %v2888 = vtanh.pop %v2864
      %v2889 = vtanh.pop %v2865
      %v2890 = vtanh.pop %v2866
      %v2891 = vtanh.pop %v2867
      %v2892 = vtanh.pop %v2868
      %v2893 = vtanh.pop %v2869
      %v2894 = vtanh.pop %v2870
      %v2895 = vtanh.pop %v2871
      %v2896 = vtanh.pop %v2872
      %v2897 = vtanh.pop %v2873
      %v2898 = vtanh.pop %v2874
      %v2899 = vtanh.pop %v2875
      %v2900 = vtanh.pop %v2876
      %v2901 = vtanh.pop %v2877
      %v2902 = vtanh.pop %v2878
      %v2903 = vtanh.pop %v2879
      %v2904 = vadd.f32 %v2880, 1.0
      %v2905 = vadd.f32 %v2881, 1.0
      %v2906 = vadd.f32 %v2882, 1.0
      %v2907 = vadd.f32 %v2883, 1.0
      %v2908 = vadd.f32 %v2884, 1.0
      %v2909 = vadd.f32 %v2885, 1.0
      %v2910 = vadd.f32 %v2886, 1.0
      %v2911 = vadd.f32 %v2887, 1.0
      %v2912 = vadd.f32 %v2888, 1.0
      %v2913 = vadd.f32 %v2889, 1.0
      %v2914 = vadd.f32 %v2890, 1.0
      %v2915 = vadd.f32 %v2891, 1.0
      %v2916 = vadd.f32 %v2892, 1.0
      %v2917 = vadd.f32 %v2893, 1.0
      %v2918 = vadd.f32 %v2894, 1.0
      %v2919 = vadd.f32 %v2895, 1.0
      %v2920 = vadd.f32 %v2896, 1.0
      %v2921 = vadd.f32 %v2897, 1.0
      %v2922 = vadd.f32 %v2898, 1.0
      %v2923 = vadd.f32 %v2899, 1.0
      %v2924 = vadd.f32 %v2900, 1.0
      %v2925 = vadd.f32 %v2901, 1.0
      %v2926 = vadd.f32 %v2902, 1.0
      %v2927 = vadd.f32 %v2903, 1.0
      %v2928 = vmul.f32 %v2904, 0.5
      %v2929 = vmul.f32 %v2905, 0.5
      %v2930 = vmul.f32 %v2906, 0.5
      %v2931 = vmul.f32 %v2907, 0.5
      %v2932 = vmul.f32 %v2908, 0.5
      %v2933 = vmul.f32 %v2909, 0.5
      %v2934 = vmul.f32 %v2910, 0.5
      %v2935 = vmul.f32 %v2911, 0.5
      %v2936 = vmul.f32 %v2912, 0.5
      %v2937 = vmul.f32 %v2913, 0.5
      %v2938 = vmul.f32 %v2914, 0.5
      %v2939 = vmul.f32 %v2915, 0.5
      %v2940 = vmul.f32 %v2916, 0.5
      %v2941 = vmul.f32 %v2917, 0.5
      %v2942 = vmul.f32 %v2918, 0.5
      %v2943 = vmul.f32 %v2919, 0.5
      %v2944 = vmul.f32 %v2920, 0.5
      %v2945 = vmul.f32 %v2921, 0.5
      %v2946 = vmul.f32 %v2922, 0.5
      %v2947 = vmul.f32 %v2923, 0.5
      %v2948 = vmul.f32 %v2924, 0.5
      %v2949 = vmul.f32 %v2925, 0.5
      %v2950 = vmul.f32 %v2926, 0.5
      %v2951 = vmul.f32 %v2927, 0.5
      %v2952 = vmul.f32 %v2702, %v2928
      %v2953 = vmul.f32 %v2704, %v2929
      %v2954 = vmul.f32 %v2706, %v2930
      %v2955 = vmul.f32 %v2708, %v2931
      %v2956 = vmul.f32 %v2712, %v2932
      %v2957 = vmul.f32 %v2714, %v2933
      %v2958 = vmul.f32 %v2716, %v2934
      %v2959 = vmul.f32 %v2718, %v2935
      %v2960 = vmul.f32 %v2722, %v2936
      %v2961 = vmul.f32 %v2724, %v2937
      %v2962 = vmul.f32 %v2726, %v2938
      %v2963 = vmul.f32 %v2728, %v2939
      %v2964 = vmul.f32 %v2732, %v2940
      %v2965 = vmul.f32 %v2734, %v2941
      %v2966 = vmul.f32 %v2736, %v2942
      %v2967 = vmul.f32 %v2738, %v2943
      %v2968 = vmul.f32 %v2742, %v2944
      %v2969 = vmul.f32 %v2744, %v2945
      %v2970 = vmul.f32 %v2746, %v2946
      %v2971 = vmul.f32 %v2748, %v2947
      %v2972 = vmul.f32 %v2752, %v2948
      %v2973 = vmul.f32 %v2754, %v2949
      %v2974 = vmul.f32 %v2756, %v2950
      %v2975 = vmul.f32 %v2758, %v2951
      %v2976 = vpack.c.bf16 %v2954, %v2952
      %v2977 = vpack.c.bf16 %v2955, %v2953
      %v2978 = vpack.c.bf16 %v2958, %v2956
      %v2979 = vpack.c.bf16 %v2959, %v2957
      %v2980 = vpack.c.bf16 %v2962, %v2960
      %v2981 = vpack.c.bf16 %v2963, %v2961
      %v2982 = vpack.c.bf16 %v2966, %v2964
      %v2983 = vpack.c.bf16 %v2967, %v2965
      %v2984 = vpack.c.bf16 %v2970, %v2968
      %v2985 = vpack.c.bf16 %v2971, %v2969
      %v2986 = vpack.c.bf16 %v2974, %v2972
      %v2987 = vpack.c.bf16 %v2975, %v2973
      %v2989 = vsel %vm797, %v2610, 0
      %2991 = vmatprep.subr.bf16.mxu0 0
      %2992 = vmatpush1.bf16.msra.mxu0 0
      %2993 = vmatprep.subr.bf16.mxu0 0
      %2994 = vmatpush1.bf16.msra.mxu0 0
      %2995 = vmatprep.subr.bf16.mxu0 %v2987
      %2996 = vmatpush1.bf16.msra.mxu0 %v2986
      %2997 = vmatprep.subr.bf16.mxu0 %v2985
      %2998 = vmatpush1.bf16.msra.mxu0 %v2984
      %2999 = vmatprep.subr.bf16.mxu0 %v2983
      %3000 = vmatpush1.bf16.msra.mxu0 %v2982
      %3001 = vmatprep.subr.bf16.mxu0 %v2981
      %3002 = vmatpush1.bf16.msra.mxu0 %v2980
      %3003 = vmatprep.subr.bf16.mxu0 %v2979
      %3004 = vmatpush1.bf16.msra.mxu0 %v2978
      %3005 = vmatprep.subr.bf16.mxu0 %v2977
      %3006 = vmatpush1.bf16.msra.mxu0 %v2976
      %3007 = vmatprep.subr.bf16.mxu0 0
      %3008 = vmatpush2.bf16.msra.mxu0 0
      %3009 = vmatprep.subr.bf16.mxu0 0
      %3010 = vmatpush2.bf16.msra.mxu0 0
      %3011 = vmatprep.subr.bf16.mxu0 0
      %3012 = vmatpush2.bf16.msra.mxu0 0
      %3013 = vmatprep.subr.bf16.mxu0 0
      %3014 = vmatpush2.bf16.msra.mxu0 0
      %3015 = vmatprep.subr.bf16.mxu0 0
      %3016 = vmatpush2.bf16.msra.mxu0 0
      %3017 = vmatprep.subr.bf16.mxu0 0
      %3018 = vmatpush2.bf16.msra.mxu0 0
      %3019 = vmatprep.subr.bf16.mxu0 0
      %3020 = vmatpush2.bf16.msra.mxu0 0
      %3021 = vmatprep.subr.bf16.mxu0 0
      %3022 = vmatpush2.bf16.msra.mxu0 0
      %3023 = vmatprep.mubr.bf16.mxu0 0
      %3024 = vmatmul.mubr.bf16.gmra.mxu0 %v2989
      %v3025 = vpop.f32.mrf.mxu0
      %v3026 = vadd.f32 0.0, %v3025
      %v3027 = vpop.f32.mrf.mxu0
      %v3028 = vadd.f32 0.0, %v3027
      %v3029 = vpop.f32.mrf.mxu0
      %v3030 = vpop.f32.mrf.mxu0
      %3031 = vdwg.mxu0
      %v3032 = vadd.f32 %v2594, %v3026
      %v3033 = vadd.f32 %v2595, %v3028
      %s3034 = scalar_lea.vmem %s2, 288
      %v3035 = vld [vmem:[%s3034] sm:$0xf]
      %v3036 = vld [vmem:[%s3034 + $0x4] sm:$0xf]
      %v3037 = vld [vmem:[%s3034 + $0x8] sm:$0xf]
      %v3038 = vld [vmem:[%s3034 + $0xc] sm:$0xf]
      %v3039 = vld [vmem:[%s3034 + $0x10] sm:$0xf]
      %v3040 = vld [vmem:[%s3034 + $0x14] sm:$0xf]
      %v3041 = vld [vmem:[%s3034 + $0x18] sm:$0xf]
      %v3042 = vld [vmem:[%s3034 + $0x1c] sm:$0xf]
      %v3043 = vld [vmem:[%s3034 + $0x20] sm:$0xf]
      %v3044 = vld [vmem:[%s3034 + $0x24] sm:$0xf]
      %v3045 = vld [vmem:[%s3034 + $0x28] sm:$0xf]
      %v3046 = vld [vmem:[%s3034 + $0x2c] sm:$0xf]
      %s3047 = scalar_lea.vmem %s3, 24
      %v3048 = vld [vmem:[%s3047] sm:$0x7]
      %v3049 = vpack.c.bf16 %v3032, %v3032
      %v3050 = vpack.c.bf16 %v3033, %v3033
      %v3063 = vunpack.c.l.b16 %v3035
      %v3064 = vunpack.c.l.b16 %v3036
      %v3065 = vunpack.c.l.b16 %v3037
      %v3066 = vunpack.c.l.b16 %v3038
      %v3067 = vunpack.c.l.b16 %v3039
      %v3068 = vunpack.c.l.b16 %v3040
      %v3069 = vunpack.c.l.b16 %v3041
      %v3070 = vunpack.c.l.b16 %v3042
      %v3071 = vunpack.c.l.b16 %v3043
      %v3072 = vunpack.c.l.b16 %v3044
      %v3073 = vunpack.c.l.b16 %v3045
      %v3074 = vunpack.c.l.b16 %v3046
      %v3075 = vpack.c.b16 %v3064, %v3063
      %v3076 = vpack.c.b16 %v3066, %v3065
      %v3077 = vpack.c.b16 %v3068, %v3067
      %v3078 = vpack.c.b16 %v3070, %v3069
      %v3079 = vpack.c.b16 %v3072, %v3071
      %v3080 = vpack.c.b16 %v3074, %v3073
      %v3082 = vsel %vm450, %v3075, 0
      %v3085 = vsel %vm450, %v3076, 0
      %v3088 = vsel %vm450, %v3077, 0
      %v3091 = vsel %vm450, %v3078, 0
      %v3094 = vsel %vm450, %v3079, 0
      %v3097 = vsel %vm450, %v3080, 0
      %v3100 = vsel %vm469, %v3049, 0
      %v3103 = vsel %vm469, %v3050, 0
      %3105 = vmatprep.subr.bf16.mxu0 0
      %3106 = vmatpush1.bf16.msra.mxu0 0
      %3107 = vmatprep.subr.bf16.mxu0 0
      %3108 = vmatpush1.bf16.msra.mxu0 0
      %3109 = vmatprep.subr.bf16.mxu0 0
      %3110 = vmatpush1.bf16.msra.mxu0 0
      %3111 = vmatprep.subr.bf16.mxu0 0
      %3112 = vmatpush1.bf16.msra.mxu0 0
      %3113 = vmatprep.subr.bf16.mxu0 0
      %3114 = vmatpush1.bf16.msra.mxu0 0
      %3115 = vmatprep.subr.bf16.mxu0 0
      %3116 = vmatpush1.bf16.msra.mxu0 0
      %3117 = vmatprep.subr.bf16.mxu0 0
      %3118 = vmatpush1.bf16.msra.mxu0 0
      %3119 = vmatprep.subr.bf16.mxu0 %v3103
      %3120 = vmatpush1.bf16.msra.mxu0 %v3100
      %3121 = vmatprep.subr.bf16.mxu0 0
      %3122 = vmatpush2.bf16.msra.mxu0 0
      %3123 = vmatprep.subr.bf16.mxu0 0
      %3124 = vmatpush2.bf16.msra.mxu0 0
      %3125 = vmatprep.subr.bf16.mxu0 0
      %3126 = vmatpush2.bf16.msra.mxu0 0
      %3127 = vmatprep.subr.bf16.mxu0 0
      %3128 = vmatpush2.bf16.msra.mxu0 0
      %3129 = vmatprep.subr.bf16.mxu0 0
      %3130 = vmatpush2.bf16.msra.mxu0 0
      %3131 = vmatprep.subr.bf16.mxu0 0
      %3132 = vmatpush2.bf16.msra.mxu0 0
      %3133 = vmatprep.subr.bf16.mxu0 0
      %3134 = vmatpush2.bf16.msra.mxu0 0
      %3135 = vmatprep.subr.bf16.mxu0 0
      %3136 = vmatpush2.bf16.msra.mxu0 0
      %3137 = vmatprep.mubr.bf16.mxu0 0
      %3138 = vmatmul.mubr.bf16.gmra.mxu0 %v3082
      %v3139 = vpop.f32.mrf.mxu0
      %v3140 = vadd.f32 0.0, %v3139
      %v3141 = vpop.f32.mrf.mxu0
      %v3142 = vadd.f32 0.0, %v3141
      %v3143 = vpop.f32.mrf.mxu0
      %v3144 = vadd.f32 0.0, %v3143
      %v3145 = vpop.f32.mrf.mxu0
      %v3146 = vadd.f32 0.0, %v3145
      %3147 = vmatprep.mubr.bf16.mxu0 0
      %3148 = vmatmul.mubr.bf16.gmra.mxu0 %v3085
      %v3149 = vpop.f32.mrf.mxu0
      %v3150 = vadd.f32 0.0, %v3149
      %v3151 = vpop.f32.mrf.mxu0
      %v3152 = vadd.f32 0.0, %v3151
      %v3153 = vpop.f32.mrf.mxu0
      %v3154 = vadd.f32 0.0, %v3153
      %v3155 = vpop.f32.mrf.mxu0
      %v3156 = vadd.f32 0.0, %v3155
      %3157 = vmatprep.mubr.bf16.mxu0 0
      %3158 = vmatmul.mubr.bf16.gmra.mxu0 %v3088
      %v3159 = vpop.f32.mrf.mxu0
      %v3160 = vadd.f32 0.0, %v3159
      %v3161 = vpop.f32.mrf.mxu0
      %v3162 = vadd.f32 0.0, %v3161
      %v3163 = vpop.f32.mrf.mxu0
      %v3164 = vadd.f32 0.0, %v3163
      %v3165 = vpop.f32.mrf.mxu0
      %v3166 = vadd.f32 0.0, %v3165
      %3167 = vmatprep.mubr.bf16.mxu0 0
      %3168 = vmatmul.mubr.bf16.gmra.mxu0 %v3091
      %v3169 = vpop.f32.mrf.mxu0
      %v3170 = vadd.f32 0.0, %v3169
      %v3171 = vpop.f32.mrf.mxu0
      %v3172 = vadd.f32 0.0, %v3171
      %v3173 = vpop.f32.mrf.mxu0
      %v3174 = vadd.f32 0.0, %v3173
      %v3175 = vpop.f32.mrf.mxu0
      %v3176 = vadd.f32 0.0, %v3175
      %3177 = vmatprep.mubr.bf16.mxu0 0
      %3178 = vmatmul.mubr.bf16.gmra.mxu0 %v3094
      %v3179 = vpop.f32.mrf.mxu0
      %v3180 = vadd.f32 0.0, %v3179
      %v3181 = vpop.f32.mrf.mxu0
      %v3182 = vadd.f32 0.0, %v3181
      %v3183 = vpop.f32.mrf.mxu0
      %v3184 = vadd.f32 0.0, %v3183
      %v3185 = vpop.f32.mrf.mxu0
      %v3186 = vadd.f32 0.0, %v3185
      %3187 = vmatprep.mubr.bf16.mxu0 0
      %3188 = vmatmul.mubr.bf16.gmra.mxu0 %v3097
      %v3189 = vpop.f32.mrf.mxu0
      %v3190 = vadd.f32 0.0, %v3189
      %v3191 = vpop.f32.mrf.mxu0
      %v3192 = vadd.f32 0.0, %v3191
      %v3193 = vpop.f32.mrf.mxu0
      %v3194 = vadd.f32 0.0, %v3193
      %v3195 = vpop.f32.mrf.mxu0
      %v3196 = vadd.f32 0.0, %v3195
      %3197 = vdwg.mxu0
      %v3198 = vmul.f32 %v3140, %v3140
      %v3199 = vmul.f32 %v3142, %v3142
      %v3200 = vmul.f32 %v3144, %v3144
      %v3201 = vmul.f32 %v3146, %v3146
      %v3202 = vmul.f32 %v3150, %v3150
      %v3203 = vmul.f32 %v3152, %v3152
      %v3204 = vmul.f32 %v3154, %v3154
      %v3205 = vmul.f32 %v3156, %v3156
      %v3206 = vmul.f32 %v3160, %v3160
      %v3207 = vmul.f32 %v3162, %v3162
      %v3208 = vmul.f32 %v3164, %v3164
      %v3209 = vmul.f32 %v3166, %v3166
      %v3210 = vmul.f32 %v3170, %v3170
      %v3211 = vmul.f32 %v3172, %v3172
      %v3212 = vmul.f32 %v3174, %v3174
      %v3213 = vmul.f32 %v3176, %v3176
      %v3214 = vmul.f32 %v3180, %v3180
      %v3215 = vmul.f32 %v3182, %v3182
      %v3216 = vmul.f32 %v3184, %v3184
      %v3217 = vmul.f32 %v3186, %v3186
      %v3218 = vmul.f32 %v3190, %v3190
      %v3219 = vmul.f32 %v3192, %v3192
      %v3220 = vmul.f32 %v3194, %v3194
      %v3221 = vmul.f32 %v3196, %v3196
      %v3222 = vmul.f32 %v3140, %v3198
      %v3223 = vmul.f32 %v3142, %v3199
      %v3224 = vmul.f32 %v3144, %v3200
      %v3225 = vmul.f32 %v3146, %v3201
      %v3226 = vmul.f32 %v3150, %v3202
      %v3227 = vmul.f32 %v3152, %v3203
      %v3228 = vmul.f32 %v3154, %v3204
      %v3229 = vmul.f32 %v3156, %v3205
      %v3230 = vmul.f32 %v3160, %v3206
      %v3231 = vmul.f32 %v3162, %v3207
      %v3232 = vmul.f32 %v3164, %v3208
      %v3233 = vmul.f32 %v3166, %v3209
      %v3234 = vmul.f32 %v3170, %v3210
      %v3235 = vmul.f32 %v3172, %v3211
      %v3236 = vmul.f32 %v3174, %v3212
      %v3237 = vmul.f32 %v3176, %v3213
      %v3238 = vmul.f32 %v3180, %v3214
      %v3239 = vmul.f32 %v3182, %v3215
      %v3240 = vmul.f32 %v3184, %v3216
      %v3241 = vmul.f32 %v3186, %v3217
      %v3242 = vmul.f32 %v3190, %v3218
      %v3243 = vmul.f32 %v3192, %v3219
      %v3244 = vmul.f32 %v3194, %v3220
      %v3245 = vmul.f32 %v3196, %v3221
      %v3246 = vmul.f32 %v3222, 0.044715
      %v3247 = vmul.f32 %v3223, 0.044715
      %v3248 = vmul.f32 %v3224, 0.044715
      %v3249 = vmul.f32 %v3225, 0.044715
      %v3250 = vmul.f32 %v3226, 0.044715
      %v3251 = vmul.f32 %v3227, 0.044715
      %v3252 = vmul.f32 %v3228, 0.044715
      %v3253 = vmul.f32 %v3229, 0.044715
      %v3254 = vmul.f32 %v3230, 0.044715
      %v3255 = vmul.f32 %v3231, 0.044715
      %v3256 = vmul.f32 %v3232, 0.044715
      %v3257 = vmul.f32 %v3233, 0.044715
      %v3258 = vmul.f32 %v3234, 0.044715
      %v3259 = vmul.f32 %v3235, 0.044715
      %v3260 = vmul.f32 %v3236, 0.044715
      %v3261 = vmul.f32 %v3237, 0.044715
      %v3262 = vmul.f32 %v3238, 0.044715
      %v3263 = vmul.f32 %v3239, 0.044715
      %v3264 = vmul.f32 %v3240, 0.044715
      %v3265 = vmul.f32 %v3241, 0.044715
      %v3266 = vmul.f32 %v3242, 0.044715
      %v3267 = vmul.f32 %v3243, 0.044715
      %v3268 = vmul.f32 %v3244, 0.044715
      %v3269 = vmul.f32 %v3245, 0.044715
      %v3270 = vadd.f32 %v3140, %v3246
      %v3271 = vadd.f32 %v3142, %v3247
      %v3272 = vadd.f32 %v3144, %v3248
      %v3273 = vadd.f32 %v3146, %v3249
      %v3274 = vadd.f32 %v3150, %v3250
      %v3275 = vadd.f32 %v3152, %v3251
      %v3276 = vadd.f32 %v3154, %v3252
      %v3277 = vadd.f32 %v3156, %v3253
      %v3278 = vadd.f32 %v3160, %v3254
      %v3279 = vadd.f32 %v3162, %v3255
      %v3280 = vadd.f32 %v3164, %v3256
      %v3281 = vadd.f32 %v3166, %v3257
      %v3282 = vadd.f32 %v3170, %v3258
      %v3283 = vadd.f32 %v3172, %v3259
      %v3284 = vadd.f32 %v3174, %v3260
      %v3285 = vadd.f32 %v3176, %v3261
      %v3286 = vadd.f32 %v3180, %v3262
      %v3287 = vadd.f32 %v3182, %v3263
      %v3288 = vadd.f32 %v3184, %v3264
      %v3289 = vadd.f32 %v3186, %v3265
      %v3290 = vadd.f32 %v3190, %v3266
      %v3291 = vadd.f32 %v3192, %v3267
      %v3292 = vadd.f32 %v3194, %v3268
      %v3293 = vadd.f32 %v3196, %v3269
      %v3294 = vmul.f32 %v3270, 0.7978846
      %v3295 = vmul.f32 %v3271, 0.7978846
      %v3296 = vmul.f32 %v3272, 0.7978846
      %v3297 = vmul.f32 %v3273, 0.7978846
      %v3298 = vmul.f32 %v3274, 0.7978846
      %v3299 = vmul.f32 %v3275, 0.7978846
      %v3300 = vmul.f32 %v3276, 0.7978846
      %v3301 = vmul.f32 %v3277, 0.7978846
      %v3302 = vmul.f32 %v3278, 0.7978846
      %v3303 = vmul.f32 %v3279, 0.7978846
      %v3304 = vmul.f32 %v3280, 0.7978846
      %v3305 = vmul.f32 %v3281, 0.7978846
      %v3306 = vmul.f32 %v3282, 0.7978846
      %v3307 = vmul.f32 %v3283, 0.7978846
      %v3308 = vmul.f32 %v3284, 0.7978846
      %v3309 = vmul.f32 %v3285, 0.7978846
      %v3310 = vmul.f32 %v3286, 0.7978846
      %v3311 = vmul.f32 %v3287, 0.7978846
      %v3312 = vmul.f32 %v3288, 0.7978846
      %v3313 = vmul.f32 %v3289, 0.7978846
      %v3314 = vmul.f32 %v3290, 0.7978846
      %v3315 = vmul.f32 %v3291, 0.7978846
      %v3316 = vmul.f32 %v3292, 0.7978846
      %v3317 = vmul.f32 %v3293, 0.7978846
      %v3318 = vtanh.pop %v3294
      %v3319 = vtanh.pop %v3295
      %v3320 = vtanh.pop %v3296
      %v3321 = vtanh.pop %v3297
      %v3322 = vtanh.pop %v3298
      %v3323 = vtanh.pop %v3299
      %v3324 = vtanh.pop %v3300
      %v3325 = vtanh.pop %v3301
      %v3326 = vtanh.pop %v3302
      %v3327 = vtanh.pop %v3303
      %v3328 = vtanh.pop %v3304
      %v3329 = vtanh.pop %v3305
      %v3330 = vtanh.pop %v3306
      %v3331 = vtanh.pop %v3307
      %v3332 = vtanh.pop %v3308
      %v3333 = vtanh.pop %v3309
      %v3334 = vtanh.pop %v3310
      %v3335 = vtanh.pop %v3311
      %v3336 = vtanh.pop %v3312
      %v3337 = vtanh.pop %v3313
      %v3338 = vtanh.pop %v3314
      %v3339 = vtanh.pop %v3315
      %v3340 = vtanh.pop %v3316
      %v3341 = vtanh.pop %v3317
      %v3342 = vadd.f32 %v3318, 1.0
      %v3343 = vadd.f32 %v3319, 1.0
      %v3344 = vadd.f32 %v3320, 1.0
      %v3345 = vadd.f32 %v3321, 1.0
      %v3346 = vadd.f32 %v3322, 1.0
      %v3347 = vadd.f32 %v3323, 1.0
      %v3348 = vadd.f32 %v3324, 1.0
      %v3349 = vadd.f32 %v3325, 1.0
      %v3350 = vadd.f32 %v3326, 1.0
      %v3351 = vadd.f32 %v3327, 1.0
      %v3352 = vadd.f32 %v3328, 1.0
      %v3353 = vadd.f32 %v3329, 1.0
      %v3354 = vadd.f32 %v3330, 1.0
      %v3355 = vadd.f32 %v3331, 1.0
      %v3356 = vadd.f32 %v3332, 1.0
      %v3357 = vadd.f32 %v3333, 1.0
      %v3358 = vadd.f32 %v3334, 1.0
      %v3359 = vadd.f32 %v3335, 1.0
      %v3360 = vadd.f32 %v3336, 1.0
      %v3361 = vadd.f32 %v3337, 1.0
      %v3362 = vadd.f32 %v3338, 1.0
      %v3363 = vadd.f32 %v3339, 1.0
      %v3364 = vadd.f32 %v3340, 1.0
      %v3365 = vadd.f32 %v3341, 1.0
      %v3366 = vmul.f32 %v3342, 0.5
      %v3367 = vmul.f32 %v3343, 0.5
      %v3368 = vmul.f32 %v3344, 0.5
      %v3369 = vmul.f32 %v3345, 0.5
      %v3370 = vmul.f32 %v3346, 0.5
      %v3371 = vmul.f32 %v3347, 0.5
      %v3372 = vmul.f32 %v3348, 0.5
      %v3373 = vmul.f32 %v3349, 0.5
      %v3374 = vmul.f32 %v3350, 0.5
      %v3375 = vmul.f32 %v3351, 0.5
      %v3376 = vmul.f32 %v3352, 0.5
      %v3377 = vmul.f32 %v3353, 0.5
      %v3378 = vmul.f32 %v3354, 0.5
      %v3379 = vmul.f32 %v3355, 0.5
      %v3380 = vmul.f32 %v3356, 0.5
      %v3381 = vmul.f32 %v3357, 0.5
      %v3382 = vmul.f32 %v3358, 0.5
      %v3383 = vmul.f32 %v3359, 0.5
      %v3384 = vmul.f32 %v3360, 0.5
      %v3385 = vmul.f32 %v3361, 0.5
      %v3386 = vmul.f32 %v3362, 0.5
      %v3387 = vmul.f32 %v3363, 0.5
      %v3388 = vmul.f32 %v3364, 0.5
      %v3389 = vmul.f32 %v3365, 0.5
      %v3390 = vmul.f32 %v3140, %v3366
      %v3391 = vmul.f32 %v3142, %v3367
      %v3392 = vmul.f32 %v3144, %v3368
      %v3393 = vmul.f32 %v3146, %v3369
      %v3394 = vmul.f32 %v3150, %v3370
      %v3395 = vmul.f32 %v3152, %v3371
      %v3396 = vmul.f32 %v3154, %v3372
      %v3397 = vmul.f32 %v3156, %v3373
      %v3398 = vmul.f32 %v3160, %v3374
      %v3399 = vmul.f32 %v3162, %v3375
      %v3400 = vmul.f32 %v3164, %v3376
      %v3401 = vmul.f32 %v3166, %v3377
      %v3402 = vmul.f32 %v3170, %v3378
      %v3403 = vmul.f32 %v3172, %v3379
      %v3404 = vmul.f32 %v3174, %v3380
      %v3405 = vmul.f32 %v3176, %v3381
      %v3406 = vmul.f32 %v3180, %v3382
      %v3407 = vmul.f32 %v3182, %v3383
      %v3408 = vmul.f32 %v3184, %v3384
      %v3409 = vmul.f32 %v3186, %v3385
      %v3410 = vmul.f32 %v3190, %v3386
      %v3411 = vmul.f32 %v3192, %v3387
      %v3412 = vmul.f32 %v3194, %v3388
      %v3413 = vmul.f32 %v3196, %v3389
      %v3414 = vpack.c.bf16 %v3392, %v3390
      %v3415 = vpack.c.bf16 %v3393, %v3391
      %v3416 = vpack.c.bf16 %v3396, %v3394
      %v3417 = vpack.c.bf16 %v3397, %v3395
      %v3418 = vpack.c.bf16 %v3400, %v3398
      %v3419 = vpack.c.bf16 %v3401, %v3399
      %v3420 = vpack.c.bf16 %v3404, %v3402
      %v3421 = vpack.c.bf16 %v3405, %v3403
      %v3422 = vpack.c.bf16 %v3408, %v3406
      %v3423 = vpack.c.bf16 %v3409, %v3407
      %v3424 = vpack.c.bf16 %v3412, %v3410
      %v3425 = vpack.c.bf16 %v3413, %v3411
      %v3427 = vsel %vm797, %v3048, 0
      %3429 = vmatprep.subr.bf16.mxu0 0
      %3430 = vmatpush1.bf16.msra.mxu0 0
      %3431 = vmatprep.subr.bf16.mxu0 0
      %3432 = vmatpush1.bf16.msra.mxu0 0
      %3433 = vmatprep.subr.bf16.mxu0 %v3425
      %3434 = vmatpush1.bf16.msra.mxu0 %v3424
      %3435 = vmatprep.subr.bf16.mxu0 %v3423
      %3436 = vmatpush1.bf16.msra.mxu0 %v3422
      %3437 = vmatprep.subr.bf16.mxu0 %v3421
      %3438 = vmatpush1.bf16.msra.mxu0 %v3420
      %3439 = vmatprep.subr.bf16.mxu0 %v3419
      %3440 = vmatpush1.bf16.msra.mxu0 %v3418
      %3441 = vmatprep.subr.bf16.mxu0 %v3417
      %3442 = vmatpush1.bf16.msra.mxu0 %v3416
      %3443 = vmatprep.subr.bf16.mxu0 %v3415
      %3444 = vmatpush1.bf16.msra.mxu0 %v3414
      %3445 = vmatprep.subr.bf16.mxu0 0
      %3446 = vmatpush2.bf16.msra.mxu0 0
      %3447 = vmatprep.subr.bf16.mxu0 0
      %3448 = vmatpush2.bf16.msra.mxu0 0
      %3449 = vmatprep.subr.bf16.mxu0 0
      %3450 = vmatpush2.bf16.msra.mxu0 0
      %3451 = vmatprep.subr.bf16.mxu0 0
      %3452 = vmatpush2.bf16.msra.mxu0 0
      %3453 = vmatprep.subr.bf16.mxu0 0
      %3454 = vmatpush2.bf16.msra.mxu0 0
      %3455 = vmatprep.subr.bf16.mxu0 0
      %3456 = vmatpush2.bf16.msra.mxu0 0
      %3457 = vmatprep.subr.bf16.mxu0 0
      %3458 = vmatpush2.bf16.msra.mxu0 0
      %3459 = vmatprep.subr.bf16.mxu0 0
      %3460 = vmatpush2.bf16.msra.mxu0 0
      %3461 = vmatprep.mubr.bf16.mxu0 0
      %3462 = vmatmul.mubr.bf16.gmra.mxu0 %v3427
      %v3463 = vpop.f32.mrf.mxu0
      %v3464 = vadd.f32 0.0, %v3463
      %v3465 = vpop.f32.mrf.mxu0
      %v3466 = vadd.f32 0.0, %v3465
      %v3467 = vpop.f32.mrf.mxu0
      %v3468 = vpop.f32.mrf.mxu0
      %3469 = vdwg.mxu0
      %v3470 = vadd.f32 %v3032, %v3464
      %v3471 = vadd.f32 %v3033, %v3466
      %s3472 = scalar_lea.vmem %s2, 336
      %v3473 = vld [vmem:[%s3472] sm:$0xf]
      %v3474 = vld [vmem:[%s3472 + $0x4] sm:$0xf]
      %v3475 = vld [vmem:[%s3472 + $0x8] sm:$0xf]
      %v3476 = vld [vmem:[%s3472 + $0xc] sm:$0xf]
      %v3477 = vld [vmem:[%s3472 + $0x10] sm:$0xf]
      %v3478 = vld [vmem:[%s3472 + $0x14] sm:$0xf]
      %v3479 = vld [vmem:[%s3472 + $0x18] sm:$0xf]
      %v3480 = vld [vmem:[%s3472 + $0x1c] sm:$0xf]
      %v3481 = vld [vmem:[%s3472 + $0x20] sm:$0xf]
      %v3482 = vld [vmem:[%s3472 + $0x24] sm:$0xf]
      %v3483 = vld [vmem:[%s3472 + $0x28] sm:$0xf]
      %v3484 = vld [vmem:[%s3472 + $0x2c] sm:$0xf]
      %s3485 = scalar_lea.vmem %s3, 28
      %v3486 = vld [vmem:[%s3485] sm:$0x7]
      %v3487 = vpack.c.bf16 %v3470, %v3470
      %v3488 = vpack.c.bf16 %v3471, %v3471
      %v3501 = vunpack.c.l.b16 %v3473
      %v3502 = vunpack.c.l.b16 %v3474
      %v3503 = vunpack.c.l.b16 %v3475
      %v3504 = vunpack.c.l.b16 %v3476
      %v3505 = vunpack.c.l.b16 %v3477
      %v3506 = vunpack.c.l.b16 %v3478
      %v3507 = vunpack.c.l.b16 %v3479
      %v3508 = vunpack.c.l.b16 %v3480
      %v3509 = vunpack.c.l.b16 %v3481
      %v3510 = vunpack.c.l.b16 %v3482
      %v3511 = vunpack.c.l.b16 %v3483
      %v3512 = vunpack.c.l.b16 %v3484
      %v3513 = vpack.c.b16 %v3502, %v3501
      %v3514 = vpack.c.b16 %v3504, %v3503
      %v3515 = vpack.c.b16 %v3506, %v3505
      %v3516 = vpack.c.b16 %v3508, %v3507
      %v3517 = vpack.c.b16 %v3510, %v3509
      %v3518 = vpack.c.b16 %v3512, %v3511
      %v3520 = vsel %vm450, %v3513, 0
      %v3523 = vsel %vm450, %v3514, 0
      %v3526 = vsel %vm450, %v3515, 0
      %v3529 = vsel %vm450, %v3516, 0
      %v3532 = vsel %vm450, %v3517, 0
      %v3535 = vsel %vm450, %v3518, 0
      %v3538 = vsel %vm469, %v3487, 0
      %v3541 = vsel %vm469, %v3488, 0
      %3543 = vmatprep.subr.bf16.mxu0 0
      %3544 = vmatpush1.bf16.msra.mxu0 0
      %3545 = vmatprep.subr.bf16.mxu0 0
      %3546 = vmatpush1.bf16.msra.mxu0 0
      %3547 = vmatprep.subr.bf16.mxu0 0
      %3548 = vmatpush1.bf16.msra.mxu0 0
      %3549 = vmatprep.subr.bf16.mxu0 0
      %3550 = vmatpush1.bf16.msra.mxu0 0
      %3551 = vmatprep.subr.bf16.mxu0 0
      %3552 = vmatpush1.bf16.msra.mxu0 0
      %3553 = vmatprep.subr.bf16.mxu0 0
      %3554 = vmatpush1.bf16.msra.mxu0 0
      %3555 = vmatprep.subr.bf16.mxu0 0
      %3556 = vmatpush1.bf16.msra.mxu0 0
      %3557 = vmatprep.subr.bf16.mxu0 %v3541
      %3558 = vmatpush1.bf16.msra.mxu0 %v3538
      %3559 = vmatprep.subr.bf16.mxu0 0
      %3560 = vmatpush2.bf16.msra.mxu0 0
      %3561 = vmatprep.subr.bf16.mxu0 0
      %3562 = vmatpush2.bf16.msra.mxu0 0
      %3563 = vmatprep.subr.bf16.mxu0 0
      %3564 = vmatpush2.bf16.msra.mxu0 0
      %3565 = vmatprep.subr.bf16.mxu0 0
      %3566 = vmatpush2.bf16.msra.mxu0 0
      %3567 = vmatprep.subr.bf16.mxu0 0
      %3568 = vmatpush2.bf16.msra.mxu0 0
      %3569 = vmatprep.subr.bf16.mxu0 0
      %3570 = vmatpush2.bf16.msra.mxu0 0
      %3571 = vmatprep.subr.bf16.mxu0 0
      %3572 = vmatpush2.bf16.msra.mxu0 0
      %3573 = vmatprep.subr.bf16.mxu0 0
      %3574 = vmatpush2.bf16.msra.mxu0 0
      %3575 = vmatprep.mubr.bf16.mxu0 0
      %3576 = vmatmul.mubr.bf16.gmra.mxu0 %v3520
      %v3577 = vpop.f32.mrf.mxu0
      %v3578 = vadd.f32 0.0, %v3577
      %v3579 = vpop.f32.mrf.mxu0
      %v3580 = vadd.f32 0.0, %v3579
      %v3581 = vpop.f32.mrf.mxu0
      %v3582 = vadd.f32 0.0, %v3581
      %v3583 = vpop.f32.mrf.mxu0
      %v3584 = vadd.f32 0.0, %v3583
      %3585 = vmatprep.mubr.bf16.mxu0 0
      %3586 = vmatmul.mubr.bf16.gmra.mxu0 %v3523
      %v3587 = vpop.f32.mrf.mxu0
      %v3588 = vadd.f32 0.0, %v3587
      %v3589 = vpop.f32.mrf.mxu0
      %v3590 = vadd.f32 0.0, %v3589
      %v3591 = vpop.f32.mrf.mxu0
      %v3592 = vadd.f32 0.0, %v3591
      %v3593 = vpop.f32.mrf.mxu0
      %v3594 = vadd.f32 0.0, %v3593
      %3595 = vmatprep.mubr.bf16.mxu0 0
      %3596 = vmatmul.mubr.bf16.gmra.mxu0 %v3526
      %v3597 = vpop.f32.mrf.mxu0
      %v3598 = vadd.f32 0.0, %v3597
      %v3599 = vpop.f32.mrf.mxu0
      %v3600 = vadd.f32 0.0, %v3599
      %v3601 = vpop.f32.mrf.mxu0
      %v3602 = vadd.f32 0.0, %v3601
      %v3603 = vpop.f32.mrf.mxu0
      %v3604 = vadd.f32 0.0, %v3603
      %3605 = vmatprep.mubr.bf16.mxu0 0
      %3606 = vmatmul.mubr.bf16.gmra.mxu0 %v3529
      %v3607 = vpop.f32.mrf.mxu0
      %v3608 = vadd.f32 0.0, %v3607
      %v3609 = vpop.f32.mrf.mxu0
      %v3610 = vadd.f32 0.0, %v3609
      %v3611 = vpop.f32.mrf.mxu0
      %v3612 = vadd.f32 0.0, %v3611
      %v3613 = vpop.f32.mrf.mxu0
      %v3614 = vadd.f32 0.0, %v3613
      %3615 = vmatprep.mubr.bf16.mxu0 0
      %3616 = vmatmul.mubr.bf16.gmra.mxu0 %v3532
      %v3617 = vpop.f32.mrf.mxu0
      %v3618 = vadd.f32 0.0, %v3617
      %v3619 = vpop.f32.mrf.mxu0
      %v3620 = vadd.f32 0.0, %v3619
      %v3621 = vpop.f32.mrf.mxu0
      %v3622 = vadd.f32 0.0, %v3621
      %v3623 = vpop.f32.mrf.mxu0
      %v3624 = vadd.f32 0.0, %v3623
      %3625 = vmatprep.mubr.bf16.mxu0 0
      %3626 = vmatmul.mubr.bf16.gmra.mxu0 %v3535
      %v3627 = vpop.f32.mrf.mxu0
      %v3628 = vadd.f32 0.0, %v3627
      %v3629 = vpop.f32.mrf.mxu0
      %v3630 = vadd.f32 0.0, %v3629
      %v3631 = vpop.f32.mrf.mxu0
      %v3632 = vadd.f32 0.0, %v3631
      %v3633 = vpop.f32.mrf.mxu0
      %v3634 = vadd.f32 0.0, %v3633
      %3635 = vdwg.mxu0
      %v3636 = vmul.f32 %v3578, %v3578
      %v3637 = vmul.f32 %v3580, %v3580
      %v3638 = vmul.f32 %v3582, %v3582
      %v3639 = vmul.f32 %v3584, %v3584
      %v3640 = vmul.f32 %v3588, %v3588
      %v3641 = vmul.f32 %v3590, %v3590
      %v3642 = vmul.f32 %v3592, %v3592
      %v3643 = vmul.f32 %v3594, %v3594
      %v3644 = vmul.f32 %v3598, %v3598
      %v3645 = vmul.f32 %v3600, %v3600
      %v3646 = vmul.f32 %v3602, %v3602
      %v3647 = vmul.f32 %v3604, %v3604
      %v3648 = vmul.f32 %v3608, %v3608
      %v3649 = vmul.f32 %v3610, %v3610
      %v3650 = vmul.f32 %v3612, %v3612
      %v3651 = vmul.f32 %v3614, %v3614
      %v3652 = vmul.f32 %v3618, %v3618
      %v3653 = vmul.f32 %v3620, %v3620
      %v3654 = vmul.f32 %v3622, %v3622
      %v3655 = vmul.f32 %v3624, %v3624
      %v3656 = vmul.f32 %v3628, %v3628
      %v3657 = vmul.f32 %v3630, %v3630
      %v3658 = vmul.f32 %v3632, %v3632
      %v3659 = vmul.f32 %v3634, %v3634
      %v3660 = vmul.f32 %v3578, %v3636
      %v3661 = vmul.f32 %v3580, %v3637
      %v3662 = vmul.f32 %v3582, %v3638
      %v3663 = vmul.f32 %v3584, %v3639
      %v3664 = vmul.f32 %v3588, %v3640
      %v3665 = vmul.f32 %v3590, %v3641
      %v3666 = vmul.f32 %v3592, %v3642
      %v3667 = vmul.f32 %v3594, %v3643
      %v3668 = vmul.f32 %v3598, %v3644
      %v3669 = vmul.f32 %v3600, %v3645
      %v3670 = vmul.f32 %v3602, %v3646
      %v3671 = vmul.f32 %v3604, %v3647
      %v3672 = vmul.f32 %v3608, %v3648
      %v3673 = vmul.f32 %v3610, %v3649
      %v3674 = vmul.f32 %v3612, %v3650
      %v3675 = vmul.f32 %v3614, %v3651
      %v3676 = vmul.f32 %v3618, %v3652
      %v3677 = vmul.f32 %v3620, %v3653
      %v3678 = vmul.f32 %v3622, %v3654
      %v3679 = vmul.f32 %v3624, %v3655
      %v3680 = vmul.f32 %v3628, %v3656
      %v3681 = vmul.f32 %v3630, %v3657
      %v3682 = vmul.f32 %v3632, %v3658
      %v3683 = vmul.f32 %v3634, %v3659
      %v3684 = vmul.f32 %v3660, 0.044715
      %v3685 = vmul.f32 %v3661, 0.044715
      %v3686 = vmul.f32 %v3662, 0.044715
      %v3687 = vmul.f32 %v3663, 0.044715
      %v3688 = vmul.f32 %v3664, 0.044715
      %v3689 = vmul.f32 %v3665, 0.044715
      %v3690 = vmul.f32 %v3666, 0.044715
      %v3691 = vmul.f32 %v3667, 0.044715
      %v3692 = vmul.f32 %v3668, 0.044715
      %v3693 = vmul.f32 %v3669, 0.044715
      %v3694 = vmul.f32 %v3670, 0.044715
      %v3695 = vmul.f32 %v3671, 0.044715
      %v3696 = vmul.f32 %v3672, 0.044715
      %v3697 = vmul.f32 %v3673, 0.044715
      %v3698 = vmul.f32 %v3674, 0.044715
      %v3699 = vmul.f32 %v3675, 0.044715
      %v3700 = vmul.f32 %v3676, 0.044715
      %v3701 = vmul.f32 %v3677, 0.044715
      %v3702 = vmul.f32 %v3678, 0.044715
      %v3703 = vmul.f32 %v3679, 0.044715
      %v3704 = vmul.f32 %v3680, 0.044715
      %v3705 = vmul.f32 %v3681, 0.044715
      %v3706 = vmul.f32 %v3682, 0.044715
      %v3707 = vmul.f32 %v3683, 0.044715
      %v3708 = vadd.f32 %v3578, %v3684
      %v3709 = vadd.f32 %v3580, %v3685
      %v3710 = vadd.f32 %v3582, %v3686
      %v3711 = vadd.f32 %v3584, %v3687
      %v3712 = vadd.f32 %v3588, %v3688
      %v3713 = vadd.f32 %v3590, %v3689
      %v3714 = vadd.f32 %v3592, %v3690
      %v3715 = vadd.f32 %v3594, %v3691
      %v3716 = vadd.f32 %v3598, %v3692
      %v3717 = vadd.f32 %v3600, %v3693
      %v3718 = vadd.f32 %v3602, %v3694
      %v3719 = vadd.f32 %v3604, %v3695
      %v3720 = vadd.f32 %v3608, %v3696
      %v3721 = vadd.f32 %v3610, %v3697
      %v3722 = vadd.f32 %v3612, %v3698
      %v3723 = vadd.f32 %v3614, %v3699
      %v3724 = vadd.f32 %v3618, %v3700
      %v3725 = vadd.f32 %v3620, %v3701
      %v3726 = vadd.f32 %v3622, %v3702
      %v3727 = vadd.f32 %v3624, %v3703
      %v3728 = vadd.f32 %v3628, %v3704
      %v3729 = vadd.f32 %v3630, %v3705
      %v3730 = vadd.f32 %v3632, %v3706
      %v3731 = vadd.f32 %v3634, %v3707
      %v3732 = vmul.f32 %v3708, 0.7978846
      %v3733 = vmul.f32 %v3709, 0.7978846
      %v3734 = vmul.f32 %v3710, 0.7978846
      %v3735 = vmul.f32 %v3711, 0.7978846
      %v3736 = vmul.f32 %v3712, 0.7978846
      %v3737 = vmul.f32 %v3713, 0.7978846
      %v3738 = vmul.f32 %v3714, 0.7978846
      %v3739 = vmul.f32 %v3715, 0.7978846
      %v3740 = vmul.f32 %v3716, 0.7978846
      %v3741 = vmul.f32 %v3717, 0.7978846
      %v3742 = vmul.f32 %v3718, 0.7978846
      %v3743 = vmul.f32 %v3719, 0.7978846
      %v3744 = vmul.f32 %v3720, 0.7978846
      %v3745 = vmul.f32 %v3721, 0.7978846
      %v3746 = vmul.f32 %v3722, 0.7978846
      %v3747 = vmul.f32 %v3723, 0.7978846
      %v3748 = vmul.f32 %v3724, 0.7978846
      %v3749 = vmul.f32 %v3725, 0.7978846
      %v3750 = vmul.f32 %v3726, 0.7978846
      %v3751 = vmul.f32 %v3727, 0.7978846
      %v3752 = vmul.f32 %v3728, 0.7978846
      %v3753 = vmul.f32 %v3729, 0.7978846
      %v3754 = vmul.f32 %v3730, 0.7978846
      %v3755 = vmul.f32 %v3731, 0.7978846
      %v3756 = vtanh.pop %v3732
      %v3757 = vtanh.pop %v3733
      %v3758 = vtanh.pop %v3734
      %v3759 = vtanh.pop %v3735
      %v3760 = vtanh.pop %v3736
      %v3761 = vtanh.pop %v3737
      %v3762 = vtanh.pop %v3738
      %v3763 = vtanh.pop %v3739
      %v3764 = vtanh.pop %v3740
      %v3765 = vtanh.pop %v3741
      %v3766 = vtanh.pop %v3742
      %v3767 = vtanh.pop %v3743
      %v3768 = vtanh.pop %v3744
      %v3769 = vtanh.pop %v3745
      %v3770 = vtanh.pop %v3746
      %v3771 = vtanh.pop %v3747
      %v3772 = vtanh.pop %v3748
      %v3773 = vtanh.pop %v3749
      %v3774 = vtanh.pop %v3750
      %v3775 = vtanh.pop %v3751
      %v3776 = vtanh.pop %v3752
      %v3777 = vtanh.pop %v3753
      %v3778 = vtanh.pop %v3754
      %v3779 = vtanh.pop %v3755
      %v3780 = vadd.f32 %v3756, 1.0
      %v3781 = vadd.f32 %v3757, 1.0
      %v3782 = vadd.f32 %v3758, 1.0
      %v3783 = vadd.f32 %v3759, 1.0
      %v3784 = vadd.f32 %v3760, 1.0
      %v3785 = vadd.f32 %v3761, 1.0
      %v3786 = vadd.f32 %v3762, 1.0
      %v3787 = vadd.f32 %v3763, 1.0
      %v3788 = vadd.f32 %v3764, 1.0
      %v3789 = vadd.f32 %v3765, 1.0
      %v3790 = vadd.f32 %v3766, 1.0
      %v3791 = vadd.f32 %v3767, 1.0
      %v3792 = vadd.f32 %v3768, 1.0
      %v3793 = vadd.f32 %v3769, 1.0
      %v3794 = vadd.f32 %v3770, 1.0
      %v3795 = vadd.f32 %v3771, 1.0
      %v3796 = vadd.f32 %v3772, 1.0
      %v3797 = vadd.f32 %v3773, 1.0
      %v3798 = vadd.f32 %v3774, 1.0
      %v3799 = vadd.f32 %v3775, 1.0
      %v3800 = vadd.f32 %v3776, 1.0
      %v3801 = vadd.f32 %v3777, 1.0
      %v3802 = vadd.f32 %v3778, 1.0
      %v3803 = vadd.f32 %v3779, 1.0
      %v3804 = vmul.f32 %v3780, 0.5
      %v3805 = vmul.f32 %v3781, 0.5
      %v3806 = vmul.f32 %v3782, 0.5
      %v3807 = vmul.f32 %v3783, 0.5
      %v3808 = vmul.f32 %v3784, 0.5
      %v3809 = vmul.f32 %v3785, 0.5
      %v3810 = vmul.f32 %v3786, 0.5
      %v3811 = vmul.f32 %v3787, 0.5
      %v3812 = vmul.f32 %v3788, 0.5
      %v3813 = vmul.f32 %v3789, 0.5
      %v3814 = vmul.f32 %v3790, 0.5
      %v3815 = vmul.f32 %v3791, 0.5
      %v3816 = vmul.f32 %v3792, 0.5
      %v3817 = vmul.f32 %v3793, 0.5
      %v3818 = vmul.f32 %v3794, 0.5
      %v3819 = vmul.f32 %v3795, 0.5
      %v3820 = vmul.f32 %v3796, 0.5
      %v3821 = vmul.f32 %v3797, 0.5
      %v3822 = vmul.f32 %v3798, 0.5
      %v3823 = vmul.f32 %v3799, 0.5
      %v3824 = vmul.f32 %v3800, 0.5
      %v3825 = vmul.f32 %v3801, 0.5
      %v3826 = vmul.f32 %v3802, 0.5
      %v3827 = vmul.f32 %v3803, 0.5
      %v3828 = vmul.f32 %v3578, %v3804
      %v3829 = vmul.f32 %v3580, %v3805
      %v3830 = vmul.f32 %v3582, %v3806
      %v3831 = vmul.f32 %v3584, %v3807
      %v3832 = vmul.f32 %v3588, %v3808
      %v3833 = vmul.f32 %v3590, %v3809
      %v3834 = vmul.f32 %v3592, %v3810
      %v3835 = vmul.f32 %v3594, %v3811
      %v3836 = vmul.f32 %v3598, %v3812
      %v3837 = vmul.f32 %v3600, %v3813
      %v3838 = vmul.f32 %v3602, %v3814
      %v3839 = vmul.f32 %v3604, %v3815
      %v3840 = vmul.f32 %v3608, %v3816
      %v3841 = vmul.f32 %v3610, %v3817
      %v3842 = vmul.f32 %v3612, %v3818
      %v3843 = vmul.f32 %v3614, %v3819
      %v3844 = vmul.f32 %v3618, %v3820
      %v3845 = vmul.f32 %v3620, %v3821
      %v3846 = vmul.f32 %v3622, %v3822
      %v3847 = vmul.f32 %v3624, %v3823
      %v3848 = vmul.f32 %v3628, %v3824
      %v3849 = vmul.f32 %v3630, %v3825
      %v3850 = vmul.f32 %v3632, %v3826
      %v3851 = vmul.f32 %v3634, %v3827
      %v3852 = vpack.c.bf16 %v3830, %v3828
      %v3853 = vpack.c.bf16 %v3831, %v3829
      %v3854 = vpack.c.bf16 %v3834, %v3832
      %v3855 = vpack.c.bf16 %v3835, %v3833
      %v3856 = vpack.c.bf16 %v3838, %v3836
      %v3857 = vpack.c.bf16 %v3839, %v3837
      %v3858 = vpack.c.bf16 %v3842, %v3840
      %v3859 = vpack.c.bf16 %v3843, %v3841
      %v3860 = vpack.c.bf16 %v3846, %v3844
      %v3861 = vpack.c.bf16 %v3847, %v3845
      %v3862 = vpack.c.bf16 %v3850, %v3848
      %v3863 = vpack.c.bf16 %v3851, %v3849
      %v3865 = vsel %vm797, %v3486, 0
      %3867 = vmatprep.subr.bf16.mxu0 0
      %3868 = vmatpush1.bf16.msra.mxu0 0
      %3869 = vmatprep.subr.bf16.mxu0 0
      %3870 = vmatpush1.bf16.msra.mxu0 0
      %3871 = vmatprep.subr.bf16.mxu0 %v3863
      %3872 = vmatpush1.bf16.msra.mxu0 %v3862
      %3873 = vmatprep.subr.bf16.mxu0 %v3861
      %3874 = vmatpush1.bf16.msra.mxu0 %v3860
      %3875 = vmatprep.subr.bf16.mxu0 %v3859
      %3876 = vmatpush1.bf16.msra.mxu0 %v3858
      %3877 = vmatprep.subr.bf16.mxu0 %v3857
      %3878 = vmatpush1.bf16.msra.mxu0 %v3856
      %3879 = vmatprep.subr.bf16.mxu0 %v3855
      %3880 = vmatpush1.bf16.msra.mxu0 %v3854
      %3881 = vmatprep.subr.bf16.mxu0 %v3853
      %3882 = vmatpush1.bf16.msra.mxu0 %v3852
      %3883 = vmatprep.subr.bf16.mxu0 0
      %3884 = vmatpush2.bf16.msra.mxu0 0
      %3885 = vmatprep.subr.bf16.mxu0 0
      %3886 = vmatpush2.bf16.msra.mxu0 0
      %3887 = vmatprep.subr.bf16.mxu0 0
      %3888 = vmatpush2.bf16.msra.mxu0 0
      %3889 = vmatprep.subr.bf16.mxu0 0
      %3890 = vmatpush2.bf16.msra.mxu0 0
      %3891 = vmatprep.subr.bf16.mxu0 0
      %3892 = vmatpush2.bf16.msra.mxu0 0
      %3893 = vmatprep.subr.bf16.mxu0 0
      %3894 = vmatpush2.bf16.msra.mxu0 0
      %3895 = vmatprep.subr.bf16.mxu0 0
      %3896 = vmatpush2.bf16.msra.mxu0 0
      %3897 = vmatprep.subr.bf16.mxu0 0
      %3898 = vmatpush2.bf16.msra.mxu0 0
      %3899 = vmatprep.mubr.bf16.mxu0 0
      %3900 = vmatmul.mubr.bf16.gmra.mxu0 %v3865
      %v3901 = vpop.f32.mrf.mxu0
      %v3902 = vadd.f32 0.0, %v3901
      %v3903 = vpop.f32.mrf.mxu0
      %v3904 = vadd.f32 0.0, %v3903
      %v3905 = vpop.f32.mrf.mxu0
      %v3906 = vpop.f32.mrf.mxu0
      %3907 = vdwg.mxu0
      %v3908 = vadd.f32 %v3470, %v3902
      %v3909 = vadd.f32 %v3471, %v3904
      %s3910 = scalar_lea.vmem %s2, 384
      %v3911 = vld [vmem:[%s3910] sm:$0xf]
      %v3912 = vld [vmem:[%s3910 + $0x4] sm:$0xf]
      %v3913 = vld [vmem:[%s3910 + $0x8] sm:$0xf]
      %v3914 = vld [vmem:[%s3910 + $0xc] sm:$0xf]
      %v3915 = vld [vmem:[%s3910 + $0x10] sm:$0xf]
      %v3916 = vld [vmem:[%s3910 + $0x14] sm:$0xf]
      %v3917 = vld [vmem:[%s3910 + $0x18] sm:$0xf]
      %v3918 = vld [vmem:[%s3910 + $0x1c] sm:$0xf]
      %v3919 = vld [vmem:[%s3910 + $0x20] sm:$0xf]
      %v3920 = vld [vmem:[%s3910 + $0x24] sm:$0xf]
      %v3921 = vld [vmem:[%s3910 + $0x28] sm:$0xf]
      %v3922 = vld [vmem:[%s3910 + $0x2c] sm:$0xf]
      %s3923 = scalar_lea.vmem %s3, 32
      %v3924 = vld [vmem:[%s3923] sm:$0x7]
      %v3925 = vpack.c.bf16 %v3908, %v3908
      %v3926 = vpack.c.bf16 %v3909, %v3909
      %v3939 = vunpack.c.l.b16 %v3911
      %v3940 = vunpack.c.l.b16 %v3912
      %v3941 = vunpack.c.l.b16 %v3913
      %v3942 = vunpack.c.l.b16 %v3914
      %v3943 = vunpack.c.l.b16 %v3915
      %v3944 = vunpack.c.l.b16 %v3916
      %v3945 = vunpack.c.l.b16 %v3917
      %v3946 = vunpack.c.l.b16 %v3918
      %v3947 = vunpack.c.l.b16 %v3919
      %v3948 = vunpack.c.l.b16 %v3920
      %v3949 = vunpack.c.l.b16 %v3921
      %v3950 = vunpack.c.l.b16 %v3922
      %v3951 = vpack.c.b16 %v3940, %v3939
      %v3952 = vpack.c.b16 %v3942, %v3941
      %v3953 = vpack.c.b16 %v3944, %v3943
      %v3954 = vpack.c.b16 %v3946, %v3945
      %v3955 = vpack.c.b16 %v3948, %v3947
      %v3956 = vpack.c.b16 %v3950, %v3949
      %v3958 = vsel %vm450, %v3951, 0
      %v3961 = vsel %vm450, %v3952, 0
      %v3964 = vsel %vm450, %v3953, 0
      %v3967 = vsel %vm450, %v3954, 0
      %v3970 = vsel %vm450, %v3955, 0
      %v3973 = vsel %vm450, %v3956, 0
      %v3976 = vsel %vm469, %v3925, 0
      %v3979 = vsel %vm469, %v3926, 0
      %3981 = vmatprep.subr.bf16.mxu0 0
      %3982 = vmatpush1.bf16.msra.mxu0 0
      %3983 = vmatprep.subr.bf16.mxu0 0
      %3984 = vmatpush1.bf16.msra.mxu0 0
      %3985 = vmatprep.subr.bf16.mxu0 0
      %3986 = vmatpush1.bf16.msra.mxu0 0
      %3987 = vmatprep.subr.bf16.mxu0 0
      %3988 = vmatpush1.bf16.msra.mxu0 0
      %3989 = vmatprep.subr.bf16.mxu0 0
      %3990 = vmatpush1.bf16.msra.mxu0 0
      %3991 = vmatprep.subr.bf16.mxu0 0
      %3992 = vmatpush1.bf16.msra.mxu0 0
      %3993 = vmatprep.subr.bf16.mxu0 0
      %3994 = vmatpush1.bf16.msra.mxu0 0
      %3995 = vmatprep.subr.bf16.mxu0 %v3979
      %3996 = vmatpush1.bf16.msra.mxu0 %v3976
      %3997 = vmatprep.subr.bf16.mxu0 0
      %3998 = vmatpush2.bf16.msra.mxu0 0
      %3999 = vmatprep.subr.bf16.mxu0 0
      %4000 = vmatpush2.bf16.msra.mxu0 0
      %4001 = vmatprep.subr.bf16.mxu0 0
      %4002 = vmatpush2.bf16.msra.mxu0 0
      %4003 = vmatprep.subr.bf16.mxu0 0
      %4004 = vmatpush2.bf16.msra.mxu0 0
      %4005 = vmatprep.subr.bf16.mxu0 0
      %4006 = vmatpush2.bf16.msra.mxu0 0
      %4007 = vmatprep.subr.bf16.mxu0 0
      %4008 = vmatpush2.bf16.msra.mxu0 0
      %4009 = vmatprep.subr.bf16.mxu0 0
      %4010 = vmatpush2.bf16.msra.mxu0 0
      %4011 = vmatprep.subr.bf16.mxu0 0
      %4012 = vmatpush2.bf16.msra.mxu0 0
      %4013 = vmatprep.mubr.bf16.mxu0 0
      %4014 = vmatmul.mubr.bf16.gmra.mxu0 %v3958
      %v4015 = vpop.f32.mrf.mxu0
      %v4016 = vadd.f32 0.0, %v4015
      %v4017 = vpop.f32.mrf.mxu0
      %v4018 = vadd.f32 0.0, %v4017
      %v4019 = vpop.f32.mrf.mxu0
      %v4020 = vadd.f32 0.0, %v4019
      %v4021 = vpop.f32.mrf.mxu0
      %v4022 = vadd.f32 0.0, %v4021
      %4023 = vmatprep.mubr.bf16.mxu0 0
      %4024 = vmatmul.mubr.bf16.gmra.mxu0 %v3961
      %v4025 = vpop.f32.mrf.mxu0
      %v4026 = vadd.f32 0.0, %v4025
      %v4027 = vpop.f32.mrf.mxu0
      %v4028 = vadd.f32 0.0, %v4027
      %v4029 = vpop.f32.mrf.mxu0
      %v4030 = vadd.f32 0.0, %v4029
      %v4031 = vpop.f32.mrf.mxu0
      %v4032 = vadd.f32 0.0, %v4031
      %4033 = vmatprep.mubr.bf16.mxu0 0
      %4034 = vmatmul.mubr.bf16.gmra.mxu0 %v3964
      %v4035 = vpop.f32.mrf.mxu0
      %v4036 = vadd.f32 0.0, %v4035
      %v4037 = vpop.f32.mrf.mxu0
      %v4038 = vadd.f32 0.0, %v4037
      %v4039 = vpop.f32.mrf.mxu0
      %v4040 = vadd.f32 0.0, %v4039
      %v4041 = vpop.f32.mrf.mxu0
      %v4042 = vadd.f32 0.0, %v4041
      %4043 = vmatprep.mubr.bf16.mxu0 0
      %4044 = vmatmul.mubr.bf16.gmra.mxu0 %v3967
      %v4045 = vpop.f32.mrf.mxu0
      %v4046 = vadd.f32 0.0, %v4045
      %v4047 = vpop.f32.mrf.mxu0
      %v4048 = vadd.f32 0.0, %v4047
      %v4049 = vpop.f32.mrf.mxu0
      %v4050 = vadd.f32 0.0, %v4049
      %v4051 = vpop.f32.mrf.mxu0
      %v4052 = vadd.f32 0.0, %v4051
      %4053 = vmatprep.mubr.bf16.mxu0 0
      %4054 = vmatmul.mubr.bf16.gmra.mxu0 %v3970
      %v4055 = vpop.f32.mrf.mxu0
      %v4056 = vadd.f32 0.0, %v4055
      %v4057 = vpop.f32.mrf.mxu0
      %v4058 = vadd.f32 0.0, %v4057
      %v4059 = vpop.f32.mrf.mxu0
      %v4060 = vadd.f32 0.0, %v4059
      %v4061 = vpop.f32.mrf.mxu0
      %v4062 = vadd.f32 0.0, %v4061
      %4063 = vmatprep.mubr.bf16.mxu0 0
      %4064 = vmatmul.mubr.bf16.gmra.mxu0 %v3973
      %v4065 = vpop.f32.mrf.mxu0
      %v4066 = vadd.f32 0.0, %v4065
      %v4067 = vpop.f32.mrf.mxu0
      %v4068 = vadd.f32 0.0, %v4067
      %v4069 = vpop.f32.mrf.mxu0
      %v4070 = vadd.f32 0.0, %v4069
      %v4071 = vpop.f32.mrf.mxu0
      %v4072 = vadd.f32 0.0, %v4071
      %4073 = vdwg.mxu0
      %v4074 = vmul.f32 %v4016, %v4016
      %v4075 = vmul.f32 %v4018, %v4018
      %v4076 = vmul.f32 %v4020, %v4020
      %v4077 = vmul.f32 %v4022, %v4022
      %v4078 = vmul.f32 %v4026, %v4026
      %v4079 = vmul.f32 %v4028, %v4028
      %v4080 = vmul.f32 %v4030, %v4030
      %v4081 = vmul.f32 %v4032, %v4032
      %v4082 = vmul.f32 %v4036, %v4036
      %v4083 = vmul.f32 %v4038, %v4038
      %v4084 = vmul.f32 %v4040, %v4040
      %v4085 = vmul.f32 %v4042, %v4042
      %v4086 = vmul.f32 %v4046, %v4046
      %v4087 = vmul.f32 %v4048, %v4048
      %v4088 = vmul.f32 %v4050, %v4050
      %v4089 = vmul.f32 %v4052, %v4052
      %v4090 = vmul.f32 %v4056, %v4056
      %v4091 = vmul.f32 %v4058, %v4058
      %v4092 = vmul.f32 %v4060, %v4060
      %v4093 = vmul.f32 %v4062, %v4062
      %v4094 = vmul.f32 %v4066, %v4066
      %v4095 = vmul.f32 %v4068, %v4068
      %v4096 = vmul.f32 %v4070, %v4070
      %v4097 = vmul.f32 %v4072, %v4072
      %v4098 = vmul.f32 %v4016, %v4074
      %v4099 = vmul.f32 %v4018, %v4075
      %v4100 = vmul.f32 %v4020, %v4076
      %v4101 = vmul.f32 %v4022, %v4077
      %v4102 = vmul.f32 %v4026, %v4078
      %v4103 = vmul.f32 %v4028, %v4079
      %v4104 = vmul.f32 %v4030, %v4080
      %v4105 = vmul.f32 %v4032, %v4081
      %v4106 = vmul.f32 %v4036, %v4082
      %v4107 = vmul.f32 %v4038, %v4083
      %v4108 = vmul.f32 %v4040, %v4084
      %v4109 = vmul.f32 %v4042, %v4085
      %v4110 = vmul.f32 %v4046, %v4086
      %v4111 = vmul.f32 %v4048, %v4087
      %v4112 = vmul.f32 %v4050, %v4088
      %v4113 = vmul.f32 %v4052, %v4089
      %v4114 = vmul.f32 %v4056, %v4090
      %v4115 = vmul.f32 %v4058, %v4091
      %v4116 = vmul.f32 %v4060, %v4092
      %v4117 = vmul.f32 %v4062, %v4093
      %v4118 = vmul.f32 %v4066, %v4094
      %v4119 = vmul.f32 %v4068, %v4095
      %v4120 = vmul.f32 %v4070, %v4096
      %v4121 = vmul.f32 %v4072, %v4097
      %v4122 = vmul.f32 %v4098, 0.044715
      %v4123 = vmul.f32 %v4099, 0.044715
      %v4124 = vmul.f32 %v4100, 0.044715
      %v4125 = vmul.f32 %v4101, 0.044715
      %v4126 = vmul.f32 %v4102, 0.044715
      %v4127 = vmul.f32 %v4103, 0.044715
      %v4128 = vmul.f32 %v4104, 0.044715
      %v4129 = vmul.f32 %v4105, 0.044715
      %v4130 = vmul.f32 %v4106, 0.044715
      %v4131 = vmul.f32 %v4107, 0.044715
      %v4132 = vmul.f32 %v4108, 0.044715
      %v4133 = vmul.f32 %v4109, 0.044715
      %v4134 = vmul.f32 %v4110, 0.044715
      %v4135 = vmul.f32 %v4111, 0.044715
      %v4136 = vmul.f32 %v4112, 0.044715
      %v4137 = vmul.f32 %v4113, 0.044715
      %v4138 = vmul.f32 %v4114, 0.044715
      %v4139 = vmul.f32 %v4115, 0.044715
      %v4140 = vmul.f32 %v4116, 0.044715
      %v4141 = vmul.f32 %v4117, 0.044715
      %v4142 = vmul.f32 %v4118, 0.044715
      %v4143 = vmul.f32 %v4119, 0.044715
      %v4144 = vmul.f32 %v4120, 0.044715
      %v4145 = vmul.f32 %v4121, 0.044715
      %v4146 = vadd.f32 %v4016, %v4122
      %v4147 = vadd.f32 %v4018, %v4123
      %v4148 = vadd.f32 %v4020, %v4124
      %v4149 = vadd.f32 %v4022, %v4125
      %v4150 = vadd.f32 %v4026, %v4126
      %v4151 = vadd.f32 %v4028, %v4127
      %v4152 = vadd.f32 %v4030, %v4128
      %v4153 = vadd.f32 %v4032, %v4129
      %v4154 = vadd.f32 %v4036, %v4130
      %v4155 = vadd.f32 %v4038, %v4131
      %v4156 = vadd.f32 %v4040, %v4132
      %v4157 = vadd.f32 %v4042, %v4133
      %v4158 = vadd.f32 %v4046, %v4134
      %v4159 = vadd.f32 %v4048, %v4135
      %v4160 = vadd.f32 %v4050, %v4136
      %v4161 = vadd.f32 %v4052, %v4137
      %v4162 = vadd.f32 %v4056, %v4138
      %v4163 = vadd.f32 %v4058, %v4139
      %v4164 = vadd.f32 %v4060, %v4140
      %v4165 = vadd.f32 %v4062, %v4141
      %v4166 = vadd.f32 %v4066, %v4142
      %v4167 = vadd.f32 %v4068, %v4143
      %v4168 = vadd.f32 %v4070, %v4144
      %v4169 = vadd.f32 %v4072, %v4145
      %v4170 = vmul.f32 %v4146, 0.7978846
      %v4171 = vmul.f32 %v4147, 0.7978846
      %v4172 = vmul.f32 %v4148, 0.7978846
      %v4173 = vmul.f32 %v4149, 0.7978846
      %v4174 = vmul.f32 %v4150, 0.7978846
      %v4175 = vmul.f32 %v4151, 0.7978846
      %v4176 = vmul.f32 %v4152, 0.7978846
      %v4177 = vmul.f32 %v4153, 0.7978846
      %v4178 = vmul.f32 %v4154, 0.7978846
      %v4179 = vmul.f32 %v4155, 0.7978846
      %v4180 = vmul.f32 %v4156, 0.7978846
      %v4181 = vmul.f32 %v4157, 0.7978846
      %v4182 = vmul.f32 %v4158, 0.7978846
      %v4183 = vmul.f32 %v4159, 0.7978846
      %v4184 = vmul.f32 %v4160, 0.7978846
      %v4185 = vmul.f32 %v4161, 0.7978846
      %v4186 = vmul.f32 %v4162, 0.7978846
      %v4187 = vmul.f32 %v4163, 0.7978846
      %v4188 = vmul.f32 %v4164, 0.7978846
      %v4189 = vmul.f32 %v4165, 0.7978846
      %v4190 = vmul.f32 %v4166, 0.7978846
      %v4191 = vmul.f32 %v4167, 0.7978846
      %v4192 = vmul.f32 %v4168, 0.7978846
      %v4193 = vmul.f32 %v4169, 0.7978846
      %v4194 = vtanh.pop %v4170
      %v4195 = vtanh.pop %v4171
      %v4196 = vtanh.pop %v4172
      %v4197 = vtanh.pop %v4173
      %v4198 = vtanh.pop %v4174
      %v4199 = vtanh.pop %v4175
      %v4200 = vtanh.pop %v4176
      %v4201 = vtanh.pop %v4177
      %v4202 = vtanh.pop %v4178
      %v4203 = vtanh.pop %v4179
      %v4204 = vtanh.pop %v4180
      %v4205 = vtanh.pop %v4181
      %v4206 = vtanh.pop %v4182
      %v4207 = vtanh.pop %v4183
      %v4208 = vtanh.pop %v4184
      %v4209 = vtanh.pop %v4185
      %v4210 = vtanh.pop %v4186
      %v4211 = vtanh.pop %v4187
      %v4212 = vtanh.pop %v4188
      %v4213 = vtanh.pop %v4189
      %v4214 = vtanh.pop %v4190
      %v4215 = vtanh.pop %v4191
      %v4216 = vtanh.pop %v4192
      %v4217 = vtanh.pop %v4193
      %v4218 = vadd.f32 %v4194, 1.0
      %v4219 = vadd.f32 %v4195, 1.0
      %v4220 = vadd.f32 %v4196, 1.0
      %v4221 = vadd.f32 %v4197, 1.0
      %v4222 = vadd.f32 %v4198, 1.0
      %v4223 = vadd.f32 %v4199, 1.0
      %v4224 = vadd.f32 %v4200, 1.0
      %v4225 = vadd.f32 %v4201, 1.0
      %v4226 = vadd.f32 %v4202, 1.0
      %v4227 = vadd.f32 %v4203, 1.0
      %v4228 = vadd.f32 %v4204, 1.0
      %v4229 = vadd.f32 %v4205, 1.0
      %v4230 = vadd.f32 %v4206, 1.0
      %v4231 = vadd.f32 %v4207, 1.0
      %v4232 = vadd.f32 %v4208, 1.0
      %v4233 = vadd.f32 %v4209, 1.0
      %v4234 = vadd.f32 %v4210, 1.0
      %v4235 = vadd.f32 %v4211, 1.0
      %v4236 = vadd.f32 %v4212, 1.0
      %v4237 = vadd.f32 %v4213, 1.0
      %v4238 = vadd.f32 %v4214, 1.0
      %v4239 = vadd.f32 %v4215, 1.0
      %v4240 = vadd.f32 %v4216, 1.0
      %v4241 = vadd.f32 %v4217, 1.0
      %v4242 = vmul.f32 %v4218, 0.5
      %v4243 = vmul.f32 %v4219, 0.5
      %v4244 = vmul.f32 %v4220, 0.5
      %v4245 = vmul.f32 %v4221, 0.5
      %v4246 = vmul.f32 %v4222, 0.5
      %v4247 = vmul.f32 %v4223, 0.5
      %v4248 = vmul.f32 %v4224, 0.5
      %v4249 = vmul.f32 %v4225, 0.5
      %v4250 = vmul.f32 %v4226, 0.5
      %v4251 = vmul.f32 %v4227, 0.5
      %v4252 = vmul.f32 %v4228, 0.5
      %v4253 = vmul.f32 %v4229, 0.5
      %v4254 = vmul.f32 %v4230, 0.5
      %v4255 = vmul.f32 %v4231, 0.5
      %v4256 = vmul.f32 %v4232, 0.5
      %v4257 = vmul.f32 %v4233, 0.5
      %v4258 = vmul.f32 %v4234, 0.5
      %v4259 = vmul.f32 %v4235, 0.5
      %v4260 = vmul.f32 %v4236, 0.5
      %v4261 = vmul.f32 %v4237, 0.5
      %v4262 = vmul.f32 %v4238, 0.5
      %v4263 = vmul.f32 %v4239, 0.5
      %v4264 = vmul.f32 %v4240, 0.5
      %v4265 = vmul.f32 %v4241, 0.5
      %v4266 = vmul.f32 %v4016, %v4242
      %v4267 = vmul.f32 %v4018, %v4243
      %v4268 = vmul.f32 %v4020, %v4244
      %v4269 = vmul.f32 %v4022, %v4245
      %v4270 = vmul.f32 %v4026, %v4246
      %v4271 = vmul.f32 %v4028, %v4247
      %v4272 = vmul.f32 %v4030, %v4248
      %v4273 = vmul.f32 %v4032, %v4249
      %v4274 = vmul.f32 %v4036, %v4250
      %v4275 = vmul.f32 %v4038, %v4251
      %v4276 = vmul.f32 %v4040, %v4252
      %v4277 = vmul.f32 %v4042, %v4253
      %v4278 = vmul.f32 %v4046, %v4254
      %v4279 = vmul.f32 %v4048, %v4255
      %v4280 = vmul.f32 %v4050, %v4256
      %v4281 = vmul.f32 %v4052, %v4257
      %v4282 = vmul.f32 %v4056, %v4258
      %v4283 = vmul.f32 %v4058, %v4259
      %v4284 = vmul.f32 %v4060, %v4260
      %v4285 = vmul.f32 %v4062, %v4261
      %v4286 = vmul.f32 %v4066, %v4262
      %v4287 = vmul.f32 %v4068, %v4263
      %v4288 = vmul.f32 %v4070, %v4264
      %v4289 = vmul.f32 %v4072, %v4265
      %v4290 = vpack.c.bf16 %v4268, %v4266
      %v4291 = vpack.c.bf16 %v4269, %v4267
      %v4292 = vpack.c.bf16 %v4272, %v4270
      %v4293 = vpack.c.bf16 %v4273, %v4271
      %v4294 = vpack.c.bf16 %v4276, %v4274
      %v4295 = vpack.c.bf16 %v4277, %v4275
      %v4296 = vpack.c.bf16 %v4280, %v4278
      %v4297 = vpack.c.bf16 %v4281, %v4279
      %v4298 = vpack.c.bf16 %v4284, %v4282
      %v4299 = vpack.c.bf16 %v4285, %v4283
      %v4300 = vpack.c.bf16 %v4288, %v4286
      %v4301 = vpack.c.bf16 %v4289, %v4287
      %v4303 = vsel %vm797, %v3924, 0
      %4305 = vmatprep.subr.bf16.mxu0 0
      %4306 = vmatpush1.bf16.msra.mxu0 0
      %4307 = vmatprep.subr.bf16.mxu0 0
      %4308 = vmatpush1.bf16.msra.mxu0 0
      %4309 = vmatprep.subr.bf16.mxu0 %v4301
      %4310 = vmatpush1.bf16.msra.mxu0 %v4300
      %4311 = vmatprep.subr.bf16.mxu0 %v4299
      %4312 = vmatpush1.bf16.msra.mxu0 %v4298
      %4313 = vmatprep.subr.bf16.mxu0 %v4297
      %4314 = vmatpush1.bf16.msra.mxu0 %v4296
      %4315 = vmatprep.subr.bf16.mxu0 %v4295
      %4316 = vmatpush1.bf16.msra.mxu0 %v4294
      %4317 = vmatprep.subr.bf16.mxu0 %v4293
      %4318 = vmatpush1.bf16.msra.mxu0 %v4292
      %4319 = vmatprep.subr.bf16.mxu0 %v4291
      %4320 = vmatpush1.bf16.msra.mxu0 %v4290
      %4321 = vmatprep.subr.bf16.mxu0 0
      %4322 = vmatpush2.bf16.msra.mxu0 0
      %4323 = vmatprep.subr.bf16.mxu0 0
      %4324 = vmatpush2.bf16.msra.mxu0 0
      %4325 = vmatprep.subr.bf16.mxu0 0
      %4326 = vmatpush2.bf16.msra.mxu0 0
      %4327 = vmatprep.subr.bf16.mxu0 0
      %4328 = vmatpush2.bf16.msra.mxu0 0
      %4329 = vmatprep.subr.bf16.mxu0 0
      %4330 = vmatpush2.bf16.msra.mxu0 0
      %4331 = vmatprep.subr.bf16.mxu0 0
      %4332 = vmatpush2.bf16.msra.mxu0 0
      %4333 = vmatprep.subr.bf16.mxu0 0
      %4334 = vmatpush2.bf16.msra.mxu0 0
      %4335 = vmatprep.subr.bf16.mxu0 0
      %4336 = vmatpush2.bf16.msra.mxu0 0
      %4337 = vmatprep.mubr.bf16.mxu0 0
      %4338 = vmatmul.mubr.bf16.gmra.mxu0 %v4303
      %v4339 = vpop.f32.mrf.mxu0
      %v4340 = vadd.f32 0.0, %v4339
      %v4341 = vpop.f32.mrf.mxu0
      %v4342 = vadd.f32 0.0, %v4341
      %v4343 = vpop.f32.mrf.mxu0
      %v4344 = vpop.f32.mrf.mxu0
      %4345 = vdwg.mxu0
      %v4346 = vadd.f32 %v3908, %v4340
      %v4347 = vadd.f32 %v3909, %v4342
      %s4348 = scalar_lea.vmem %s2, 432
      %v4349 = vld [vmem:[%s4348] sm:$0xf]
      %v4350 = vld [vmem:[%s4348 + $0x4] sm:$0xf]
      %v4351 = vld [vmem:[%s4348 + $0x8] sm:$0xf]
      %v4352 = vld [vmem:[%s4348 + $0xc] sm:$0xf]
      %v4353 = vld [vmem:[%s4348 + $0x10] sm:$0xf]
      %v4354 = vld [vmem:[%s4348 + $0x14] sm:$0xf]
      %v4355 = vld [vmem:[%s4348 + $0x18] sm:$0xf]
      %v4356 = vld [vmem:[%s4348 + $0x1c] sm:$0xf]
      %v4357 = vld [vmem:[%s4348 + $0x20] sm:$0xf]
      %v4358 = vld [vmem:[%s4348 + $0x24] sm:$0xf]
      %v4359 = vld [vmem:[%s4348 + $0x28] sm:$0xf]
      %v4360 = vld [vmem:[%s4348 + $0x2c] sm:$0xf]
      %s4361 = scalar_lea.vmem %s3, 36
      %v4362 = vld [vmem:[%s4361] sm:$0x7]
      %v4363 = vpack.c.bf16 %v4346, %v4346
      %v4364 = vpack.c.bf16 %v4347, %v4347
      %v4377 = vunpack.c.l.b16 %v4349
      %v4378 = vunpack.c.l.b16 %v4350
      %v4379 = vunpack.c.l.b16 %v4351
      %v4380 = vunpack.c.l.b16 %v4352
      %v4381 = vunpack.c.l.b16 %v4353
      %v4382 = vunpack.c.l.b16 %v4354
      %v4383 = vunpack.c.l.b16 %v4355
      %v4384 = vunpack.c.l.b16 %v4356
      %v4385 = vunpack.c.l.b16 %v4357
      %v4386 = vunpack.c.l.b16 %v4358
      %v4387 = vunpack.c.l.b16 %v4359
      %v4388 = vunpack.c.l.b16 %v4360
      %v4389 = vpack.c.b16 %v4378, %v4377
      %v4390 = vpack.c.b16 %v4380, %v4379
      %v4391 = vpack.c.b16 %v4382, %v4381
      %v4392 = vpack.c.b16 %v4384, %v4383
      %v4393 = vpack.c.b16 %v4386, %v4385
      %v4394 = vpack.c.b16 %v4388, %v4387
      %v4396 = vsel %vm450, %v4389, 0
      %v4399 = vsel %vm450, %v4390, 0
      %v4402 = vsel %vm450, %v4391, 0
      %v4405 = vsel %vm450, %v4392, 0
      %v4408 = vsel %vm450, %v4393, 0
      %v4411 = vsel %vm450, %v4394, 0
      %v4414 = vsel %vm469, %v4363, 0
      %v4417 = vsel %vm469, %v4364, 0
      %4419 = vmatprep.subr.bf16.mxu0 0
      %4420 = vmatpush1.bf16.msra.mxu0 0
      %4421 = vmatprep.subr.bf16.mxu0 0
      %4422 = vmatpush1.bf16.msra.mxu0 0
      %4423 = vmatprep.subr.bf16.mxu0 0
      %4424 = vmatpush1.bf16.msra.mxu0 0
      %4425 = vmatprep.subr.bf16.mxu0 0
      %4426 = vmatpush1.bf16.msra.mxu0 0
      %4427 = vmatprep.subr.bf16.mxu0 0
      %4428 = vmatpush1.bf16.msra.mxu0 0
      %4429 = vmatprep.subr.bf16.mxu0 0
      %4430 = vmatpush1.bf16.msra.mxu0 0
      %4431 = vmatprep.subr.bf16.mxu0 0
      %4432 = vmatpush1.bf16.msra.mxu0 0
      %4433 = vmatprep.subr.bf16.mxu0 %v4417
      %4434 = vmatpush1.bf16.msra.mxu0 %v4414
      %4435 = vmatprep.subr.bf16.mxu0 0
      %4436 = vmatpush2.bf16.msra.mxu0 0
      %4437 = vmatprep.subr.bf16.mxu0 0
      %4438 = vmatpush2.bf16.msra.mxu0 0
      %4439 = vmatprep.subr.bf16.mxu0 0
      %4440 = vmatpush2.bf16.msra.mxu0 0
      %4441 = vmatprep.subr.bf16.mxu0 0
      %4442 = vmatpush2.bf16.msra.mxu0 0
      %4443 = vmatprep.subr.bf16.mxu0 0
      %4444 = vmatpush2.bf16.msra.mxu0 0
      %4445 = vmatprep.subr.bf16.mxu0 0
      %4446 = vmatpush2.bf16.msra.mxu0 0
      %4447 = vmatprep.subr.bf16.mxu0 0
      %4448 = vmatpush2.bf16.msra.mxu0 0
      %4449 = vmatprep.subr.bf16.mxu0 0
      %4450 = vmatpush2.bf16.msra.mxu0 0
      %4451 = vmatprep.mubr.bf16.mxu0 0
      %4452 = vmatmul.mubr.bf16.gmra.mxu0 %v4396
      %v4453 = vpop.f32.mrf.mxu0
      %v4454 = vadd.f32 0.0, %v4453
      %v4455 = vpop.f32.mrf.mxu0
      %v4456 = vadd.f32 0.0, %v4455
      %v4457 = vpop.f32.mrf.mxu0
      %v4458 = vadd.f32 0.0, %v4457
      %v4459 = vpop.f32.mrf.mxu0
      %v4460 = vadd.f32 0.0, %v4459
      %4461 = vmatprep.mubr.bf16.mxu0 0
      %4462 = vmatmul.mubr.bf16.gmra.mxu0 %v4399
      %v4463 = vpop.f32.mrf.mxu0
      %v4464 = vadd.f32 0.0, %v4463
      %v4465 = vpop.f32.mrf.mxu0
      %v4466 = vadd.f32 0.0, %v4465
      %v4467 = vpop.f32.mrf.mxu0
      %v4468 = vadd.f32 0.0, %v4467
      %v4469 = vpop.f32.mrf.mxu0
      %v4470 = vadd.f32 0.0, %v4469
      %4471 = vmatprep.mubr.bf16.mxu0 0
      %4472 = vmatmul.mubr.bf16.gmra.mxu0 %v4402
      %v4473 = vpop.f32.mrf.mxu0
      %v4474 = vadd.f32 0.0, %v4473
      %v4475 = vpop.f32.mrf.mxu0
      %v4476 = vadd.f32 0.0, %v4475
      %v4477 = vpop.f32.mrf.mxu0
      %v4478 = vadd.f32 0.0, %v4477
      %v4479 = vpop.f32.mrf.mxu0
      %v4480 = vadd.f32 0.0, %v4479
      %4481 = vmatprep.mubr.bf16.mxu0 0
      %4482 = vmatmul.mubr.bf16.gmra.mxu0 %v4405
      %v4483 = vpop.f32.mrf.mxu0
      %v4484 = vadd.f32 0.0, %v4483
      %v4485 = vpop.f32.mrf.mxu0
      %v4486 = vadd.f32 0.0, %v4485
      %v4487 = vpop.f32.mrf.mxu0
      %v4488 = vadd.f32 0.0, %v4487
      %v4489 = vpop.f32.mrf.mxu0
      %v4490 = vadd.f32 0.0, %v4489
      %4491 = vmatprep.mubr.bf16.mxu0 0
      %4492 = vmatmul.mubr.bf16.gmra.mxu0 %v4408
      %v4493 = vpop.f32.mrf.mxu0
      %v4494 = vadd.f32 0.0, %v4493
      %v4495 = vpop.f32.mrf.mxu0
      %v4496 = vadd.f32 0.0, %v4495
      %v4497 = vpop.f32.mrf.mxu0
      %v4498 = vadd.f32 0.0, %v4497
      %v4499 = vpop.f32.mrf.mxu0
      %v4500 = vadd.f32 0.0, %v4499
      %4501 = vmatprep.mubr.bf16.mxu0 0
      %4502 = vmatmul.mubr.bf16.gmra.mxu0 %v4411
      %v4503 = vpop.f32.mrf.mxu0
      %v4504 = vadd.f32 0.0, %v4503
      %v4505 = vpop.f32.mrf.mxu0
      %v4506 = vadd.f32 0.0, %v4505
      %v4507 = vpop.f32.mrf.mxu0
      %v4508 = vadd.f32 0.0, %v4507
      %v4509 = vpop.f32.mrf.mxu0
      %v4510 = vadd.f32 0.0, %v4509
      %4511 = vdwg.mxu0
      %v4512 = vmul.f32 %v4454, %v4454
      %v4513 = vmul.f32 %v4456, %v4456
      %v4514 = vmul.f32 %v4458, %v4458
      %v4515 = vmul.f32 %v4460, %v4460
      %v4516 = vmul.f32 %v4464, %v4464
      %v4517 = vmul.f32 %v4466, %v4466
      %v4518 = vmul.f32 %v4468, %v4468
      %v4519 = vmul.f32 %v4470, %v4470
      %v4520 = vmul.f32 %v4474, %v4474
      %v4521 = vmul.f32 %v4476, %v4476
      %v4522 = vmul.f32 %v4478, %v4478
      %v4523 = vmul.f32 %v4480, %v4480
      %v4524 = vmul.f32 %v4484, %v4484
      %v4525 = vmul.f32 %v4486, %v4486
      %v4526 = vmul.f32 %v4488, %v4488
      %v4527 = vmul.f32 %v4490, %v4490
      %v4528 = vmul.f32 %v4494, %v4494
      %v4529 = vmul.f32 %v4496, %v4496
      %v4530 = vmul.f32 %v4498, %v4498
      %v4531 = vmul.f32 %v4500, %v4500
      %v4532 = vmul.f32 %v4504, %v4504
      %v4533 = vmul.f32 %v4506, %v4506
      %v4534 = vmul.f32 %v4508, %v4508
      %v4535 = vmul.f32 %v4510, %v4510
      %v4536 = vmul.f32 %v4454, %v4512
      %v4537 = vmul.f32 %v4456, %v4513
      %v4538 = vmul.f32 %v4458, %v4514
      %v4539 = vmul.f32 %v4460, %v4515
      %v4540 = vmul.f32 %v4464, %v4516
      %v4541 = vmul.f32 %v4466, %v4517
      %v4542 = vmul.f32 %v4468, %v4518
      %v4543 = vmul.f32 %v4470, %v4519
      %v4544 = vmul.f32 %v4474, %v4520
      %v4545 = vmul.f32 %v4476, %v4521
      %v4546 = vmul.f32 %v4478, %v4522
      %v4547 = vmul.f32 %v4480, %v4523
      %v4548 = vmul.f32 %v4484, %v4524
      %v4549 = vmul.f32 %v4486, %v4525
      %v4550 = vmul.f32 %v4488, %v4526
      %v4551 = vmul.f32 %v4490, %v4527
      %v4552 = vmul.f32 %v4494, %v4528
      %v4553 = vmul.f32 %v4496, %v4529
      %v4554 = vmul.f32 %v4498, %v4530
      %v4555 = vmul.f32 %v4500, %v4531
      %v4556 = vmul.f32 %v4504, %v4532
      %v4557 = vmul.f32 %v4506, %v4533
      %v4558 = vmul.f32 %v4508, %v4534
      %v4559 = vmul.f32 %v4510, %v4535
      %v4560 = vmul.f32 %v4536, 0.044715
      %v4561 = vmul.f32 %v4537, 0.044715
      %v4562 = vmul.f32 %v4538, 0.044715
      %v4563 = vmul.f32 %v4539, 0.044715
      %v4564 = vmul.f32 %v4540, 0.044715
      %v4565 = vmul.f32 %v4541, 0.044715
      %v4566 = vmul.f32 %v4542, 0.044715
      %v4567 = vmul.f32 %v4543, 0.044715
      %v4568 = vmul.f32 %v4544, 0.044715
      %v4569 = vmul.f32 %v4545, 0.044715
      %v4570 = vmul.f32 %v4546, 0.044715
      %v4571 = vmul.f32 %v4547, 0.044715
      %v4572 = vmul.f32 %v4548, 0.044715
      %v4573 = vmul.f32 %v4549, 0.044715
      %v4574 = vmul.f32 %v4550, 0.044715
      %v4575 = vmul.f32 %v4551, 0.044715
      %v4576 = vmul.f32 %v4552, 0.044715
      %v4577 = vmul.f32 %v4553, 0.044715
      %v4578 = vmul.f32 %v4554, 0.044715
      %v4579 = vmul.f32 %v4555, 0.044715
      %v4580 = vmul.f32 %v4556, 0.044715
      %v4581 = vmul.f32 %v4557, 0.044715
      %v4582 = vmul.f32 %v4558, 0.044715
      %v4583 = vmul.f32 %v4559, 0.044715
      %v4584 = vadd.f32 %v4454, %v4560
      %v4585 = vadd.f32 %v4456, %v4561
      %v4586 = vadd.f32 %v4458, %v4562
      %v4587 = vadd.f32 %v4460, %v4563
      %v4588 = vadd.f32 %v4464, %v4564
      %v4589 = vadd.f32 %v4466, %v4565
      %v4590 = vadd.f32 %v4468, %v4566
      %v4591 = vadd.f32 %v4470, %v4567
      %v4592 = vadd.f32 %v4474, %v4568
      %v4593 = vadd.f32 %v4476, %v4569
      %v4594 = vadd.f32 %v4478, %v4570
      %v4595 = vadd.f32 %v4480, %v4571
      %v4596 = vadd.f32 %v4484, %v4572
      %v4597 = vadd.f32 %v4486, %v4573
      %v4598 = vadd.f32 %v4488, %v4574
      %v4599 = vadd.f32 %v4490, %v4575
      %v4600 = vadd.f32 %v4494, %v4576
      %v4601 = vadd.f32 %v4496, %v4577
      %v4602 = vadd.f32 %v4498, %v4578
      %v4603 = vadd.f32 %v4500, %v4579
      %v4604 = vadd.f32 %v4504, %v4580
      %v4605 = vadd.f32 %v4506, %v4581
      %v4606 = vadd.f32 %v4508, %v4582
      %v4607 = vadd.f32 %v4510, %v4583
      %v4608 = vmul.f32 %v4584, 0.7978846
      %v4609 = vmul.f32 %v4585, 0.7978846
      %v4610 = vmul.f32 %v4586, 0.7978846
      %v4611 = vmul.f32 %v4587, 0.7978846
      %v4612 = vmul.f32 %v4588, 0.7978846
      %v4613 = vmul.f32 %v4589, 0.7978846
      %v4614 = vmul.f32 %v4590, 0.7978846
      %v4615 = vmul.f32 %v4591, 0.7978846
      %v4616 = vmul.f32 %v4592, 0.7978846
      %v4617 = vmul.f32 %v4593, 0.7978846
      %v4618 = vmul.f32 %v4594, 0.7978846
      %v4619 = vmul.f32 %v4595, 0.7978846
      %v4620 = vmul.f32 %v4596, 0.7978846
      %v4621 = vmul.f32 %v4597, 0.7978846
      %v4622 = vmul.f32 %v4598, 0.7978846
      %v4623 = vmul.f32 %v4599, 0.7978846
      %v4624 = vmul.f32 %v4600, 0.7978846
      %v4625 = vmul.f32 %v4601, 0.7978846
      %v4626 = vmul.f32 %v4602, 0.7978846
      %v4627 = vmul.f32 %v4603, 0.7978846
      %v4628 = vmul.f32 %v4604, 0.7978846
      %v4629 = vmul.f32 %v4605, 0.7978846
      %v4630 = vmul.f32 %v4606, 0.7978846
      %v4631 = vmul.f32 %v4607, 0.7978846
      %v4632 = vtanh.pop %v4608
      %v4633 = vtanh.pop %v4609
      %v4634 = vtanh.pop %v4610
      %v4635 = vtanh.pop %v4611
      %v4636 = vtanh.pop %v4612
      %v4637 = vtanh.pop %v4613
      %v4638 = vtanh.pop %v4614
      %v4639 = vtanh.pop %v4615
      %v4640 = vtanh.pop %v4616
      %v4641 = vtanh.pop %v4617
      %v4642 = vtanh.pop %v4618
      %v4643 = vtanh.pop %v4619
      %v4644 = vtanh.pop %v4620
      %v4645 = vtanh.pop %v4621
      %v4646 = vtanh.pop %v4622
      %v4647 = vtanh.pop %v4623
      %v4648 = vtanh.pop %v4624
      %v4649 = vtanh.pop %v4625
      %v4650 = vtanh.pop %v4626
      %v4651 = vtanh.pop %v4627
      %v4652 = vtanh.pop %v4628
      %v4653 = vtanh.pop %v4629
      %v4654 = vtanh.pop %v4630
      %v4655 = vtanh.pop %v4631
      %v4656 = vadd.f32 %v4632, 1.0
      %v4657 = vadd.f32 %v4633, 1.0
      %v4658 = vadd.f32 %v4634, 1.0
      %v4659 = vadd.f32 %v4635, 1.0
      %v4660 = vadd.f32 %v4636, 1.0
      %v4661 = vadd.f32 %v4637, 1.0
      %v4662 = vadd.f32 %v4638, 1.0
      %v4663 = vadd.f32 %v4639, 1.0
      %v4664 = vadd.f32 %v4640, 1.0
      %v4665 = vadd.f32 %v4641, 1.0
      %v4666 = vadd.f32 %v4642, 1.0
      %v4667 = vadd.f32 %v4643, 1.0
      %v4668 = vadd.f32 %v4644, 1.0
      %v4669 = vadd.f32 %v4645, 1.0
      %v4670 = vadd.f32 %v4646, 1.0
      %v4671 = vadd.f32 %v4647, 1.0
      %v4672 = vadd.f32 %v4648, 1.0
      %v4673 = vadd.f32 %v4649, 1.0
      %v4674 = vadd.f32 %v4650, 1.0
      %v4675 = vadd.f32 %v4651, 1.0
      %v4676 = vadd.f32 %v4652, 1.0
      %v4677 = vadd.f32 %v4653, 1.0
      %v4678 = vadd.f32 %v4654, 1.0
      %v4679 = vadd.f32 %v4655, 1.0
      %v4680 = vmul.f32 %v4656, 0.5
      %v4681 = vmul.f32 %v4657, 0.5
      %v4682 = vmul.f32 %v4658, 0.5
      %v4683 = vmul.f32 %v4659, 0.5
      %v4684 = vmul.f32 %v4660, 0.5
      %v4685 = vmul.f32 %v4661, 0.5
      %v4686 = vmul.f32 %v4662, 0.5
      %v4687 = vmul.f32 %v4663, 0.5
      %v4688 = vmul.f32 %v4664, 0.5
      %v4689 = vmul.f32 %v4665, 0.5
      %v4690 = vmul.f32 %v4666, 0.5
      %v4691 = vmul.f32 %v4667, 0.5
      %v4692 = vmul.f32 %v4668, 0.5
      %v4693 = vmul.f32 %v4669, 0.5
      %v4694 = vmul.f32 %v4670, 0.5
      %v4695 = vmul.f32 %v4671, 0.5
      %v4696 = vmul.f32 %v4672, 0.5
      %v4697 = vmul.f32 %v4673, 0.5
      %v4698 = vmul.f32 %v4674, 0.5
      %v4699 = vmul.f32 %v4675, 0.5
      %v4700 = vmul.f32 %v4676, 0.5
      %v4701 = vmul.f32 %v4677, 0.5
      %v4702 = vmul.f32 %v4678, 0.5
      %v4703 = vmul.f32 %v4679, 0.5
      %v4704 = vmul.f32 %v4454, %v4680
      %v4705 = vmul.f32 %v4456, %v4681
      %v4706 = vmul.f32 %v4458, %v4682
      %v4707 = vmul.f32 %v4460, %v4683
      %v4708 = vmul.f32 %v4464, %v4684
      %v4709 = vmul.f32 %v4466, %v4685
      %v4710 = vmul.f32 %v4468, %v4686
      %v4711 = vmul.f32 %v4470, %v4687
      %v4712 = vmul.f32 %v4474, %v4688
      %v4713 = vmul.f32 %v4476, %v4689
      %v4714 = vmul.f32 %v4478, %v4690
      %v4715 = vmul.f32 %v4480, %v4691
      %v4716 = vmul.f32 %v4484, %v4692
      %v4717 = vmul.f32 %v4486, %v4693
      %v4718 = vmul.f32 %v4488, %v4694
      %v4719 = vmul.f32 %v4490, %v4695
      %v4720 = vmul.f32 %v4494, %v4696
      %v4721 = vmul.f32 %v4496, %v4697
      %v4722 = vmul.f32 %v4498, %v4698
      %v4723 = vmul.f32 %v4500, %v4699
      %v4724 = vmul.f32 %v4504, %v4700
      %v4725 = vmul.f32 %v4506, %v4701
      %v4726 = vmul.f32 %v4508, %v4702
      %v4727 = vmul.f32 %v4510, %v4703
      %v4728 = vpack.c.bf16 %v4706, %v4704
      %v4729 = vpack.c.bf16 %v4707, %v4705
      %v4730 = vpack.c.bf16 %v4710, %v4708
      %v4731 = vpack.c.bf16 %v4711, %v4709
      %v4732 = vpack.c.bf16 %v4714, %v4712
      %v4733 = vpack.c.bf16 %v4715, %v4713
      %v4734 = vpack.c.bf16 %v4718, %v4716
      %v4735 = vpack.c.bf16 %v4719, %v4717
      %v4736 = vpack.c.bf16 %v4722, %v4720
      %v4737 = vpack.c.bf16 %v4723, %v4721
      %v4738 = vpack.c.bf16 %v4726, %v4724
      %v4739 = vpack.c.bf16 %v4727, %v4725
      %v4741 = vsel %vm797, %v4362, 0
      %4743 = vmatprep.subr.bf16.mxu0 0
      %4744 = vmatpush1.bf16.msra.mxu0 0
      %4745 = vmatprep.subr.bf16.mxu0 0
      %4746 = vmatpush1.bf16.msra.mxu0 0
      %4747 = vmatprep.subr.bf16.mxu0 %v4739
      %4748 = vmatpush1.bf16.msra.mxu0 %v4738
      %4749 = vmatprep.subr.bf16.mxu0 %v4737
      %4750 = vmatpush1.bf16.msra.mxu0 %v4736
      %4751 = vmatprep.subr.bf16.mxu0 %v4735
      %4752 = vmatpush1.bf16.msra.mxu0 %v4734
      %4753 = vmatprep.subr.bf16.mxu0 %v4733
      %4754 = vmatpush1.bf16.msra.mxu0 %v4732
      %4755 = vmatprep.subr.bf16.mxu0 %v4731
      %4756 = vmatpush1.bf16.msra.mxu0 %v4730
      %4757 = vmatprep.subr.bf16.mxu0 %v4729
      %4758 = vmatpush1.bf16.msra.mxu0 %v4728
      %4759 = vmatprep.subr.bf16.mxu0 0
      %4760 = vmatpush2.bf16.msra.mxu0 0
      %4761 = vmatprep.subr.bf16.mxu0 0
      %4762 = vmatpush2.bf16.msra.mxu0 0
      %4763 = vmatprep.subr.bf16.mxu0 0
      %4764 = vmatpush2.bf16.msra.mxu0 0
      %4765 = vmatprep.subr.bf16.mxu0 0
      %4766 = vmatpush2.bf16.msra.mxu0 0
      %4767 = vmatprep.subr.bf16.mxu0 0
      %4768 = vmatpush2.bf16.msra.mxu0 0
      %4769 = vmatprep.subr.bf16.mxu0 0
      %4770 = vmatpush2.bf16.msra.mxu0 0
      %4771 = vmatprep.subr.bf16.mxu0 0
      %4772 = vmatpush2.bf16.msra.mxu0 0
      %4773 = vmatprep.subr.bf16.mxu0 0
      %4774 = vmatpush2.bf16.msra.mxu0 0
      %4775 = vmatprep.mubr.bf16.mxu0 0
      %4776 = vmatmul.mubr.bf16.gmra.mxu0 %v4741
      %v4777 = vpop.f32.mrf.mxu0
      %v4778 = vadd.f32 0.0, %v4777
      %v4779 = vpop.f32.mrf.mxu0
      %v4780 = vadd.f32 0.0, %v4779
      %v4781 = vpop.f32.mrf.mxu0
      %v4782 = vpop.f32.mrf.mxu0
      %4783 = vdwg.mxu0
      %v4784 = vadd.f32 %v4346, %v4778
      %v4785 = vadd.f32 %v4347, %v4780
      %s4786 = scalar_lea.vmem %s4, 432
      %v4787 = vld [vmem:[%s4786] sm:$0xf]
      %v4788 = vld [vmem:[%s4786 + $0x4] sm:$0xf]
      %v4789 = vld [vmem:[%s4786 + $0x8] sm:$0xf]
      %v4790 = vld [vmem:[%s4786 + $0xc] sm:$0xf]
      %v4791 = vld [vmem:[%s4786 + $0x10] sm:$0xf]
      %v4792 = vld [vmem:[%s4786 + $0x14] sm:$0xf]
      %v4793 = vld [vmem:[%s4786 + $0x18] sm:$0xf]
      %v4794 = vld [vmem:[%s4786 + $0x1c] sm:$0xf]
      %v4795 = vld [vmem:[%s4786 + $0x20] sm:$0xf]
      %v4796 = vld [vmem:[%s4786 + $0x24] sm:$0xf]
      %v4797 = vld [vmem:[%s4786 + $0x28] sm:$0xf]
      %v4798 = vld [vmem:[%s4786 + $0x2c] sm:$0xf]
      %s4799 = scalar_lea.vmem %s5, 36
      %v4800 = vld [vmem:[%s4799] sm:$0x7]
      %v4801 = vpack.c.bf16 %v4784, %v4784
      %v4802 = vpack.c.bf16 %v4785, %v4785
      %v4815 = vunpack.c.l.b16 %v4787
      %v4816 = vunpack.c.l.b16 %v4788
      %v4817 = vunpack.c.l.b16 %v4789
      %v4818 = vunpack.c.l.b16 %v4790
      %v4819 = vunpack.c.l.b16 %v4791
      %v4820 = vunpack.c.l.b16 %v4792
      %v4821 = vunpack.c.l.b16 %v4793
      %v4822 = vunpack.c.l.b16 %v4794
      %v4823 = vunpack.c.l.b16 %v4795
      %v4824 = vunpack.c.l.b16 %v4796
      %v4825 = vunpack.c.l.b16 %v4797
      %v4826 = vunpack.c.l.b16 %v4798
      %v4827 = vpack.c.b16 %v4816, %v4815
      %v4828 = vpack.c.b16 %v4818, %v4817
      %v4829 = vpack.c.b16 %v4820, %v4819
      %v4830 = vpack.c.b16 %v4822, %v4821
      %v4831 = vpack.c.b16 %v4824, %v4823
      %v4832 = vpack.c.b16 %v4826, %v4825
      %v4834 = vsel %vm450, %v4827, 0
      %v4837 = vsel %vm450, %v4828, 0
      %v4840 = vsel %vm450, %v4829, 0
      %v4843 = vsel %vm450, %v4830, 0
      %v4846 = vsel %vm450, %v4831, 0
      %v4849 = vsel %vm450, %v4832, 0
      %v4852 = vsel %vm469, %v4801, 0
      %v4855 = vsel %vm469, %v4802, 0
      %4857 = vmatprep.subr.bf16.mxu0 0
      %4858 = vmatpush1.bf16.msra.mxu0 0
      %4859 = vmatprep.subr.bf16.mxu0 0
      %4860 = vmatpush1.bf16.msra.mxu0 0
      %4861 = vmatprep.subr.bf16.mxu0 0
      %4862 = vmatpush1.bf16.msra.mxu0 0
      %4863 = vmatprep.subr.bf16.mxu0 0
      %4864 = vmatpush1.bf16.msra.mxu0 0
      %4865 = vmatprep.subr.bf16.mxu0 0
      %4866 = vmatpush1.bf16.msra.mxu0 0
      %4867 = vmatprep.subr.bf16.mxu0 0
      %4868 = vmatpush1.bf16.msra.mxu0 0
      %4869 = vmatprep.subr.bf16.mxu0 0
      %4870 = vmatpush1.bf16.msra.mxu0 0
      %4871 = vmatprep.subr.bf16.mxu0 %v4855
      %4872 = vmatpush1.bf16.msra.mxu0 %v4852
      %4873 = vmatprep.subr.bf16.mxu0 0
      %4874 = vmatpush2.bf16.msra.mxu0 0
      %4875 = vmatprep.subr.bf16.mxu0 0
      %4876 = vmatpush2.bf16.msra.mxu0 0
      %4877 = vmatprep.subr.bf16.mxu0 0
      %4878 = vmatpush2.bf16.msra.mxu0 0
      %4879 = vmatprep.subr.bf16.mxu0 0
      %4880 = vmatpush2.bf16.msra.mxu0 0
      %4881 = vmatprep.subr.bf16.mxu0 0
      %4882 = vmatpush2.bf16.msra.mxu0 0
      %4883 = vmatprep.subr.bf16.mxu0 0
      %4884 = vmatpush2.bf16.msra.mxu0 0
      %4885 = vmatprep.subr.bf16.mxu0 0
      %4886 = vmatpush2.bf16.msra.mxu0 0
      %4887 = vmatprep.subr.bf16.mxu0 0
      %4888 = vmatpush2.bf16.msra.mxu0 0
      %4889 = vmatprep.mubr.bf16.mxu0 0
      %4890 = vmatmul.mubr.bf16.gmra.mxu0 %v4834
      %v4891 = vpop.f32.mrf.mxu0
      %v4892 = vadd.f32 0.0, %v4891
      %v4893 = vpop.f32.mrf.mxu0
      %v4894 = vadd.f32 0.0, %v4893
      %v4895 = vpop.f32.mrf.mxu0
      %v4896 = vadd.f32 0.0, %v4895
      %v4897 = vpop.f32.mrf.mxu0
      %v4898 = vadd.f32 0.0, %v4897
      %4899 = vmatprep.mubr.bf16.mxu0 0
      %4900 = vmatmul.mubr.bf16.gmra.mxu0 %v4837
      %v4901 = vpop.f32.mrf.mxu0
      %v4902 = vadd.f32 0.0, %v4901
      %v4903 = vpop.f32.mrf.mxu0
      %v4904 = vadd.f32 0.0, %v4903
      %v4905 = vpop.f32.mrf.mxu0
      %v4906 = vadd.f32 0.0, %v4905
      %v4907 = vpop.f32.mrf.mxu0
      %v4908 = vadd.f32 0.0, %v4907
      %4909 = vmatprep.mubr.bf16.mxu0 0
      %4910 = vmatmul.mubr.bf16.gmra.mxu0 %v4840
      %v4911 = vpop.f32.mrf.mxu0
      %v4912 = vadd.f32 0.0, %v4911
      %v4913 = vpop.f32.mrf.mxu0
      %v4914 = vadd.f32 0.0, %v4913
      %v4915 = vpop.f32.mrf.mxu0
      %v4916 = vadd.f32 0.0, %v4915
      %v4917 = vpop.f32.mrf.mxu0
      %v4918 = vadd.f32 0.0, %v4917
      %4919 = vmatprep.mubr.bf16.mxu0 0
      %4920 = vmatmul.mubr.bf16.gmra.mxu0 %v4843
      %v4921 = vpop.f32.mrf.mxu0
      %v4922 = vadd.f32 0.0, %v4921
      %v4923 = vpop.f32.mrf.mxu0
      %v4924 = vadd.f32 0.0, %v4923
      %v4925 = vpop.f32.mrf.mxu0
      %v4926 = vadd.f32 0.0, %v4925
      %v4927 = vpop.f32.mrf.mxu0
      %v4928 = vadd.f32 0.0, %v4927
      %4929 = vmatprep.mubr.bf16.mxu0 0
      %4930 = vmatmul.mubr.bf16.gmra.mxu0 %v4846
      %v4931 = vpop.f32.mrf.mxu0
      %v4932 = vadd.f32 0.0, %v4931
      %v4933 = vpop.f32.mrf.mxu0
      %v4934 = vadd.f32 0.0, %v4933
      %v4935 = vpop.f32.mrf.mxu0
      %v4936 = vadd.f32 0.0, %v4935
      %v4937 = vpop.f32.mrf.mxu0
      %v4938 = vadd.f32 0.0, %v4937
      %4939 = vmatprep.mubr.bf16.mxu0 0
      %4940 = vmatmul.mubr.bf16.gmra.mxu0 %v4849
      %v4941 = vpop.f32.mrf.mxu0
      %v4942 = vadd.f32 0.0, %v4941
      %v4943 = vpop.f32.mrf.mxu0
      %v4944 = vadd.f32 0.0, %v4943
      %v4945 = vpop.f32.mrf.mxu0
      %v4946 = vadd.f32 0.0, %v4945
      %v4947 = vpop.f32.mrf.mxu0
      %v4948 = vadd.f32 0.0, %v4947
      %4949 = vdwg.mxu0
      %v4950 = vmul.f32 %v4892, %v4892
      %v4951 = vmul.f32 %v4894, %v4894
      %v4952 = vmul.f32 %v4896, %v4896
      %v4953 = vmul.f32 %v4898, %v4898
      %v4954 = vmul.f32 %v4902, %v4902
      %v4955 = vmul.f32 %v4904, %v4904
      %v4956 = vmul.f32 %v4906, %v4906
      %v4957 = vmul.f32 %v4908, %v4908
      %v4958 = vmul.f32 %v4912, %v4912
      %v4959 = vmul.f32 %v4914, %v4914
      %v4960 = vmul.f32 %v4916, %v4916
      %v4961 = vmul.f32 %v4918, %v4918
      %v4962 = vmul.f32 %v4922, %v4922
      %v4963 = vmul.f32 %v4924, %v4924
      %v4964 = vmul.f32 %v4926, %v4926
      %v4965 = vmul.f32 %v4928, %v4928
      %v4966 = vmul.f32 %v4932, %v4932
      %v4967 = vmul.f32 %v4934, %v4934
      %v4968 = vmul.f32 %v4936, %v4936
      %v4969 = vmul.f32 %v4938, %v4938
      %v4970 = vmul.f32 %v4942, %v4942
      %v4971 = vmul.f32 %v4944, %v4944
      %v4972 = vmul.f32 %v4946, %v4946
      %v4973 = vmul.f32 %v4948, %v4948
      %v4974 = vmul.f32 %v4892, %v4950
      %v4975 = vmul.f32 %v4894, %v4951
      %v4976 = vmul.f32 %v4896, %v4952
      %v4977 = vmul.f32 %v4898, %v4953
      %v4978 = vmul.f32 %v4902, %v4954
      %v4979 = vmul.f32 %v4904, %v4955
      %v4980 = vmul.f32 %v4906, %v4956
      %v4981 = vmul.f32 %v4908, %v4957
      %v4982 = vmul.f32 %v4912, %v4958
      %v4983 = vmul.f32 %v4914, %v4959
      %v4984 = vmul.f32 %v4916, %v4960
      %v4985 = vmul.f32 %v4918, %v4961
      %v4986 = vmul.f32 %v4922, %v4962
      %v4987 = vmul.f32 %v4924, %v4963
      %v4988 = vmul.f32 %v4926, %v4964
      %v4989 = vmul.f32 %v4928, %v4965
      %v4990 = vmul.f32 %v4932, %v4966
      %v4991 = vmul.f32 %v4934, %v4967
      %v4992 = vmul.f32 %v4936, %v4968
      %v4993 = vmul.f32 %v4938, %v4969
      %v4994 = vmul.f32 %v4942, %v4970
      %v4995 = vmul.f32 %v4944, %v4971
      %v4996 = vmul.f32 %v4946, %v4972
      %v4997 = vmul.f32 %v4948, %v4973
      %v4998 = vmul.f32 %v4974, 0.044715
      %v4999 = vmul.f32 %v4975, 0.044715
      %v5000 = vmul.f32 %v4976, 0.044715
      %v5001 = vmul.f32 %v4977, 0.044715
      %v5002 = vmul.f32 %v4978, 0.044715
      %v5003 = vmul.f32 %v4979, 0.044715
      %v5004 = vmul.f32 %v4980, 0.044715
      %v5005 = vmul.f32 %v4981, 0.044715
      %v5006 = vmul.f32 %v4982, 0.044715
      %v5007 = vmul.f32 %v4983, 0.044715
      %v5008 = vmul.f32 %v4984, 0.044715
      %v5009 = vmul.f32 %v4985, 0.044715
      %v5010 = vmul.f32 %v4986, 0.044715
      %v5011 = vmul.f32 %v4987, 0.044715
      %v5012 = vmul.f32 %v4988, 0.044715
      %v5013 = vmul.f32 %v4989, 0.044715
      %v5014 = vmul.f32 %v4990, 0.044715
      %v5015 = vmul.f32 %v4991, 0.044715
      %v5016 = vmul.f32 %v4992, 0.044715
      %v5017 = vmul.f32 %v4993, 0.044715
      %v5018 = vmul.f32 %v4994, 0.044715
      %v5019 = vmul.f32 %v4995, 0.044715
      %v5020 = vmul.f32 %v4996, 0.044715
      %v5021 = vmul.f32 %v4997, 0.044715
      %v5022 = vadd.f32 %v4892, %v4998
      %v5023 = vadd.f32 %v4894, %v4999
      %v5024 = vadd.f32 %v4896, %v5000
      %v5025 = vadd.f32 %v4898, %v5001
      %v5026 = vadd.f32 %v4902, %v5002
      %v5027 = vadd.f32 %v4904, %v5003
      %v5028 = vadd.f32 %v4906, %v5004
      %v5029 = vadd.f32 %v4908, %v5005
      %v5030 = vadd.f32 %v4912, %v5006
      %v5031 = vadd.f32 %v4914, %v5007
      %v5032 = vadd.f32 %v4916, %v5008
      %v5033 = vadd.f32 %v4918, %v5009
      %v5034 = vadd.f32 %v4922, %v5010
      %v5035 = vadd.f32 %v4924, %v5011
      %v5036 = vadd.f32 %v4926, %v5012
      %v5037 = vadd.f32 %v4928, %v5013
      %v5038 = vadd.f32 %v4932, %v5014
      %v5039 = vadd.f32 %v4934, %v5015
      %v5040 = vadd.f32 %v4936, %v5016
      %v5041 = vadd.f32 %v4938, %v5017
      %v5042 = vadd.f32 %v4942, %v5018
      %v5043 = vadd.f32 %v4944, %v5019
      %v5044 = vadd.f32 %v4946, %v5020
      %v5045 = vadd.f32 %v4948, %v5021
      %v5046 = vmul.f32 %v5022, 0.7978846
      %v5047 = vmul.f32 %v5023, 0.7978846
      %v5048 = vmul.f32 %v5024, 0.7978846
      %v5049 = vmul.f32 %v5025, 0.7978846
      %v5050 = vmul.f32 %v5026, 0.7978846
      %v5051 = vmul.f32 %v5027, 0.7978846
      %v5052 = vmul.f32 %v5028, 0.7978846
      %v5053 = vmul.f32 %v5029, 0.7978846
      %v5054 = vmul.f32 %v5030, 0.7978846
      %v5055 = vmul.f32 %v5031, 0.7978846
      %v5056 = vmul.f32 %v5032, 0.7978846
      %v5057 = vmul.f32 %v5033, 0.7978846
      %v5058 = vmul.f32 %v5034, 0.7978846
      %v5059 = vmul.f32 %v5035, 0.7978846
      %v5060 = vmul.f32 %v5036, 0.7978846
      %v5061 = vmul.f32 %v5037, 0.7978846
      %v5062 = vmul.f32 %v5038, 0.7978846
      %v5063 = vmul.f32 %v5039, 0.7978846
      %v5064 = vmul.f32 %v5040, 0.7978846
      %v5065 = vmul.f32 %v5041, 0.7978846
      %v5066 = vmul.f32 %v5042, 0.7978846
      %v5067 = vmul.f32 %v5043, 0.7978846
      %v5068 = vmul.f32 %v5044, 0.7978846
      %v5069 = vmul.f32 %v5045, 0.7978846
      %v5070 = vtanh.pop %v5046
      %v5071 = vtanh.pop %v5047
      %v5072 = vtanh.pop %v5048
      %v5073 = vtanh.pop %v5049
      %v5074 = vtanh.pop %v5050
      %v5075 = vtanh.pop %v5051
      %v5076 = vtanh.pop %v5052
      %v5077 = vtanh.pop %v5053
      %v5078 = vtanh.pop %v5054
      %v5079 = vtanh.pop %v5055
      %v5080 = vtanh.pop %v5056
      %v5081 = vtanh.pop %v5057
      %v5082 = vtanh.pop %v5058
      %v5083 = vtanh.pop %v5059
      %v5084 = vtanh.pop %v5060
      %v5085 = vtanh.pop %v5061
      %v5086 = vtanh.pop %v5062
      %v5087 = vtanh.pop %v5063
      %v5088 = vtanh.pop %v5064
      %v5089 = vtanh.pop %v5065
      %v5090 = vtanh.pop %v5066
      %v5091 = vtanh.pop %v5067
      %v5092 = vtanh.pop %v5068
      %v5093 = vtanh.pop %v5069
      %v5094 = vadd.f32 %v5070, 1.0
      %v5095 = vadd.f32 %v5071, 1.0
      %v5096 = vadd.f32 %v5072, 1.0
      %v5097 = vadd.f32 %v5073, 1.0
      %v5098 = vadd.f32 %v5074, 1.0
      %v5099 = vadd.f32 %v5075, 1.0
      %v5100 = vadd.f32 %v5076, 1.0
      %v5101 = vadd.f32 %v5077, 1.0
      %v5102 = vadd.f32 %v5078, 1.0
      %v5103 = vadd.f32 %v5079, 1.0
      %v5104 = vadd.f32 %v5080, 1.0
      %v5105 = vadd.f32 %v5081, 1.0
      %v5106 = vadd.f32 %v5082, 1.0
      %v5107 = vadd.f32 %v5083, 1.0
      %v5108 = vadd.f32 %v5084, 1.0
      %v5109 = vadd.f32 %v5085, 1.0
      %v5110 = vadd.f32 %v5086, 1.0
      %v5111 = vadd.f32 %v5087, 1.0
      %v5112 = vadd.f32 %v5088, 1.0
      %v5113 = vadd.f32 %v5089, 1.0
      %v5114 = vadd.f32 %v5090, 1.0
      %v5115 = vadd.f32 %v5091, 1.0
      %v5116 = vadd.f32 %v5092, 1.0
      %v5117 = vadd.f32 %v5093, 1.0
      %v5118 = vmul.f32 %v5094, 0.5
      %v5119 = vmul.f32 %v5095, 0.5
      %v5120 = vmul.f32 %v5096, 0.5
      %v5121 = vmul.f32 %v5097, 0.5
      %v5122 = vmul.f32 %v5098, 0.5
      %v5123 = vmul.f32 %v5099, 0.5
      %v5124 = vmul.f32 %v5100, 0.5
      %v5125 = vmul.f32 %v5101, 0.5
      %v5126 = vmul.f32 %v5102, 0.5
      %v5127 = vmul.f32 %v5103, 0.5
      %v5128 = vmul.f32 %v5104, 0.5
      %v5129 = vmul.f32 %v5105, 0.5
      %v5130 = vmul.f32 %v5106, 0.5
      %v5131 = vmul.f32 %v5107, 0.5
      %v5132 = vmul.f32 %v5108, 0.5
      %v5133 = vmul.f32 %v5109, 0.5
      %v5134 = vmul.f32 %v5110, 0.5
      %v5135 = vmul.f32 %v5111, 0.5
      %v5136 = vmul.f32 %v5112, 0.5
      %v5137 = vmul.f32 %v5113, 0.5
      %v5138 = vmul.f32 %v5114, 0.5
      %v5139 = vmul.f32 %v5115, 0.5
      %v5140 = vmul.f32 %v5116, 0.5
      %v5141 = vmul.f32 %v5117, 0.5
      %v5142 = vmul.f32 %v4892, %v5118
      %v5143 = vmul.f32 %v4894, %v5119
      %v5144 = vmul.f32 %v4896, %v5120
      %v5145 = vmul.f32 %v4898, %v5121
      %v5146 = vmul.f32 %v4902, %v5122
      %v5147 = vmul.f32 %v4904, %v5123
      %v5148 = vmul.f32 %v4906, %v5124
      %v5149 = vmul.f32 %v4908, %v5125
      %v5150 = vmul.f32 %v4912, %v5126
      %v5151 = vmul.f32 %v4914, %v5127
      %v5152 = vmul.f32 %v4916, %v5128
      %v5153 = vmul.f32 %v4918, %v5129
      %v5154 = vmul.f32 %v4922, %v5130
      %v5155 = vmul.f32 %v4924, %v5131
      %v5156 = vmul.f32 %v4926, %v5132
      %v5157 = vmul.f32 %v4928, %v5133
      %v5158 = vmul.f32 %v4932, %v5134
      %v5159 = vmul.f32 %v4934, %v5135
      %v5160 = vmul.f32 %v4936, %v5136
      %v5161 = vmul.f32 %v4938, %v5137
      %v5162 = vmul.f32 %v4942, %v5138
      %v5163 = vmul.f32 %v4944, %v5139
      %v5164 = vmul.f32 %v4946, %v5140
      %v5165 = vmul.f32 %v4948, %v5141
      %v5166 = vpack.c.bf16 %v5144, %v5142
      %v5167 = vpack.c.bf16 %v5145, %v5143
      %v5168 = vpack.c.bf16 %v5148, %v5146
      %v5169 = vpack.c.bf16 %v5149, %v5147
      %v5170 = vpack.c.bf16 %v5152, %v5150
      %v5171 = vpack.c.bf16 %v5153, %v5151
      %v5172 = vpack.c.bf16 %v5156, %v5154
      %v5173 = vpack.c.bf16 %v5157, %v5155
      %v5174 = vpack.c.bf16 %v5160, %v5158
      %v5175 = vpack.c.bf16 %v5161, %v5159
      %v5176 = vpack.c.bf16 %v5164, %v5162
      %v5177 = vpack.c.bf16 %v5165, %v5163
      %v5179 = vsel %vm797, %v4800, 0
      %5181 = vmatprep.subr.bf16.mxu0 0
      %5182 = vmatpush1.bf16.msra.mxu0 0
      %5183 = vmatprep.subr.bf16.mxu0 0
      %5184 = vmatpush1.bf16.msra.mxu0 0
      %5185 = vmatprep.subr.bf16.mxu0 %v5177
      %5186 = vmatpush1.bf16.msra.mxu0 %v5176
      %5187 = vmatprep.subr.bf16.mxu0 %v5175
      %5188 = vmatpush1.bf16.msra.mxu0 %v5174
      %5189 = vmatprep.subr.bf16.mxu0 %v5173
      %5190 = vmatpush1.bf16.msra.mxu0 %v5172
      %5191 = vmatprep.subr.bf16.mxu0 %v5171
      %5192 = vmatpush1.bf16.msra.mxu0 %v5170
      %5193 = vmatprep.subr.bf16.mxu0 %v5169
      %5194 = vmatpush1.bf16.msra.mxu0 %v5168
      %5195 = vmatprep.subr.bf16.mxu0 %v5167
      %5196 = vmatpush1.bf16.msra.mxu0 %v5166
      %5197 = vmatprep.subr.bf16.mxu0 0
      %5198 = vmatpush2.bf16.msra.mxu0 0
      %5199 = vmatprep.subr.bf16.mxu0 0
      %5200 = vmatpush2.bf16.msra.mxu0 0
      %5201 = vmatprep.subr.bf16.mxu0 0
      %5202 = vmatpush2.bf16.msra.mxu0 0
      %5203 = vmatprep.subr.bf16.mxu0 0
      %5204 = vmatpush2.bf16.msra.mxu0 0
      %5205 = vmatprep.subr.bf16.mxu0 0
      %5206 = vmatpush2.bf16.msra.mxu0 0
      %5207 = vmatprep.subr.bf16.mxu0 0
      %5208 = vmatpush2.bf16.msra.mxu0 0
      %5209 = vmatprep.subr.bf16.mxu0 0
      %5210 = vmatpush2.bf16.msra.mxu0 0
      %5211 = vmatprep.subr.bf16.mxu0 0
      %5212 = vmatpush2.bf16.msra.mxu0 0
      %5213 = vmatprep.mubr.bf16.mxu0 0
      %5214 = vmatmul.mubr.bf16.gmra.mxu0 %v5179
      %v5215 = vpop.f32.mrf.mxu0
      %v5216 = vadd.f32 0.0, %v5215
      %v5217 = vpop.f32.mrf.mxu0
      %v5218 = vadd.f32 0.0, %v5217
      %v5219 = vpop.f32.mrf.mxu0
      %v5220 = vpop.f32.mrf.mxu0
      %5221 = vdwg.mxu0
      %v5222 = vadd.f32 %v4784, %v5216
      %v5223 = vadd.f32 %v4785, %v5218
      %s5224 = scalar_lea.vmem %s6, 12
      %v5225 = vld [vmem:[%s5224] sm:$0x7]
      %s5226 = scalar_lea.vmem %s7, 12
      %v5227 = vld [vmem:[%s5226] sm:$0x7]
      %v5228 = vpack.c.bf16 %v5222, %v5222
      %v5229 = vpack.c.bf16 %v5223, %v5223
      %v5231 = vsel %vm450, %v5227, 0
      %v5234 = vsel %vm469, %v5228, 0
      %v5237 = vsel %vm469, %v5229, 0
      %5239 = vmatprep.subr.bf16.mxu0 0
      %5240 = vmatpush1.bf16.msra.mxu0 0
      %5241 = vmatprep.subr.bf16.mxu0 0
      %5242 = vmatpush1.bf16.msra.mxu0 0
      %5243 = vmatprep.subr.bf16.mxu0 0
      %5244 = vmatpush1.bf16.msra.mxu0 0
      %5245 = vmatprep.subr.bf16.mxu0 0
      %5246 = vmatpush1.bf16.msra.mxu0 0
      %5247 = vmatprep.subr.bf16.mxu0 0
      %5248 = vmatpush1.bf16.msra.mxu0 0
      %5249 = vmatprep.subr.bf16.mxu0 0
      %5250 = vmatpush1.bf16.msra.mxu0 0
      %5251 = vmatprep.subr.bf16.mxu0 0
      %5252 = vmatpush1.bf16.msra.mxu0 0
      %5253 = vmatprep.subr.bf16.mxu0 %v5237
      %5254 = vmatpush1.bf16.msra.mxu0 %v5234
      %5255 = vmatprep.subr.bf16.mxu0 0
      %5256 = vmatpush2.bf16.msra.mxu0 0
      %5257 = vmatprep.subr.bf16.mxu0 0
      %5258 = vmatpush2.bf16.msra.mxu0 0
      %5259 = vmatprep.subr.bf16.mxu0 0
      %5260 = vmatpush2.bf16.msra.mxu0 0
      %5261 = vmatprep.subr.bf16.mxu0 0
      %5262 = vmatpush2.bf16.msra.mxu0 0
      %5263 = vmatprep.subr.bf16.mxu0 0
      %5264 = vmatpush2.bf16.msra.mxu0 0
      %5265 = vmatprep.subr.bf16.mxu0 0
      %5266 = vmatpush2.bf16.msra.mxu0 0
      %5267 = vmatprep.subr.bf16.mxu0 0
      %5268 = vmatpush2.bf16.msra.mxu0 0
      %5269 = vmatprep.subr.bf16.mxu0 0
      %5270 = vmatpush2.bf16.msra.mxu0 0
      %5271 = vmatprep.mubr.bf16.mxu0 0
      %5272 = vmatmul.mubr.bf16.gmra.mxu0 %v5231
      %v5273 = vpop.f32.mrf.mxu0
      %v5274 = vadd.f32 0.0, %v5273
      %v5275 = vpop.f32.mrf.mxu0
      %v5276 = vadd.f32 0.0, %v5275
      %v5277 = vpop.f32.mrf.mxu0
      %v5278 = vpop.f32.mrf.mxu0
      %5279 = vdwg.mxu0
      %v5281 = vsel %vm450, %v5225, 0
      %5283 = vmatprep.subr.bf16.mxu0 0
      %5284 = vmatpush1.bf16.msra.mxu0 0
      %5285 = vmatprep.subr.bf16.mxu0 0
      %5286 = vmatpush1.bf16.msra.mxu0 0
      %5287 = vmatprep.subr.bf16.mxu0 0
      %5288 = vmatpush1.bf16.msra.mxu0 0
      %5289 = vmatprep.subr.bf16.mxu0 0
      %5290 = vmatpush1.bf16.msra.mxu0 0
      %5291 = vmatprep.subr.bf16.mxu0 0
      %5292 = vmatpush1.bf16.msra.mxu0 0
      %5293 = vmatprep.subr.bf16.mxu0 0
      %5294 = vmatpush1.bf16.msra.mxu0 0
      %5295 = vmatprep.subr.bf16.mxu0 0
      %5296 = vmatpush1.bf16.msra.mxu0 0
      %5297 = vmatprep.subr.bf16.mxu0 %v4417
      %5298 = vmatpush1.bf16.msra.mxu0 %v4414
      %5299 = vmatprep.subr.bf16.mxu0 0
      %5300 = vmatpush2.bf16.msra.mxu0 0
      %5301 = vmatprep.subr.bf16.mxu0 0
      %5302 = vmatpush2.bf16.msra.mxu0 0
      %5303 = vmatprep.subr.bf16.mxu0 0
      %5304 = vmatpush2.bf16.msra.mxu0 0
      %5305 = vmatprep.subr.bf16.mxu0 0
      %5306 = vmatpush2.bf16.msra.mxu0 0
      %5307 = vmatprep.subr.bf16.mxu0 0
      %5308 = vmatpush2.bf16.msra.mxu0 0
      %5309 = vmatprep.subr.bf16.mxu0 0
      %5310 = vmatpush2.bf16.msra.mxu0 0
      %5311 = vmatprep.subr.bf16.mxu0 0
      %5312 = vmatpush2.bf16.msra.mxu0 0
      %5313 = vmatprep.subr.bf16.mxu0 0
      %5314 = vmatpush2.bf16.msra.mxu0 0
      %5315 = vmatprep.mubr.bf16.mxu0 0
      %5316 = vmatmul.mubr.bf16.gmra.mxu0 %v5281
      %v5317 = vpop.f32.mrf.mxu0
      %v5318 = vadd.f32 %v5274, %v5317
      %v5319 = vpop.f32.mrf.mxu0
      %v5320 = vadd.f32 %v5276, %v5319
      %v5321 = vpop.f32.mrf.mxu0
      %v5322 = vpop.f32.mrf.mxu0
      %5323 = vdwg.mxu0
      %s5324 = scalar_lea.vmem %s4, 384
      %v5325 = vld [vmem:[%s5324] sm:$0xf]
      %v5326 = vld [vmem:[%s5324 + $0x4] sm:$0xf]
      %v5327 = vld [vmem:[%s5324 + $0x8] sm:$0xf]
      %v5328 = vld [vmem:[%s5324 + $0xc] sm:$0xf]
      %v5329 = vld [vmem:[%s5324 + $0x10] sm:$0xf]
      %v5330 = vld [vmem:[%s5324 + $0x14] sm:$0xf]
      %v5331 = vld [vmem:[%s5324 + $0x18] sm:$0xf]
      %v5332 = vld [vmem:[%s5324 + $0x1c] sm:$0xf]
      %v5333 = vld [vmem:[%s5324 + $0x20] sm:$0xf]
      %v5334 = vld [vmem:[%s5324 + $0x24] sm:$0xf]
      %v5335 = vld [vmem:[%s5324 + $0x28] sm:$0xf]
      %v5336 = vld [vmem:[%s5324 + $0x2c] sm:$0xf]
      %s5337 = scalar_lea.vmem %s5, 32
      %v5338 = vld [vmem:[%s5337] sm:$0x7]
      %v5339 = vpack.c.bf16 %v5318, %v5318
      %v5340 = vpack.c.bf16 %v5320, %v5320
      %v5353 = vunpack.c.l.b16 %v5325
      %v5354 = vunpack.c.l.b16 %v5326
      %v5355 = vunpack.c.l.b16 %v5327
      %v5356 = vunpack.c.l.b16 %v5328
      %v5357 = vunpack.c.l.b16 %v5329
      %v5358 = vunpack.c.l.b16 %v5330
      %v5359 = vunpack.c.l.b16 %v5331
      %v5360 = vunpack.c.l.b16 %v5332
      %v5361 = vunpack.c.l.b16 %v5333
      %v5362 = vunpack.c.l.b16 %v5334
      %v5363 = vunpack.c.l.b16 %v5335
      %v5364 = vunpack.c.l.b16 %v5336
      %v5365 = vpack.c.b16 %v5354, %v5353
      %v5366 = vpack.c.b16 %v5356, %v5355
      %v5367 = vpack.c.b16 %v5358, %v5357
      %v5368 = vpack.c.b16 %v5360, %v5359
      %v5369 = vpack.c.b16 %v5362, %v5361
      %v5370 = vpack.c.b16 %v5364, %v5363
      %v5372 = vsel %vm450, %v5365, 0
      %v5375 = vsel %vm450, %v5366, 0
      %v5378 = vsel %vm450, %v5367, 0
      %v5381 = vsel %vm450, %v5368, 0
      %v5384 = vsel %vm450, %v5369, 0
      %v5387 = vsel %vm450, %v5370, 0
      %v5390 = vsel %vm469, %v5339, 0
      %v5393 = vsel %vm469, %v5340, 0
      %5395 = vmatprep.subr.bf16.mxu0 0
      %5396 = vmatpush1.bf16.msra.mxu0 0
      %5397 = vmatprep.subr.bf16.mxu0 0
      %5398 = vmatpush1.bf16.msra.mxu0 0
      %5399 = vmatprep.subr.bf16.mxu0 0
      %5400 = vmatpush1.bf16.msra.mxu0 0
      %5401 = vmatprep.subr.bf16.mxu0 0
      %5402 = vmatpush1.bf16.msra.mxu0 0
      %5403 = vmatprep.subr.bf16.mxu0 0
      %5404 = vmatpush1.bf16.msra.mxu0 0
      %5405 = vmatprep.subr.bf16.mxu0 0
      %5406 = vmatpush1.bf16.msra.mxu0 0
      %5407 = vmatprep.subr.bf16.mxu0 0
      %5408 = vmatpush1.bf16.msra.mxu0 0
      %5409 = vmatprep.subr.bf16.mxu0 %v5393
      %5410 = vmatpush1.bf16.msra.mxu0 %v5390
      %5411 = vmatprep.subr.bf16.mxu0 0
      %5412 = vmatpush2.bf16.msra.mxu0 0
      %5413 = vmatprep.subr.bf16.mxu0 0
      %5414 = vmatpush2.bf16.msra.mxu0 0
      %5415 = vmatprep.subr.bf16.mxu0 0
      %5416 = vmatpush2.bf16.msra.mxu0 0
      %5417 = vmatprep.subr.bf16.mxu0 0
      %5418 = vmatpush2.bf16.msra.mxu0 0
      %5419 = vmatprep.subr.bf16.mxu0 0
      %5420 = vmatpush2.bf16.msra.mxu0 0
      %5421 = vmatprep.subr.bf16.mxu0 0
      %5422 = vmatpush2.bf16.msra.mxu0 0
      %5423 = vmatprep.subr.bf16.mxu0 0
      %5424 = vmatpush2.bf16.msra.mxu0 0
      %5425 = vmatprep.subr.bf16.mxu0 0
      %5426 = vmatpush2.bf16.msra.mxu0 0
      %5427 = vmatprep.mubr.bf16.mxu0 0
      %5428 = vmatmul.mubr.bf16.gmra.mxu0 %v5372
      %v5429 = vpop.f32.mrf.mxu0
      %v5430 = vadd.f32 0.0, %v5429
      %v5431 = vpop.f32.mrf.mxu0
      %v5432 = vadd.f32 0.0, %v5431
      %v5433 = vpop.f32.mrf.mxu0
      %v5434 = vadd.f32 0.0, %v5433
      %v5435 = vpop.f32.mrf.mxu0
      %v5436 = vadd.f32 0.0, %v5435
      %5437 = vmatprep.mubr.bf16.mxu0 0
      %5438 = vmatmul.mubr.bf16.gmra.mxu0 %v5375
      %v5439 = vpop.f32.mrf.mxu0
      %v5440 = vadd.f32 0.0, %v5439
      %v5441 = vpop.f32.mrf.mxu0
      %v5442 = vadd.f32 0.0, %v5441
      %v5443 = vpop.f32.mrf.mxu0
      %v5444 = vadd.f32 0.0, %v5443
      %v5445 = vpop.f32.mrf.mxu0
      %v5446 = vadd.f32 0.0, %v5445
      %5447 = vmatprep.mubr.bf16.mxu0 0
      %5448 = vmatmul.mubr.bf16.gmra.mxu0 %v5378
      %v5449 = vpop.f32.mrf.mxu0
      %v5450 = vadd.f32 0.0, %v5449
      %v5451 = vpop.f32.mrf.mxu0
      %v5452 = vadd.f32 0.0, %v5451
      %v5453 = vpop.f32.mrf.mxu0
      %v5454 = vadd.f32 0.0, %v5453
      %v5455 = vpop.f32.mrf.mxu0
      %v5456 = vadd.f32 0.0, %v5455
      %5457 = vmatprep.mubr.bf16.mxu0 0
      %5458 = vmatmul.mubr.bf16.gmra.mxu0 %v5381
      %v5459 = vpop.f32.mrf.mxu0
      %v5460 = vadd.f32 0.0, %v5459
      %v5461 = vpop.f32.mrf.mxu0
      %v5462 = vadd.f32 0.0, %v5461
      %v5463 = vpop.f32.mrf.mxu0
      %v5464 = vadd.f32 0.0, %v5463
      %v5465 = vpop.f32.mrf.mxu0
      %v5466 = vadd.f32 0.0, %v5465
      %5467 = vmatprep.mubr.bf16.mxu0 0
      %5468 = vmatmul.mubr.bf16.gmra.mxu0 %v5384
      %v5469 = vpop.f32.mrf.mxu0
      %v5470 = vadd.f32 0.0, %v5469
      %v5471 = vpop.f32.mrf.mxu0
      %v5472 = vadd.f32 0.0, %v5471
      %v5473 = vpop.f32.mrf.mxu0
      %v5474 = vadd.f32 0.0, %v5473
      %v5475 = vpop.f32.mrf.mxu0
      %v5476 = vadd.f32 0.0, %v5475
      %5477 = vmatprep.mubr.bf16.mxu0 0
      %5478 = vmatmul.mubr.bf16.gmra.mxu0 %v5387
      %v5479 = vpop.f32.mrf.mxu0
      %v5480 = vadd.f32 0.0, %v5479
      %v5481 = vpop.f32.mrf.mxu0
      %v5482 = vadd.f32 0.0, %v5481
      %v5483 = vpop.f32.mrf.mxu0
      %v5484 = vadd.f32 0.0, %v5483
      %v5485 = vpop.f32.mrf.mxu0
      %v5486 = vadd.f32 0.0, %v5485
      %5487 = vdwg.mxu0
      %v5488 = vmul.f32 %v5430, %v5430
      %v5489 = vmul.f32 %v5432, %v5432
      %v5490 = vmul.f32 %v5434, %v5434
      %v5491 = vmul.f32 %v5436, %v5436
      %v5492 = vmul.f32 %v5440, %v5440
      %v5493 = vmul.f32 %v5442, %v5442
      %v5494 = vmul.f32 %v5444, %v5444
      %v5495 = vmul.f32 %v5446, %v5446
      %v5496 = vmul.f32 %v5450, %v5450
      %v5497 = vmul.f32 %v5452, %v5452
      %v5498 = vmul.f32 %v5454, %v5454
      %v5499 = vmul.f32 %v5456, %v5456
      %v5500 = vmul.f32 %v5460, %v5460
      %v5501 = vmul.f32 %v5462, %v5462
      %v5502 = vmul.f32 %v5464, %v5464
      %v5503 = vmul.f32 %v5466, %v5466
      %v5504 = vmul.f32 %v5470, %v5470
      %v5505 = vmul.f32 %v5472, %v5472
      %v5506 = vmul.f32 %v5474, %v5474
      %v5507 = vmul.f32 %v5476, %v5476
      %v5508 = vmul.f32 %v5480, %v5480
      %v5509 = vmul.f32 %v5482, %v5482
      %v5510 = vmul.f32 %v5484, %v5484
      %v5511 = vmul.f32 %v5486, %v5486
      %v5512 = vmul.f32 %v5430, %v5488
      %v5513 = vmul.f32 %v5432, %v5489
      %v5514 = vmul.f32 %v5434, %v5490
      %v5515 = vmul.f32 %v5436, %v5491
      %v5516 = vmul.f32 %v5440, %v5492
      %v5517 = vmul.f32 %v5442, %v5493
      %v5518 = vmul.f32 %v5444, %v5494
      %v5519 = vmul.f32 %v5446, %v5495
      %v5520 = vmul.f32 %v5450, %v5496
      %v5521 = vmul.f32 %v5452, %v5497
      %v5522 = vmul.f32 %v5454, %v5498
      %v5523 = vmul.f32 %v5456, %v5499
      %v5524 = vmul.f32 %v5460, %v5500
      %v5525 = vmul.f32 %v5462, %v5501
      %v5526 = vmul.f32 %v5464, %v5502
      %v5527 = vmul.f32 %v5466, %v5503
      %v5528 = vmul.f32 %v5470, %v5504
      %v5529 = vmul.f32 %v5472, %v5505
      %v5530 = vmul.f32 %v5474, %v5506
      %v5531 = vmul.f32 %v5476, %v5507
      %v5532 = vmul.f32 %v5480, %v5508
      %v5533 = vmul.f32 %v5482, %v5509
      %v5534 = vmul.f32 %v5484, %v5510
      %v5535 = vmul.f32 %v5486, %v5511
      %v5536 = vmul.f32 %v5512, 0.044715
      %v5537 = vmul.f32 %v5513, 0.044715
      %v5538 = vmul.f32 %v5514, 0.044715
      %v5539 = vmul.f32 %v5515, 0.044715
      %v5540 = vmul.f32 %v5516, 0.044715
      %v5541 = vmul.f32 %v5517, 0.044715
      %v5542 = vmul.f32 %v5518, 0.044715
      %v5543 = vmul.f32 %v5519, 0.044715
      %v5544 = vmul.f32 %v5520, 0.044715
      %v5545 = vmul.f32 %v5521, 0.044715
      %v5546 = vmul.f32 %v5522, 0.044715
      %v5547 = vmul.f32 %v5523, 0.044715
      %v5548 = vmul.f32 %v5524, 0.044715
      %v5549 = vmul.f32 %v5525, 0.044715
      %v5550 = vmul.f32 %v5526, 0.044715
      %v5551 = vmul.f32 %v5527, 0.044715
      %v5552 = vmul.f32 %v5528, 0.044715
      %v5553 = vmul.f32 %v5529, 0.044715
      %v5554 = vmul.f32 %v5530, 0.044715
      %v5555 = vmul.f32 %v5531, 0.044715
      %v5556 = vmul.f32 %v5532, 0.044715
      %v5557 = vmul.f32 %v5533, 0.044715
      %v5558 = vmul.f32 %v5534, 0.044715
      %v5559 = vmul.f32 %v5535, 0.044715
      %v5560 = vadd.f32 %v5430, %v5536
      %v5561 = vadd.f32 %v5432, %v5537
      %v5562 = vadd.f32 %v5434, %v5538
      %v5563 = vadd.f32 %v5436, %v5539
      %v5564 = vadd.f32 %v5440, %v5540
      %v5565 = vadd.f32 %v5442, %v5541
      %v5566 = vadd.f32 %v5444, %v5542
      %v5567 = vadd.f32 %v5446, %v5543
      %v5568 = vadd.f32 %v5450, %v5544
      %v5569 = vadd.f32 %v5452, %v5545
      %v5570 = vadd.f32 %v5454, %v5546
      %v5571 = vadd.f32 %v5456, %v5547
      %v5572 = vadd.f32 %v5460, %v5548
      %v5573 = vadd.f32 %v5462, %v5549
      %v5574 = vadd.f32 %v5464, %v5550
      %v5575 = vadd.f32 %v5466, %v5551
      %v5576 = vadd.f32 %v5470, %v5552
      %v5577 = vadd.f32 %v5472, %v5553
      %v5578 = vadd.f32 %v5474, %v5554
      %v5579 = vadd.f32 %v5476, %v5555
      %v5580 = vadd.f32 %v5480, %v5556
      %v5581 = vadd.f32 %v5482, %v5557
      %v5582 = vadd.f32 %v5484, %v5558
      %v5583 = vadd.f32 %v5486, %v5559
      %v5584 = vmul.f32 %v5560, 0.7978846
      %v5585 = vmul.f32 %v5561, 0.7978846
      %v5586 = vmul.f32 %v5562, 0.7978846
      %v5587 = vmul.f32 %v5563, 0.7978846
      %v5588 = vmul.f32 %v5564, 0.7978846
      %v5589 = vmul.f32 %v5565, 0.7978846
      %v5590 = vmul.f32 %v5566, 0.7978846
      %v5591 = vmul.f32 %v5567, 0.7978846
      %v5592 = vmul.f32 %v5568, 0.7978846
      %v5593 = vmul.f32 %v5569, 0.7978846
      %v5594 = vmul.f32 %v5570, 0.7978846
      %v5595 = vmul.f32 %v5571, 0.7978846
      %v5596 = vmul.f32 %v5572, 0.7978846
      %v5597 = vmul.f32 %v5573, 0.7978846
      %v5598 = vmul.f32 %v5574, 0.7978846
      %v5599 = vmul.f32 %v5575, 0.7978846
      %v5600 = vmul.f32 %v5576, 0.7978846
      %v5601 = vmul.f32 %v5577, 0.7978846
      %v5602 = vmul.f32 %v5578, 0.7978846
      %v5603 = vmul.f32 %v5579, 0.7978846
      %v5604 = vmul.f32 %v5580, 0.7978846
      %v5605 = vmul.f32 %v5581, 0.7978846
      %v5606 = vmul.f32 %v5582, 0.7978846
      %v5607 = vmul.f32 %v5583, 0.7978846
      %v5608 = vtanh.pop %v5584
      %v5609 = vtanh.pop %v5585
      %v5610 = vtanh.pop %v5586
      %v5611 = vtanh.pop %v5587
      %v5612 = vtanh.pop %v5588
      %v5613 = vtanh.pop %v5589
      %v5614 = vtanh.pop %v5590
      %v5615 = vtanh.pop %v5591
      %v5616 = vtanh.pop %v5592
      %v5617 = vtanh.pop %v5593
      %v5618 = vtanh.pop %v5594
      %v5619 = vtanh.pop %v5595
      %v5620 = vtanh.pop %v5596
      %v5621 = vtanh.pop %v5597
      %v5622 = vtanh.pop %v5598
      %v5623 = vtanh.pop %v5599
      %v5624 = vtanh.pop %v5600
      %v5625 = vtanh.pop %v5601
      %v5626 = vtanh.pop %v5602
      %v5627 = vtanh.pop %v5603
      %v5628 = vtanh.pop %v5604
      %v5629 = vtanh.pop %v5605
      %v5630 = vtanh.pop %v5606
      %v5631 = vtanh.pop %v5607
      %v5632 = vadd.f32 %v5608, 1.0
      %v5633 = vadd.f32 %v5609, 1.0
      %v5634 = vadd.f32 %v5610, 1.0
      %v5635 = vadd.f32 %v5611, 1.0
      %v5636 = vadd.f32 %v5612, 1.0
      %v5637 = vadd.f32 %v5613, 1.0
      %v5638 = vadd.f32 %v5614, 1.0
      %v5639 = vadd.f32 %v5615, 1.0
      %v5640 = vadd.f32 %v5616, 1.0
      %v5641 = vadd.f32 %v5617, 1.0
      %v5642 = vadd.f32 %v5618, 1.0
      %v5643 = vadd.f32 %v5619, 1.0
      %v5644 = vadd.f32 %v5620, 1.0
      %v5645 = vadd.f32 %v5621, 1.0
      %v5646 = vadd.f32 %v5622, 1.0
      %v5647 = vadd.f32 %v5623, 1.0
      %v5648 = vadd.f32 %v5624, 1.0
      %v5649 = vadd.f32 %v5625, 1.0
      %v5650 = vadd.f32 %v5626, 1.0
      %v5651 = vadd.f32 %v5627, 1.0
      %v5652 = vadd.f32 %v5628, 1.0
      %v5653 = vadd.f32 %v5629, 1.0
      %v5654 = vadd.f32 %v5630, 1.0
      %v5655 = vadd.f32 %v5631, 1.0
      %v5656 = vmul.f32 %v5632, 0.5
      %v5657 = vmul.f32 %v5633, 0.5
      %v5658 = vmul.f32 %v5634, 0.5
      %v5659 = vmul.f32 %v5635, 0.5
      %v5660 = vmul.f32 %v5636, 0.5
      %v5661 = vmul.f32 %v5637, 0.5
      %v5662 = vmul.f32 %v5638, 0.5
      %v5663 = vmul.f32 %v5639, 0.5
      %v5664 = vmul.f32 %v5640, 0.5
      %v5665 = vmul.f32 %v5641, 0.5
      %v5666 = vmul.f32 %v5642, 0.5
      %v5667 = vmul.f32 %v5643, 0.5
      %v5668 = vmul.f32 %v5644, 0.5
      %v5669 = vmul.f32 %v5645, 0.5
      %v5670 = vmul.f32 %v5646, 0.5
      %v5671 = vmul.f32 %v5647, 0.5
      %v5672 = vmul.f32 %v5648, 0.5
      %v5673 = vmul.f32 %v5649, 0.5
      %v5674 = vmul.f32 %v5650, 0.5
      %v5675 = vmul.f32 %v5651, 0.5
      %v5676 = vmul.f32 %v5652, 0.5
      %v5677 = vmul.f32 %v5653, 0.5
      %v5678 = vmul.f32 %v5654, 0.5
      %v5679 = vmul.f32 %v5655, 0.5
      %v5680 = vmul.f32 %v5430, %v5656
      %v5681 = vmul.f32 %v5432, %v5657
      %v5682 = vmul.f32 %v5434, %v5658
      %v5683 = vmul.f32 %v5436, %v5659
      %v5684 = vmul.f32 %v5440, %v5660
      %v5685 = vmul.f32 %v5442, %v5661
      %v5686 = vmul.f32 %v5444, %v5662
      %v5687 = vmul.f32 %v5446, %v5663
      %v5688 = vmul.f32 %v5450, %v5664
      %v5689 = vmul.f32 %v5452, %v5665
      %v5690 = vmul.f32 %v5454, %v5666
      %v5691 = vmul.f32 %v5456, %v5667
      %v5692 = vmul.f32 %v5460, %v5668
      %v5693 = vmul.f32 %v5462, %v5669
      %v5694 = vmul.f32 %v5464, %v5670
      %v5695 = vmul.f32 %v5466, %v5671
      %v5696 = vmul.f32 %v5470, %v5672
      %v5697 = vmul.f32 %v5472, %v5673
      %v5698 = vmul.f32 %v5474, %v5674
      %v5699 = vmul.f32 %v5476, %v5675
      %v5700 = vmul.f32 %v5480, %v5676
      %v5701 = vmul.f32 %v5482, %v5677
      %v5702 = vmul.f32 %v5484, %v5678
      %v5703 = vmul.f32 %v5486, %v5679
      %v5704 = vpack.c.bf16 %v5682, %v5680
      %v5705 = vpack.c.bf16 %v5683, %v5681
      %v5706 = vpack.c.bf16 %v5686, %v5684
      %v5707 = vpack.c.bf16 %v5687, %v5685
      %v5708 = vpack.c.bf16 %v5690, %v5688
      %v5709 = vpack.c.bf16 %v5691, %v5689
      %v5710 = vpack.c.bf16 %v5694, %v5692
      %v5711 = vpack.c.bf16 %v5695, %v5693
      %v5712 = vpack.c.bf16 %v5698, %v5696
      %v5713 = vpack.c.bf16 %v5699, %v5697
      %v5714 = vpack.c.bf16 %v5702, %v5700
      %v5715 = vpack.c.bf16 %v5703, %v5701
      %v5717 = vsel %vm797, %v5338, 0
      %5719 = vmatprep.subr.bf16.mxu0 0
      %5720 = vmatpush1.bf16.msra.mxu0 0
      %5721 = vmatprep.subr.bf16.mxu0 0
      %5722 = vmatpush1.bf16.msra.mxu0 0
      %5723 = vmatprep.subr.bf16.mxu0 %v5715
      %5724 = vmatpush1.bf16.msra.mxu0 %v5714
      %5725 = vmatprep.subr.bf16.mxu0 %v5713
      %5726 = vmatpush1.bf16.msra.mxu0 %v5712
      %5727 = vmatprep.subr.bf16.mxu0 %v5711
      %5728 = vmatpush1.bf16.msra.mxu0 %v5710
      %5729 = vmatprep.subr.bf16.mxu0 %v5709
      %5730 = vmatpush1.bf16.msra.mxu0 %v5708
      %5731 = vmatprep.subr.bf16.mxu0 %v5707
      %5732 = vmatpush1.bf16.msra.mxu0 %v5706
      %5733 = vmatprep.subr.bf16.mxu0 %v5705
      %5734 = vmatpush1.bf16.msra.mxu0 %v5704
      %5735 = vmatprep.subr.bf16.mxu0 0
      %5736 = vmatpush2.bf16.msra.mxu0 0
      %5737 = vmatprep.subr.bf16.mxu0 0
      %5738 = vmatpush2.bf16.msra.mxu0 0
      %5739 = vmatprep.subr.bf16.mxu0 0
      %5740 = vmatpush2.bf16.msra.mxu0 0
      %5741 = vmatprep.subr.bf16.mxu0 0
      %5742 = vmatpush2.bf16.msra.mxu0 0
      %5743 = vmatprep.subr.bf16.mxu0 0
      %5744 = vmatpush2.bf16.msra.mxu0 0
      %5745 = vmatprep.subr.bf16.mxu0 0
      %5746 = vmatpush2.bf16.msra.mxu0 0
      %5747 = vmatprep.subr.bf16.mxu0 0
      %5748 = vmatpush2.bf16.msra.mxu0 0
      %5749 = vmatprep.subr.bf16.mxu0 0
      %5750 = vmatpush2.bf16.msra.mxu0 0
      %5751 = vmatprep.mubr.bf16.mxu0 0
      %5752 = vmatmul.mubr.bf16.gmra.mxu0 %v5717
      %v5753 = vpop.f32.mrf.mxu0
      %v5754 = vadd.f32 0.0, %v5753
      %v5755 = vpop.f32.mrf.mxu0
      %v5756 = vadd.f32 0.0, %v5755
      %v5757 = vpop.f32.mrf.mxu0
      %v5758 = vpop.f32.mrf.mxu0
      %5759 = vdwg.mxu0
      %v5760 = vadd.f32 %v5318, %v5754
      %v5761 = vadd.f32 %v5320, %v5756
      %s5762 = scalar_lea.vmem %s4, 336
      %v5763 = vld [vmem:[%s5762] sm:$0xf]
      %v5764 = vld [vmem:[%s5762 + $0x4] sm:$0xf]
      %v5765 = vld [vmem:[%s5762 + $0x8] sm:$0xf]
      %v5766 = vld [vmem:[%s5762 + $0xc] sm:$0xf]
      %v5767 = vld [vmem:[%s5762 + $0x10] sm:$0xf]
      %v5768 = vld [vmem:[%s5762 + $0x14] sm:$0xf]
      %v5769 = vld [vmem:[%s5762 + $0x18] sm:$0xf]
      %v5770 = vld [vmem:[%s5762 + $0x1c] sm:$0xf]
      %v5771 = vld [vmem:[%s5762 + $0x20] sm:$0xf]
      %v5772 = vld [vmem:[%s5762 + $0x24] sm:$0xf]
      %v5773 = vld [vmem:[%s5762 + $0x28] sm:$0xf]
      %v5774 = vld [vmem:[%s5762 + $0x2c] sm:$0xf]
      %s5775 = scalar_lea.vmem %s5, 28
      %v5776 = vld [vmem:[%s5775] sm:$0x7]
      %v5777 = vpack.c.bf16 %v5760, %v5760
      %v5778 = vpack.c.bf16 %v5761, %v5761
      %v5791 = vunpack.c.l.b16 %v5763
      %v5792 = vunpack.c.l.b16 %v5764
      %v5793 = vunpack.c.l.b16 %v5765
      %v5794 = vunpack.c.l.b16 %v5766
      %v5795 = vunpack.c.l.b16 %v5767
      %v5796 = vunpack.c.l.b16 %v5768
      %v5797 = vunpack.c.l.b16 %v5769
      %v5798 = vunpack.c.l.b16 %v5770
      %v5799 = vunpack.c.l.b16 %v5771
      %v5800 = vunpack.c.l.b16 %v5772
      %v5801 = vunpack.c.l.b16 %v5773
      %v5802 = vunpack.c.l.b16 %v5774
      %v5803 = vpack.c.b16 %v5792, %v5791
      %v5804 = vpack.c.b16 %v5794, %v5793
      %v5805 = vpack.c.b16 %v5796, %v5795
      %v5806 = vpack.c.b16 %v5798, %v5797
      %v5807 = vpack.c.b16 %v5800, %v5799
      %v5808 = vpack.c.b16 %v5802, %v5801
      %v5810 = vsel %vm450, %v5803, 0
      %v5813 = vsel %vm450, %v5804, 0
      %v5816 = vsel %vm450, %v5805, 0
      %v5819 = vsel %vm450, %v5806, 0
      %v5822 = vsel %vm450, %v5807, 0
      %v5825 = vsel %vm450, %v5808, 0
      %v5828 = vsel %vm469, %v5777, 0
      %v5831 = vsel %vm469, %v5778, 0
      %5833 = vmatprep.subr.bf16.mxu0 0
      %5834 = vmatpush1.bf16.msra.mxu0 0
      %5835 = vmatprep.subr.bf16.mxu0 0
      %5836 = vmatpush1.bf16.msra.mxu0 0
      %5837 = vmatprep.subr.bf16.mxu0 0
      %5838 = vmatpush1.bf16.msra.mxu0 0
      %5839 = vmatprep.subr.bf16.mxu0 0
      %5840 = vmatpush1.bf16.msra.mxu0 0
      %5841 = vmatprep.subr.bf16.mxu0 0
      %5842 = vmatpush1.bf16.msra.mxu0 0
      %5843 = vmatprep.subr.bf16.mxu0 0
      %5844 = vmatpush1.bf16.msra.mxu0 0
      %5845 = vmatprep.subr.bf16.mxu0 0
      %5846 = vmatpush1.bf16.msra.mxu0 0
      %5847 = vmatprep.subr.bf16.mxu0 %v5831
      %5848 = vmatpush1.bf16.msra.mxu0 %v5828
      %5849 = vmatprep.subr.bf16.mxu0 0
      %5850 = vmatpush2.bf16.msra.mxu0 0
      %5851 = vmatprep.subr.bf16.mxu0 0
      %5852 = vmatpush2.bf16.msra.mxu0 0
      %5853 = vmatprep.subr.bf16.mxu0 0
      %5854 = vmatpush2.bf16.msra.mxu0 0
      %5855 = vmatprep.subr.bf16.mxu0 0
      %5856 = vmatpush2.bf16.msra.mxu0 0
      %5857 = vmatprep.subr.bf16.mxu0 0
      %5858 = vmatpush2.bf16.msra.mxu0 0
      %5859 = vmatprep.subr.bf16.mxu0 0
      %5860 = vmatpush2.bf16.msra.mxu0 0
      %5861 = vmatprep.subr.bf16.mxu0 0
      %5862 = vmatpush2.bf16.msra.mxu0 0
      %5863 = vmatprep.subr.bf16.mxu0 0
      %5864 = vmatpush2.bf16.msra.mxu0 0
      %5865 = vmatprep.mubr.bf16.mxu0 0
      %5866 = vmatmul.mubr.bf16.gmra.mxu0 %v5810
      %v5867 = vpop.f32.mrf.mxu0
      %v5868 = vadd.f32 0.0, %v5867
      %v5869 = vpop.f32.mrf.mxu0
      %v5870 = vadd.f32 0.0, %v5869
      %v5871 = vpop.f32.mrf.mxu0
      %v5872 = vadd.f32 0.0, %v5871
      %v5873 = vpop.f32.mrf.mxu0
      %v5874 = vadd.f32 0.0, %v5873
      %5875 = vmatprep.mubr.bf16.mxu0 0
      %5876 = vmatmul.mubr.bf16.gmra.mxu0 %v5813
      %v5877 = vpop.f32.mrf.mxu0
      %v5878 = vadd.f32 0.0, %v5877
      %v5879 = vpop.f32.mrf.mxu0
      %v5880 = vadd.f32 0.0, %v5879
      %v5881 = vpop.f32.mrf.mxu0
      %v5882 = vadd.f32 0.0, %v5881
      %v5883 = vpop.f32.mrf.mxu0
      %v5884 = vadd.f32 0.0, %v5883
      %5885 = vmatprep.mubr.bf16.mxu0 0
      %5886 = vmatmul.mubr.bf16.gmra.mxu0 %v5816
      %v5887 = vpop.f32.mrf.mxu0
      %v5888 = vadd.f32 0.0, %v5887
      %v5889 = vpop.f32.mrf.mxu0
      %v5890 = vadd.f32 0.0, %v5889
      %v5891 = vpop.f32.mrf.mxu0
      %v5892 = vadd.f32 0.0, %v5891
      %v5893 = vpop.f32.mrf.mxu0
      %v5894 = vadd.f32 0.0, %v5893
      %5895 = vmatprep.mubr.bf16.mxu0 0
      %5896 = vmatmul.mubr.bf16.gmra.mxu0 %v5819
      %v5897 = vpop.f32.mrf.mxu0
      %v5898 = vadd.f32 0.0, %v5897
      %v5899 = vpop.f32.mrf.mxu0
      %v5900 = vadd.f32 0.0, %v5899
      %v5901 = vpop.f32.mrf.mxu0
      %v5902 = vadd.f32 0.0, %v5901
      %v5903 = vpop.f32.mrf.mxu0
      %v5904 = vadd.f32 0.0, %v5903
      %5905 = vmatprep.mubr.bf16.mxu0 0
      %5906 = vmatmul.mubr.bf16.gmra.mxu0 %v5822
      %v5907 = vpop.f32.mrf.mxu0
      %v5908 = vadd.f32 0.0, %v5907
      %v5909 = vpop.f32.mrf.mxu0
      %v5910 = vadd.f32 0.0, %v5909
      %v5911 = vpop.f32.mrf.mxu0
      %v5912 = vadd.f32 0.0, %v5911
      %v5913 = vpop.f32.mrf.mxu0
      %v5914 = vadd.f32 0.0, %v5913
      %5915 = vmatprep.mubr.bf16.mxu0 0
      %5916 = vmatmul.mubr.bf16.gmra.mxu0 %v5825
      %v5917 = vpop.f32.mrf.mxu0
      %v5918 = vadd.f32 0.0, %v5917
      %v5919 = vpop.f32.mrf.mxu0
      %v5920 = vadd.f32 0.0, %v5919
      %v5921 = vpop.f32.mrf.mxu0
      %v5922 = vadd.f32 0.0, %v5921
      %v5923 = vpop.f32.mrf.mxu0
      %v5924 = vadd.f32 0.0, %v5923
      %5925 = vdwg.mxu0
      %v5926 = vmul.f32 %v5868, %v5868
      %v5927 = vmul.f32 %v5870, %v5870
      %v5928 = vmul.f32 %v5872, %v5872
      %v5929 = vmul.f32 %v5874, %v5874
      %v5930 = vmul.f32 %v5878, %v5878
      %v5931 = vmul.f32 %v5880, %v5880
      %v5932 = vmul.f32 %v5882, %v5882
      %v5933 = vmul.f32 %v5884, %v5884
      %v5934 = vmul.f32 %v5888, %v5888
      %v5935 = vmul.f32 %v5890, %v5890
      %v5936 = vmul.f32 %v5892, %v5892
      %v5937 = vmul.f32 %v5894, %v5894
      %v5938 = vmul.f32 %v5898, %v5898
      %v5939 = vmul.f32 %v5900, %v5900
      %v5940 = vmul.f32 %v5902, %v5902
      %v5941 = vmul.f32 %v5904, %v5904
      %v5942 = vmul.f32 %v5908, %v5908
      %v5943 = vmul.f32 %v5910, %v5910
      %v5944 = vmul.f32 %v5912, %v5912
      %v5945 = vmul.f32 %v5914, %v5914
      %v5946 = vmul.f32 %v5918, %v5918
      %v5947 = vmul.f32 %v5920, %v5920
      %v5948 = vmul.f32 %v5922, %v5922
      %v5949 = vmul.f32 %v5924, %v5924
      %v5950 = vmul.f32 %v5868, %v5926
      %v5951 = vmul.f32 %v5870, %v5927
      %v5952 = vmul.f32 %v5872, %v5928
      %v5953 = vmul.f32 %v5874, %v5929
      %v5954 = vmul.f32 %v5878, %v5930
      %v5955 = vmul.f32 %v5880, %v5931
      %v5956 = vmul.f32 %v5882, %v5932
      %v5957 = vmul.f32 %v5884, %v5933
      %v5958 = vmul.f32 %v5888, %v5934
      %v5959 = vmul.f32 %v5890, %v5935
      %v5960 = vmul.f32 %v5892, %v5936
      %v5961 = vmul.f32 %v5894, %v5937
      %v5962 = vmul.f32 %v5898, %v5938
      %v5963 = vmul.f32 %v5900, %v5939
      %v5964 = vmul.f32 %v5902, %v5940
      %v5965 = vmul.f32 %v5904, %v5941
      %v5966 = vmul.f32 %v5908, %v5942
      %v5967 = vmul.f32 %v5910, %v5943
      %v5968 = vmul.f32 %v5912, %v5944
      %v5969 = vmul.f32 %v5914, %v5945
      %v5970 = vmul.f32 %v5918, %v5946
      %v5971 = vmul.f32 %v5920, %v5947
      %v5972 = vmul.f32 %v5922, %v5948
      %v5973 = vmul.f32 %v5924, %v5949
      %v5974 = vmul.f32 %v5950, 0.044715
      %v5975 = vmul.f32 %v5951, 0.044715
      %v5976 = vmul.f32 %v5952, 0.044715
      %v5977 = vmul.f32 %v5953, 0.044715
      %v5978 = vmul.f32 %v5954, 0.044715
      %v5979 = vmul.f32 %v5955, 0.044715
      %v5980 = vmul.f32 %v5956, 0.044715
      %v5981 = vmul.f32 %v5957, 0.044715
      %v5982 = vmul.f32 %v5958, 0.044715
      %v5983 = vmul.f32 %v5959, 0.044715
      %v5984 = vmul.f32 %v5960, 0.044715
      %v5985 = vmul.f32 %v5961, 0.044715
      %v5986 = vmul.f32 %v5962, 0.044715
      %v5987 = vmul.f32 %v5963, 0.044715
      %v5988 = vmul.f32 %v5964, 0.044715
      %v5989 = vmul.f32 %v5965, 0.044715
      %v5990 = vmul.f32 %v5966, 0.044715
      %v5991 = vmul.f32 %v5967, 0.044715
      %v5992 = vmul.f32 %v5968, 0.044715
      %v5993 = vmul.f32 %v5969, 0.044715
      %v5994 = vmul.f32 %v5970, 0.044715
      %v5995 = vmul.f32 %v5971, 0.044715
      %v5996 = vmul.f32 %v5972, 0.044715
      %v5997 = vmul.f32 %v5973, 0.044715
      %v5998 = vadd.f32 %v5868, %v5974
      %v5999 = vadd.f32 %v5870, %v5975
      %v6000 = vadd.f32 %v5872, %v5976
      %v6001 = vadd.f32 %v5874, %v5977
      %v6002 = vadd.f32 %v5878, %v5978
      %v6003 = vadd.f32 %v5880, %v5979
      %v6004 = vadd.f32 %v5882, %v5980
      %v6005 = vadd.f32 %v5884, %v5981
      %v6006 = vadd.f32 %v5888, %v5982
      %v6007 = vadd.f32 %v5890, %v5983
      %v6008 = vadd.f32 %v5892, %v5984
      %v6009 = vadd.f32 %v5894, %v5985
      %v6010 = vadd.f32 %v5898, %v5986
      %v6011 = vadd.f32 %v5900, %v5987
      %v6012 = vadd.f32 %v5902, %v5988
      %v6013 = vadd.f32 %v5904, %v5989
      %v6014 = vadd.f32 %v5908, %v5990
      %v6015 = vadd.f32 %v5910, %v5991
      %v6016 = vadd.f32 %v5912, %v5992
      %v6017 = vadd.f32 %v5914, %v5993
      %v6018 = vadd.f32 %v5918, %v5994
      %v6019 = vadd.f32 %v5920, %v5995
      %v6020 = vadd.f32 %v5922, %v5996
      %v6021 = vadd.f32 %v5924, %v5997
      %v6022 = vmul.f32 %v5998, 0.7978846
      %v6023 = vmul.f32 %v5999, 0.7978846
      %v6024 = vmul.f32 %v6000, 0.7978846
      %v6025 = vmul.f32 %v6001, 0.7978846
      %v6026 = vmul.f32 %v6002, 0.7978846
      %v6027 = vmul.f32 %v6003, 0.7978846
      %v6028 = vmul.f32 %v6004, 0.7978846
      %v6029 = vmul.f32 %v6005, 0.7978846
      %v6030 = vmul.f32 %v6006, 0.7978846
      %v6031 = vmul.f32 %v6007, 0.7978846
      %v6032 = vmul.f32 %v6008, 0.7978846
      %v6033 = vmul.f32 %v6009, 0.7978846
      %v6034 = vmul.f32 %v6010, 0.7978846
      %v6035 = vmul.f32 %v6011, 0.7978846
      %v6036 = vmul.f32 %v6012, 0.7978846
      %v6037 = vmul.f32 %v6013, 0.7978846
      %v6038 = vmul.f32 %v6014, 0.7978846
      %v6039 = vmul.f32 %v6015, 0.7978846
      %v6040 = vmul.f32 %v6016, 0.7978846
      %v6041 = vmul.f32 %v6017, 0.7978846
      %v6042 = vmul.f32 %v6018, 0.7978846
      %v6043 = vmul.f32 %v6019, 0.7978846
      %v6044 = vmul.f32 %v6020, 0.7978846
      %v6045 = vmul.f32 %v6021, 0.7978846
      %v6046 = vtanh.pop %v6022
      %v6047 = vtanh.pop %v6023
      %v6048 = vtanh.pop %v6024
      %v6049 = vtanh.pop %v6025
      %v6050 = vtanh.pop %v6026
      %v6051 = vtanh.pop %v6027
      %v6052 = vtanh.pop %v6028
      %v6053 = vtanh.pop %v6029
      %v6054 = vtanh.pop %v6030
      %v6055 = vtanh.pop %v6031
      %v6056 = vtanh.pop %v6032
      %v6057 = vtanh.pop %v6033
      %v6058 = vtanh.pop %v6034
      %v6059 = vtanh.pop %v6035
      %v6060 = vtanh.pop %v6036
      %v6061 = vtanh.pop %v6037
      %v6062 = vtanh.pop %v6038
      %v6063 = vtanh.pop %v6039
      %v6064 = vtanh.pop %v6040
      %v6065 = vtanh.pop %v6041
      %v6066 = vtanh.pop %v6042
      %v6067 = vtanh.pop %v6043
      %v6068 = vtanh.pop %v6044
      %v6069 = vtanh.pop %v6045
      %v6070 = vadd.f32 %v6046, 1.0
      %v6071 = vadd.f32 %v6047, 1.0
      %v6072 = vadd.f32 %v6048, 1.0
      %v6073 = vadd.f32 %v6049, 1.0
      %v6074 = vadd.f32 %v6050, 1.0
      %v6075 = vadd.f32 %v6051, 1.0
      %v6076 = vadd.f32 %v6052, 1.0
      %v6077 = vadd.f32 %v6053, 1.0
      %v6078 = vadd.f32 %v6054, 1.0
      %v6079 = vadd.f32 %v6055, 1.0
      %v6080 = vadd.f32 %v6056, 1.0
      %v6081 = vadd.f32 %v6057, 1.0
      %v6082 = vadd.f32 %v6058, 1.0
      %v6083 = vadd.f32 %v6059, 1.0
      %v6084 = vadd.f32 %v6060, 1.0
      %v6085 = vadd.f32 %v6061, 1.0
      %v6086 = vadd.f32 %v6062, 1.0
      %v6087 = vadd.f32 %v6063, 1.0
      %v6088 = vadd.f32 %v6064, 1.0
      %v6089 = vadd.f32 %v6065, 1.0
      %v6090 = vadd.f32 %v6066, 1.0
      %v6091 = vadd.f32 %v6067, 1.0
      %v6092 = vadd.f32 %v6068, 1.0
      %v6093 = vadd.f32 %v6069, 1.0
      %v6094 = vmul.f32 %v6070, 0.5
      %v6095 = vmul.f32 %v6071, 0.5
      %v6096 = vmul.f32 %v6072, 0.5
      %v6097 = vmul.f32 %v6073, 0.5
      %v6098 = vmul.f32 %v6074, 0.5
      %v6099 = vmul.f32 %v6075, 0.5
      %v6100 = vmul.f32 %v6076, 0.5
      %v6101 = vmul.f32 %v6077, 0.5
      %v6102 = vmul.f32 %v6078, 0.5
      %v6103 = vmul.f32 %v6079, 0.5
      %v6104 = vmul.f32 %v6080, 0.5
      %v6105 = vmul.f32 %v6081, 0.5
      %v6106 = vmul.f32 %v6082, 0.5
      %v6107 = vmul.f32 %v6083, 0.5
      %v6108 = vmul.f32 %v6084, 0.5
      %v6109 = vmul.f32 %v6085, 0.5
      %v6110 = vmul.f32 %v6086, 0.5
      %v6111 = vmul.f32 %v6087, 0.5
      %v6112 = vmul.f32 %v6088, 0.5
      %v6113 = vmul.f32 %v6089, 0.5
      %v6114 = vmul.f32 %v6090, 0.5
      %v6115 = vmul.f32 %v6091, 0.5
      %v6116 = vmul.f32 %v6092, 0.5
      %v6117 = vmul.f32 %v6093, 0.5
      %v6118 = vmul.f32 %v5868, %v6094
      %v6119 = vmul.f32 %v5870, %v6095
      %v6120 = vmul.f32 %v5872, %v6096
      %v6121 = vmul.f32 %v5874, %v6097
      %v6122 = vmul.f32 %v5878, %v6098
      %v6123 = vmul.f32 %v5880, %v6099
      %v6124 = vmul.f32 %v5882, %v6100
      %v6125 = vmul.f32 %v5884, %v6101
      %v6126 = vmul.f32 %v5888, %v6102
      %v6127 = vmul.f32 %v5890, %v6103
      %v6128 = vmul.f32 %v5892, %v6104
      %v6129 = vmul.f32 %v5894, %v6105
      %v6130 = vmul.f32 %v5898, %v6106
      %v6131 = vmul.f32 %v5900, %v6107
      %v6132 = vmul.f32 %v5902, %v6108
      %v6133 = vmul.f32 %v5904, %v6109
      %v6134 = vmul.f32 %v5908, %v6110
      %v6135 = vmul.f32 %v5910, %v6111
      %v6136 = vmul.f32 %v5912, %v6112
      %v6137 = vmul.f32 %v5914, %v6113
      %v6138 = vmul.f32 %v5918, %v6114
      %v6139 = vmul.f32 %v5920, %v6115
      %v6140 = vmul.f32 %v5922, %v6116
      %v6141 = vmul.f32 %v5924, %v6117
      %v6142 = vpack.c.bf16 %v6120, %v6118
      %v6143 = vpack.c.bf16 %v6121, %v6119
      %v6144 = vpack.c.bf16 %v6124, %v6122
      %v6145 = vpack.c.bf16 %v6125, %v6123
      %v6146 = vpack.c.bf16 %v6128, %v6126
      %v6147 = vpack.c.bf16 %v6129, %v6127
      %v6148 = vpack.c.bf16 %v6132, %v6130
      %v6149 = vpack.c.bf16 %v6133, %v6131
      %v6150 = vpack.c.bf16 %v6136, %v6134
      %v6151 = vpack.c.bf16 %v6137, %v6135
      %v6152 = vpack.c.bf16 %v6140, %v6138
      %v6153 = vpack.c.bf16 %v6141, %v6139
      %v6155 = vsel %vm797, %v5776, 0
      %6157 = vmatprep.subr.bf16.mxu0 0
      %6158 = vmatpush1.bf16.msra.mxu0 0
      %6159 = vmatprep.subr.bf16.mxu0 0
      %6160 = vmatpush1.bf16.msra.mxu0 0
      %6161 = vmatprep.subr.bf16.mxu0 %v6153
      %6162 = vmatpush1.bf16.msra.mxu0 %v6152
      %6163 = vmatprep.subr.bf16.mxu0 %v6151
      %6164 = vmatpush1.bf16.msra.mxu0 %v6150
      %6165 = vmatprep.subr.bf16.mxu0 %v6149
      %6166 = vmatpush1.bf16.msra.mxu0 %v6148
      %6167 = vmatprep.subr.bf16.mxu0 %v6147
      %6168 = vmatpush1.bf16.msra.mxu0 %v6146
      %6169 = vmatprep.subr.bf16.mxu0 %v6145
      %6170 = vmatpush1.bf16.msra.mxu0 %v6144
      %6171 = vmatprep.subr.bf16.mxu0 %v6143
      %6172 = vmatpush1.bf16.msra.mxu0 %v6142
      %6173 = vmatprep.subr.bf16.mxu0 0
      %6174 = vmatpush2.bf16.msra.mxu0 0
      %6175 = vmatprep.subr.bf16.mxu0 0
      %6176 = vmatpush2.bf16.msra.mxu0 0
      %6177 = vmatprep.subr.bf16.mxu0 0
      %6178 = vmatpush2.bf16.msra.mxu0 0
      %6179 = vmatprep.subr.bf16.mxu0 0
      %6180 = vmatpush2.bf16.msra.mxu0 0
      %6181 = vmatprep.subr.bf16.mxu0 0
      %6182 = vmatpush2.bf16.msra.mxu0 0
      %6183 = vmatprep.subr.bf16.mxu0 0
      %6184 = vmatpush2.bf16.msra.mxu0 0
      %6185 = vmatprep.subr.bf16.mxu0 0
      %6186 = vmatpush2.bf16.msra.mxu0 0
      %6187 = vmatprep.subr.bf16.mxu0 0
      %6188 = vmatpush2.bf16.msra.mxu0 0
      %6189 = vmatprep.mubr.bf16.mxu0 0
      %6190 = vmatmul.mubr.bf16.gmra.mxu0 %v6155
      %v6191 = vpop.f32.mrf.mxu0
      %v6192 = vadd.f32 0.0, %v6191
      %v6193 = vpop.f32.mrf.mxu0
      %v6194 = vadd.f32 0.0, %v6193
      %v6195 = vpop.f32.mrf.mxu0
      %v6196 = vpop.f32.mrf.mxu0
      %6197 = vdwg.mxu0
      %v6198 = vadd.f32 %v5760, %v6192
      %v6199 = vadd.f32 %v5761, %v6194
      %s6200 = scalar_lea.vmem %s6, 8
      %v6201 = vld [vmem:[%s6200] sm:$0x7]
      %s6202 = scalar_lea.vmem %s7, 8
      %v6203 = vld [vmem:[%s6202] sm:$0x7]
      %v6204 = vpack.c.bf16 %v6198, %v6198
      %v6205 = vpack.c.bf16 %v6199, %v6199
      %v6207 = vsel %vm450, %v6203, 0
      %v6210 = vsel %vm469, %v6204, 0
      %v6213 = vsel %vm469, %v6205, 0
      %6215 = vmatprep.subr.bf16.mxu0 0
      %6216 = vmatpush1.bf16.msra.mxu0 0
      %6217 = vmatprep.subr.bf16.mxu0 0
      %6218 = vmatpush1.bf16.msra.mxu0 0
      %6219 = vmatprep.subr.bf16.mxu0 0
      %6220 = vmatpush1.bf16.msra.mxu0 0
      %6221 = vmatprep.subr.bf16.mxu0 0
      %6222 = vmatpush1.bf16.msra.mxu0 0
      %6223 = vmatprep.subr.bf16.mxu0 0
      %6224 = vmatpush1.bf16.msra.mxu0 0
      %6225 = vmatprep.subr.bf16.mxu0 0
      %6226 = vmatpush1.bf16.msra.mxu0 0
      %6227 = vmatprep.subr.bf16.mxu0 0
      %6228 = vmatpush1.bf16.msra.mxu0 0
      %6229 = vmatprep.subr.bf16.mxu0 %v6213
      %6230 = vmatpush1.bf16.msra.mxu0 %v6210
      %6231 = vmatprep.subr.bf16.mxu0 0
      %6232 = vmatpush2.bf16.msra.mxu0 0
      %6233 = vmatprep.subr.bf16.mxu0 0
      %6234 = vmatpush2.bf16.msra.mxu0 0
      %6235 = vmatprep.subr.bf16.mxu0 0
      %6236 = vmatpush2.bf16.msra.mxu0 0
      %6237 = vmatprep.subr.bf16.mxu0 0
      %6238 = vmatpush2.bf16.msra.mxu0 0
      %6239 = vmatprep.subr.bf16.mxu0 0
      %6240 = vmatpush2.bf16.msra.mxu0 0
      %6241 = vmatprep.subr.bf16.mxu0 0
      %6242 = vmatpush2.bf16.msra.mxu0 0
      %6243 = vmatprep.subr.bf16.mxu0 0
      %6244 = vmatpush2.bf16.msra.mxu0 0
      %6245 = vmatprep.subr.bf16.mxu0 0
      %6246 = vmatpush2.bf16.msra.mxu0 0
      %6247 = vmatprep.mubr.bf16.mxu0 0
      %6248 = vmatmul.mubr.bf16.gmra.mxu0 %v6207
      %v6249 = vpop.f32.mrf.mxu0
      %v6250 = vadd.f32 0.0, %v6249
      %v6251 = vpop.f32.mrf.mxu0
      %v6252 = vadd.f32 0.0, %v6251
      %v6253 = vpop.f32.mrf.mxu0
      %v6254 = vpop.f32.mrf.mxu0
      %6255 = vdwg.mxu0
      %v6257 = vsel %vm450, %v6201, 0
      %6259 = vmatprep.subr.bf16.mxu0 0
      %6260 = vmatpush1.bf16.msra.mxu0 0
      %6261 = vmatprep.subr.bf16.mxu0 0
      %6262 = vmatpush1.bf16.msra.mxu0 0
      %6263 = vmatprep.subr.bf16.mxu0 0
      %6264 = vmatpush1.bf16.msra.mxu0 0
      %6265 = vmatprep.subr.bf16.mxu0 0
      %6266 = vmatpush1.bf16.msra.mxu0 0
      %6267 = vmatprep.subr.bf16.mxu0 0
      %6268 = vmatpush1.bf16.msra.mxu0 0
      %6269 = vmatprep.subr.bf16.mxu0 0
      %6270 = vmatpush1.bf16.msra.mxu0 0
      %6271 = vmatprep.subr.bf16.mxu0 0
      %6272 = vmatpush1.bf16.msra.mxu0 0
      %6273 = vmatprep.subr.bf16.mxu0 %v3541
      %6274 = vmatpush1.bf16.msra.mxu0 %v3538
      %6275 = vmatprep.subr.bf16.mxu0 0
      %6276 = vmatpush2.bf16.msra.mxu0 0
      %6277 = vmatprep.subr.bf16.mxu0 0
      %6278 = vmatpush2.bf16.msra.mxu0 0
      %6279 = vmatprep.subr.bf16.mxu0 0
      %6280 = vmatpush2.bf16.msra.mxu0 0
      %6281 = vmatprep.subr.bf16.mxu0 0
      %6282 = vmatpush2.bf16.msra.mxu0 0
      %6283 = vmatprep.subr.bf16.mxu0 0
      %6284 = vmatpush2.bf16.msra.mxu0 0
      %6285 = vmatprep.subr.bf16.mxu0 0
      %6286 = vmatpush2.bf16.msra.mxu0 0
      %6287 = vmatprep.subr.bf16.mxu0 0
      %6288 = vmatpush2.bf16.msra.mxu0 0
      %6289 = vmatprep.subr.bf16.mxu0 0
      %6290 = vmatpush2.bf16.msra.mxu0 0
      %6291 = vmatprep.mubr.bf16.mxu0 0
      %6292 = vmatmul.mubr.bf16.gmra.mxu0 %v6257
      %v6293 = vpop.f32.mrf.mxu0
      %v6294 = vadd.f32 %v6250, %v6293
      %v6295 = vpop.f32.mrf.mxu0
      %v6296 = vadd.f32 %v6252, %v6295
      %v6297 = vpop.f32.mrf.mxu0
      %v6298 = vpop.f32.mrf.mxu0
      %6299 = vdwg.mxu0
      %s6300 = scalar_lea.vmem %s4, 288
      %v6301 = vld [vmem:[%s6300] sm:$0xf]
      %v6302 = vld [vmem:[%s6300 + $0x4] sm:$0xf]
      %v6303 = vld [vmem:[%s6300 + $0x8] sm:$0xf]
      %v6304 = vld [vmem:[%s6300 + $0xc] sm:$0xf]
      %v6305 = vld [vmem:[%s6300 + $0x10] sm:$0xf]
      %v6306 = vld [vmem:[%s6300 + $0x14] sm:$0xf]
      %v6307 = vld [vmem:[%s6300 + $0x18] sm:$0xf]
      %v6308 = vld [vmem:[%s6300 + $0x1c] sm:$0xf]
      %v6309 = vld [vmem:[%s6300 + $0x20] sm:$0xf]
      %v6310 = vld [vmem:[%s6300 + $0x24] sm:$0xf]
      %v6311 = vld [vmem:[%s6300 + $0x28] sm:$0xf]
      %v6312 = vld [vmem:[%s6300 + $0x2c] sm:$0xf]
      %s6313 = scalar_lea.vmem %s5, 24
      %v6314 = vld [vmem:[%s6313] sm:$0x7]
      %v6315 = vpack.c.bf16 %v6294, %v6294
      %v6316 = vpack.c.bf16 %v6296, %v6296
      %v6329 = vunpack.c.l.b16 %v6301
      %v6330 = vunpack.c.l.b16 %v6302
      %v6331 = vunpack.c.l.b16 %v6303
      %v6332 = vunpack.c.l.b16 %v6304
      %v6333 = vunpack.c.l.b16 %v6305
      %v6334 = vunpack.c.l.b16 %v6306
      %v6335 = vunpack.c.l.b16 %v6307
      %v6336 = vunpack.c.l.b16 %v6308
      %v6337 = vunpack.c.l.b16 %v6309
      %v6338 = vunpack.c.l.b16 %v6310
      %v6339 = vunpack.c.l.b16 %v6311
      %v6340 = vunpack.c.l.b16 %v6312
      %v6341 = vpack.c.b16 %v6330, %v6329
      %v6342 = vpack.c.b16 %v6332, %v6331
      %v6343 = vpack.c.b16 %v6334, %v6333
      %v6344 = vpack.c.b16 %v6336, %v6335
      %v6345 = vpack.c.b16 %v6338, %v6337
      %v6346 = vpack.c.b16 %v6340, %v6339
      %v6348 = vsel %vm450, %v6341, 0
      %v6351 = vsel %vm450, %v6342, 0
      %v6354 = vsel %vm450, %v6343, 0
      %v6357 = vsel %vm450, %v6344, 0
      %v6360 = vsel %vm450, %v6345, 0
      %v6363 = vsel %vm450, %v6346, 0
      %v6366 = vsel %vm469, %v6315, 0
      %v6369 = vsel %vm469, %v6316, 0
      %6371 = vmatprep.subr.bf16.mxu0 0
      %6372 = vmatpush1.bf16.msra.mxu0 0
      %6373 = vmatprep.subr.bf16.mxu0 0
      %6374 = vmatpush1.bf16.msra.mxu0 0
      %6375 = vmatprep.subr.bf16.mxu0 0
      %6376 = vmatpush1.bf16.msra.mxu0 0
      %6377 = vmatprep.subr.bf16.mxu0 0
      %6378 = vmatpush1.bf16.msra.mxu0 0
      %6379 = vmatprep.subr.bf16.mxu0 0
      %6380 = vmatpush1.bf16.msra.mxu0 0
      %6381 = vmatprep.subr.bf16.mxu0 0
      %6382 = vmatpush1.bf16.msra.mxu0 0
      %6383 = vmatprep.subr.bf16.mxu0 0
      %6384 = vmatpush1.bf16.msra.mxu0 0
      %6385 = vmatprep.subr.bf16.mxu0 %v6369
      %6386 = vmatpush1.bf16.msra.mxu0 %v6366
      %6387 = vmatprep.subr.bf16.mxu0 0
      %6388 = vmatpush2.bf16.msra.mxu0 0
      %6389 = vmatprep.subr.bf16.mxu0 0
      %6390 = vmatpush2.bf16.msra.mxu0 0
      %6391 = vmatprep.subr.bf16.mxu0 0
      %6392 = vmatpush2.bf16.msra.mxu0 0
      %6393 = vmatprep.subr.bf16.mxu0 0
      %6394 = vmatpush2.bf16.msra.mxu0 0
      %6395 = vmatprep.subr.bf16.mxu0 0
      %6396 = vmatpush2.bf16.msra.mxu0 0
      %6397 = vmatprep.subr.bf16.mxu0 0
      %6398 = vmatpush2.bf16.msra.mxu0 0
      %6399 = vmatprep.subr.bf16.mxu0 0
      %6400 = vmatpush2.bf16.msra.mxu0 0
      %6401 = vmatprep.subr.bf16.mxu0 0
      %6402 = vmatpush2.bf16.msra.mxu0 0
      %6403 = vmatprep.mubr.bf16.mxu0 0
      %6404 = vmatmul.mubr.bf16.gmra.mxu0 %v6348
      %v6405 = vpop.f32.mrf.mxu0
      %v6406 = vadd.f32 0.0, %v6405
      %v6407 = vpop.f32.mrf.mxu0
      %v6408 = vadd.f32 0.0, %v6407
      %v6409 = vpop.f32.mrf.mxu0
      %v6410 = vadd.f32 0.0, %v6409
      %v6411 = vpop.f32.mrf.mxu0
      %v6412 = vadd.f32 0.0, %v6411
      %6413 = vmatprep.mubr.bf16.mxu0 0
      %6414 = vmatmul.mubr.bf16.gmra.mxu0 %v6351
      %v6415 = vpop.f32.mrf.mxu0
      %v6416 = vadd.f32 0.0, %v6415
      %v6417 = vpop.f32.mrf.mxu0
      %v6418 = vadd.f32 0.0, %v6417
      %v6419 = vpop.f32.mrf.mxu0
      %v6420 = vadd.f32 0.0, %v6419
      %v6421 = vpop.f32.mrf.mxu0
      %v6422 = vadd.f32 0.0, %v6421
      %6423 = vmatprep.mubr.bf16.mxu0 0
      %6424 = vmatmul.mubr.bf16.gmra.mxu0 %v6354
      %v6425 = vpop.f32.mrf.mxu0
      %v6426 = vadd.f32 0.0, %v6425
      %v6427 = vpop.f32.mrf.mxu0
      %v6428 = vadd.f32 0.0, %v6427
      %v6429 = vpop.f32.mrf.mxu0
      %v6430 = vadd.f32 0.0, %v6429
      %v6431 = vpop.f32.mrf.mxu0
      %v6432 = vadd.f32 0.0, %v6431
      %6433 = vmatprep.mubr.bf16.mxu0 0
      %6434 = vmatmul.mubr.bf16.gmra.mxu0 %v6357
      %v6435 = vpop.f32.mrf.mxu0
      %v6436 = vadd.f32 0.0, %v6435
      %v6437 = vpop.f32.mrf.mxu0
      %v6438 = vadd.f32 0.0, %v6437
      %v6439 = vpop.f32.mrf.mxu0
      %v6440 = vadd.f32 0.0, %v6439
      %v6441 = vpop.f32.mrf.mxu0
      %v6442 = vadd.f32 0.0, %v6441
      %6443 = vmatprep.mubr.bf16.mxu0 0
      %6444 = vmatmul.mubr.bf16.gmra.mxu0 %v6360
      %v6445 = vpop.f32.mrf.mxu0
      %v6446 = vadd.f32 0.0, %v6445
      %v6447 = vpop.f32.mrf.mxu0
      %v6448 = vadd.f32 0.0, %v6447
      %v6449 = vpop.f32.mrf.mxu0
      %v6450 = vadd.f32 0.0, %v6449
      %v6451 = vpop.f32.mrf.mxu0
      %v6452 = vadd.f32 0.0, %v6451
      %6453 = vmatprep.mubr.bf16.mxu0 0
      %6454 = vmatmul.mubr.bf16.gmra.mxu0 %v6363
      %v6455 = vpop.f32.mrf.mxu0
      %v6456 = vadd.f32 0.0, %v6455
      %v6457 = vpop.f32.mrf.mxu0
      %v6458 = vadd.f32 0.0, %v6457
      %v6459 = vpop.f32.mrf.mxu0
      %v6460 = vadd.f32 0.0, %v6459
      %v6461 = vpop.f32.mrf.mxu0
      %v6462 = vadd.f32 0.0, %v6461
      %6463 = vdwg.mxu0
      %v6464 = vmul.f32 %v6406, %v6406
      %v6465 = vmul.f32 %v6408, %v6408
      %v6466 = vmul.f32 %v6410, %v6410
      %v6467 = vmul.f32 %v6412, %v6412
      %v6468 = vmul.f32 %v6416, %v6416
      %v6469 = vmul.f32 %v6418, %v6418
      %v6470 = vmul.f32 %v6420, %v6420
      %v6471 = vmul.f32 %v6422, %v6422
      %v6472 = vmul.f32 %v6426, %v6426
      %v6473 = vmul.f32 %v6428, %v6428
      %v6474 = vmul.f32 %v6430, %v6430
      %v6475 = vmul.f32 %v6432, %v6432
      %v6476 = vmul.f32 %v6436, %v6436
      %v6477 = vmul.f32 %v6438, %v6438
      %v6478 = vmul.f32 %v6440, %v6440
      %v6479 = vmul.f32 %v6442, %v6442
      %v6480 = vmul.f32 %v6446, %v6446
      %v6481 = vmul.f32 %v6448, %v6448
      %v6482 = vmul.f32 %v6450, %v6450
      %v6483 = vmul.f32 %v6452, %v6452
      %v6484 = vmul.f32 %v6456, %v6456
      %v6485 = vmul.f32 %v6458, %v6458
      %v6486 = vmul.f32 %v6460, %v6460
      %v6487 = vmul.f32 %v6462, %v6462
      %v6488 = vmul.f32 %v6406, %v6464
      %v6489 = vmul.f32 %v6408, %v6465
      %v6490 = vmul.f32 %v6410, %v6466
      %v6491 = vmul.f32 %v6412, %v6467
      %v6492 = vmul.f32 %v6416, %v6468
      %v6493 = vmul.f32 %v6418, %v6469
      %v6494 = vmul.f32 %v6420, %v6470
      %v6495 = vmul.f32 %v6422, %v6471
      %v6496 = vmul.f32 %v6426, %v6472
      %v6497 = vmul.f32 %v6428, %v6473
      %v6498 = vmul.f32 %v6430, %v6474
      %v6499 = vmul.f32 %v6432, %v6475
      %v6500 = vmul.f32 %v6436, %v6476
      %v6501 = vmul.f32 %v6438, %v6477
      %v6502 = vmul.f32 %v6440, %v6478
      %v6503 = vmul.f32 %v6442, %v6479
      %v6504 = vmul.f32 %v6446, %v6480
      %v6505 = vmul.f32 %v6448, %v6481
      %v6506 = vmul.f32 %v6450, %v6482
      %v6507 = vmul.f32 %v6452, %v6483
      %v6508 = vmul.f32 %v6456, %v6484
      %v6509 = vmul.f32 %v6458, %v6485
      %v6510 = vmul.f32 %v6460, %v6486
      %v6511 = vmul.f32 %v6462, %v6487
      %v6512 = vmul.f32 %v6488, 0.044715
      %v6513 = vmul.f32 %v6489, 0.044715
      %v6514 = vmul.f32 %v6490, 0.044715
      %v6515 = vmul.f32 %v6491, 0.044715
      %v6516 = vmul.f32 %v6492, 0.044715
      %v6517 = vmul.f32 %v6493, 0.044715
      %v6518 = vmul.f32 %v6494, 0.044715
      %v6519 = vmul.f32 %v6495, 0.044715
      %v6520 = vmul.f32 %v6496, 0.044715
      %v6521 = vmul.f32 %v6497, 0.044715
      %v6522 = vmul.f32 %v6498, 0.044715
      %v6523 = vmul.f32 %v6499, 0.044715
      %v6524 = vmul.f32 %v6500, 0.044715
      %v6525 = vmul.f32 %v6501, 0.044715
      %v6526 = vmul.f32 %v6502, 0.044715
      %v6527 = vmul.f32 %v6503, 0.044715
      %v6528 = vmul.f32 %v6504, 0.044715
      %v6529 = vmul.f32 %v6505, 0.044715
      %v6530 = vmul.f32 %v6506, 0.044715
      %v6531 = vmul.f32 %v6507, 0.044715
      %v6532 = vmul.f32 %v6508, 0.044715
      %v6533 = vmul.f32 %v6509, 0.044715
      %v6534 = vmul.f32 %v6510, 0.044715
      %v6535 = vmul.f32 %v6511, 0.044715
      %v6536 = vadd.f32 %v6406, %v6512
      %v6537 = vadd.f32 %v6408, %v6513
      %v6538 = vadd.f32 %v6410, %v6514
      %v6539 = vadd.f32 %v6412, %v6515
      %v6540 = vadd.f32 %v6416, %v6516
      %v6541 = vadd.f32 %v6418, %v6517
      %v6542 = vadd.f32 %v6420, %v6518
      %v6543 = vadd.f32 %v6422, %v6519
      %v6544 = vadd.f32 %v6426, %v6520
      %v6545 = vadd.f32 %v6428, %v6521
      %v6546 = vadd.f32 %v6430, %v6522
      %v6547 = vadd.f32 %v6432, %v6523
      %v6548 = vadd.f32 %v6436, %v6524
      %v6549 = vadd.f32 %v6438, %v6525
      %v6550 = vadd.f32 %v6440, %v6526
      %v6551 = vadd.f32 %v6442, %v6527
      %v6552 = vadd.f32 %v6446, %v6528
      %v6553 = vadd.f32 %v6448, %v6529
      %v6554 = vadd.f32 %v6450, %v6530
      %v6555 = vadd.f32 %v6452, %v6531
      %v6556 = vadd.f32 %v6456, %v6532
      %v6557 = vadd.f32 %v6458, %v6533
      %v6558 = vadd.f32 %v6460, %v6534
      %v6559 = vadd.f32 %v6462, %v6535
      %v6560 = vmul.f32 %v6536, 0.7978846
      %v6561 = vmul.f32 %v6537, 0.7978846
      %v6562 = vmul.f32 %v6538, 0.7978846
      %v6563 = vmul.f32 %v6539, 0.7978846
      %v6564 = vmul.f32 %v6540, 0.7978846
      %v6565 = vmul.f32 %v6541, 0.7978846
      %v6566 = vmul.f32 %v6542, 0.7978846
      %v6567 = vmul.f32 %v6543, 0.7978846
      %v6568 = vmul.f32 %v6544, 0.7978846
      %v6569 = vmul.f32 %v6545, 0.7978846
      %v6570 = vmul.f32 %v6546, 0.7978846
      %v6571 = vmul.f32 %v6547, 0.7978846
      %v6572 = vmul.f32 %v6548, 0.7978846
      %v6573 = vmul.f32 %v6549, 0.7978846
      %v6574 = vmul.f32 %v6550, 0.7978846
      %v6575 = vmul.f32 %v6551, 0.7978846
      %v6576 = vmul.f32 %v6552, 0.7978846
      %v6577 = vmul.f32 %v6553, 0.7978846
      %v6578 = vmul.f32 %v6554, 0.7978846
      %v6579 = vmul.f32 %v6555, 0.7978846
      %v6580 = vmul.f32 %v6556, 0.7978846
      %v6581 = vmul.f32 %v6557, 0.7978846
      %v6582 = vmul.f32 %v6558, 0.7978846
      %v6583 = vmul.f32 %v6559, 0.7978846
      %v6584 = vtanh.pop %v6560
      %v6585 = vtanh.pop %v6561
      %v6586 = vtanh.pop %v6562
      %v6587 = vtanh.pop %v6563
      %v6588 = vtanh.pop %v6564
      %v6589 = vtanh.pop %v6565
      %v6590 = vtanh.pop %v6566
      %v6591 = vtanh.pop %v6567
      %v6592 = vtanh.pop %v6568
      %v6593 = vtanh.pop %v6569
      %v6594 = vtanh.pop %v6570
      %v6595 = vtanh.pop %v6571
      %v6596 = vtanh.pop %v6572
      %v6597 = vtanh.pop %v6573
      %v6598 = vtanh.pop %v6574
      %v6599 = vtanh.pop %v6575
      %v6600 = vtanh.pop %v6576
      %v6601 = vtanh.pop %v6577
      %v6602 = vtanh.pop %v6578
      %v6603 = vtanh.pop %v6579
      %v6604 = vtanh.pop %v6580
      %v6605 = vtanh.pop %v6581
      %v6606 = vtanh.pop %v6582
      %v6607 = vtanh.pop %v6583
      %v6608 = vadd.f32 %v6584, 1.0
      %v6609 = vadd.f32 %v6585, 1.0
      %v6610 = vadd.f32 %v6586, 1.0
      %v6611 = vadd.f32 %v6587, 1.0
      %v6612 = vadd.f32 %v6588, 1.0
      %v6613 = vadd.f32 %v6589, 1.0
      %v6614 = vadd.f32 %v6590, 1.0
      %v6615 = vadd.f32 %v6591, 1.0
      %v6616 = vadd.f32 %v6592, 1.0
      %v6617 = vadd.f32 %v6593, 1.0
      %v6618 = vadd.f32 %v6594, 1.0
      %v6619 = vadd.f32 %v6595, 1.0
      %v6620 = vadd.f32 %v6596, 1.0
      %v6621 = vadd.f32 %v6597, 1.0
      %v6622 = vadd.f32 %v6598, 1.0
      %v6623 = vadd.f32 %v6599, 1.0
      %v6624 = vadd.f32 %v6600, 1.0
      %v6625 = vadd.f32 %v6601, 1.0
      %v6626 = vadd.f32 %v6602, 1.0
      %v6627 = vadd.f32 %v6603, 1.0
      %v6628 = vadd.f32 %v6604, 1.0
      %v6629 = vadd.f32 %v6605, 1.0
      %v6630 = vadd.f32 %v6606, 1.0
      %v6631 = vadd.f32 %v6607, 1.0
      %v6632 = vmul.f32 %v6608, 0.5
      %v6633 = vmul.f32 %v6609, 0.5
      %v6634 = vmul.f32 %v6610, 0.5
      %v6635 = vmul.f32 %v6611, 0.5
      %v6636 = vmul.f32 %v6612, 0.5
      %v6637 = vmul.f32 %v6613, 0.5
      %v6638 = vmul.f32 %v6614, 0.5
      %v6639 = vmul.f32 %v6615, 0.5
      %v6640 = vmul.f32 %v6616, 0.5
      %v6641 = vmul.f32 %v6617, 0.5
      %v6642 = vmul.f32 %v6618, 0.5
      %v6643 = vmul.f32 %v6619, 0.5
      %v6644 = vmul.f32 %v6620, 0.5
      %v6645 = vmul.f32 %v6621, 0.5
      %v6646 = vmul.f32 %v6622, 0.5
      %v6647 = vmul.f32 %v6623, 0.5
      %v6648 = vmul.f32 %v6624, 0.5
      %v6649 = vmul.f32 %v6625, 0.5
      %v6650 = vmul.f32 %v6626, 0.5
      %v6651 = vmul.f32 %v6627, 0.5
      %v6652 = vmul.f32 %v6628, 0.5
      %v6653 = vmul.f32 %v6629, 0.5
      %v6654 = vmul.f32 %v6630, 0.5
      %v6655 = vmul.f32 %v6631, 0.5
      %v6656 = vmul.f32 %v6406, %v6632
      %v6657 = vmul.f32 %v6408, %v6633
      %v6658 = vmul.f32 %v6410, %v6634
      %v6659 = vmul.f32 %v6412, %v6635
      %v6660 = vmul.f32 %v6416, %v6636
      %v6661 = vmul.f32 %v6418, %v6637
      %v6662 = vmul.f32 %v6420, %v6638
      %v6663 = vmul.f32 %v6422, %v6639
      %v6664 = vmul.f32 %v6426, %v6640
      %v6665 = vmul.f32 %v6428, %v6641
      %v6666 = vmul.f32 %v6430, %v6642
      %v6667 = vmul.f32 %v6432, %v6643
      %v6668 = vmul.f32 %v6436, %v6644
      %v6669 = vmul.f32 %v6438, %v6645
      %v6670 = vmul.f32 %v6440, %v6646
      %v6671 = vmul.f32 %v6442, %v6647
      %v6672 = vmul.f32 %v6446, %v6648
      %v6673 = vmul.f32 %v6448, %v6649
      %v6674 = vmul.f32 %v6450, %v6650
      %v6675 = vmul.f32 %v6452, %v6651
      %v6676 = vmul.f32 %v6456, %v6652
      %v6677 = vmul.f32 %v6458, %v6653
      %v6678 = vmul.f32 %v6460, %v6654
      %v6679 = vmul.f32 %v6462, %v6655
      %v6680 = vpack.c.bf16 %v6658, %v6656
      %v6681 = vpack.c.bf16 %v6659, %v6657
      %v6682 = vpack.c.bf16 %v6662, %v6660
      %v6683 = vpack.c.bf16 %v6663, %v6661
      %v6684 = vpack.c.bf16 %v6666, %v6664
      %v6685 = vpack.c.bf16 %v6667, %v6665
      %v6686 = vpack.c.bf16 %v6670, %v6668
      %v6687 = vpack.c.bf16 %v6671, %v6669
      %v6688 = vpack.c.bf16 %v6674, %v6672
      %v6689 = vpack.c.bf16 %v6675, %v6673
      %v6690 = vpack.c.bf16 %v6678, %v6676
      %v6691 = vpack.c.bf16 %v6679, %v6677
      %v6693 = vsel %vm797, %v6314, 0
      %6695 = vmatprep.subr.bf16.mxu0 0
      %6696 = vmatpush1.bf16.msra.mxu0 0
      %6697 = vmatprep.subr.bf16.mxu0 0
      %6698 = vmatpush1.bf16.msra.mxu0 0
      %6699 = vmatprep.subr.bf16.mxu0 %v6691
      %6700 = vmatpush1.bf16.msra.mxu0 %v6690
      %6701 = vmatprep.subr.bf16.mxu0 %v6689
      %6702 = vmatpush1.bf16.msra.mxu0 %v6688
      %6703 = vmatprep.subr.bf16.mxu0 %v6687
      %6704 = vmatpush1.bf16.msra.mxu0 %v6686
      %6705 = vmatprep.subr.bf16.mxu0 %v6685
      %6706 = vmatpush1.bf16.msra.mxu0 %v6684
      %6707 = vmatprep.subr.bf16.mxu0 %v6683
      %6708 = vmatpush1.bf16.msra.mxu0 %v6682
      %6709 = vmatprep.subr.bf16.mxu0 %v6681
      %6710 = vmatpush1.bf16.msra.mxu0 %v6680
      %6711 = vmatprep.subr.bf16.mxu0 0
      %6712 = vmatpush2.bf16.msra.mxu0 0
      %6713 = vmatprep.subr.bf16.mxu0 0
      %6714 = vmatpush2.bf16.msra.mxu0 0
      %6715 = vmatprep.subr.bf16.mxu0 0
      %6716 = vmatpush2.bf16.msra.mxu0 0
      %6717 = vmatprep.subr.bf16.mxu0 0
      %6718 = vmatpush2.bf16.msra.mxu0 0
      %6719 = vmatprep.subr.bf16.mxu0 0
      %6720 = vmatpush2.bf16.msra.mxu0 0
      %6721 = vmatprep.subr.bf16.mxu0 0
      %6722 = vmatpush2.bf16.msra.mxu0 0
      %6723 = vmatprep.subr.bf16.mxu0 0
      %6724 = vmatpush2.bf16.msra.mxu0 0
      %6725 = vmatprep.subr.bf16.mxu0 0
      %6726 = vmatpush2.bf16.msra.mxu0 0
      %6727 = vmatprep.mubr.bf16.mxu0 0
      %6728 = vmatmul.mubr.bf16.gmra.mxu0 %v6693
      %v6729 = vpop.f32.mrf.mxu0
      %v6730 = vadd.f32 0.0, %v6729
      %v6731 = vpop.f32.mrf.mxu0
      %v6732 = vadd.f32 0.0, %v6731
      %v6733 = vpop.f32.mrf.mxu0
      %v6734 = vpop.f32.mrf.mxu0
      %6735 = vdwg.mxu0
      %v6736 = vadd.f32 %v6294, %v6730
      %v6737 = vadd.f32 %v6296, %v6732
      %s6738 = scalar_lea.vmem %s4, 240
      %v6739 = vld [vmem:[%s6738] sm:$0xf]
      %v6740 = vld [vmem:[%s6738 + $0x4] sm:$0xf]
      %v6741 = vld [vmem:[%s6738 + $0x8] sm:$0xf]
      %v6742 = vld [vmem:[%s6738 + $0xc] sm:$0xf]
      %v6743 = vld [vmem:[%s6738 + $0x10] sm:$0xf]
      %v6744 = vld [vmem:[%s6738 + $0x14] sm:$0xf]
      %v6745 = vld [vmem:[%s6738 + $0x18] sm:$0xf]
      %v6746 = vld [vmem:[%s6738 + $0x1c] sm:$0xf]
      %v6747 = vld [vmem:[%s6738 + $0x20] sm:$0xf]
      %v6748 = vld [vmem:[%s6738 + $0x24] sm:$0xf]
      %v6749 = vld [vmem:[%s6738 + $0x28] sm:$0xf]
      %v6750 = vld [vmem:[%s6738 + $0x2c] sm:$0xf]
      %s6751 = scalar_lea.vmem %s5, 20
      %v6752 = vld [vmem:[%s6751] sm:$0x7]
      %v6753 = vpack.c.bf16 %v6736, %v6736
      %v6754 = vpack.c.bf16 %v6737, %v6737
      %v6767 = vunpack.c.l.b16 %v6739
      %v6768 = vunpack.c.l.b16 %v6740
      %v6769 = vunpack.c.l.b16 %v6741
      %v6770 = vunpack.c.l.b16 %v6742
      %v6771 = vunpack.c.l.b16 %v6743
      %v6772 = vunpack.c.l.b16 %v6744
      %v6773 = vunpack.c.l.b16 %v6745
      %v6774 = vunpack.c.l.b16 %v6746
      %v6775 = vunpack.c.l.b16 %v6747
      %v6776 = vunpack.c.l.b16 %v6748
      %v6777 = vunpack.c.l.b16 %v6749
      %v6778 = vunpack.c.l.b16 %v6750
      %v6779 = vpack.c.b16 %v6768, %v6767
      %v6780 = vpack.c.b16 %v6770, %v6769
      %v6781 = vpack.c.b16 %v6772, %v6771
      %v6782 = vpack.c.b16 %v6774, %v6773
      %v6783 = vpack.c.b16 %v6776, %v6775
      %v6784 = vpack.c.b16 %v6778, %v6777
      %v6786 = vsel %vm450, %v6779, 0
      %v6789 = vsel %vm450, %v6780, 0
      %v6792 = vsel %vm450, %v6781, 0
      %v6795 = vsel %vm450, %v6782, 0
      %v6798 = vsel %vm450, %v6783, 0
      %v6801 = vsel %vm450, %v6784, 0
      %v6804 = vsel %vm469, %v6753, 0
      %v6807 = vsel %vm469, %v6754, 0
      %6809 = vmatprep.subr.bf16.mxu0 0
      %6810 = vmatpush1.bf16.msra.mxu0 0
      %6811 = vmatprep.subr.bf16.mxu0 0
      %6812 = vmatpush1.bf16.msra.mxu0 0
      %6813 = vmatprep.subr.bf16.mxu0 0
      %6814 = vmatpush1.bf16.msra.mxu0 0
      %6815 = vmatprep.subr.bf16.mxu0 0
      %6816 = vmatpush1.bf16.msra.mxu0 0
      %6817 = vmatprep.subr.bf16.mxu0 0
      %6818 = vmatpush1.bf16.msra.mxu0 0
      %6819 = vmatprep.subr.bf16.mxu0 0
      %6820 = vmatpush1.bf16.msra.mxu0 0
      %6821 = vmatprep.subr.bf16.mxu0 0
      %6822 = vmatpush1.bf16.msra.mxu0 0
      %6823 = vmatprep.subr.bf16.mxu0 %v6807
      %6824 = vmatpush1.bf16.msra.mxu0 %v6804
      %6825 = vmatprep.subr.bf16.mxu0 0
      %6826 = vmatpush2.bf16.msra.mxu0 0
      %6827 = vmatprep.subr.bf16.mxu0 0
      %6828 = vmatpush2.bf16.msra.mxu0 0
      %6829 = vmatprep.subr.bf16.mxu0 0
      %6830 = vmatpush2.bf16.msra.mxu0 0
      %6831 = vmatprep.subr.bf16.mxu0 0
      %6832 = vmatpush2.bf16.msra.mxu0 0
      %6833 = vmatprep.subr.bf16.mxu0 0
      %6834 = vmatpush2.bf16.msra.mxu0 0
      %6835 = vmatprep.subr.bf16.mxu0 0
      %6836 = vmatpush2.bf16.msra.mxu0 0
      %6837 = vmatprep.subr.bf16.mxu0 0
      %6838 = vmatpush2.bf16.msra.mxu0 0
      %6839 = vmatprep.subr.bf16.mxu0 0
      %6840 = vmatpush2.bf16.msra.mxu0 0
      %6841 = vmatprep.mubr.bf16.mxu0 0
      %6842 = vmatmul.mubr.bf16.gmra.mxu0 %v6786
      %v6843 = vpop.f32.mrf.mxu0
      %v6844 = vadd.f32 0.0, %v6843
      %v6845 = vpop.f32.mrf.mxu0
      %v6846 = vadd.f32 0.0, %v6845
      %v6847 = vpop.f32.mrf.mxu0
      %v6848 = vadd.f32 0.0, %v6847
      %v6849 = vpop.f32.mrf.mxu0
      %v6850 = vadd.f32 0.0, %v6849
      %6851 = vmatprep.mubr.bf16.mxu0 0
      %6852 = vmatmul.mubr.bf16.gmra.mxu0 %v6789
      %v6853 = vpop.f32.mrf.mxu0
      %v6854 = vadd.f32 0.0, %v6853
      %v6855 = vpop.f32.mrf.mxu0
      %v6856 = vadd.f32 0.0, %v6855
      %v6857 = vpop.f32.mrf.mxu0
      %v6858 = vadd.f32 0.0, %v6857
      %v6859 = vpop.f32.mrf.mxu0
      %v6860 = vadd.f32 0.0, %v6859
      %6861 = vmatprep.mubr.bf16.mxu0 0
      %6862 = vmatmul.mubr.bf16.gmra.mxu0 %v6792
      %v6863 = vpop.f32.mrf.mxu0
      %v6864 = vadd.f32 0.0, %v6863
      %v6865 = vpop.f32.mrf.mxu0
      %v6866 = vadd.f32 0.0, %v6865
      %v6867 = vpop.f32.mrf.mxu0
      %v6868 = vadd.f32 0.0, %v6867
      %v6869 = vpop.f32.mrf.mxu0
      %v6870 = vadd.f32 0.0, %v6869
      %6871 = vmatprep.mubr.bf16.mxu0 0
      %6872 = vmatmul.mubr.bf16.gmra.mxu0 %v6795
      %v6873 = vpop.f32.mrf.mxu0
      %v6874 = vadd.f32 0.0, %v6873
      %v6875 = vpop.f32.mrf.mxu0
      %v6876 = vadd.f32 0.0, %v6875
      %v6877 = vpop.f32.mrf.mxu0
      %v6878 = vadd.f32 0.0, %v6877
      %v6879 = vpop.f32.mrf.mxu0
      %v6880 = vadd.f32 0.0, %v6879
      %6881 = vmatprep.mubr.bf16.mxu0 0
      %6882 = vmatmul.mubr.bf16.gmra.mxu0 %v6798
      %v6883 = vpop.f32.mrf.mxu0
      %v6884 = vadd.f32 0.0, %v6883
      %v6885 = vpop.f32.mrf.mxu0
      %v6886 = vadd.f32 0.0, %v6885
      %v6887 = vpop.f32.mrf.mxu0
      %v6888 = vadd.f32 0.0, %v6887
      %v6889 = vpop.f32.mrf.mxu0
      %v6890 = vadd.f32 0.0, %v6889
      %6891 = vmatprep.mubr.bf16.mxu0 0
      %6892 = vmatmul.mubr.bf16.gmra.mxu0 %v6801
      %v6893 = vpop.f32.mrf.mxu0
      %v6894 = vadd.f32 0.0, %v6893
      %v6895 = vpop.f32.mrf.mxu0
      %v6896 = vadd.f32 0.0, %v6895
      %v6897 = vpop.f32.mrf.mxu0
      %v6898 = vadd.f32 0.0, %v6897
      %v6899 = vpop.f32.mrf.mxu0
      %v6900 = vadd.f32 0.0, %v6899
      %6901 = vdwg.mxu0
      %v6902 = vmul.f32 %v6844, %v6844
      %v6903 = vmul.f32 %v6846, %v6846
      %v6904 = vmul.f32 %v6848, %v6848
      %v6905 = vmul.f32 %v6850, %v6850
      %v6906 = vmul.f32 %v6854, %v6854
      %v6907 = vmul.f32 %v6856, %v6856
      %v6908 = vmul.f32 %v6858, %v6858
      %v6909 = vmul.f32 %v6860, %v6860
      %v6910 = vmul.f32 %v6864, %v6864
      %v6911 = vmul.f32 %v6866, %v6866
      %v6912 = vmul.f32 %v6868, %v6868
      %v6913 = vmul.f32 %v6870, %v6870
      %v6914 = vmul.f32 %v6874, %v6874
      %v6915 = vmul.f32 %v6876, %v6876
      %v6916 = vmul.f32 %v6878, %v6878
      %v6917 = vmul.f32 %v6880, %v6880
      %v6918 = vmul.f32 %v6884, %v6884
      %v6919 = vmul.f32 %v6886, %v6886
      %v6920 = vmul.f32 %v6888, %v6888
      %v6921 = vmul.f32 %v6890, %v6890
      %v6922 = vmul.f32 %v6894, %v6894
      %v6923 = vmul.f32 %v6896, %v6896
      %v6924 = vmul.f32 %v6898, %v6898
      %v6925 = vmul.f32 %v6900, %v6900
      %v6926 = vmul.f32 %v6844, %v6902
      %v6927 = vmul.f32 %v6846, %v6903
      %v6928 = vmul.f32 %v6848, %v6904
      %v6929 = vmul.f32 %v6850, %v6905
      %v6930 = vmul.f32 %v6854, %v6906
      %v6931 = vmul.f32 %v6856, %v6907
      %v6932 = vmul.f32 %v6858, %v6908
      %v6933 = vmul.f32 %v6860, %v6909
      %v6934 = vmul.f32 %v6864, %v6910
      %v6935 = vmul.f32 %v6866, %v6911
      %v6936 = vmul.f32 %v6868, %v6912
      %v6937 = vmul.f32 %v6870, %v6913
      %v6938 = vmul.f32 %v6874, %v6914
      %v6939 = vmul.f32 %v6876, %v6915
      %v6940 = vmul.f32 %v6878, %v6916
      %v6941 = vmul.f32 %v6880, %v6917
      %v6942 = vmul.f32 %v6884, %v6918
      %v6943 = vmul.f32 %v6886, %v6919
      %v6944 = vmul.f32 %v6888, %v6920
      %v6945 = vmul.f32 %v6890, %v6921
      %v6946 = vmul.f32 %v6894, %v6922
      %v6947 = vmul.f32 %v6896, %v6923
      %v6948 = vmul.f32 %v6898, %v6924
      %v6949 = vmul.f32 %v6900, %v6925
      %v6950 = vmul.f32 %v6926, 0.044715
      %v6951 = vmul.f32 %v6927, 0.044715
      %v6952 = vmul.f32 %v6928, 0.044715
      %v6953 = vmul.f32 %v6929, 0.044715
      %v6954 = vmul.f32 %v6930, 0.044715
      %v6955 = vmul.f32 %v6931, 0.044715
      %v6956 = vmul.f32 %v6932, 0.044715
      %v6957 = vmul.f32 %v6933, 0.044715
      %v6958 = vmul.f32 %v6934, 0.044715
      %v6959 = vmul.f32 %v6935, 0.044715
      %v6960 = vmul.f32 %v6936, 0.044715
      %v6961 = vmul.f32 %v6937, 0.044715
      %v6962 = vmul.f32 %v6938, 0.044715
      %v6963 = vmul.f32 %v6939, 0.044715
      %v6964 = vmul.f32 %v6940, 0.044715
      %v6965 = vmul.f32 %v6941, 0.044715
      %v6966 = vmul.f32 %v6942, 0.044715
      %v6967 = vmul.f32 %v6943, 0.044715
      %v6968 = vmul.f32 %v6944, 0.044715
      %v6969 = vmul.f32 %v6945, 0.044715
      %v6970 = vmul.f32 %v6946, 0.044715
      %v6971 = vmul.f32 %v6947, 0.044715
      %v6972 = vmul.f32 %v6948, 0.044715
      %v6973 = vmul.f32 %v6949, 0.044715
      %v6974 = vadd.f32 %v6844, %v6950
      %v6975 = vadd.f32 %v6846, %v6951
      %v6976 = vadd.f32 %v6848, %v6952
      %v6977 = vadd.f32 %v6850, %v6953
      %v6978 = vadd.f32 %v6854, %v6954
      %v6979 = vadd.f32 %v6856, %v6955
      %v6980 = vadd.f32 %v6858, %v6956
      %v6981 = vadd.f32 %v6860, %v6957
      %v6982 = vadd.f32 %v6864, %v6958
      %v6983 = vadd.f32 %v6866, %v6959
      %v6984 = vadd.f32 %v6868, %v6960
      %v6985 = vadd.f32 %v6870, %v6961
      %v6986 = vadd.f32 %v6874, %v6962
      %v6987 = vadd.f32 %v6876, %v6963
      %v6988 = vadd.f32 %v6878, %v6964
      %v6989 = vadd.f32 %v6880, %v6965
      %v6990 = vadd.f32 %v6884, %v6966
      %v6991 = vadd.f32 %v6886, %v6967
      %v6992 = vadd.f32 %v6888, %v6968
      %v6993 = vadd.f32 %v6890, %v6969
      %v6994 = vadd.f32 %v6894, %v6970
      %v6995 = vadd.f32 %v6896, %v6971
      %v6996 = vadd.f32 %v6898, %v6972
      %v6997 = vadd.f32 %v6900, %v6973
      %v6998 = vmul.f32 %v6974, 0.7978846
      %v6999 = vmul.f32 %v6975, 0.7978846
      %v7000 = vmul.f32 %v6976, 0.7978846
      %v7001 = vmul.f32 %v6977, 0.7978846
      %v7002 = vmul.f32 %v6978, 0.7978846
      %v7003 = vmul.f32 %v6979, 0.7978846
      %v7004 = vmul.f32 %v6980, 0.7978846
      %v7005 = vmul.f32 %v6981, 0.7978846
      %v7006 = vmul.f32 %v6982, 0.7978846
      %v7007 = vmul.f32 %v6983, 0.7978846
      %v7008 = vmul.f32 %v6984, 0.7978846
      %v7009 = vmul.f32 %v6985, 0.7978846
      %v7010 = vmul.f32 %v6986, 0.7978846
      %v7011 = vmul.f32 %v6987, 0.7978846
      %v7012 = vmul.f32 %v6988, 0.7978846
      %v7013 = vmul.f32 %v6989, 0.7978846
      %v7014 = vmul.f32 %v6990, 0.7978846
      %v7015 = vmul.f32 %v6991, 0.7978846
      %v7016 = vmul.f32 %v6992, 0.7978846
      %v7017 = vmul.f32 %v6993, 0.7978846
      %v7018 = vmul.f32 %v6994, 0.7978846
      %v7019 = vmul.f32 %v6995, 0.7978846
      %v7020 = vmul.f32 %v6996, 0.7978846
      %v7021 = vmul.f32 %v6997, 0.7978846
      %v7022 = vtanh.pop %v6998
      %v7023 = vtanh.pop %v6999
      %v7024 = vtanh.pop %v7000
      %v7025 = vtanh.pop %v7001
      %v7026 = vtanh.pop %v7002
      %v7027 = vtanh.pop %v7003
      %v7028 = vtanh.pop %v7004
      %v7029 = vtanh.pop %v7005
      %v7030 = vtanh.pop %v7006
      %v7031 = vtanh.pop %v7007
      %v7032 = vtanh.pop %v7008
      %v7033 = vtanh.pop %v7009
      %v7034 = vtanh.pop %v7010
      %v7035 = vtanh.pop %v7011
      %v7036 = vtanh.pop %v7012
      %v7037 = vtanh.pop %v7013
      %v7038 = vtanh.pop %v7014
      %v7039 = vtanh.pop %v7015
      %v7040 = vtanh.pop %v7016
      %v7041 = vtanh.pop %v7017
      %v7042 = vtanh.pop %v7018
      %v7043 = vtanh.pop %v7019
      %v7044 = vtanh.pop %v7020
      %v7045 = vtanh.pop %v7021
      %v7046 = vadd.f32 %v7022, 1.0
      %v7047 = vadd.f32 %v7023, 1.0
      %v7048 = vadd.f32 %v7024, 1.0
      %v7049 = vadd.f32 %v7025, 1.0
      %v7050 = vadd.f32 %v7026, 1.0
      %v7051 = vadd.f32 %v7027, 1.0
      %v7052 = vadd.f32 %v7028, 1.0
      %v7053 = vadd.f32 %v7029, 1.0
      %v7054 = vadd.f32 %v7030, 1.0
      %v7055 = vadd.f32 %v7031, 1.0
      %v7056 = vadd.f32 %v7032, 1.0
      %v7057 = vadd.f32 %v7033, 1.0
      %v7058 = vadd.f32 %v7034, 1.0
      %v7059 = vadd.f32 %v7035, 1.0
      %v7060 = vadd.f32 %v7036, 1.0
      %v7061 = vadd.f32 %v7037, 1.0
      %v7062 = vadd.f32 %v7038, 1.0
      %v7063 = vadd.f32 %v7039, 1.0
      %v7064 = vadd.f32 %v7040, 1.0
      %v7065 = vadd.f32 %v7041, 1.0
      %v7066 = vadd.f32 %v7042, 1.0
      %v7067 = vadd.f32 %v7043, 1.0
      %v7068 = vadd.f32 %v7044, 1.0
      %v7069 = vadd.f32 %v7045, 1.0
      %v7070 = vmul.f32 %v7046, 0.5
      %v7071 = vmul.f32 %v7047, 0.5
      %v7072 = vmul.f32 %v7048, 0.5
      %v7073 = vmul.f32 %v7049, 0.5
      %v7074 = vmul.f32 %v7050, 0.5
      %v7075 = vmul.f32 %v7051, 0.5
      %v7076 = vmul.f32 %v7052, 0.5
      %v7077 = vmul.f32 %v7053, 0.5
      %v7078 = vmul.f32 %v7054, 0.5
      %v7079 = vmul.f32 %v7055, 0.5
      %v7080 = vmul.f32 %v7056, 0.5
      %v7081 = vmul.f32 %v7057, 0.5
      %v7082 = vmul.f32 %v7058, 0.5
      %v7083 = vmul.f32 %v7059, 0.5
      %v7084 = vmul.f32 %v7060, 0.5
      %v7085 = vmul.f32 %v7061, 0.5
      %v7086 = vmul.f32 %v7062, 0.5
      %v7087 = vmul.f32 %v7063, 0.5
      %v7088 = vmul.f32 %v7064, 0.5
      %v7089 = vmul.f32 %v7065, 0.5
      %v7090 = vmul.f32 %v7066, 0.5
      %v7091 = vmul.f32 %v7067, 0.5
      %v7092 = vmul.f32 %v7068, 0.5
      %v7093 = vmul.f32 %v7069, 0.5
      %v7094 = vmul.f32 %v6844, %v7070
      %v7095 = vmul.f32 %v6846, %v7071
      %v7096 = vmul.f32 %v6848, %v7072
      %v7097 = vmul.f32 %v6850, %v7073
      %v7098 = vmul.f32 %v6854, %v7074
      %v7099 = vmul.f32 %v6856, %v7075
      %v7100 = vmul.f32 %v6858, %v7076
      %v7101 = vmul.f32 %v6860, %v7077
      %v7102 = vmul.f32 %v6864, %v7078
      %v7103 = vmul.f32 %v6866, %v7079
      %v7104 = vmul.f32 %v6868, %v7080
      %v7105 = vmul.f32 %v6870, %v7081
      %v7106 = vmul.f32 %v6874, %v7082
      %v7107 = vmul.f32 %v6876, %v7083
      %v7108 = vmul.f32 %v6878, %v7084
      %v7109 = vmul.f32 %v6880, %v7085
      %v7110 = vmul.f32 %v6884, %v7086
      %v7111 = vmul.f32 %v6886, %v7087
      %v7112 = vmul.f32 %v6888, %v7088
      %v7113 = vmul.f32 %v6890, %v7089
      %v7114 = vmul.f32 %v6894, %v7090
      %v7115 = vmul.f32 %v6896, %v7091
      %v7116 = vmul.f32 %v6898, %v7092
      %v7117 = vmul.f32 %v6900, %v7093
      %v7118 = vpack.c.bf16 %v7096, %v7094
      %v7119 = vpack.c.bf16 %v7097, %v7095
      %v7120 = vpack.c.bf16 %v7100, %v7098
      %v7121 = vpack.c.bf16 %v7101, %v7099
      %v7122 = vpack.c.bf16 %v7104, %v7102
      %v7123 = vpack.c.bf16 %v7105, %v7103
      %v7124 = vpack.c.bf16 %v7108, %v7106
      %v7125 = vpack.c.bf16 %v7109, %v7107
      %v7126 = vpack.c.bf16 %v7112, %v7110
      %v7127 = vpack.c.bf16 %v7113, %v7111
      %v7128 = vpack.c.bf16 %v7116, %v7114
      %v7129 = vpack.c.bf16 %v7117, %v7115
      %v7131 = vsel %vm797, %v6752, 0
      %7133 = vmatprep.subr.bf16.mxu0 0
      %7134 = vmatpush1.bf16.msra.mxu0 0
      %7135 = vmatprep.subr.bf16.mxu0 0
      %7136 = vmatpush1.bf16.msra.mxu0 0
      %7137 = vmatprep.subr.bf16.mxu0 %v7129
      %7138 = vmatpush1.bf16.msra.mxu0 %v7128
      %7139 = vmatprep.subr.bf16.mxu0 %v7127
      %7140 = vmatpush1.bf16.msra.mxu0 %v7126
      %7141 = vmatprep.subr.bf16.mxu0 %v7125
      %7142 = vmatpush1.bf16.msra.mxu0 %v7124
      %7143 = vmatprep.subr.bf16.mxu0 %v7123
      %7144 = vmatpush1.bf16.msra.mxu0 %v7122
      %7145 = vmatprep.subr.bf16.mxu0 %v7121
      %7146 = vmatpush1.bf16.msra.mxu0 %v7120
      %7147 = vmatprep.subr.bf16.mxu0 %v7119
      %7148 = vmatpush1.bf16.msra.mxu0 %v7118
      %7149 = vmatprep.subr.bf16.mxu0 0
      %7150 = vmatpush2.bf16.msra.mxu0 0
      %7151 = vmatprep.subr.bf16.mxu0 0
      %7152 = vmatpush2.bf16.msra.mxu0 0
      %7153 = vmatprep.subr.bf16.mxu0 0
      %7154 = vmatpush2.bf16.msra.mxu0 0
      %7155 = vmatprep.subr.bf16.mxu0 0
      %7156 = vmatpush2.bf16.msra.mxu0 0
      %7157 = vmatprep.subr.bf16.mxu0 0
      %7158 = vmatpush2.bf16.msra.mxu0 0
      %7159 = vmatprep.subr.bf16.mxu0 0
      %7160 = vmatpush2.bf16.msra.mxu0 0
      %7161 = vmatprep.subr.bf16.mxu0 0
      %7162 = vmatpush2.bf16.msra.mxu0 0
      %7163 = vmatprep.subr.bf16.mxu0 0
      %7164 = vmatpush2.bf16.msra.mxu0 0
      %7165 = vmatprep.mubr.bf16.mxu0 0
      %7166 = vmatmul.mubr.bf16.gmra.mxu0 %v7131
      %v7167 = vpop.f32.mrf.mxu0
      %v7168 = vadd.f32 0.0, %v7167
      %v7169 = vpop.f32.mrf.mxu0
      %v7170 = vadd.f32 0.0, %v7169
      %v7171 = vpop.f32.mrf.mxu0
      %v7172 = vpop.f32.mrf.mxu0
      %7173 = vdwg.mxu0
      %v7174 = vadd.f32 %v6736, %v7168
      %v7175 = vadd.f32 %v6737, %v7170
      %s7176 = scalar_lea.vmem %s6, 4
      %v7177 = vld [vmem:[%s7176] sm:$0x7]
      %s7178 = scalar_lea.vmem %s7, 4
      %v7179 = vld [vmem:[%s7178] sm:$0x7]
      %v7180 = vpack.c.bf16 %v7174, %v7174
      %v7181 = vpack.c.bf16 %v7175, %v7175
      %v7183 = vsel %vm450, %v7179, 0
      %v7186 = vsel %vm469, %v7180, 0
      %v7189 = vsel %vm469, %v7181, 0
      %7191 = vmatprep.subr.bf16.mxu0 0
      %7192 = vmatpush1.bf16.msra.mxu0 0
      %7193 = vmatprep.subr.bf16.mxu0 0
      %7194 = vmatpush1.bf16.msra.mxu0 0
      %7195 = vmatprep.subr.bf16.mxu0 0
      %7196 = vmatpush1.bf16.msra.mxu0 0
      %7197 = vmatprep.subr.bf16.mxu0 0
      %7198 = vmatpush1.bf16.msra.mxu0 0
      %7199 = vmatprep.subr.bf16.mxu0 0
      %7200 = vmatpush1.bf16.msra.mxu0 0
      %7201 = vmatprep.subr.bf16.mxu0 0
      %7202 = vmatpush1.bf16.msra.mxu0 0
      %7203 = vmatprep.subr.bf16.mxu0 0
      %7204 = vmatpush1.bf16.msra.mxu0 0
      %7205 = vmatprep.subr.bf16.mxu0 %v7189
      %7206 = vmatpush1.bf16.msra.mxu0 %v7186
      %7207 = vmatprep.subr.bf16.mxu0 0
      %7208 = vmatpush2.bf16.msra.mxu0 0
      %7209 = vmatprep.subr.bf16.mxu0 0
      %7210 = vmatpush2.bf16.msra.mxu0 0
      %7211 = vmatprep.subr.bf16.mxu0 0
      %7212 = vmatpush2.bf16.msra.mxu0 0
      %7213 = vmatprep.subr.bf16.mxu0 0
      %7214 = vmatpush2.bf16.msra.mxu0 0
      %7215 = vmatprep.subr.bf16.mxu0 0
      %7216 = vmatpush2.bf16.msra.mxu0 0
      %7217 = vmatprep.subr.bf16.mxu0 0
      %7218 = vmatpush2.bf16.msra.mxu0 0
      %7219 = vmatprep.subr.bf16.mxu0 0
      %7220 = vmatpush2.bf16.msra.mxu0 0
      %7221 = vmatprep.subr.bf16.mxu0 0
      %7222 = vmatpush2.bf16.msra.mxu0 0
      %7223 = vmatprep.mubr.bf16.mxu0 0
      %7224 = vmatmul.mubr.bf16.gmra.mxu0 %v7183
      %v7225 = vpop.f32.mrf.mxu0
      %v7226 = vadd.f32 0.0, %v7225
      %v7227 = vpop.f32.mrf.mxu0
      %v7228 = vadd.f32 0.0, %v7227
      %v7229 = vpop.f32.mrf.mxu0
      %v7230 = vpop.f32.mrf.mxu0
      %7231 = vdwg.mxu0
      %v7233 = vsel %vm450, %v7177, 0
      %7235 = vmatprep.subr.bf16.mxu0 0
      %7236 = vmatpush1.bf16.msra.mxu0 0
      %7237 = vmatprep.subr.bf16.mxu0 0
      %7238 = vmatpush1.bf16.msra.mxu0 0
      %7239 = vmatprep.subr.bf16.mxu0 0
      %7240 = vmatpush1.bf16.msra.mxu0 0
      %7241 = vmatprep.subr.bf16.mxu0 0
      %7242 = vmatpush1.bf16.msra.mxu0 0
      %7243 = vmatprep.subr.bf16.mxu0 0
      %7244 = vmatpush1.bf16.msra.mxu0 0
      %7245 = vmatprep.subr.bf16.mxu0 0
      %7246 = vmatpush1.bf16.msra.mxu0 0
      %7247 = vmatprep.subr.bf16.mxu0 0
      %7248 = vmatpush1.bf16.msra.mxu0 0
      %7249 = vmatprep.subr.bf16.mxu0 %v2665
      %7250 = vmatpush1.bf16.msra.mxu0 %v2662
      %7251 = vmatprep.subr.bf16.mxu0 0
      %7252 = vmatpush2.bf16.msra.mxu0 0
      %7253 = vmatprep.subr.bf16.mxu0 0
      %7254 = vmatpush2.bf16.msra.mxu0 0
      %7255 = vmatprep.subr.bf16.mxu0 0
      %7256 = vmatpush2.bf16.msra.mxu0 0
      %7257 = vmatprep.subr.bf16.mxu0 0
      %7258 = vmatpush2.bf16.msra.mxu0 0
      %7259 = vmatprep.subr.bf16.mxu0 0
      %7260 = vmatpush2.bf16.msra.mxu0 0
      %7261 = vmatprep.subr.bf16.mxu0 0
      %7262 = vmatpush2.bf16.msra.mxu0 0
      %7263 = vmatprep.subr.bf16.mxu0 0
      %7264 = vmatpush2.bf16.msra.mxu0 0
      %7265 = vmatprep.subr.bf16.mxu0 0
      %7266 = vmatpush2.bf16.msra.mxu0 0
      %7267 = vmatprep.mubr.bf16.mxu0 0
      %7268 = vmatmul.mubr.bf16.gmra.mxu0 %v7233
      %v7269 = vpop.f32.mrf.mxu0
      %v7270 = vadd.f32 %v7226, %v7269
      %v7271 = vpop.f32.mrf.mxu0
      %v7272 = vadd.f32 %v7228, %v7271
      %v7273 = vpop.f32.mrf.mxu0
      %v7274 = vpop.f32.mrf.mxu0
      %7275 = vdwg.mxu0
      %s7276 = scalar_lea.vmem %s4, 192
      %v7277 = vld [vmem:[%s7276] sm:$0xf]
      %v7278 = vld [vmem:[%s7276 + $0x4] sm:$0xf]
      %v7279 = vld [vmem:[%s7276 + $0x8] sm:$0xf]
      %v7280 = vld [vmem:[%s7276 + $0xc] sm:$0xf]
      %v7281 = vld [vmem:[%s7276 + $0x10] sm:$0xf]
      %v7282 = vld [vmem:[%s7276 + $0x14] sm:$0xf]
      %v7283 = vld [vmem:[%s7276 + $0x18] sm:$0xf]
      %v7284 = vld [vmem:[%s7276 + $0x1c] sm:$0xf]
      %v7285 = vld [vmem:[%s7276 + $0x20] sm:$0xf]
      %v7286 = vld [vmem:[%s7276 + $0x24] sm:$0xf]
      %v7287 = vld [vmem:[%s7276 + $0x28] sm:$0xf]
      %v7288 = vld [vmem:[%s7276 + $0x2c] sm:$0xf]
      %s7289 = scalar_lea.vmem %s5, 16
      %v7290 = vld [vmem:[%s7289] sm:$0x7]
      %v7291 = vpack.c.bf16 %v7270, %v7270
      %v7292 = vpack.c.bf16 %v7272, %v7272
      %v7305 = vunpack.c.l.b16 %v7277
      %v7306 = vunpack.c.l.b16 %v7278
      %v7307 = vunpack.c.l.b16 %v7279
      %v7308 = vunpack.c.l.b16 %v7280
      %v7309 = vunpack.c.l.b16 %v7281
      %v7310 = vunpack.c.l.b16 %v7282
      %v7311 = vunpack.c.l.b16 %v7283
      %v7312 = vunpack.c.l.b16 %v7284
      %v7313 = vunpack.c.l.b16 %v7285
      %v7314 = vunpack.c.l.b16 %v7286
      %v7315 = vunpack.c.l.b16 %v7287
      %v7316 = vunpack.c.l.b16 %v7288
      %v7317 = vpack.c.b16 %v7306, %v7305
      %v7318 = vpack.c.b16 %v7308, %v7307
      %v7319 = vpack.c.b16 %v7310, %v7309
      %v7320 = vpack.c.b16 %v7312, %v7311
      %v7321 = vpack.c.b16 %v7314, %v7313
      %v7322 = vpack.c.b16 %v7316, %v7315
      %v7324 = vsel %vm450, %v7317, 0
      %v7327 = vsel %vm450, %v7318, 0
      %v7330 = vsel %vm450, %v7319, 0
      %v7333 = vsel %vm450, %v7320, 0
      %v7336 = vsel %vm450, %v7321, 0
      %v7339 = vsel %vm450, %v7322, 0
      %v7342 = vsel %vm469, %v7291, 0
      %v7345 = vsel %vm469, %v7292, 0
      %7347 = vmatprep.subr.bf16.mxu0 0
      %7348 = vmatpush1.bf16.msra.mxu0 0
      %7349 = vmatprep.subr.bf16.mxu0 0
      %7350 = vmatpush1.bf16.msra.mxu0 0
      %7351 = vmatprep.subr.bf16.mxu0 0
      %7352 = vmatpush1.bf16.msra.mxu0 0
      %7353 = vmatprep.subr.bf16.mxu0 0
      %7354 = vmatpush1.bf16.msra.mxu0 0
      %7355 = vmatprep.subr.bf16.mxu0 0
      %7356 = vmatpush1.bf16.msra.mxu0 0
      %7357 = vmatprep.subr.bf16.mxu0 0
      %7358 = vmatpush1.bf16.msra.mxu0 0
      %7359 = vmatprep.subr.bf16.mxu0 0
      %7360 = vmatpush1.bf16.msra.mxu0 0
      %7361 = vmatprep.subr.bf16.mxu0 %v7345
      %7362 = vmatpush1.bf16.msra.mxu0 %v7342
      %7363 = vmatprep.subr.bf16.mxu0 0
      %7364 = vmatpush2.bf16.msra.mxu0 0
      %7365 = vmatprep.subr.bf16.mxu0 0
      %7366 = vmatpush2.bf16.msra.mxu0 0
      %7367 = vmatprep.subr.bf16.mxu0 0
      %7368 = vmatpush2.bf16.msra.mxu0 0
      %7369 = vmatprep.subr.bf16.mxu0 0
      %7370 = vmatpush2.bf16.msra.mxu0 0
      %7371 = vmatprep.subr.bf16.mxu0 0
      %7372 = vmatpush2.bf16.msra.mxu0 0
      %7373 = vmatprep.subr.bf16.mxu0 0
      %7374 = vmatpush2.bf16.msra.mxu0 0
      %7375 = vmatprep.subr.bf16.mxu0 0
      %7376 = vmatpush2.bf16.msra.mxu0 0
      %7377 = vmatprep.subr.bf16.mxu0 0
      %7378 = vmatpush2.bf16.msra.mxu0 0
      %7379 = vmatprep.mubr.bf16.mxu0 0
      %7380 = vmatmul.mubr.bf16.gmra.mxu0 %v7324
      %v7381 = vpop.f32.mrf.mxu0
      %v7382 = vadd.f32 0.0, %v7381
      %v7383 = vpop.f32.mrf.mxu0
      %v7384 = vadd.f32 0.0, %v7383
      %v7385 = vpop.f32.mrf.mxu0
      %v7386 = vadd.f32 0.0, %v7385
      %v7387 = vpop.f32.mrf.mxu0
      %v7388 = vadd.f32 0.0, %v7387
      %7389 = vmatprep.mubr.bf16.mxu0 0
      %7390 = vmatmul.mubr.bf16.gmra.mxu0 %v7327
      %v7391 = vpop.f32.mrf.mxu0
      %v7392 = vadd.f32 0.0, %v7391
      %v7393 = vpop.f32.mrf.mxu0
      %v7394 = vadd.f32 0.0, %v7393
      %v7395 = vpop.f32.mrf.mxu0
      %v7396 = vadd.f32 0.0, %v7395
      %v7397 = vpop.f32.mrf.mxu0
      %v7398 = vadd.f32 0.0, %v7397
      %7399 = vmatprep.mubr.bf16.mxu0 0
      %7400 = vmatmul.mubr.bf16.gmra.mxu0 %v7330
      %v7401 = vpop.f32.mrf.mxu0
      %v7402 = vadd.f32 0.0, %v7401
      %v7403 = vpop.f32.mrf.mxu0
      %v7404 = vadd.f32 0.0, %v7403
      %v7405 = vpop.f32.mrf.mxu0
      %v7406 = vadd.f32 0.0, %v7405
      %v7407 = vpop.f32.mrf.mxu0
      %v7408 = vadd.f32 0.0, %v7407
      %7409 = vmatprep.mubr.bf16.mxu0 0
      %7410 = vmatmul.mubr.bf16.gmra.mxu0 %v7333
      %v7411 = vpop.f32.mrf.mxu0
      %v7412 = vadd.f32 0.0, %v7411
      %v7413 = vpop.f32.mrf.mxu0
      %v7414 = vadd.f32 0.0, %v7413
      %v7415 = vpop.f32.mrf.mxu0
      %v7416 = vadd.f32 0.0, %v7415
      %v7417 = vpop.f32.mrf.mxu0
      %v7418 = vadd.f32 0.0, %v7417
      %7419 = vmatprep.mubr.bf16.mxu0 0
      %7420 = vmatmul.mubr.bf16.gmra.mxu0 %v7336
      %v7421 = vpop.f32.mrf.mxu0
      %v7422 = vadd.f32 0.0, %v7421
      %v7423 = vpop.f32.mrf.mxu0
      %v7424 = vadd.f32 0.0, %v7423
      %v7425 = vpop.f32.mrf.mxu0
      %v7426 = vadd.f32 0.0, %v7425
      %v7427 = vpop.f32.mrf.mxu0
      %v7428 = vadd.f32 0.0, %v7427
      %7429 = vmatprep.mubr.bf16.mxu0 0
      %7430 = vmatmul.mubr.bf16.gmra.mxu0 %v7339
      %v7431 = vpop.f32.mrf.mxu0
      %v7432 = vadd.f32 0.0, %v7431
      %v7433 = vpop.f32.mrf.mxu0
      %v7434 = vadd.f32 0.0, %v7433
      %v7435 = vpop.f32.mrf.mxu0
      %v7436 = vadd.f32 0.0, %v7435
      %v7437 = vpop.f32.mrf.mxu0
      %v7438 = vadd.f32 0.0, %v7437
      %7439 = vdwg.mxu0
      %v7440 = vmul.f32 %v7382, %v7382
      %v7441 = vmul.f32 %v7384, %v7384
      %v7442 = vmul.f32 %v7386, %v7386
      %v7443 = vmul.f32 %v7388, %v7388
      %v7444 = vmul.f32 %v7392, %v7392
      %v7445 = vmul.f32 %v7394, %v7394
      %v7446 = vmul.f32 %v7396, %v7396
      %v7447 = vmul.f32 %v7398, %v7398
      %v7448 = vmul.f32 %v7402, %v7402
      %v7449 = vmul.f32 %v7404, %v7404
      %v7450 = vmul.f32 %v7406, %v7406
      %v7451 = vmul.f32 %v7408, %v7408
      %v7452 = vmul.f32 %v7412, %v7412
      %v7453 = vmul.f32 %v7414, %v7414
      %v7454 = vmul.f32 %v7416, %v7416
      %v7455 = vmul.f32 %v7418, %v7418
      %v7456 = vmul.f32 %v7422, %v7422
      %v7457 = vmul.f32 %v7424, %v7424
      %v7458 = vmul.f32 %v7426, %v7426
      %v7459 = vmul.f32 %v7428, %v7428
      %v7460 = vmul.f32 %v7432, %v7432
      %v7461 = vmul.f32 %v7434, %v7434
      %v7462 = vmul.f32 %v7436, %v7436
      %v7463 = vmul.f32 %v7438, %v7438
      %v7464 = vmul.f32 %v7382, %v7440
      %v7465 = vmul.f32 %v7384, %v7441
      %v7466 = vmul.f32 %v7386, %v7442
      %v7467 = vmul.f32 %v7388, %v7443
      %v7468 = vmul.f32 %v7392, %v7444
      %v7469 = vmul.f32 %v7394, %v7445
      %v7470 = vmul.f32 %v7396, %v7446
      %v7471 = vmul.f32 %v7398, %v7447
      %v7472 = vmul.f32 %v7402, %v7448
      %v7473 = vmul.f32 %v7404, %v7449
      %v7474 = vmul.f32 %v7406, %v7450
      %v7475 = vmul.f32 %v7408, %v7451
      %v7476 = vmul.f32 %v7412, %v7452
      %v7477 = vmul.f32 %v7414, %v7453
      %v7478 = vmul.f32 %v7416, %v7454
      %v7479 = vmul.f32 %v7418, %v7455
      %v7480 = vmul.f32 %v7422, %v7456
      %v7481 = vmul.f32 %v7424, %v7457
      %v7482 = vmul.f32 %v7426, %v7458
      %v7483 = vmul.f32 %v7428, %v7459
      %v7484 = vmul.f32 %v7432, %v7460
      %v7485 = vmul.f32 %v7434, %v7461
      %v7486 = vmul.f32 %v7436, %v7462
      %v7487 = vmul.f32 %v7438, %v7463
      %v7488 = vmul.f32 %v7464, 0.044715
      %v7489 = vmul.f32 %v7465, 0.044715
      %v7490 = vmul.f32 %v7466, 0.044715
      %v7491 = vmul.f32 %v7467, 0.044715
      %v7492 = vmul.f32 %v7468, 0.044715
      %v7493 = vmul.f32 %v7469, 0.044715
      %v7494 = vmul.f32 %v7470, 0.044715
      %v7495 = vmul.f32 %v7471, 0.044715
      %v7496 = vmul.f32 %v7472, 0.044715
      %v7497 = vmul.f32 %v7473, 0.044715
      %v7498 = vmul.f32 %v7474, 0.044715
      %v7499 = vmul.f32 %v7475, 0.044715
      %v7500 = vmul.f32 %v7476, 0.044715
      %v7501 = vmul.f32 %v7477, 0.044715
      %v7502 = vmul.f32 %v7478, 0.044715
      %v7503 = vmul.f32 %v7479, 0.044715
      %v7504 = vmul.f32 %v7480, 0.044715
      %v7505 = vmul.f32 %v7481, 0.044715
      %v7506 = vmul.f32 %v7482, 0.044715
      %v7507 = vmul.f32 %v7483, 0.044715
      %v7508 = vmul.f32 %v7484, 0.044715
      %v7509 = vmul.f32 %v7485, 0.044715
      %v7510 = vmul.f32 %v7486, 0.044715
      %v7511 = vmul.f32 %v7487, 0.044715
      %v7512 = vadd.f32 %v7382, %v7488
      %v7513 = vadd.f32 %v7384, %v7489
      %v7514 = vadd.f32 %v7386, %v7490
      %v7515 = vadd.f32 %v7388, %v7491
      %v7516 = vadd.f32 %v7392, %v7492
      %v7517 = vadd.f32 %v7394, %v7493
      %v7518 = vadd.f32 %v7396, %v7494
      %v7519 = vadd.f32 %v7398, %v7495
      %v7520 = vadd.f32 %v7402, %v7496
      %v7521 = vadd.f32 %v7404, %v7497
      %v7522 = vadd.f32 %v7406, %v7498
      %v7523 = vadd.f32 %v7408, %v7499
      %v7524 = vadd.f32 %v7412, %v7500
      %v7525 = vadd.f32 %v7414, %v7501
      %v7526 = vadd.f32 %v7416, %v7502
      %v7527 = vadd.f32 %v7418, %v7503
      %v7528 = vadd.f32 %v7422, %v7504
      %v7529 = vadd.f32 %v7424, %v7505
      %v7530 = vadd.f32 %v7426, %v7506
      %v7531 = vadd.f32 %v7428, %v7507
      %v7532 = vadd.f32 %v7432, %v7508
      %v7533 = vadd.f32 %v7434, %v7509
      %v7534 = vadd.f32 %v7436, %v7510
      %v7535 = vadd.f32 %v7438, %v7511
      %v7536 = vmul.f32 %v7512, 0.7978846
      %v7537 = vmul.f32 %v7513, 0.7978846
      %v7538 = vmul.f32 %v7514, 0.7978846
      %v7539 = vmul.f32 %v7515, 0.7978846
      %v7540 = vmul.f32 %v7516, 0.7978846
      %v7541 = vmul.f32 %v7517, 0.7978846
      %v7542 = vmul.f32 %v7518, 0.7978846
      %v7543 = vmul.f32 %v7519, 0.7978846
      %v7544 = vmul.f32 %v7520, 0.7978846
      %v7545 = vmul.f32 %v7521, 0.7978846
      %v7546 = vmul.f32 %v7522, 0.7978846
      %v7547 = vmul.f32 %v7523, 0.7978846
      %v7548 = vmul.f32 %v7524, 0.7978846
      %v7549 = vmul.f32 %v7525, 0.7978846
      %v7550 = vmul.f32 %v7526, 0.7978846
      %v7551 = vmul.f32 %v7527, 0.7978846
      %v7552 = vmul.f32 %v7528, 0.7978846
      %v7553 = vmul.f32 %v7529, 0.7978846
      %v7554 = vmul.f32 %v7530, 0.7978846
      %v7555 = vmul.f32 %v7531, 0.7978846
      %v7556 = vmul.f32 %v7532, 0.7978846
      %v7557 = vmul.f32 %v7533, 0.7978846
      %v7558 = vmul.f32 %v7534, 0.7978846
      %v7559 = vmul.f32 %v7535, 0.7978846
      %v7560 = vtanh.pop %v7536
      %v7561 = vtanh.pop %v7537
      %v7562 = vtanh.pop %v7538
      %v7563 = vtanh.pop %v7539
      %v7564 = vtanh.pop %v7540
      %v7565 = vtanh.pop %v7541
      %v7566 = vtanh.pop %v7542
      %v7567 = vtanh.pop %v7543
      %v7568 = vtanh.pop %v7544
      %v7569 = vtanh.pop %v7545
      %v7570 = vtanh.pop %v7546
      %v7571 = vtanh.pop %v7547
      %v7572 = vtanh.pop %v7548
      %v7573 = vtanh.pop %v7549
      %v7574 = vtanh.pop %v7550
      %v7575 = vtanh.pop %v7551
      %v7576 = vtanh.pop %v7552
      %v7577 = vtanh.pop %v7553
      %v7578 = vtanh.pop %v7554
      %v7579 = vtanh.pop %v7555
      %v7580 = vtanh.pop %v7556
      %v7581 = vtanh.pop %v7557
      %v7582 = vtanh.pop %v7558
      %v7583 = vtanh.pop %v7559
      %v7584 = vadd.f32 %v7560, 1.0
      %v7585 = vadd.f32 %v7561, 1.0
      %v7586 = vadd.f32 %v7562, 1.0
      %v7587 = vadd.f32 %v7563, 1.0
      %v7588 = vadd.f32 %v7564, 1.0
      %v7589 = vadd.f32 %v7565, 1.0
      %v7590 = vadd.f32 %v7566, 1.0
      %v7591 = vadd.f32 %v7567, 1.0
      %v7592 = vadd.f32 %v7568, 1.0
      %v7593 = vadd.f32 %v7569, 1.0
      %v7594 = vadd.f32 %v7570, 1.0
      %v7595 = vadd.f32 %v7571, 1.0
      %v7596 = vadd.f32 %v7572, 1.0
      %v7597 = vadd.f32 %v7573, 1.0
      %v7598 = vadd.f32 %v7574, 1.0
      %v7599 = vadd.f32 %v7575, 1.0
      %v7600 = vadd.f32 %v7576, 1.0
      %v7601 = vadd.f32 %v7577, 1.0
      %v7602 = vadd.f32 %v7578, 1.0
      %v7603 = vadd.f32 %v7579, 1.0
      %v7604 = vadd.f32 %v7580, 1.0
      %v7605 = vadd.f32 %v7581, 1.0
      %v7606 = vadd.f32 %v7582, 1.0
      %v7607 = vadd.f32 %v7583, 1.0
      %v7608 = vmul.f32 %v7584, 0.5
      %v7609 = vmul.f32 %v7585, 0.5
      %v7610 = vmul.f32 %v7586, 0.5
      %v7611 = vmul.f32 %v7587, 0.5
      %v7612 = vmul.f32 %v7588, 0.5
      %v7613 = vmul.f32 %v7589, 0.5
      %v7614 = vmul.f32 %v7590, 0.5
      %v7615 = vmul.f32 %v7591, 0.5
      %v7616 = vmul.f32 %v7592, 0.5
      %v7617 = vmul.f32 %v7593, 0.5
      %v7618 = vmul.f32 %v7594, 0.5
      %v7619 = vmul.f32 %v7595, 0.5
      %v7620 = vmul.f32 %v7596, 0.5
      %v7621 = vmul.f32 %v7597, 0.5
      %v7622 = vmul.f32 %v7598, 0.5
      %v7623 = vmul.f32 %v7599, 0.5
      %v7624 = vmul.f32 %v7600, 0.5
      %v7625 = vmul.f32 %v7601, 0.5
      %v7626 = vmul.f32 %v7602, 0.5
      %v7627 = vmul.f32 %v7603, 0.5
      %v7628 = vmul.f32 %v7604, 0.5
      %v7629 = vmul.f32 %v7605, 0.5
      %v7630 = vmul.f32 %v7606, 0.5
      %v7631 = vmul.f32 %v7607, 0.5
      %v7632 = vmul.f32 %v7382, %v7608
      %v7633 = vmul.f32 %v7384, %v7609
      %v7634 = vmul.f32 %v7386, %v7610
      %v7635 = vmul.f32 %v7388, %v7611
      %v7636 = vmul.f32 %v7392, %v7612
      %v7637 = vmul.f32 %v7394, %v7613
      %v7638 = vmul.f32 %v7396, %v7614
      %v7639 = vmul.f32 %v7398, %v7615
      %v7640 = vmul.f32 %v7402, %v7616
      %v7641 = vmul.f32 %v7404, %v7617
      %v7642 = vmul.f32 %v7406, %v7618
      %v7643 = vmul.f32 %v7408, %v7619
      %v7644 = vmul.f32 %v7412, %v7620
      %v7645 = vmul.f32 %v7414, %v7621
      %v7646 = vmul.f32 %v7416, %v7622
      %v7647 = vmul.f32 %v7418, %v7623
      %v7648 = vmul.f32 %v7422, %v7624
      %v7649 = vmul.f32 %v7424, %v7625
      %v7650 = vmul.f32 %v7426, %v7626
      %v7651 = vmul.f32 %v7428, %v7627
      %v7652 = vmul.f32 %v7432, %v7628
      %v7653 = vmul.f32 %v7434, %v7629
      %v7654 = vmul.f32 %v7436, %v7630
      %v7655 = vmul.f32 %v7438, %v7631
      %v7656 = vpack.c.bf16 %v7634, %v7632
      %v7657 = vpack.c.bf16 %v7635, %v7633
      %v7658 = vpack.c.bf16 %v7638, %v7636
      %v7659 = vpack.c.bf16 %v7639, %v7637
      %v7660 = vpack.c.bf16 %v7642, %v7640
      %v7661 = vpack.c.bf16 %v7643, %v7641
      %v7662 = vpack.c.bf16 %v7646, %v7644
      %v7663 = vpack.c.bf16 %v7647, %v7645
      %v7664 = vpack.c.bf16 %v7650, %v7648
      %v7665 = vpack.c.bf16 %v7651, %v7649
      %v7666 = vpack.c.bf16 %v7654, %v7652
      %v7667 = vpack.c.bf16 %v7655, %v7653
      %v7669 = vsel %vm797, %v7290, 0
      %7671 = vmatprep.subr.bf16.mxu0 0
      %7672 = vmatpush1.bf16.msra.mxu0 0
      %7673 = vmatprep.subr.bf16.mxu0 0
      %7674 = vmatpush1.bf16.msra.mxu0 0
      %7675 = vmatprep.subr.bf16.mxu0 %v7667
      %7676 = vmatpush1.bf16.msra.mxu0 %v7666
      %7677 = vmatprep.subr.bf16.mxu0 %v7665
      %7678 = vmatpush1.bf16.msra.mxu0 %v7664
      %7679 = vmatprep.subr.bf16.mxu0 %v7663
      %7680 = vmatpush1.bf16.msra.mxu0 %v7662
      %7681 = vmatprep.subr.bf16.mxu0 %v7661
      %7682 = vmatpush1.bf16.msra.mxu0 %v7660
      %7683 = vmatprep.subr.bf16.mxu0 %v7659
      %7684 = vmatpush1.bf16.msra.mxu0 %v7658
      %7685 = vmatprep.subr.bf16.mxu0 %v7657
      %7686 = vmatpush1.bf16.msra.mxu0 %v7656
      %7687 = vmatprep.subr.bf16.mxu0 0
      %7688 = vmatpush2.bf16.msra.mxu0 0
      %7689 = vmatprep.subr.bf16.mxu0 0
      %7690 = vmatpush2.bf16.msra.mxu0 0
      %7691 = vmatprep.subr.bf16.mxu0 0
      %7692 = vmatpush2.bf16.msra.mxu0 0
      %7693 = vmatprep.subr.bf16.mxu0 0
      %7694 = vmatpush2.bf16.msra.mxu0 0
      %7695 = vmatprep.subr.bf16.mxu0 0
      %7696 = vmatpush2.bf16.msra.mxu0 0
      %7697 = vmatprep.subr.bf16.mxu0 0
      %7698 = vmatpush2.bf16.msra.mxu0 0
      %7699 = vmatprep.subr.bf16.mxu0 0
      %7700 = vmatpush2.bf16.msra.mxu0 0
      %7701 = vmatprep.subr.bf16.mxu0 0
      %7702 = vmatpush2.bf16.msra.mxu0 0
      %7703 = vmatprep.mubr.bf16.mxu0 0
      %7704 = vmatmul.mubr.bf16.gmra.mxu0 %v7669
      %v7705 = vpop.f32.mrf.mxu0
      %v7706 = vadd.f32 0.0, %v7705
      %v7707 = vpop.f32.mrf.mxu0
      %v7708 = vadd.f32 0.0, %v7707
      %v7709 = vpop.f32.mrf.mxu0
      %v7710 = vpop.f32.mrf.mxu0
      %7711 = vdwg.mxu0
      %v7712 = vadd.f32 %v7270, %v7706
      %v7713 = vadd.f32 %v7272, %v7708
      %s7714 = scalar_lea.vmem %s4, 144
      %v7715 = vld [vmem:[%s7714] sm:$0xf]
      %v7716 = vld [vmem:[%s7714 + $0x4] sm:$0xf]
      %v7717 = vld [vmem:[%s7714 + $0x8] sm:$0xf]
      %v7718 = vld [vmem:[%s7714 + $0xc] sm:$0xf]
      %v7719 = vld [vmem:[%s7714 + $0x10] sm:$0xf]
      %v7720 = vld [vmem:[%s7714 + $0x14] sm:$0xf]
      %v7721 = vld [vmem:[%s7714 + $0x18] sm:$0xf]
      %v7722 = vld [vmem:[%s7714 + $0x1c] sm:$0xf]
      %v7723 = vld [vmem:[%s7714 + $0x20] sm:$0xf]
      %v7724 = vld [vmem:[%s7714 + $0x24] sm:$0xf]
      %v7725 = vld [vmem:[%s7714 + $0x28] sm:$0xf]
      %v7726 = vld [vmem:[%s7714 + $0x2c] sm:$0xf]
      %s7727 = scalar_lea.vmem %s5, 12
      %v7728 = vld [vmem:[%s7727] sm:$0x7]
      %v7729 = vpack.c.bf16 %v7712, %v7712
      %v7730 = vpack.c.bf16 %v7713, %v7713
      %v7743 = vunpack.c.l.b16 %v7715
      %v7744 = vunpack.c.l.b16 %v7716
      %v7745 = vunpack.c.l.b16 %v7717
      %v7746 = vunpack.c.l.b16 %v7718
      %v7747 = vunpack.c.l.b16 %v7719
      %v7748 = vunpack.c.l.b16 %v7720
      %v7749 = vunpack.c.l.b16 %v7721
      %v7750 = vunpack.c.l.b16 %v7722
      %v7751 = vunpack.c.l.b16 %v7723
      %v7752 = vunpack.c.l.b16 %v7724
      %v7753 = vunpack.c.l.b16 %v7725
      %v7754 = vunpack.c.l.b16 %v7726
      %v7755 = vpack.c.b16 %v7744, %v7743
      %v7756 = vpack.c.b16 %v7746, %v7745
      %v7757 = vpack.c.b16 %v7748, %v7747
      %v7758 = vpack.c.b16 %v7750, %v7749
      %v7759 = vpack.c.b16 %v7752, %v7751
      %v7760 = vpack.c.b16 %v7754, %v7753
      %v7762 = vsel %vm450, %v7755, 0
      %v7765 = vsel %vm450, %v7756, 0
      %v7768 = vsel %vm450, %v7757, 0
      %v7771 = vsel %vm450, %v7758, 0
      %v7774 = vsel %vm450, %v7759, 0
      %v7777 = vsel %vm450, %v7760, 0
      %v7780 = vsel %vm469, %v7729, 0
      %v7783 = vsel %vm469, %v7730, 0
      %7785 = vmatprep.subr.bf16.mxu0 0
      %7786 = vmatpush1.bf16.msra.mxu0 0
      %7787 = vmatprep.subr.bf16.mxu0 0
      %7788 = vmatpush1.bf16.msra.mxu0 0
      %7789 = vmatprep.subr.bf16.mxu0 0
      %7790 = vmatpush1.bf16.msra.mxu0 0
      %7791 = vmatprep.subr.bf16.mxu0 0
      %7792 = vmatpush1.bf16.msra.mxu0 0
      %7793 = vmatprep.subr.bf16.mxu0 0
      %7794 = vmatpush1.bf16.msra.mxu0 0
      %7795 = vmatprep.subr.bf16.mxu0 0
      %7796 = vmatpush1.bf16.msra.mxu0 0
      %7797 = vmatprep.subr.bf16.mxu0 0
      %7798 = vmatpush1.bf16.msra.mxu0 0
      %7799 = vmatprep.subr.bf16.mxu0 %v7783
      %7800 = vmatpush1.bf16.msra.mxu0 %v7780
      %7801 = vmatprep.subr.bf16.mxu0 0
      %7802 = vmatpush2.bf16.msra.mxu0 0
      %7803 = vmatprep.subr.bf16.mxu0 0
      %7804 = vmatpush2.bf16.msra.mxu0 0
      %7805 = vmatprep.subr.bf16.mxu0 0
      %7806 = vmatpush2.bf16.msra.mxu0 0
      %7807 = vmatprep.subr.bf16.mxu0 0
      %7808 = vmatpush2.bf16.msra.mxu0 0
      %7809 = vmatprep.subr.bf16.mxu0 0
      %7810 = vmatpush2.bf16.msra.mxu0 0
      %7811 = vmatprep.subr.bf16.mxu0 0
      %7812 = vmatpush2.bf16.msra.mxu0 0
      %7813 = vmatprep.subr.bf16.mxu0 0
      %7814 = vmatpush2.bf16.msra.mxu0 0
      %7815 = vmatprep.subr.bf16.mxu0 0
      %7816 = vmatpush2.bf16.msra.mxu0 0
      %7817 = vmatprep.mubr.bf16.mxu0 0
      %7818 = vmatmul.mubr.bf16.gmra.mxu0 %v7762
      %v7819 = vpop.f32.mrf.mxu0
      %v7820 = vadd.f32 0.0, %v7819
      %v7821 = vpop.f32.mrf.mxu0
      %v7822 = vadd.f32 0.0, %v7821
      %v7823 = vpop.f32.mrf.mxu0
      %v7824 = vadd.f32 0.0, %v7823
      %v7825 = vpop.f32.mrf.mxu0
      %v7826 = vadd.f32 0.0, %v7825
      %7827 = vmatprep.mubr.bf16.mxu0 0
      %7828 = vmatmul.mubr.bf16.gmra.mxu0 %v7765
      %v7829 = vpop.f32.mrf.mxu0
      %v7830 = vadd.f32 0.0, %v7829
      %v7831 = vpop.f32.mrf.mxu0
      %v7832 = vadd.f32 0.0, %v7831
      %v7833 = vpop.f32.mrf.mxu0
      %v7834 = vadd.f32 0.0, %v7833
      %v7835 = vpop.f32.mrf.mxu0
      %v7836 = vadd.f32 0.0, %v7835
      %7837 = vmatprep.mubr.bf16.mxu0 0
      %7838 = vmatmul.mubr.bf16.gmra.mxu0 %v7768
      %v7839 = vpop.f32.mrf.mxu0
      %v7840 = vadd.f32 0.0, %v7839
      %v7841 = vpop.f32.mrf.mxu0
      %v7842 = vadd.f32 0.0, %v7841
      %v7843 = vpop.f32.mrf.mxu0
      %v7844 = vadd.f32 0.0, %v7843
      %v7845 = vpop.f32.mrf.mxu0
      %v7846 = vadd.f32 0.0, %v7845
      %7847 = vmatprep.mubr.bf16.mxu0 0
      %7848 = vmatmul.mubr.bf16.gmra.mxu0 %v7771
      %v7849 = vpop.f32.mrf.mxu0
      %v7850 = vadd.f32 0.0, %v7849
      %v7851 = vpop.f32.mrf.mxu0
      %v7852 = vadd.f32 0.0, %v7851
      %v7853 = vpop.f32.mrf.mxu0
      %v7854 = vadd.f32 0.0, %v7853
      %v7855 = vpop.f32.mrf.mxu0
      %v7856 = vadd.f32 0.0, %v7855
      %7857 = vmatprep.mubr.bf16.mxu0 0
      %7858 = vmatmul.mubr.bf16.gmra.mxu0 %v7774
      %v7859 = vpop.f32.mrf.mxu0
      %v7860 = vadd.f32 0.0, %v7859
      %v7861 = vpop.f32.mrf.mxu0
      %v7862 = vadd.f32 0.0, %v7861
      %v7863 = vpop.f32.mrf.mxu0
      %v7864 = vadd.f32 0.0, %v7863
      %v7865 = vpop.f32.mrf.mxu0
      %v7866 = vadd.f32 0.0, %v7865
      %7867 = vmatprep.mubr.bf16.mxu0 0
      %7868 = vmatmul.mubr.bf16.gmra.mxu0 %v7777
      %v7869 = vpop.f32.mrf.mxu0
      %v7870 = vadd.f32 0.0, %v7869
      %v7871 = vpop.f32.mrf.mxu0
      %v7872 = vadd.f32 0.0, %v7871
      %v7873 = vpop.f32.mrf.mxu0
      %v7874 = vadd.f32 0.0, %v7873
      %v7875 = vpop.f32.mrf.mxu0
      %v7876 = vadd.f32 0.0, %v7875
      %7877 = vdwg.mxu0
      %v7878 = vmul.f32 %v7820, %v7820
      %v7879 = vmul.f32 %v7822, %v7822
      %v7880 = vmul.f32 %v7824, %v7824
      %v7881 = vmul.f32 %v7826, %v7826
      %v7882 = vmul.f32 %v7830, %v7830
      %v7883 = vmul.f32 %v7832, %v7832
      %v7884 = vmul.f32 %v7834, %v7834
      %v7885 = vmul.f32 %v7836, %v7836
      %v7886 = vmul.f32 %v7840, %v7840
      %v7887 = vmul.f32 %v7842, %v7842
      %v7888 = vmul.f32 %v7844, %v7844
      %v7889 = vmul.f32 %v7846, %v7846
      %v7890 = vmul.f32 %v7850, %v7850
      %v7891 = vmul.f32 %v7852, %v7852
      %v7892 = vmul.f32 %v7854, %v7854
      %v7893 = vmul.f32 %v7856, %v7856
      %v7894 = vmul.f32 %v7860, %v7860
      %v7895 = vmul.f32 %v7862, %v7862
      %v7896 = vmul.f32 %v7864, %v7864
      %v7897 = vmul.f32 %v7866, %v7866
      %v7898 = vmul.f32 %v7870, %v7870
      %v7899 = vmul.f32 %v7872, %v7872
      %v7900 = vmul.f32 %v7874, %v7874
      %v7901 = vmul.f32 %v7876, %v7876
      %v7902 = vmul.f32 %v7820, %v7878
      %v7903 = vmul.f32 %v7822, %v7879
      %v7904 = vmul.f32 %v7824, %v7880
      %v7905 = vmul.f32 %v7826, %v7881
      %v7906 = vmul.f32 %v7830, %v7882
      %v7907 = vmul.f32 %v7832, %v7883
      %v7908 = vmul.f32 %v7834, %v7884
      %v7909 = vmul.f32 %v7836, %v7885
      %v7910 = vmul.f32 %v7840, %v7886
      %v7911 = vmul.f32 %v7842, %v7887
      %v7912 = vmul.f32 %v7844, %v7888
      %v7913 = vmul.f32 %v7846, %v7889
      %v7914 = vmul.f32 %v7850, %v7890
      %v7915 = vmul.f32 %v7852, %v7891
      %v7916 = vmul.f32 %v7854, %v7892
      %v7917 = vmul.f32 %v7856, %v7893
      %v7918 = vmul.f32 %v7860, %v7894
      %v7919 = vmul.f32 %v7862, %v7895
      %v7920 = vmul.f32 %v7864, %v7896
      %v7921 = vmul.f32 %v7866, %v7897
      %v7922 = vmul.f32 %v7870, %v7898
      %v7923 = vmul.f32 %v7872, %v7899
      %v7924 = vmul.f32 %v7874, %v7900
      %v7925 = vmul.f32 %v7876, %v7901
      %v7926 = vmul.f32 %v7902, 0.044715
      %v7927 = vmul.f32 %v7903, 0.044715
      %v7928 = vmul.f32 %v7904, 0.044715
      %v7929 = vmul.f32 %v7905, 0.044715
      %v7930 = vmul.f32 %v7906, 0.044715
      %v7931 = vmul.f32 %v7907, 0.044715
      %v7932 = vmul.f32 %v7908, 0.044715
      %v7933 = vmul.f32 %v7909, 0.044715
      %v7934 = vmul.f32 %v7910, 0.044715
      %v7935 = vmul.f32 %v7911, 0.044715
      %v7936 = vmul.f32 %v7912, 0.044715
      %v7937 = vmul.f32 %v7913, 0.044715
      %v7938 = vmul.f32 %v7914, 0.044715
      %v7939 = vmul.f32 %v7915, 0.044715
      %v7940 = vmul.f32 %v7916, 0.044715
      %v7941 = vmul.f32 %v7917, 0.044715
      %v7942 = vmul.f32 %v7918, 0.044715
      %v7943 = vmul.f32 %v7919, 0.044715
      %v7944 = vmul.f32 %v7920, 0.044715
      %v7945 = vmul.f32 %v7921, 0.044715
      %v7946 = vmul.f32 %v7922, 0.044715
      %v7947 = vmul.f32 %v7923, 0.044715
      %v7948 = vmul.f32 %v7924, 0.044715
      %v7949 = vmul.f32 %v7925, 0.044715
      %v7950 = vadd.f32 %v7820, %v7926
      %v7951 = vadd.f32 %v7822, %v7927
      %v7952 = vadd.f32 %v7824, %v7928
      %v7953 = vadd.f32 %v7826, %v7929
      %v7954 = vadd.f32 %v7830, %v7930
      %v7955 = vadd.f32 %v7832, %v7931
      %v7956 = vadd.f32 %v7834, %v7932
      %v7957 = vadd.f32 %v7836, %v7933
      %v7958 = vadd.f32 %v7840, %v7934
      %v7959 = vadd.f32 %v7842, %v7935
      %v7960 = vadd.f32 %v7844, %v7936
      %v7961 = vadd.f32 %v7846, %v7937
      %v7962 = vadd.f32 %v7850, %v7938
      %v7963 = vadd.f32 %v7852, %v7939
      %v7964 = vadd.f32 %v7854, %v7940
      %v7965 = vadd.f32 %v7856, %v7941
      %v7966 = vadd.f32 %v7860, %v7942
      %v7967 = vadd.f32 %v7862, %v7943
      %v7968 = vadd.f32 %v7864, %v7944
      %v7969 = vadd.f32 %v7866, %v7945
      %v7970 = vadd.f32 %v7870, %v7946
      %v7971 = vadd.f32 %v7872, %v7947
      %v7972 = vadd.f32 %v7874, %v7948
      %v7973 = vadd.f32 %v7876, %v7949
      %v7974 = vmul.f32 %v7950, 0.7978846
      %v7975 = vmul.f32 %v7951, 0.7978846
      %v7976 = vmul.f32 %v7952, 0.7978846
      %v7977 = vmul.f32 %v7953, 0.7978846
      %v7978 = vmul.f32 %v7954, 0.7978846
      %v7979 = vmul.f32 %v7955, 0.7978846
      %v7980 = vmul.f32 %v7956, 0.7978846
      %v7981 = vmul.f32 %v7957, 0.7978846
      %v7982 = vmul.f32 %v7958, 0.7978846
      %v7983 = vmul.f32 %v7959, 0.7978846
      %v7984 = vmul.f32 %v7960, 0.7978846
      %v7985 = vmul.f32 %v7961, 0.7978846
      %v7986 = vmul.f32 %v7962, 0.7978846
      %v7987 = vmul.f32 %v7963, 0.7978846
      %v7988 = vmul.f32 %v7964, 0.7978846
      %v7989 = vmul.f32 %v7965, 0.7978846
      %v7990 = vmul.f32 %v7966, 0.7978846
      %v7991 = vmul.f32 %v7967, 0.7978846
      %v7992 = vmul.f32 %v7968, 0.7978846
      %v7993 = vmul.f32 %v7969, 0.7978846
      %v7994 = vmul.f32 %v7970, 0.7978846
      %v7995 = vmul.f32 %v7971, 0.7978846
      %v7996 = vmul.f32 %v7972, 0.7978846
      %v7997 = vmul.f32 %v7973, 0.7978846
      %v7998 = vtanh.pop %v7974
      %v7999 = vtanh.pop %v7975
      %v8000 = vtanh.pop %v7976
      %v8001 = vtanh.pop %v7977
      %v8002 = vtanh.pop %v7978
      %v8003 = vtanh.pop %v7979
      %v8004 = vtanh.pop %v7980
      %v8005 = vtanh.pop %v7981
      %v8006 = vtanh.pop %v7982
      %v8007 = vtanh.pop %v7983
      %v8008 = vtanh.pop %v7984
      %v8009 = vtanh.pop %v7985
      %v8010 = vtanh.pop %v7986
      %v8011 = vtanh.pop %v7987
      %v8012 = vtanh.pop %v7988
      %v8013 = vtanh.pop %v7989
      %v8014 = vtanh.pop %v7990
      %v8015 = vtanh.pop %v7991
      %v8016 = vtanh.pop %v7992
      %v8017 = vtanh.pop %v7993
      %v8018 = vtanh.pop %v7994
      %v8019 = vtanh.pop %v7995
      %v8020 = vtanh.pop %v7996
      %v8021 = vtanh.pop %v7997
      %v8022 = vadd.f32 %v7998, 1.0
      %v8023 = vadd.f32 %v7999, 1.0
      %v8024 = vadd.f32 %v8000, 1.0
      %v8025 = vadd.f32 %v8001, 1.0
      %v8026 = vadd.f32 %v8002, 1.0
      %v8027 = vadd.f32 %v8003, 1.0
      %v8028 = vadd.f32 %v8004, 1.0
      %v8029 = vadd.f32 %v8005, 1.0
      %v8030 = vadd.f32 %v8006, 1.0
      %v8031 = vadd.f32 %v8007, 1.0
      %v8032 = vadd.f32 %v8008, 1.0
      %v8033 = vadd.f32 %v8009, 1.0
      %v8034 = vadd.f32 %v8010, 1.0
      %v8035 = vadd.f32 %v8011, 1.0
      %v8036 = vadd.f32 %v8012, 1.0
      %v8037 = vadd.f32 %v8013, 1.0
      %v8038 = vadd.f32 %v8014, 1.0
      %v8039 = vadd.f32 %v8015, 1.0
      %v8040 = vadd.f32 %v8016, 1.0
      %v8041 = vadd.f32 %v8017, 1.0
      %v8042 = vadd.f32 %v8018, 1.0
      %v8043 = vadd.f32 %v8019, 1.0
      %v8044 = vadd.f32 %v8020, 1.0
      %v8045 = vadd.f32 %v8021, 1.0
      %v8046 = vmul.f32 %v8022, 0.5
      %v8047 = vmul.f32 %v8023, 0.5
      %v8048 = vmul.f32 %v8024, 0.5
      %v8049 = vmul.f32 %v8025, 0.5
      %v8050 = vmul.f32 %v8026, 0.5
      %v8051 = vmul.f32 %v8027, 0.5
      %v8052 = vmul.f32 %v8028, 0.5
      %v8053 = vmul.f32 %v8029, 0.5
      %v8054 = vmul.f32 %v8030, 0.5
      %v8055 = vmul.f32 %v8031, 0.5
      %v8056 = vmul.f32 %v8032, 0.5
      %v8057 = vmul.f32 %v8033, 0.5
      %v8058 = vmul.f32 %v8034, 0.5
      %v8059 = vmul.f32 %v8035, 0.5
      %v8060 = vmul.f32 %v8036, 0.5
      %v8061 = vmul.f32 %v8037, 0.5
      %v8062 = vmul.f32 %v8038, 0.5
      %v8063 = vmul.f32 %v8039, 0.5
      %v8064 = vmul.f32 %v8040, 0.5
      %v8065 = vmul.f32 %v8041, 0.5
      %v8066 = vmul.f32 %v8042, 0.5
      %v8067 = vmul.f32 %v8043, 0.5
      %v8068 = vmul.f32 %v8044, 0.5
      %v8069 = vmul.f32 %v8045, 0.5
      %v8070 = vmul.f32 %v7820, %v8046
      %v8071 = vmul.f32 %v7822, %v8047
      %v8072 = vmul.f32 %v7824, %v8048
      %v8073 = vmul.f32 %v7826, %v8049
      %v8074 = vmul.f32 %v7830, %v8050
      %v8075 = vmul.f32 %v7832, %v8051
      %v8076 = vmul.f32 %v7834, %v8052
      %v8077 = vmul.f32 %v7836, %v8053
      %v8078 = vmul.f32 %v7840, %v8054
      %v8079 = vmul.f32 %v7842, %v8055
      %v8080 = vmul.f32 %v7844, %v8056
      %v8081 = vmul.f32 %v7846, %v8057
      %v8082 = vmul.f32 %v7850, %v8058
      %v8083 = vmul.f32 %v7852, %v8059
      %v8084 = vmul.f32 %v7854, %v8060
      %v8085 = vmul.f32 %v7856, %v8061
      %v8086 = vmul.f32 %v7860, %v8062
      %v8087 = vmul.f32 %v7862, %v8063
      %v8088 = vmul.f32 %v7864, %v8064
      %v8089 = vmul.f32 %v7866, %v8065
      %v8090 = vmul.f32 %v7870, %v8066
      %v8091 = vmul.f32 %v7872, %v8067
      %v8092 = vmul.f32 %v7874, %v8068
      %v8093 = vmul.f32 %v7876, %v8069
      %v8094 = vpack.c.bf16 %v8072, %v8070
      %v8095 = vpack.c.bf16 %v8073, %v8071
      %v8096 = vpack.c.bf16 %v8076, %v8074
      %v8097 = vpack.c.bf16 %v8077, %v8075
      %v8098 = vpack.c.bf16 %v8080, %v8078
      %v8099 = vpack.c.bf16 %v8081, %v8079
      %v8100 = vpack.c.bf16 %v8084, %v8082
      %v8101 = vpack.c.bf16 %v8085, %v8083
      %v8102 = vpack.c.bf16 %v8088, %v8086
      %v8103 = vpack.c.bf16 %v8089, %v8087
      %v8104 = vpack.c.bf16 %v8092, %v8090
      %v8105 = vpack.c.bf16 %v8093, %v8091
      %v8107 = vsel %vm797, %v7728, 0
      %8109 = vmatprep.subr.bf16.mxu0 0
      %8110 = vmatpush1.bf16.msra.mxu0 0
      %8111 = vmatprep.subr.bf16.mxu0 0
      %8112 = vmatpush1.bf16.msra.mxu0 0
      %8113 = vmatprep.subr.bf16.mxu0 %v8105
      %8114 = vmatpush1.bf16.msra.mxu0 %v8104
      %8115 = vmatprep.subr.bf16.mxu0 %v8103
      %8116 = vmatpush1.bf16.msra.mxu0 %v8102
      %8117 = vmatprep.subr.bf16.mxu0 %v8101
      %8118 = vmatpush1.bf16.msra.mxu0 %v8100
      %8119 = vmatprep.subr.bf16.mxu0 %v8099
      %8120 = vmatpush1.bf16.msra.mxu0 %v8098
      %8121 = vmatprep.subr.bf16.mxu0 %v8097
      %8122 = vmatpush1.bf16.msra.mxu0 %v8096
      %8123 = vmatprep.subr.bf16.mxu0 %v8095
      %8124 = vmatpush1.bf16.msra.mxu0 %v8094
      %8125 = vmatprep.subr.bf16.mxu0 0
      %8126 = vmatpush2.bf16.msra.mxu0 0
      %8127 = vmatprep.subr.bf16.mxu0 0
      %8128 = vmatpush2.bf16.msra.mxu0 0
      %8129 = vmatprep.subr.bf16.mxu0 0
      %8130 = vmatpush2.bf16.msra.mxu0 0
      %8131 = vmatprep.subr.bf16.mxu0 0
      %8132 = vmatpush2.bf16.msra.mxu0 0
      %8133 = vmatprep.subr.bf16.mxu0 0
      %8134 = vmatpush2.bf16.msra.mxu0 0
      %8135 = vmatprep.subr.bf16.mxu0 0
      %8136 = vmatpush2.bf16.msra.mxu0 0
      %8137 = vmatprep.subr.bf16.mxu0 0
      %8138 = vmatpush2.bf16.msra.mxu0 0
      %8139 = vmatprep.subr.bf16.mxu0 0
      %8140 = vmatpush2.bf16.msra.mxu0 0
      %8141 = vmatprep.mubr.bf16.mxu0 0
      %8142 = vmatmul.mubr.bf16.gmra.mxu0 %v8107
      %v8143 = vpop.f32.mrf.mxu0
      %v8144 = vadd.f32 0.0, %v8143
      %v8145 = vpop.f32.mrf.mxu0
      %v8146 = vadd.f32 0.0, %v8145
      %v8147 = vpop.f32.mrf.mxu0
      %v8148 = vpop.f32.mrf.mxu0
      %8149 = vdwg.mxu0
      %v8150 = vadd.f32 %v7712, %v8144
      %v8151 = vadd.f32 %v7713, %v8146
      %v8152 = vld [vmem:[%s6] sm:$0x7]
      %v8153 = vld [vmem:[%s7] sm:$0x7]
      %v8154 = vpack.c.bf16 %v8150, %v8150
      %v8155 = vpack.c.bf16 %v8151, %v8151
      %v8157 = vsel %vm450, %v8153, 0
      %v8160 = vsel %vm469, %v8154, 0
      %v8163 = vsel %vm469, %v8155, 0
      %8165 = vmatprep.subr.bf16.mxu0 0
      %8166 = vmatpush1.bf16.msra.mxu0 0
      %8167 = vmatprep.subr.bf16.mxu0 0
      %8168 = vmatpush1.bf16.msra.mxu0 0
      %8169 = vmatprep.subr.bf16.mxu0 0
      %8170 = vmatpush1.bf16.msra.mxu0 0
      %8171 = vmatprep.subr.bf16.mxu0 0
      %8172 = vmatpush1.bf16.msra.mxu0 0
      %8173 = vmatprep.subr.bf16.mxu0 0
      %8174 = vmatpush1.bf16.msra.mxu0 0
      %8175 = vmatprep.subr.bf16.mxu0 0
      %8176 = vmatpush1.bf16.msra.mxu0 0
      %8177 = vmatprep.subr.bf16.mxu0 0
      %8178 = vmatpush1.bf16.msra.mxu0 0
      %8179 = vmatprep.subr.bf16.mxu0 %v8163
      %8180 = vmatpush1.bf16.msra.mxu0 %v8160
      %8181 = vmatprep.subr.bf16.mxu0 0
      %8182 = vmatpush2.bf16.msra.mxu0 0
      %8183 = vmatprep.subr.bf16.mxu0 0
      %8184 = vmatpush2.bf16.msra.mxu0 0
      %8185 = vmatprep.subr.bf16.mxu0 0
      %8186 = vmatpush2.bf16.msra.mxu0 0
      %8187 = vmatprep.subr.bf16.mxu0 0
      %8188 = vmatpush2.bf16.msra.mxu0 0
      %8189 = vmatprep.subr.bf16.mxu0 0
      %8190 = vmatpush2.bf16.msra.mxu0 0
      %8191 = vmatprep.subr.bf16.mxu0 0
      %8192 = vmatpush2.bf16.msra.mxu0 0
      %8193 = vmatprep.subr.bf16.mxu0 0
      %8194 = vmatpush2.bf16.msra.mxu0 0
      %8195 = vmatprep.subr.bf16.mxu0 0
      %8196 = vmatpush2.bf16.msra.mxu0 0
      %8197 = vmatprep.mubr.bf16.mxu0 0
      %8198 = vmatmul.mubr.bf16.gmra.mxu0 %v8157
      %v8199 = vpop.f32.mrf.mxu0
      %v8200 = vadd.f32 0.0, %v8199
      %v8201 = vpop.f32.mrf.mxu0
      %v8202 = vadd.f32 0.0, %v8201
      %v8203 = vpop.f32.mrf.mxu0
      %v8204 = vpop.f32.mrf.mxu0
      %8205 = vdwg.mxu0
      %v8207 = vsel %vm450, %v8152, 0
      %8209 = vmatprep.subr.bf16.mxu0 0
      %8210 = vmatpush1.bf16.msra.mxu0 0
      %8211 = vmatprep.subr.bf16.mxu0 0
      %8212 = vmatpush1.bf16.msra.mxu0 0
      %8213 = vmatprep.subr.bf16.mxu0 0
      %8214 = vmatpush1.bf16.msra.mxu0 0
      %8215 = vmatprep.subr.bf16.mxu0 0
      %8216 = vmatpush1.bf16.msra.mxu0 0
      %8217 = vmatprep.subr.bf16.mxu0 0
      %8218 = vmatpush1.bf16.msra.mxu0 0
      %8219 = vmatprep.subr.bf16.mxu0 0
      %8220 = vmatpush1.bf16.msra.mxu0 0
      %8221 = vmatprep.subr.bf16.mxu0 0
      %8222 = vmatpush1.bf16.msra.mxu0 0
      %8223 = vmatprep.subr.bf16.mxu0 %v1789
      %8224 = vmatpush1.bf16.msra.mxu0 %v1786
      %8225 = vmatprep.subr.bf16.mxu0 0
      %8226 = vmatpush2.bf16.msra.mxu0 0
      %8227 = vmatprep.subr.bf16.mxu0 0
      %8228 = vmatpush2.bf16.msra.mxu0 0
      %8229 = vmatprep.subr.bf16.mxu0 0
      %8230 = vmatpush2.bf16.msra.mxu0 0
      %8231 = vmatprep.subr.bf16.mxu0 0
      %8232 = vmatpush2.bf16.msra.mxu0 0
      %8233 = vmatprep.subr.bf16.mxu0 0
      %8234 = vmatpush2.bf16.msra.mxu0 0
      %8235 = vmatprep.subr.bf16.mxu0 0
      %8236 = vmatpush2.bf16.msra.mxu0 0
      %8237 = vmatprep.subr.bf16.mxu0 0
      %8238 = vmatpush2.bf16.msra.mxu0 0
      %8239 = vmatprep.subr.bf16.mxu0 0
      %8240 = vmatpush2.bf16.msra.mxu0 0
      %8241 = vmatprep.mubr.bf16.mxu0 0
      %8242 = vmatmul.mubr.bf16.gmra.mxu0 %v8207
      %v8243 = vpop.f32.mrf.mxu0
      %v8244 = vadd.f32 %v8200, %v8243
      %v8245 = vpop.f32.mrf.mxu0
      %v8246 = vadd.f32 %v8202, %v8245
      %v8247 = vpop.f32.mrf.mxu0
      %v8248 = vpop.f32.mrf.mxu0
      %8249 = vdwg.mxu0
      %s8250 = scalar_lea.vmem %s4, 96
      %v8251 = vld [vmem:[%s8250] sm:$0xf]
      %v8252 = vld [vmem:[%s8250 + $0x4] sm:$0xf]
      %v8253 = vld [vmem:[%s8250 + $0x8] sm:$0xf]
      %v8254 = vld [vmem:[%s8250 + $0xc] sm:$0xf]
      %v8255 = vld [vmem:[%s8250 + $0x10] sm:$0xf]
      %v8256 = vld [vmem:[%s8250 + $0x14] sm:$0xf]
      %v8257 = vld [vmem:[%s8250 + $0x18] sm:$0xf]
      %v8258 = vld [vmem:[%s8250 + $0x1c] sm:$0xf]
      %v8259 = vld [vmem:[%s8250 + $0x20] sm:$0xf]
      %v8260 = vld [vmem:[%s8250 + $0x24] sm:$0xf]
      %v8261 = vld [vmem:[%s8250 + $0x28] sm:$0xf]
      %v8262 = vld [vmem:[%s8250 + $0x2c] sm:$0xf]
      %s8263 = scalar_lea.vmem %s5, 8
      %v8264 = vld [vmem:[%s8263] sm:$0x7]
      %v8265 = vpack.c.bf16 %v8244, %v8244
      %v8266 = vpack.c.bf16 %v8246, %v8246
      %v8279 = vunpack.c.l.b16 %v8251
      %v8280 = vunpack.c.l.b16 %v8252
      %v8281 = vunpack.c.l.b16 %v8253
      %v8282 = vunpack.c.l.b16 %v8254
      %v8283 = vunpack.c.l.b16 %v8255
      %v8284 = vunpack.c.l.b16 %v8256
      %v8285 = vunpack.c.l.b16 %v8257
      %v8286 = vunpack.c.l.b16 %v8258
      %v8287 = vunpack.c.l.b16 %v8259
      %v8288 = vunpack.c.l.b16 %v8260
      %v8289 = vunpack.c.l.b16 %v8261
      %v8290 = vunpack.c.l.b16 %v8262
      %v8291 = vpack.c.b16 %v8280, %v8279
      %v8292 = vpack.c.b16 %v8282, %v8281
      %v8293 = vpack.c.b16 %v8284, %v8283
      %v8294 = vpack.c.b16 %v8286, %v8285
      %v8295 = vpack.c.b16 %v8288, %v8287
      %v8296 = vpack.c.b16 %v8290, %v8289
      %v8298 = vsel %vm450, %v8291, 0
      %v8301 = vsel %vm450, %v8292, 0
      %v8304 = vsel %vm450, %v8293, 0
      %v8307 = vsel %vm450, %v8294, 0
      %v8310 = vsel %vm450, %v8295, 0
      %v8313 = vsel %vm450, %v8296, 0
      %v8316 = vsel %vm469, %v8265, 0
      %v8319 = vsel %vm469, %v8266, 0
      %8321 = vmatprep.subr.bf16.mxu0 0
      %8322 = vmatpush1.bf16.msra.mxu0 0
      %8323 = vmatprep.subr.bf16.mxu0 0
      %8324 = vmatpush1.bf16.msra.mxu0 0
      %8325 = vmatprep.subr.bf16.mxu0 0
      %8326 = vmatpush1.bf16.msra.mxu0 0
      %8327 = vmatprep.subr.bf16.mxu0 0
      %8328 = vmatpush1.bf16.msra.mxu0 0
      %8329 = vmatprep.subr.bf16.mxu0 0
      %8330 = vmatpush1.bf16.msra.mxu0 0
      %8331 = vmatprep.subr.bf16.mxu0 0
      %8332 = vmatpush1.bf16.msra.mxu0 0
      %8333 = vmatprep.subr.bf16.mxu0 0
      %8334 = vmatpush1.bf16.msra.mxu0 0
      %8335 = vmatprep.subr.bf16.mxu0 %v8319
      %8336 = vmatpush1.bf16.msra.mxu0 %v8316
      %8337 = vmatprep.subr.bf16.mxu0 0
      %8338 = vmatpush2.bf16.msra.mxu0 0
      %8339 = vmatprep.subr.bf16.mxu0 0
      %8340 = vmatpush2.bf16.msra.mxu0 0
      %8341 = vmatprep.subr.bf16.mxu0 0
      %8342 = vmatpush2.bf16.msra.mxu0 0
      %8343 = vmatprep.subr.bf16.mxu0 0
      %8344 = vmatpush2.bf16.msra.mxu0 0
      %8345 = vmatprep.subr.bf16.mxu0 0
      %8346 = vmatpush2.bf16.msra.mxu0 0
      %8347 = vmatprep.subr.bf16.mxu0 0
      %8348 = vmatpush2.bf16.msra.mxu0 0
      %8349 = vmatprep.subr.bf16.mxu0 0
      %8350 = vmatpush2.bf16.msra.mxu0 0
      %8351 = vmatprep.subr.bf16.mxu0 0
      %8352 = vmatpush2.bf16.msra.mxu0 0
      %8353 = vmatprep.mubr.bf16.mxu0 0
      %8354 = vmatmul.mubr.bf16.gmra.mxu0 %v8298
      %v8355 = vpop.f32.mrf.mxu0
      %v8356 = vadd.f32 0.0, %v8355
      %v8357 = vpop.f32.mrf.mxu0
      %v8358 = vadd.f32 0.0, %v8357
      %v8359 = vpop.f32.mrf.mxu0
      %v8360 = vadd.f32 0.0, %v8359
      %v8361 = vpop.f32.mrf.mxu0
      %v8362 = vadd.f32 0.0, %v8361
      %8363 = vmatprep.mubr.bf16.mxu0 0
      %8364 = vmatmul.mubr.bf16.gmra.mxu0 %v8301
      %v8365 = vpop.f32.mrf.mxu0
      %v8366 = vadd.f32 0.0, %v8365
      %v8367 = vpop.f32.mrf.mxu0
      %v8368 = vadd.f32 0.0, %v8367
      %v8369 = vpop.f32.mrf.mxu0
      %v8370 = vadd.f32 0.0, %v8369
      %v8371 = vpop.f32.mrf.mxu0
      %v8372 = vadd.f32 0.0, %v8371
      %8373 = vmatprep.mubr.bf16.mxu0 0
      %8374 = vmatmul.mubr.bf16.gmra.mxu0 %v8304
      %v8375 = vpop.f32.mrf.mxu0
      %v8376 = vadd.f32 0.0, %v8375
      %v8377 = vpop.f32.mrf.mxu0
      %v8378 = vadd.f32 0.0, %v8377
      %v8379 = vpop.f32.mrf.mxu0
      %v8380 = vadd.f32 0.0, %v8379
      %v8381 = vpop.f32.mrf.mxu0
      %v8382 = vadd.f32 0.0, %v8381
      %8383 = vmatprep.mubr.bf16.mxu0 0
      %8384 = vmatmul.mubr.bf16.gmra.mxu0 %v8307
      %v8385 = vpop.f32.mrf.mxu0
      %v8386 = vadd.f32 0.0, %v8385
      %v8387 = vpop.f32.mrf.mxu0
      %v8388 = vadd.f32 0.0, %v8387
      %v8389 = vpop.f32.mrf.mxu0
      %v8390 = vadd.f32 0.0, %v8389
      %v8391 = vpop.f32.mrf.mxu0
      %v8392 = vadd.f32 0.0, %v8391
      %8393 = vmatprep.mubr.bf16.mxu0 0
      %8394 = vmatmul.mubr.bf16.gmra.mxu0 %v8310
      %v8395 = vpop.f32.mrf.mxu0
      %v8396 = vadd.f32 0.0, %v8395
      %v8397 = vpop.f32.mrf.mxu0
      %v8398 = vadd.f32 0.0, %v8397
      %v8399 = vpop.f32.mrf.mxu0
      %v8400 = vadd.f32 0.0, %v8399
      %v8401 = vpop.f32.mrf.mxu0
      %v8402 = vadd.f32 0.0, %v8401
      %8403 = vmatprep.mubr.bf16.mxu0 0
      %8404 = vmatmul.mubr.bf16.gmra.mxu0 %v8313
      %v8405 = vpop.f32.mrf.mxu0
      %v8406 = vadd.f32 0.0, %v8405
      %v8407 = vpop.f32.mrf.mxu0
      %v8408 = vadd.f32 0.0, %v8407
      %v8409 = vpop.f32.mrf.mxu0
      %v8410 = vadd.f32 0.0, %v8409
      %v8411 = vpop.f32.mrf.mxu0
      %v8412 = vadd.f32 0.0, %v8411
      %8413 = vdwg.mxu0
      %v8414 = vmul.f32 %v8356, %v8356
      %v8415 = vmul.f32 %v8358, %v8358
      %v8416 = vmul.f32 %v8360, %v8360
      %v8417 = vmul.f32 %v8362, %v8362
      %v8418 = vmul.f32 %v8366, %v8366
      %v8419 = vmul.f32 %v8368, %v8368
      %v8420 = vmul.f32 %v8370, %v8370
      %v8421 = vmul.f32 %v8372, %v8372
      %v8422 = vmul.f32 %v8376, %v8376
      %v8423 = vmul.f32 %v8378, %v8378
      %v8424 = vmul.f32 %v8380, %v8380
      %v8425 = vmul.f32 %v8382, %v8382
      %v8426 = vmul.f32 %v8386, %v8386
      %v8427 = vmul.f32 %v8388, %v8388
      %v8428 = vmul.f32 %v8390, %v8390
      %v8429 = vmul.f32 %v8392, %v8392
      %v8430 = vmul.f32 %v8396, %v8396
      %v8431 = vmul.f32 %v8398, %v8398
      %v8432 = vmul.f32 %v8400, %v8400
      %v8433 = vmul.f32 %v8402, %v8402
      %v8434 = vmul.f32 %v8406, %v8406
      %v8435 = vmul.f32 %v8408, %v8408
      %v8436 = vmul.f32 %v8410, %v8410
      %v8437 = vmul.f32 %v8412, %v8412
      %v8438 = vmul.f32 %v8356, %v8414
      %v8439 = vmul.f32 %v8358, %v8415
      %v8440 = vmul.f32 %v8360, %v8416
      %v8441 = vmul.f32 %v8362, %v8417
      %v8442 = vmul.f32 %v8366, %v8418
      %v8443 = vmul.f32 %v8368, %v8419
      %v8444 = vmul.f32 %v8370, %v8420
      %v8445 = vmul.f32 %v8372, %v8421
      %v8446 = vmul.f32 %v8376, %v8422
      %v8447 = vmul.f32 %v8378, %v8423
      %v8448 = vmul.f32 %v8380, %v8424
      %v8449 = vmul.f32 %v8382, %v8425
      %v8450 = vmul.f32 %v8386, %v8426
      %v8451 = vmul.f32 %v8388, %v8427
      %v8452 = vmul.f32 %v8390, %v8428
      %v8453 = vmul.f32 %v8392, %v8429
      %v8454 = vmul.f32 %v8396, %v8430
      %v8455 = vmul.f32 %v8398, %v8431
      %v8456 = vmul.f32 %v8400, %v8432
      %v8457 = vmul.f32 %v8402, %v8433
      %v8458 = vmul.f32 %v8406, %v8434
      %v8459 = vmul.f32 %v8408, %v8435
      %v8460 = vmul.f32 %v8410, %v8436
      %v8461 = vmul.f32 %v8412, %v8437
      %v8462 = vmul.f32 %v8438, 0.044715
      %v8463 = vmul.f32 %v8439, 0.044715
      %v8464 = vmul.f32 %v8440, 0.044715
      %v8465 = vmul.f32 %v8441, 0.044715
      %v8466 = vmul.f32 %v8442, 0.044715
      %v8467 = vmul.f32 %v8443, 0.044715
      %v8468 = vmul.f32 %v8444, 0.044715
      %v8469 = vmul.f32 %v8445, 0.044715
      %v8470 = vmul.f32 %v8446, 0.044715
      %v8471 = vmul.f32 %v8447, 0.044715
      %v8472 = vmul.f32 %v8448, 0.044715
      %v8473 = vmul.f32 %v8449, 0.044715
      %v8474 = vmul.f32 %v8450, 0.044715
      %v8475 = vmul.f32 %v8451, 0.044715
      %v8476 = vmul.f32 %v8452, 0.044715
      %v8477 = vmul.f32 %v8453, 0.044715
      %v8478 = vmul.f32 %v8454, 0.044715
      %v8479 = vmul.f32 %v8455, 0.044715
      %v8480 = vmul.f32 %v8456, 0.044715
      %v8481 = vmul.f32 %v8457, 0.044715
      %v8482 = vmul.f32 %v8458, 0.044715
      %v8483 = vmul.f32 %v8459, 0.044715
      %v8484 = vmul.f32 %v8460, 0.044715
      %v8485 = vmul.f32 %v8461, 0.044715
      %v8486 = vadd.f32 %v8356, %v8462
      %v8487 = vadd.f32 %v8358, %v8463
      %v8488 = vadd.f32 %v8360, %v8464
      %v8489 = vadd.f32 %v8362, %v8465
      %v8490 = vadd.f32 %v8366, %v8466
      %v8491 = vadd.f32 %v8368, %v8467
      %v8492 = vadd.f32 %v8370, %v8468
      %v8493 = vadd.f32 %v8372, %v8469
      %v8494 = vadd.f32 %v8376, %v8470
      %v8495 = vadd.f32 %v8378, %v8471
      %v8496 = vadd.f32 %v8380, %v8472
      %v8497 = vadd.f32 %v8382, %v8473
      %v8498 = vadd.f32 %v8386, %v8474
      %v8499 = vadd.f32 %v8388, %v8475
      %v8500 = vadd.f32 %v8390, %v8476
      %v8501 = vadd.f32 %v8392, %v8477
      %v8502 = vadd.f32 %v8396, %v8478
      %v8503 = vadd.f32 %v8398, %v8479
      %v8504 = vadd.f32 %v8400, %v8480
      %v8505 = vadd.f32 %v8402, %v8481
      %v8506 = vadd.f32 %v8406, %v8482
      %v8507 = vadd.f32 %v8408, %v8483
      %v8508 = vadd.f32 %v8410, %v8484
      %v8509 = vadd.f32 %v8412, %v8485
      %v8510 = vmul.f32 %v8486, 0.7978846
      %v8511 = vmul.f32 %v8487, 0.7978846
      %v8512 = vmul.f32 %v8488, 0.7978846
      %v8513 = vmul.f32 %v8489, 0.7978846
      %v8514 = vmul.f32 %v8490, 0.7978846
      %v8515 = vmul.f32 %v8491, 0.7978846
      %v8516 = vmul.f32 %v8492, 0.7978846
      %v8517 = vmul.f32 %v8493, 0.7978846
      %v8518 = vmul.f32 %v8494, 0.7978846
      %v8519 = vmul.f32 %v8495, 0.7978846
      %v8520 = vmul.f32 %v8496, 0.7978846
      %v8521 = vmul.f32 %v8497, 0.7978846
      %v8522 = vmul.f32 %v8498, 0.7978846
      %v8523 = vmul.f32 %v8499, 0.7978846
      %v8524 = vmul.f32 %v8500, 0.7978846
      %v8525 = vmul.f32 %v8501, 0.7978846
      %v8526 = vmul.f32 %v8502, 0.7978846
      %v8527 = vmul.f32 %v8503, 0.7978846
      %v8528 = vmul.f32 %v8504, 0.7978846
      %v8529 = vmul.f32 %v8505, 0.7978846
      %v8530 = vmul.f32 %v8506, 0.7978846
      %v8531 = vmul.f32 %v8507, 0.7978846
      %v8532 = vmul.f32 %v8508, 0.7978846
      %v8533 = vmul.f32 %v8509, 0.7978846
      %v8534 = vtanh.pop %v8510
      %v8535 = vtanh.pop %v8511
      %v8536 = vtanh.pop %v8512
      %v8537 = vtanh.pop %v8513
      %v8538 = vtanh.pop %v8514
      %v8539 = vtanh.pop %v8515
      %v8540 = vtanh.pop %v8516
      %v8541 = vtanh.pop %v8517
      %v8542 = vtanh.pop %v8518
      %v8543 = vtanh.pop %v8519
      %v8544 = vtanh.pop %v8520
      %v8545 = vtanh.pop %v8521
      %v8546 = vtanh.pop %v8522
      %v8547 = vtanh.pop %v8523
      %v8548 = vtanh.pop %v8524
      %v8549 = vtanh.pop %v8525
      %v8550 = vtanh.pop %v8526
      %v8551 = vtanh.pop %v8527
      %v8552 = vtanh.pop %v8528
      %v8553 = vtanh.pop %v8529
      %v8554 = vtanh.pop %v8530
      %v8555 = vtanh.pop %v8531
      %v8556 = vtanh.pop %v8532
      %v8557 = vtanh.pop %v8533
      %v8558 = vadd.f32 %v8534, 1.0
      %v8559 = vadd.f32 %v8535, 1.0
      %v8560 = vadd.f32 %v8536, 1.0
      %v8561 = vadd.f32 %v8537, 1.0
      %v8562 = vadd.f32 %v8538, 1.0
      %v8563 = vadd.f32 %v8539, 1.0
      %v8564 = vadd.f32 %v8540, 1.0
      %v8565 = vadd.f32 %v8541, 1.0
      %v8566 = vadd.f32 %v8542, 1.0
      %v8567 = vadd.f32 %v8543, 1.0
      %v8568 = vadd.f32 %v8544, 1.0
      %v8569 = vadd.f32 %v8545, 1.0
      %v8570 = vadd.f32 %v8546, 1.0
      %v8571 = vadd.f32 %v8547, 1.0
      %v8572 = vadd.f32 %v8548, 1.0
      %v8573 = vadd.f32 %v8549, 1.0
      %v8574 = vadd.f32 %v8550, 1.0
      %v8575 = vadd.f32 %v8551, 1.0
      %v8576 = vadd.f32 %v8552, 1.0
      %v8577 = vadd.f32 %v8553, 1.0
      %v8578 = vadd.f32 %v8554, 1.0
      %v8579 = vadd.f32 %v8555, 1.0
      %v8580 = vadd.f32 %v8556, 1.0
      %v8581 = vadd.f32 %v8557, 1.0
      %v8582 = vmul.f32 %v8558, 0.5
      %v8583 = vmul.f32 %v8559, 0.5
      %v8584 = vmul.f32 %v8560, 0.5
      %v8585 = vmul.f32 %v8561, 0.5
      %v8586 = vmul.f32 %v8562, 0.5
      %v8587 = vmul.f32 %v8563, 0.5
      %v8588 = vmul.f32 %v8564, 0.5
      %v8589 = vmul.f32 %v8565, 0.5
      %v8590 = vmul.f32 %v8566, 0.5
      %v8591 = vmul.f32 %v8567, 0.5
      %v8592 = vmul.f32 %v8568, 0.5
      %v8593 = vmul.f32 %v8569, 0.5
      %v8594 = vmul.f32 %v8570, 0.5
      %v8595 = vmul.f32 %v8571, 0.5
      %v8596 = vmul.f32 %v8572, 0.5
      %v8597 = vmul.f32 %v8573, 0.5
      %v8598 = vmul.f32 %v8574, 0.5
      %v8599 = vmul.f32 %v8575, 0.5
      %v8600 = vmul.f32 %v8576, 0.5
      %v8601 = vmul.f32 %v8577, 0.5
      %v8602 = vmul.f32 %v8578, 0.5
      %v8603 = vmul.f32 %v8579, 0.5
      %v8604 = vmul.f32 %v8580, 0.5
      %v8605 = vmul.f32 %v8581, 0.5
      %v8606 = vmul.f32 %v8356, %v8582
      %v8607 = vmul.f32 %v8358, %v8583
      %v8608 = vmul.f32 %v8360, %v8584
      %v8609 = vmul.f32 %v8362, %v8585
      %v8610 = vmul.f32 %v8366, %v8586
      %v8611 = vmul.f32 %v8368, %v8587
      %v8612 = vmul.f32 %v8370, %v8588
      %v8613 = vmul.f32 %v8372, %v8589
      %v8614 = vmul.f32 %v8376, %v8590
      %v8615 = vmul.f32 %v8378, %v8591
      %v8616 = vmul.f32 %v8380, %v8592
      %v8617 = vmul.f32 %v8382, %v8593
      %v8618 = vmul.f32 %v8386, %v8594
      %v8619 = vmul.f32 %v8388, %v8595
      %v8620 = vmul.f32 %v8390, %v8596
      %v8621 = vmul.f32 %v8392, %v8597
      %v8622 = vmul.f32 %v8396, %v8598
      %v8623 = vmul.f32 %v8398, %v8599
      %v8624 = vmul.f32 %v8400, %v8600
      %v8625 = vmul.f32 %v8402, %v8601
      %v8626 = vmul.f32 %v8406, %v8602
      %v8627 = vmul.f32 %v8408, %v8603
      %v8628 = vmul.f32 %v8410, %v8604
      %v8629 = vmul.f32 %v8412, %v8605
      %v8630 = vpack.c.bf16 %v8608, %v8606
      %v8631 = vpack.c.bf16 %v8609, %v8607
      %v8632 = vpack.c.bf16 %v8612, %v8610
      %v8633 = vpack.c.bf16 %v8613, %v8611
      %v8634 = vpack.c.bf16 %v8616, %v8614
      %v8635 = vpack.c.bf16 %v8617, %v8615
      %v8636 = vpack.c.bf16 %v8620, %v8618
      %v8637 = vpack.c.bf16 %v8621, %v8619
      %v8638 = vpack.c.bf16 %v8624, %v8622
      %v8639 = vpack.c.bf16 %v8625, %v8623
      %v8640 = vpack.c.bf16 %v8628, %v8626
      %v8641 = vpack.c.bf16 %v8629, %v8627
      %v8643 = vsel %vm797, %v8264, 0
      %8645 = vmatprep.subr.bf16.mxu0 0
      %8646 = vmatpush1.bf16.msra.mxu0 0
      %8647 = vmatprep.subr.bf16.mxu0 0
      %8648 = vmatpush1.bf16.msra.mxu0 0
      %8649 = vmatprep.subr.bf16.mxu0 %v8641
      %8650 = vmatpush1.bf16.msra.mxu0 %v8640
      %8651 = vmatprep.subr.bf16.mxu0 %v8639
      %8652 = vmatpush1.bf16.msra.mxu0 %v8638
      %8653 = vmatprep.subr.bf16.mxu0 %v8637
      %8654 = vmatpush1.bf16.msra.mxu0 %v8636
      %8655 = vmatprep.subr.bf16.mxu0 %v8635
      %8656 = vmatpush1.bf16.msra.mxu0 %v8634
      %8657 = vmatprep.subr.bf16.mxu0 %v8633
      %8658 = vmatpush1.bf16.msra.mxu0 %v8632
      %8659 = vmatprep.subr.bf16.mxu0 %v8631
      %8660 = vmatpush1.bf16.msra.mxu0 %v8630
      %8661 = vmatprep.subr.bf16.mxu0 0
      %8662 = vmatpush2.bf16.msra.mxu0 0
      %8663 = vmatprep.subr.bf16.mxu0 0
      %8664 = vmatpush2.bf16.msra.mxu0 0
      %8665 = vmatprep.subr.bf16.mxu0 0
      %8666 = vmatpush2.bf16.msra.mxu0 0
      %8667 = vmatprep.subr.bf16.mxu0 0
      %8668 = vmatpush2.bf16.msra.mxu0 0
      %8669 = vmatprep.subr.bf16.mxu0 0
      %8670 = vmatpush2.bf16.msra.mxu0 0
      %8671 = vmatprep.subr.bf16.mxu0 0
      %8672 = vmatpush2.bf16.msra.mxu0 0
      %8673 = vmatprep.subr.bf16.mxu0 0
      %8674 = vmatpush2.bf16.msra.mxu0 0
      %8675 = vmatprep.subr.bf16.mxu0 0
      %8676 = vmatpush2.bf16.msra.mxu0 0
      %8677 = vmatprep.mubr.bf16.mxu0 0
      %8678 = vmatmul.mubr.bf16.gmra.mxu0 %v8643
      %v8679 = vpop.f32.mrf.mxu0
      %v8680 = vadd.f32 0.0, %v8679
      %v8681 = vpop.f32.mrf.mxu0
      %v8682 = vadd.f32 0.0, %v8681
      %v8683 = vpop.f32.mrf.mxu0
      %v8684 = vpop.f32.mrf.mxu0
      %8685 = vdwg.mxu0
      %v8686 = vadd.f32 %v8244, %v8680
      %v8687 = vadd.f32 %v8246, %v8682
      %s8688 = scalar_lea.vmem %s4, 48
      %v8689 = vld [vmem:[%s8688] sm:$0xf]
      %v8690 = vld [vmem:[%s8688 + $0x4] sm:$0xf]
      %v8691 = vld [vmem:[%s8688 + $0x8] sm:$0xf]
      %v8692 = vld [vmem:[%s8688 + $0xc] sm:$0xf]
      %v8693 = vld [vmem:[%s8688 + $0x10] sm:$0xf]
      %v8694 = vld [vmem:[%s8688 + $0x14] sm:$0xf]
      %v8695 = vld [vmem:[%s8688 + $0x18] sm:$0xf]
      %v8696 = vld [vmem:[%s8688 + $0x1c] sm:$0xf]
      %v8697 = vld [vmem:[%s8688 + $0x20] sm:$0xf]
      %v8698 = vld [vmem:[%s8688 + $0x24] sm:$0xf]
      %v8699 = vld [vmem:[%s8688 + $0x28] sm:$0xf]
      %v8700 = vld [vmem:[%s8688 + $0x2c] sm:$0xf]
      %s8701 = scalar_lea.vmem %s5, 4
      %v8702 = vld [vmem:[%s8701] sm:$0x7]
      %v8703 = vpack.c.bf16 %v8686, %v8686
      %v8704 = vpack.c.bf16 %v8687, %v8687
      %v8717 = vunpack.c.l.b16 %v8689
      %v8718 = vunpack.c.l.b16 %v8690
      %v8719 = vunpack.c.l.b16 %v8691
      %v8720 = vunpack.c.l.b16 %v8692
      %v8721 = vunpack.c.l.b16 %v8693
      %v8722 = vunpack.c.l.b16 %v8694
      %v8723 = vunpack.c.l.b16 %v8695
      %v8724 = vunpack.c.l.b16 %v8696
      %v8725 = vunpack.c.l.b16 %v8697
      %v8726 = vunpack.c.l.b16 %v8698
      %v8727 = vunpack.c.l.b16 %v8699
      %v8728 = vunpack.c.l.b16 %v8700
      %v8729 = vpack.c.b16 %v8718, %v8717
      %v8730 = vpack.c.b16 %v8720, %v8719
      %v8731 = vpack.c.b16 %v8722, %v8721
      %v8732 = vpack.c.b16 %v8724, %v8723
      %v8733 = vpack.c.b16 %v8726, %v8725
      %v8734 = vpack.c.b16 %v8728, %v8727
      %v8736 = vsel %vm450, %v8729, 0
      %v8739 = vsel %vm450, %v8730, 0
      %v8742 = vsel %vm450, %v8731, 0
      %v8745 = vsel %vm450, %v8732, 0
      %v8748 = vsel %vm450, %v8733, 0
      %v8751 = vsel %vm450, %v8734, 0
      %v8754 = vsel %vm469, %v8703, 0
      %v8757 = vsel %vm469, %v8704, 0
      %8759 = vmatprep.subr.bf16.mxu0 0
      %8760 = vmatpush1.bf16.msra.mxu0 0
      %8761 = vmatprep.subr.bf16.mxu0 0
      %8762 = vmatpush1.bf16.msra.mxu0 0
      %8763 = vmatprep.subr.bf16.mxu0 0
      %8764 = vmatpush1.bf16.msra.mxu0 0
      %8765 = vmatprep.subr.bf16.mxu0 0
      %8766 = vmatpush1.bf16.msra.mxu0 0
      %8767 = vmatprep.subr.bf16.mxu0 0
      %8768 = vmatpush1.bf16.msra.mxu0 0
      %8769 = vmatprep.subr.bf16.mxu0 0
      %8770 = vmatpush1.bf16.msra.mxu0 0
      %8771 = vmatprep.subr.bf16.mxu0 0
      %8772 = vmatpush1.bf16.msra.mxu0 0
      %8773 = vmatprep.subr.bf16.mxu0 %v8757
      %8774 = vmatpush1.bf16.msra.mxu0 %v8754
      %8775 = vmatprep.subr.bf16.mxu0 0
      %8776 = vmatpush2.bf16.msra.mxu0 0
      %8777 = vmatprep.subr.bf16.mxu0 0
      %8778 = vmatpush2.bf16.msra.mxu0 0
      %8779 = vmatprep.subr.bf16.mxu0 0
      %8780 = vmatpush2.bf16.msra.mxu0 0
      %8781 = vmatprep.subr.bf16.mxu0 0
      %8782 = vmatpush2.bf16.msra.mxu0 0
      %8783 = vmatprep.subr.bf16.mxu0 0
      %8784 = vmatpush2.bf16.msra.mxu0 0
      %8785 = vmatprep.subr.bf16.mxu0 0
      %8786 = vmatpush2.bf16.msra.mxu0 0
      %8787 = vmatprep.subr.bf16.mxu0 0
      %8788 = vmatpush2.bf16.msra.mxu0 0
      %8789 = vmatprep.subr.bf16.mxu0 0
      %8790 = vmatpush2.bf16.msra.mxu0 0
      %8791 = vmatprep.mubr.bf16.mxu0 0
      %8792 = vmatmul.mubr.bf16.gmra.mxu0 %v8736
      %v8793 = vpop.f32.mrf.mxu0
      %v8794 = vadd.f32 0.0, %v8793
      %v8795 = vpop.f32.mrf.mxu0
      %v8796 = vadd.f32 0.0, %v8795
      %v8797 = vpop.f32.mrf.mxu0
      %v8798 = vadd.f32 0.0, %v8797
      %v8799 = vpop.f32.mrf.mxu0
      %v8800 = vadd.f32 0.0, %v8799
      %8801 = vmatprep.mubr.bf16.mxu0 0
      %8802 = vmatmul.mubr.bf16.gmra.mxu0 %v8739
      %v8803 = vpop.f32.mrf.mxu0
      %v8804 = vadd.f32 0.0, %v8803
      %v8805 = vpop.f32.mrf.mxu0
      %v8806 = vadd.f32 0.0, %v8805
      %v8807 = vpop.f32.mrf.mxu0
      %v8808 = vadd.f32 0.0, %v8807
      %v8809 = vpop.f32.mrf.mxu0
      %v8810 = vadd.f32 0.0, %v8809
      %8811 = vmatprep.mubr.bf16.mxu0 0
      %8812 = vmatmul.mubr.bf16.gmra.mxu0 %v8742
      %v8813 = vpop.f32.mrf.mxu0
      %v8814 = vadd.f32 0.0, %v8813
      %v8815 = vpop.f32.mrf.mxu0
      %v8816 = vadd.f32 0.0, %v8815
      %v8817 = vpop.f32.mrf.mxu0
      %v8818 = vadd.f32 0.0, %v8817
      %v8819 = vpop.f32.mrf.mxu0
      %v8820 = vadd.f32 0.0, %v8819
      %8821 = vmatprep.mubr.bf16.mxu0 0
      %8822 = vmatmul.mubr.bf16.gmra.mxu0 %v8745
      %v8823 = vpop.f32.mrf.mxu0
      %v8824 = vadd.f32 0.0, %v8823
      %v8825 = vpop.f32.mrf.mxu0
      %v8826 = vadd.f32 0.0, %v8825
      %v8827 = vpop.f32.mrf.mxu0
      %v8828 = vadd.f32 0.0, %v8827
      %v8829 = vpop.f32.mrf.mxu0
      %v8830 = vadd.f32 0.0, %v8829
      %8831 = vmatprep.mubr.bf16.mxu0 0
      %8832 = vmatmul.mubr.bf16.gmra.mxu0 %v8748
      %v8833 = vpop.f32.mrf.mxu0
      %v8834 = vadd.f32 0.0, %v8833
      %v8835 = vpop.f32.mrf.mxu0
      %v8836 = vadd.f32 0.0, %v8835
      %v8837 = vpop.f32.mrf.mxu0
      %v8838 = vadd.f32 0.0, %v8837
      %v8839 = vpop.f32.mrf.mxu0
      %v8840 = vadd.f32 0.0, %v8839
      %8841 = vmatprep.mubr.bf16.mxu0 0
      %8842 = vmatmul.mubr.bf16.gmra.mxu0 %v8751
      %v8843 = vpop.f32.mrf.mxu0
      %v8844 = vadd.f32 0.0, %v8843
      %v8845 = vpop.f32.mrf.mxu0
      %v8846 = vadd.f32 0.0, %v8845
      %v8847 = vpop.f32.mrf.mxu0
      %v8848 = vadd.f32 0.0, %v8847
      %v8849 = vpop.f32.mrf.mxu0
      %v8850 = vadd.f32 0.0, %v8849
      %8851 = vdwg.mxu0
      %v8852 = vmul.f32 %v8794, %v8794
      %v8853 = vmul.f32 %v8796, %v8796
      %v8854 = vmul.f32 %v8798, %v8798
      %v8855 = vmul.f32 %v8800, %v8800
      %v8856 = vmul.f32 %v8804, %v8804
      %v8857 = vmul.f32 %v8806, %v8806
      %v8858 = vmul.f32 %v8808, %v8808
      %v8859 = vmul.f32 %v8810, %v8810
      %v8860 = vmul.f32 %v8814, %v8814
      %v8861 = vmul.f32 %v8816, %v8816
      %v8862 = vmul.f32 %v8818, %v8818
      %v8863 = vmul.f32 %v8820, %v8820
      %v8864 = vmul.f32 %v8824, %v8824
      %v8865 = vmul.f32 %v8826, %v8826
      %v8866 = vmul.f32 %v8828, %v8828
      %v8867 = vmul.f32 %v8830, %v8830
      %v8868 = vmul.f32 %v8834, %v8834
      %v8869 = vmul.f32 %v8836, %v8836
      %v8870 = vmul.f32 %v8838, %v8838
      %v8871 = vmul.f32 %v8840, %v8840
      %v8872 = vmul.f32 %v8844, %v8844
      %v8873 = vmul.f32 %v8846, %v8846
      %v8874 = vmul.f32 %v8848, %v8848
      %v8875 = vmul.f32 %v8850, %v8850
      %v8876 = vmul.f32 %v8794, %v8852
      %v8877 = vmul.f32 %v8796, %v8853
      %v8878 = vmul.f32 %v8798, %v8854
      %v8879 = vmul.f32 %v8800, %v8855
      %v8880 = vmul.f32 %v8804, %v8856
      %v8881 = vmul.f32 %v8806, %v8857
      %v8882 = vmul.f32 %v8808, %v8858
      %v8883 = vmul.f32 %v8810, %v8859
      %v8884 = vmul.f32 %v8814, %v8860
      %v8885 = vmul.f32 %v8816, %v8861
      %v8886 = vmul.f32 %v8818, %v8862
      %v8887 = vmul.f32 %v8820, %v8863
      %v8888 = vmul.f32 %v8824, %v8864
      %v8889 = vmul.f32 %v8826, %v8865
      %v8890 = vmul.f32 %v8828, %v8866
      %v8891 = vmul.f32 %v8830, %v8867
      %v8892 = vmul.f32 %v8834, %v8868
      %v8893 = vmul.f32 %v8836, %v8869
      %v8894 = vmul.f32 %v8838, %v8870
      %v8895 = vmul.f32 %v8840, %v8871
      %v8896 = vmul.f32 %v8844, %v8872
      %v8897 = vmul.f32 %v8846, %v8873
      %v8898 = vmul.f32 %v8848, %v8874
      %v8899 = vmul.f32 %v8850, %v8875
      %v8900 = vmul.f32 %v8876, 0.044715
      %v8901 = vmul.f32 %v8877, 0.044715
      %v8902 = vmul.f32 %v8878, 0.044715
      %v8903 = vmul.f32 %v8879, 0.044715
      %v8904 = vmul.f32 %v8880, 0.044715
      %v8905 = vmul.f32 %v8881, 0.044715
      %v8906 = vmul.f32 %v8882, 0.044715
      %v8907 = vmul.f32 %v8883, 0.044715
      %v8908 = vmul.f32 %v8884, 0.044715
      %v8909 = vmul.f32 %v8885, 0.044715
      %v8910 = vmul.f32 %v8886, 0.044715
      %v8911 = vmul.f32 %v8887, 0.044715
      %v8912 = vmul.f32 %v8888, 0.044715
      %v8913 = vmul.f32 %v8889, 0.044715
      %v8914 = vmul.f32 %v8890, 0.044715
      %v8915 = vmul.f32 %v8891, 0.044715
      %v8916 = vmul.f32 %v8892, 0.044715
      %v8917 = vmul.f32 %v8893, 0.044715
      %v8918 = vmul.f32 %v8894, 0.044715
      %v8919 = vmul.f32 %v8895, 0.044715
      %v8920 = vmul.f32 %v8896, 0.044715
      %v8921 = vmul.f32 %v8897, 0.044715
      %v8922 = vmul.f32 %v8898, 0.044715
      %v8923 = vmul.f32 %v8899, 0.044715
      %v8924 = vadd.f32 %v8794, %v8900
      %v8925 = vadd.f32 %v8796, %v8901
      %v8926 = vadd.f32 %v8798, %v8902
      %v8927 = vadd.f32 %v8800, %v8903
      %v8928 = vadd.f32 %v8804, %v8904
      %v8929 = vadd.f32 %v8806, %v8905
      %v8930 = vadd.f32 %v8808, %v8906
      %v8931 = vadd.f32 %v8810, %v8907
      %v8932 = vadd.f32 %v8814, %v8908
      %v8933 = vadd.f32 %v8816, %v8909
      %v8934 = vadd.f32 %v8818, %v8910
      %v8935 = vadd.f32 %v8820, %v8911
      %v8936 = vadd.f32 %v8824, %v8912
      %v8937 = vadd.f32 %v8826, %v8913
      %v8938 = vadd.f32 %v8828, %v8914
      %v8939 = vadd.f32 %v8830, %v8915
      %v8940 = vadd.f32 %v8834, %v8916
      %v8941 = vadd.f32 %v8836, %v8917
      %v8942 = vadd.f32 %v8838, %v8918
      %v8943 = vadd.f32 %v8840, %v8919
      %v8944 = vadd.f32 %v8844, %v8920
      %v8945 = vadd.f32 %v8846, %v8921
      %v8946 = vadd.f32 %v8848, %v8922
      %v8947 = vadd.f32 %v8850, %v8923
      %v8948 = vmul.f32 %v8924, 0.7978846
      %v8949 = vmul.f32 %v8925, 0.7978846
      %v8950 = vmul.f32 %v8926, 0.7978846
      %v8951 = vmul.f32 %v8927, 0.7978846
      %v8952 = vmul.f32 %v8928, 0.7978846
      %v8953 = vmul.f32 %v8929, 0.7978846
      %v8954 = vmul.f32 %v8930, 0.7978846
      %v8955 = vmul.f32 %v8931, 0.7978846
      %v8956 = vmul.f32 %v8932, 0.7978846
      %v8957 = vmul.f32 %v8933, 0.7978846
      %v8958 = vmul.f32 %v8934, 0.7978846
      %v8959 = vmul.f32 %v8935, 0.7978846
      %v8960 = vmul.f32 %v8936, 0.7978846
      %v8961 = vmul.f32 %v8937, 0.7978846
      %v8962 = vmul.f32 %v8938, 0.7978846
      %v8963 = vmul.f32 %v8939, 0.7978846
      %v8964 = vmul.f32 %v8940, 0.7978846
      %v8965 = vmul.f32 %v8941, 0.7978846
      %v8966 = vmul.f32 %v8942, 0.7978846
      %v8967 = vmul.f32 %v8943, 0.7978846
      %v8968 = vmul.f32 %v8944, 0.7978846
      %v8969 = vmul.f32 %v8945, 0.7978846
      %v8970 = vmul.f32 %v8946, 0.7978846
      %v8971 = vmul.f32 %v8947, 0.7978846
      %v8972 = vtanh.pop %v8948
      %v8973 = vtanh.pop %v8949
      %v8974 = vtanh.pop %v8950
      %v8975 = vtanh.pop %v8951
      %v8976 = vtanh.pop %v8952
      %v8977 = vtanh.pop %v8953
      %v8978 = vtanh.pop %v8954
      %v8979 = vtanh.pop %v8955
      %v8980 = vtanh.pop %v8956
      %v8981 = vtanh.pop %v8957
      %v8982 = vtanh.pop %v8958
      %v8983 = vtanh.pop %v8959
      %v8984 = vtanh.pop %v8960
      %v8985 = vtanh.pop %v8961
      %v8986 = vtanh.pop %v8962
      %v8987 = vtanh.pop %v8963
      %v8988 = vtanh.pop %v8964
      %v8989 = vtanh.pop %v8965
      %v8990 = vtanh.pop %v8966
      %v8991 = vtanh.pop %v8967
      %v8992 = vtanh.pop %v8968
      %v8993 = vtanh.pop %v8969
      %v8994 = vtanh.pop %v8970
      %v8995 = vtanh.pop %v8971
      %v8996 = vadd.f32 %v8972, 1.0
      %v8997 = vadd.f32 %v8973, 1.0
      %v8998 = vadd.f32 %v8974, 1.0
      %v8999 = vadd.f32 %v8975, 1.0
      %v9000 = vadd.f32 %v8976, 1.0
      %v9001 = vadd.f32 %v8977, 1.0
      %v9002 = vadd.f32 %v8978, 1.0
      %v9003 = vadd.f32 %v8979, 1.0
      %v9004 = vadd.f32 %v8980, 1.0
      %v9005 = vadd.f32 %v8981, 1.0
      %v9006 = vadd.f32 %v8982, 1.0
      %v9007 = vadd.f32 %v8983, 1.0
      %v9008 = vadd.f32 %v8984, 1.0
      %v9009 = vadd.f32 %v8985, 1.0
      %v9010 = vadd.f32 %v8986, 1.0
      %v9011 = vadd.f32 %v8987, 1.0
      %v9012 = vadd.f32 %v8988, 1.0
      %v9013 = vadd.f32 %v8989, 1.0
      %v9014 = vadd.f32 %v8990, 1.0
      %v9015 = vadd.f32 %v8991, 1.0
      %v9016 = vadd.f32 %v8992, 1.0
      %v9017 = vadd.f32 %v8993, 1.0
      %v9018 = vadd.f32 %v8994, 1.0
      %v9019 = vadd.f32 %v8995, 1.0
      %v9020 = vmul.f32 %v8996, 0.5
      %v9021 = vmul.f32 %v8997, 0.5
      %v9022 = vmul.f32 %v8998, 0.5
      %v9023 = vmul.f32 %v8999, 0.5
      %v9024 = vmul.f32 %v9000, 0.5
      %v9025 = vmul.f32 %v9001, 0.5
      %v9026 = vmul.f32 %v9002, 0.5
      %v9027 = vmul.f32 %v9003, 0.5
      %v9028 = vmul.f32 %v9004, 0.5
      %v9029 = vmul.f32 %v9005, 0.5
      %v9030 = vmul.f32 %v9006, 0.5
      %v9031 = vmul.f32 %v9007, 0.5
      %v9032 = vmul.f32 %v9008, 0.5
      %v9033 = vmul.f32 %v9009, 0.5
      %v9034 = vmul.f32 %v9010, 0.5
      %v9035 = vmul.f32 %v9011, 0.5
      %v9036 = vmul.f32 %v9012, 0.5
      %v9037 = vmul.f32 %v9013, 0.5
      %v9038 = vmul.f32 %v9014, 0.5
      %v9039 = vmul.f32 %v9015, 0.5
      %v9040 = vmul.f32 %v9016, 0.5
      %v9041 = vmul.f32 %v9017, 0.5
      %v9042 = vmul.f32 %v9018, 0.5
      %v9043 = vmul.f32 %v9019, 0.5
      %v9044 = vmul.f32 %v8794, %v9020
      %v9045 = vmul.f32 %v8796, %v9021
      %v9046 = vmul.f32 %v8798, %v9022
      %v9047 = vmul.f32 %v8800, %v9023
      %v9048 = vmul.f32 %v8804, %v9024
      %v9049 = vmul.f32 %v8806, %v9025
      %v9050 = vmul.f32 %v8808, %v9026
      %v9051 = vmul.f32 %v8810, %v9027
      %v9052 = vmul.f32 %v8814, %v9028
      %v9053 = vmul.f32 %v8816, %v9029
      %v9054 = vmul.f32 %v8818, %v9030
      %v9055 = vmul.f32 %v8820, %v9031
      %v9056 = vmul.f32 %v8824, %v9032
      %v9057 = vmul.f32 %v8826, %v9033
      %v9058 = vmul.f32 %v8828, %v9034
      %v9059 = vmul.f32 %v8830, %v9035
      %v9060 = vmul.f32 %v8834, %v9036
      %v9061 = vmul.f32 %v8836, %v9037
      %v9062 = vmul.f32 %v8838, %v9038
      %v9063 = vmul.f32 %v8840, %v9039
      %v9064 = vmul.f32 %v8844, %v9040
      %v9065 = vmul.f32 %v8846, %v9041
      %v9066 = vmul.f32 %v8848, %v9042
      %v9067 = vmul.f32 %v8850, %v9043
      %v9068 = vpack.c.bf16 %v9046, %v9044
      %v9069 = vpack.c.bf16 %v9047, %v9045
      %v9070 = vpack.c.bf16 %v9050, %v9048
      %v9071 = vpack.c.bf16 %v9051, %v9049
      %v9072 = vpack.c.bf16 %v9054, %v9052
      %v9073 = vpack.c.bf16 %v9055, %v9053
      %v9074 = vpack.c.bf16 %v9058, %v9056
      %v9075 = vpack.c.bf16 %v9059, %v9057
      %v9076 = vpack.c.bf16 %v9062, %v9060
      %v9077 = vpack.c.bf16 %v9063, %v9061
      %v9078 = vpack.c.bf16 %v9066, %v9064
      %v9079 = vpack.c.bf16 %v9067, %v9065
      %v9081 = vsel %vm797, %v8702, 0
      %9083 = vmatprep.subr.bf16.mxu0 0
      %9084 = vmatpush1.bf16.msra.mxu0 0
      %9085 = vmatprep.subr.bf16.mxu0 0
      %9086 = vmatpush1.bf16.msra.mxu0 0
      %9087 = vmatprep.subr.bf16.mxu0 %v9079
      %9088 = vmatpush1.bf16.msra.mxu0 %v9078
      %9089 = vmatprep.subr.bf16.mxu0 %v9077
      %9090 = vmatpush1.bf16.msra.mxu0 %v9076
      %9091 = vmatprep.subr.bf16.mxu0 %v9075
      %9092 = vmatpush1.bf16.msra.mxu0 %v9074
      %9093 = vmatprep.subr.bf16.mxu0 %v9073
      %9094 = vmatpush1.bf16.msra.mxu0 %v9072
      %9095 = vmatprep.subr.bf16.mxu0 %v9071
      %9096 = vmatpush1.bf16.msra.mxu0 %v9070
      %9097 = vmatprep.subr.bf16.mxu0 %v9069
      %9098 = vmatpush1.bf16.msra.mxu0 %v9068
      %9099 = vmatprep.subr.bf16.mxu0 0
      %9100 = vmatpush2.bf16.msra.mxu0 0
      %9101 = vmatprep.subr.bf16.mxu0 0
      %9102 = vmatpush2.bf16.msra.mxu0 0
      %9103 = vmatprep.subr.bf16.mxu0 0
      %9104 = vmatpush2.bf16.msra.mxu0 0
      %9105 = vmatprep.subr.bf16.mxu0 0
      %9106 = vmatpush2.bf16.msra.mxu0 0
      %9107 = vmatprep.subr.bf16.mxu0 0
      %9108 = vmatpush2.bf16.msra.mxu0 0
      %9109 = vmatprep.subr.bf16.mxu0 0
      %9110 = vmatpush2.bf16.msra.mxu0 0
      %9111 = vmatprep.subr.bf16.mxu0 0
      %9112 = vmatpush2.bf16.msra.mxu0 0
      %9113 = vmatprep.subr.bf16.mxu0 0
      %9114 = vmatpush2.bf16.msra.mxu0 0
      %9115 = vmatprep.mubr.bf16.mxu0 0
      %9116 = vmatmul.mubr.bf16.gmra.mxu0 %v9081
      %v9117 = vpop.f32.mrf.mxu0
      %v9118 = vadd.f32 0.0, %v9117
      %v9119 = vpop.f32.mrf.mxu0
      %v9120 = vadd.f32 0.0, %v9119
      %v9121 = vpop.f32.mrf.mxu0
      %v9122 = vpop.f32.mrf.mxu0
      %9123 = vdwg.mxu0
      %v9124 = vadd.f32 %v8686, %v9118
      %v9125 = vadd.f32 %v8687, %v9120
      %v9126 = vld [vmem:[%s4] sm:$0xf]
      %v9127 = vld [vmem:[%s4 + $0x4] sm:$0xf]
      %v9128 = vld [vmem:[%s4 + $0x8] sm:$0xf]
      %v9129 = vld [vmem:[%s4 + $0xc] sm:$0xf]
      %v9130 = vld [vmem:[%s4 + $0x10] sm:$0xf]
      %v9131 = vld [vmem:[%s4 + $0x14] sm:$0xf]
      %v9132 = vld [vmem:[%s4 + $0x18] sm:$0xf]
      %v9133 = vld [vmem:[%s4 + $0x1c] sm:$0xf]
      %v9134 = vld [vmem:[%s4 + $0x20] sm:$0xf]
      %v9135 = vld [vmem:[%s4 + $0x24] sm:$0xf]
      %v9136 = vld [vmem:[%s4 + $0x28] sm:$0xf]
      %v9137 = vld [vmem:[%s4 + $0x2c] sm:$0xf]
      %v9138 = vld [vmem:[%s5] sm:$0x7]
      %v9139 = vpack.c.bf16 %v9124, %v9124
      %v9140 = vpack.c.bf16 %v9125, %v9125
      %v9153 = vunpack.c.l.b16 %v9126
      %v9154 = vunpack.c.l.b16 %v9127
      %v9155 = vunpack.c.l.b16 %v9128
      %v9156 = vunpack.c.l.b16 %v9129
      %v9157 = vunpack.c.l.b16 %v9130
      %v9158 = vunpack.c.l.b16 %v9131
      %v9159 = vunpack.c.l.b16 %v9132
      %v9160 = vunpack.c.l.b16 %v9133
      %v9161 = vunpack.c.l.b16 %v9134
      %v9162 = vunpack.c.l.b16 %v9135
      %v9163 = vunpack.c.l.b16 %v9136
      %v9164 = vunpack.c.l.b16 %v9137
      %v9165 = vpack.c.b16 %v9154, %v9153
      %v9166 = vpack.c.b16 %v9156, %v9155
      %v9167 = vpack.c.b16 %v9158, %v9157
      %v9168 = vpack.c.b16 %v9160, %v9159
      %v9169 = vpack.c.b16 %v9162, %v9161
      %v9170 = vpack.c.b16 %v9164, %v9163
      %v9172 = vsel %vm450, %v9165, 0
      %v9175 = vsel %vm450, %v9166, 0
      %v9178 = vsel %vm450, %v9167, 0
      %v9181 = vsel %vm450, %v9168, 0
      %v9184 = vsel %vm450, %v9169, 0
      %v9187 = vsel %vm450, %v9170, 0
      %v9190 = vsel %vm469, %v9139, 0
      %v9193 = vsel %vm469, %v9140, 0
      %9195 = vmatprep.subr.bf16.mxu0 0
      %9196 = vmatpush1.bf16.msra.mxu0 0
      %9197 = vmatprep.subr.bf16.mxu0 0
      %9198 = vmatpush1.bf16.msra.mxu0 0
      %9199 = vmatprep.subr.bf16.mxu0 0
      %9200 = vmatpush1.bf16.msra.mxu0 0
      %9201 = vmatprep.subr.bf16.mxu0 0
      %9202 = vmatpush1.bf16.msra.mxu0 0
      %9203 = vmatprep.subr.bf16.mxu0 0
      %9204 = vmatpush1.bf16.msra.mxu0 0
      %9205 = vmatprep.subr.bf16.mxu0 0
      %9206 = vmatpush1.bf16.msra.mxu0 0
      %9207 = vmatprep.subr.bf16.mxu0 0
      %9208 = vmatpush1.bf16.msra.mxu0 0
      %9209 = vmatprep.subr.bf16.mxu0 %v9193
      %9210 = vmatpush1.bf16.msra.mxu0 %v9190
      %9211 = vmatprep.subr.bf16.mxu0 0
      %9212 = vmatpush2.bf16.msra.mxu0 0
      %9213 = vmatprep.subr.bf16.mxu0 0
      %9214 = vmatpush2.bf16.msra.mxu0 0
      %9215 = vmatprep.subr.bf16.mxu0 0
      %9216 = vmatpush2.bf16.msra.mxu0 0
      %9217 = vmatprep.subr.bf16.mxu0 0
      %9218 = vmatpush2.bf16.msra.mxu0 0
      %9219 = vmatprep.subr.bf16.mxu0 0
      %9220 = vmatpush2.bf16.msra.mxu0 0
      %9221 = vmatprep.subr.bf16.mxu0 0
      %9222 = vmatpush2.bf16.msra.mxu0 0
      %9223 = vmatprep.subr.bf16.mxu0 0
      %9224 = vmatpush2.bf16.msra.mxu0 0
      %9225 = vmatprep.subr.bf16.mxu0 0
      %9226 = vmatpush2.bf16.msra.mxu0 0
      %9227 = vmatprep.mubr.bf16.mxu0 0
      %9228 = vmatmul.mubr.bf16.gmra.mxu0 %v9172
      %v9229 = vpop.f32.mrf.mxu0
      %v9230 = vadd.f32 0.0, %v9229
      %v9231 = vpop.f32.mrf.mxu0
      %v9232 = vadd.f32 0.0, %v9231
      %v9233 = vpop.f32.mrf.mxu0
      %v9234 = vadd.f32 0.0, %v9233
      %v9235 = vpop.f32.mrf.mxu0
      %v9236 = vadd.f32 0.0, %v9235
      %9237 = vmatprep.mubr.bf16.mxu0 0
      %9238 = vmatmul.mubr.bf16.gmra.mxu0 %v9175
      %v9239 = vpop.f32.mrf.mxu0
      %v9240 = vadd.f32 0.0, %v9239
      %v9241 = vpop.f32.mrf.mxu0
      %v9242 = vadd.f32 0.0, %v9241
      %v9243 = vpop.f32.mrf.mxu0
      %v9244 = vadd.f32 0.0, %v9243
      %v9245 = vpop.f32.mrf.mxu0
      %v9246 = vadd.f32 0.0, %v9245
      %9247 = vmatprep.mubr.bf16.mxu0 0
      %9248 = vmatmul.mubr.bf16.gmra.mxu0 %v9178
      %v9249 = vpop.f32.mrf.mxu0
      %v9250 = vadd.f32 0.0, %v9249
      %v9251 = vpop.f32.mrf.mxu0
      %v9252 = vadd.f32 0.0, %v9251
      %v9253 = vpop.f32.mrf.mxu0
      %v9254 = vadd.f32 0.0, %v9253
      %v9255 = vpop.f32.mrf.mxu0
      %v9256 = vadd.f32 0.0, %v9255
      %9257 = vmatprep.mubr.bf16.mxu0 0
      %9258 = vmatmul.mubr.bf16.gmra.mxu0 %v9181
      %v9259 = vpop.f32.mrf.mxu0
      %v9260 = vadd.f32 0.0, %v9259
      %v9261 = vpop.f32.mrf.mxu0
      %v9262 = vadd.f32 0.0, %v9261
      %v9263 = vpop.f32.mrf.mxu0
      %v9264 = vadd.f32 0.0, %v9263
      %v9265 = vpop.f32.mrf.mxu0
      %v9266 = vadd.f32 0.0, %v9265
      %9267 = vmatprep.mubr.bf16.mxu0 0
      %9268 = vmatmul.mubr.bf16.gmra.mxu0 %v9184
      %v9269 = vpop.f32.mrf.mxu0
      %v9270 = vadd.f32 0.0, %v9269
      %v9271 = vpop.f32.mrf.mxu0
      %v9272 = vadd.f32 0.0, %v9271
      %v9273 = vpop.f32.mrf.mxu0
      %v9274 = vadd.f32 0.0, %v9273
      %v9275 = vpop.f32.mrf.mxu0
      %v9276 = vadd.f32 0.0, %v9275
      %9277 = vmatprep.mubr.bf16.mxu0 0
      %9278 = vmatmul.mubr.bf16.gmra.mxu0 %v9187
      %v9279 = vpop.f32.mrf.mxu0
      %v9280 = vadd.f32 0.0, %v9279
      %v9281 = vpop.f32.mrf.mxu0
      %v9282 = vadd.f32 0.0, %v9281
      %v9283 = vpop.f32.mrf.mxu0
      %v9284 = vadd.f32 0.0, %v9283
      %v9285 = vpop.f32.mrf.mxu0
      %v9286 = vadd.f32 0.0, %v9285
      %9287 = vdwg.mxu0
      %v9288 = vmul.f32 %v9230, %v9230
      %v9289 = vmul.f32 %v9232, %v9232
      %v9290 = vmul.f32 %v9234, %v9234
      %v9291 = vmul.f32 %v9236, %v9236
      %v9292 = vmul.f32 %v9240, %v9240
      %v9293 = vmul.f32 %v9242, %v9242
      %v9294 = vmul.f32 %v9244, %v9244
      %v9295 = vmul.f32 %v9246, %v9246
      %v9296 = vmul.f32 %v9250, %v9250
      %v9297 = vmul.f32 %v9252, %v9252
      %v9298 = vmul.f32 %v9254, %v9254
      %v9299 = vmul.f32 %v9256, %v9256
      %v9300 = vmul.f32 %v9260, %v9260
      %v9301 = vmul.f32 %v9262, %v9262
      %v9302 = vmul.f32 %v9264, %v9264
      %v9303 = vmul.f32 %v9266, %v9266
      %v9304 = vmul.f32 %v9270, %v9270
      %v9305 = vmul.f32 %v9272, %v9272
      %v9306 = vmul.f32 %v9274, %v9274
      %v9307 = vmul.f32 %v9276, %v9276
      %v9308 = vmul.f32 %v9280, %v9280
      %v9309 = vmul.f32 %v9282, %v9282
      %v9310 = vmul.f32 %v9284, %v9284
      %v9311 = vmul.f32 %v9286, %v9286
      %v9312 = vmul.f32 %v9230, %v9288
      %v9313 = vmul.f32 %v9232, %v9289
      %v9314 = vmul.f32 %v9234, %v9290
      %v9315 = vmul.f32 %v9236, %v9291
      %v9316 = vmul.f32 %v9240, %v9292
      %v9317 = vmul.f32 %v9242, %v9293
      %v9318 = vmul.f32 %v9244, %v9294
      %v9319 = vmul.f32 %v9246, %v9295
      %v9320 = vmul.f32 %v9250, %v9296
      %v9321 = vmul.f32 %v9252, %v9297
      %v9322 = vmul.f32 %v9254, %v9298
      %v9323 = vmul.f32 %v9256, %v9299
      %v9324 = vmul.f32 %v9260, %v9300
      %v9325 = vmul.f32 %v9262, %v9301
      %v9326 = vmul.f32 %v9264, %v9302
      %v9327 = vmul.f32 %v9266, %v9303
      %v9328 = vmul.f32 %v9270, %v9304
      %v9329 = vmul.f32 %v9272, %v9305
      %v9330 = vmul.f32 %v9274, %v9306
      %v9331 = vmul.f32 %v9276, %v9307
      %v9332 = vmul.f32 %v9280, %v9308
      %v9333 = vmul.f32 %v9282, %v9309
      %v9334 = vmul.f32 %v9284, %v9310
      %v9335 = vmul.f32 %v9286, %v9311
      %v9336 = vmul.f32 %v9312, 0.044715
      %v9337 = vmul.f32 %v9313, 0.044715
      %v9338 = vmul.f32 %v9314, 0.044715
      %v9339 = vmul.f32 %v9315, 0.044715
      %v9340 = vmul.f32 %v9316, 0.044715
      %v9341 = vmul.f32 %v9317, 0.044715
      %v9342 = vmul.f32 %v9318, 0.044715
      %v9343 = vmul.f32 %v9319, 0.044715
      %v9344 = vmul.f32 %v9320, 0.044715
      %v9345 = vmul.f32 %v9321, 0.044715
      %v9346 = vmul.f32 %v9322, 0.044715
      %v9347 = vmul.f32 %v9323, 0.044715
      %v9348 = vmul.f32 %v9324, 0.044715
      %v9349 = vmul.f32 %v9325, 0.044715
      %v9350 = vmul.f32 %v9326, 0.044715
      %v9351 = vmul.f32 %v9327, 0.044715
      %v9352 = vmul.f32 %v9328, 0.044715
      %v9353 = vmul.f32 %v9329, 0.044715
      %v9354 = vmul.f32 %v9330, 0.044715
      %v9355 = vmul.f32 %v9331, 0.044715
      %v9356 = vmul.f32 %v9332, 0.044715
      %v9357 = vmul.f32 %v9333, 0.044715
      %v9358 = vmul.f32 %v9334, 0.044715
      %v9359 = vmul.f32 %v9335, 0.044715
      %v9360 = vadd.f32 %v9230, %v9336
      %v9361 = vadd.f32 %v9232, %v9337
      %v9362 = vadd.f32 %v9234, %v9338
      %v9363 = vadd.f32 %v9236, %v9339
      %v9364 = vadd.f32 %v9240, %v9340
      %v9365 = vadd.f32 %v9242, %v9341
      %v9366 = vadd.f32 %v9244, %v9342
      %v9367 = vadd.f32 %v9246, %v9343
      %v9368 = vadd.f32 %v9250, %v9344
      %v9369 = vadd.f32 %v9252, %v9345
      %v9370 = vadd.f32 %v9254, %v9346
      %v9371 = vadd.f32 %v9256, %v9347
      %v9372 = vadd.f32 %v9260, %v9348
      %v9373 = vadd.f32 %v9262, %v9349
      %v9374 = vadd.f32 %v9264, %v9350
      %v9375 = vadd.f32 %v9266, %v9351
      %v9376 = vadd.f32 %v9270, %v9352
      %v9377 = vadd.f32 %v9272, %v9353
      %v9378 = vadd.f32 %v9274, %v9354
      %v9379 = vadd.f32 %v9276, %v9355
      %v9380 = vadd.f32 %v9280, %v9356
      %v9381 = vadd.f32 %v9282, %v9357
      %v9382 = vadd.f32 %v9284, %v9358
      %v9383 = vadd.f32 %v9286, %v9359
      %v9384 = vmul.f32 %v9360, 0.7978846
      %v9385 = vmul.f32 %v9361, 0.7978846
      %v9386 = vmul.f32 %v9362, 0.7978846
      %v9387 = vmul.f32 %v9363, 0.7978846
      %v9388 = vmul.f32 %v9364, 0.7978846
      %v9389 = vmul.f32 %v9365, 0.7978846
      %v9390 = vmul.f32 %v9366, 0.7978846
      %v9391 = vmul.f32 %v9367, 0.7978846
      %v9392 = vmul.f32 %v9368, 0.7978846
      %v9393 = vmul.f32 %v9369, 0.7978846
      %v9394 = vmul.f32 %v9370, 0.7978846
      %v9395 = vmul.f32 %v9371, 0.7978846
      %v9396 = vmul.f32 %v9372, 0.7978846
      %v9397 = vmul.f32 %v9373, 0.7978846
      %v9398 = vmul.f32 %v9374, 0.7978846
      %v9399 = vmul.f32 %v9375, 0.7978846
      %v9400 = vmul.f32 %v9376, 0.7978846
      %v9401 = vmul.f32 %v9377, 0.7978846
      %v9402 = vmul.f32 %v9378, 0.7978846
      %v9403 = vmul.f32 %v9379, 0.7978846
      %v9404 = vmul.f32 %v9380, 0.7978846
      %v9405 = vmul.f32 %v9381, 0.7978846
      %v9406 = vmul.f32 %v9382, 0.7978846
      %v9407 = vmul.f32 %v9383, 0.7978846
      %v9408 = vtanh.pop %v9384
      %v9409 = vtanh.pop %v9385
      %v9410 = vtanh.pop %v9386
      %v9411 = vtanh.pop %v9387
      %v9412 = vtanh.pop %v9388
      %v9413 = vtanh.pop %v9389
      %v9414 = vtanh.pop %v9390
      %v9415 = vtanh.pop %v9391
      %v9416 = vtanh.pop %v9392
      %v9417 = vtanh.pop %v9393
      %v9418 = vtanh.pop %v9394
      %v9419 = vtanh.pop %v9395
      %v9420 = vtanh.pop %v9396
      %v9421 = vtanh.pop %v9397
      %v9422 = vtanh.pop %v9398
      %v9423 = vtanh.pop %v9399
      %v9424 = vtanh.pop %v9400
      %v9425 = vtanh.pop %v9401
      %v9426 = vtanh.pop %v9402
      %v9427 = vtanh.pop %v9403
      %v9428 = vtanh.pop %v9404
      %v9429 = vtanh.pop %v9405
      %v9430 = vtanh.pop %v9406
      %v9431 = vtanh.pop %v9407
      %v9432 = vadd.f32 %v9408, 1.0
      %v9433 = vadd.f32 %v9409, 1.0
      %v9434 = vadd.f32 %v9410, 1.0
      %v9435 = vadd.f32 %v9411, 1.0
      %v9436 = vadd.f32 %v9412, 1.0
      %v9437 = vadd.f32 %v9413, 1.0
      %v9438 = vadd.f32 %v9414, 1.0
      %v9439 = vadd.f32 %v9415, 1.0
      %v9440 = vadd.f32 %v9416, 1.0
      %v9441 = vadd.f32 %v9417, 1.0
      %v9442 = vadd.f32 %v9418, 1.0
      %v9443 = vadd.f32 %v9419, 1.0
      %v9444 = vadd.f32 %v9420, 1.0
      %v9445 = vadd.f32 %v9421, 1.0
      %v9446 = vadd.f32 %v9422, 1.0
      %v9447 = vadd.f32 %v9423, 1.0
      %v9448 = vadd.f32 %v9424, 1.0
      %v9449 = vadd.f32 %v9425, 1.0
      %v9450 = vadd.f32 %v9426, 1.0
      %v9451 = vadd.f32 %v9427, 1.0
      %v9452 = vadd.f32 %v9428, 1.0
      %v9453 = vadd.f32 %v9429, 1.0
      %v9454 = vadd.f32 %v9430, 1.0
      %v9455 = vadd.f32 %v9431, 1.0
      %v9456 = vmul.f32 %v9432, 0.5
      %v9457 = vmul.f32 %v9433, 0.5
      %v9458 = vmul.f32 %v9434, 0.5
      %v9459 = vmul.f32 %v9435, 0.5
      %v9460 = vmul.f32 %v9436, 0.5
      %v9461 = vmul.f32 %v9437, 0.5
      %v9462 = vmul.f32 %v9438, 0.5
      %v9463 = vmul.f32 %v9439, 0.5
      %v9464 = vmul.f32 %v9440, 0.5
      %v9465 = vmul.f32 %v9441, 0.5
      %v9466 = vmul.f32 %v9442, 0.5
      %v9467 = vmul.f32 %v9443, 0.5
      %v9468 = vmul.f32 %v9444, 0.5
      %v9469 = vmul.f32 %v9445, 0.5
      %v9470 = vmul.f32 %v9446, 0.5
      %v9471 = vmul.f32 %v9447, 0.5
      %v9472 = vmul.f32 %v9448, 0.5
      %v9473 = vmul.f32 %v9449, 0.5
      %v9474 = vmul.f32 %v9450, 0.5
      %v9475 = vmul.f32 %v9451, 0.5
      %v9476 = vmul.f32 %v9452, 0.5
      %v9477 = vmul.f32 %v9453, 0.5
      %v9478 = vmul.f32 %v9454, 0.5
      %v9479 = vmul.f32 %v9455, 0.5
      %v9480 = vmul.f32 %v9230, %v9456
      %v9481 = vmul.f32 %v9232, %v9457
      %v9482 = vmul.f32 %v9234, %v9458
      %v9483 = vmul.f32 %v9236, %v9459
      %v9484 = vmul.f32 %v9240, %v9460
      %v9485 = vmul.f32 %v9242, %v9461
      %v9486 = vmul.f32 %v9244, %v9462
      %v9487 = vmul.f32 %v9246, %v9463
      %v9488 = vmul.f32 %v9250, %v9464
      %v9489 = vmul.f32 %v9252, %v9465
      %v9490 = vmul.f32 %v9254, %v9466
      %v9491 = vmul.f32 %v9256, %v9467
      %v9492 = vmul.f32 %v9260, %v9468
      %v9493 = vmul.f32 %v9262, %v9469
      %v9494 = vmul.f32 %v9264, %v9470
      %v9495 = vmul.f32 %v9266, %v9471
      %v9496 = vmul.f32 %v9270, %v9472
      %v9497 = vmul.f32 %v9272, %v9473
      %v9498 = vmul.f32 %v9274, %v9474
      %v9499 = vmul.f32 %v9276, %v9475
      %v9500 = vmul.f32 %v9280, %v9476
      %v9501 = vmul.f32 %v9282, %v9477
      %v9502 = vmul.f32 %v9284, %v9478
      %v9503 = vmul.f32 %v9286, %v9479
      %v9504 = vpack.c.bf16 %v9482, %v9480
      %v9505 = vpack.c.bf16 %v9483, %v9481
      %v9506 = vpack.c.bf16 %v9486, %v9484
      %v9507 = vpack.c.bf16 %v9487, %v9485
      %v9508 = vpack.c.bf16 %v9490, %v9488
      %v9509 = vpack.c.bf16 %v9491, %v9489
      %v9510 = vpack.c.bf16 %v9494, %v9492
      %v9511 = vpack.c.bf16 %v9495, %v9493
      %v9512 = vpack.c.bf16 %v9498, %v9496
      %v9513 = vpack.c.bf16 %v9499, %v9497
      %v9514 = vpack.c.bf16 %v9502, %v9500
      %v9515 = vpack.c.bf16 %v9503, %v9501
      %v9517 = vsel %vm797, %v9138, 0
      %9519 = vmatprep.subr.bf16.mxu0 0
      %9520 = vmatpush1.bf16.msra.mxu0 0
      %9521 = vmatprep.subr.bf16.mxu0 0
      %9522 = vmatpush1.bf16.msra.mxu0 0
      %9523 = vmatprep.subr.bf16.mxu0 %v9515
      %9524 = vmatpush1.bf16.msra.mxu0 %v9514
      %9525 = vmatprep.subr.bf16.mxu0 %v9513
      %9526 = vmatpush1.bf16.msra.mxu0 %v9512
      %9527 = vmatprep.subr.bf16.mxu0 %v9511
      %9528 = vmatpush1.bf16.msra.mxu0 %v9510
      %9529 = vmatprep.subr.bf16.mxu0 %v9509
      %9530 = vmatpush1.bf16.msra.mxu0 %v9508
      %9531 = vmatprep.subr.bf16.mxu0 %v9507
      %9532 = vmatpush1.bf16.msra.mxu0 %v9506
      %9533 = vmatprep.subr.bf16.mxu0 %v9505
      %9534 = vmatpush1.bf16.msra.mxu0 %v9504
      %9535 = vmatprep.subr.bf16.mxu0 0
      %9536 = vmatpush2.bf16.msra.mxu0 0
      %9537 = vmatprep.subr.bf16.mxu0 0
      %9538 = vmatpush2.bf16.msra.mxu0 0
      %9539 = vmatprep.subr.bf16.mxu0 0
      %9540 = vmatpush2.bf16.msra.mxu0 0
      %9541 = vmatprep.subr.bf16.mxu0 0
      %9542 = vmatpush2.bf16.msra.mxu0 0
      %9543 = vmatprep.subr.bf16.mxu0 0
      %9544 = vmatpush2.bf16.msra.mxu0 0
      %9545 = vmatprep.subr.bf16.mxu0 0
      %9546 = vmatpush2.bf16.msra.mxu0 0
      %9547 = vmatprep.subr.bf16.mxu0 0
      %9548 = vmatpush2.bf16.msra.mxu0 0
      %9549 = vmatprep.subr.bf16.mxu0 0
      %9550 = vmatpush2.bf16.msra.mxu0 0
      %9551 = vmatprep.mubr.bf16.mxu0 0
      %9552 = vmatmul.mubr.bf16.gmra.mxu0 %v9517
      %v9553 = vpop.f32.mrf.mxu0
      %v9554 = vadd.f32 0.0, %v9553
      %v9555 = vpop.f32.mrf.mxu0
      %v9556 = vadd.f32 0.0, %v9555
      %v9557 = vpop.f32.mrf.mxu0
      %v9558 = vpop.f32.mrf.mxu0
      %9559 = vdwg.mxu0
      %v9560 = vadd.f32 %v9124, %v9554
      %v9561 = vadd.f32 %v9125, %v9556
      %9562 = vst [vmem:[%s343] sm:$0x3f] %v9560
      %9563 = vst [vmem:[%s343 + $0x8] sm:$0x3f] %v9561
      %s9564 = smul.u32 2, %s24
      %p9565 = scmp.lt.s32.totalorder %s23, 1
      %s9566 = scalar_select %p9565, %s23, 1
      %p9567 = scmp.lt.s32.totalorder %s9564, 1
      %s9568 = scalar_select %p9567, %s9564, 1
      %s9569 = smul.addr %s9566, 2
      %s9570 = sadd.s32 %s9568, %s9569
      %s9571 = smul.addr %s9570, 8
      %s9572 = scalar_lea.vmem %s8, %s9571
      // Predicated region
      $region53: #{vimunet_forward.2} parent=51 // pred_check
        %p9573 = pneg %p226
      $region54: #{vimunet_forward.2} parent=51 // pred_check_branch
        %9575 = sbr.rel (%p9573) target = $region56
      $region55: #{vimunet_forward.2} parent=51 // pred_region
        %s9576 = smul.u32 2, %s24
      $region56: #{vimunet_forward.2} parent=51 // pred_fallthru
        _
    $region52: #{vimunet_forward.2} parent=5 // pred_fallthru
      _
    %p9577 = scmp.le.s32.totalorder 2, %s14
    // Predicated region
    $region57: #{vimunet_forward.2} parent=5 // pred_check
      %p9578 = pneg %p9577
    $region58: #{vimunet_forward.2} parent=5 // pred_check_branch
      %9580 = sbr.rel (%p9578) target = $region60
    $region59: #{vimunet_forward.2} parent=5 // pred_region
      %s9581 = ssub.s32 %s14, 2
      // Predicated region
      $region61: #{vimunet_forward.2} parent=59 // pred_check
        %p9582 = pneg %p232
      $region62: #{vimunet_forward.2} parent=59 // pred_check_branch
        %9584 = sbr.rel (%p9582) target = $region64
      $region63: #{vimunet_forward.2} parent=59 // pred_region
        %s9585 = smul.u32 2, %s26
        %p9586 = scmp.lt.s32.totalorder %s25, 1
        %s9587 = scalar_select %p9586, %s25, 1
        %p9588 = scmp.lt.s32.totalorder %s9585, 1
        %s9589 = scalar_select %p9588, %s9585, 1
        %s9590 = smul.addr %s9587, 2
        %s9591 = sadd.s32 %s9589, %s9590
        %s9592 = smul.addr %s9591, 8
        %s9593 = scalar_lea.vmem %s8, %s9592
      $region64: #{vimunet_forward.2} parent=59 // pred_fallthru
        _
    $region60: #{vimunet_forward.2} parent=5 // pred_fallthru
      _
  $region6: #{vimunet_forward.2} parent=0 // loop_footer
    %s18 = sadd.s32 1, %s14
  $region7: #{vimunet_forward.2} parent=0 // loop_footer_branch
    %13 = sbr.rel target = $region3
  $region8: #{vimunet_forward.2} parent=0 // loop_exit
    _

</llo_original>
